<compile_context>
chip_gen: v7x
topology: tpu7x:2x2x1
jax: 0.10.0
libtpu: 0.0.40
codegen_flags: <defaults>
</compile_context>

<pallas_src>
import functools

import jax
import jax.numpy as jnp
from jax import lax
from jax.experimental import pallas as pl
from jax.experimental.pallas import tpu as pltpu

IMG_SIZE = 256.0
NUM_JOINTS = 22          # 1 global orient + 21 body joints (SMPL-H)
NUM_BETAS = 10
EPS_NORM_SQ = 1e-24      # (torch F.normalize eps=1e-12)^2 ; max(||v||,eps)=sqrt(max(s,eps^2))
EPS_CAM = 1e-9

# Row offsets inside the packed (33, B) per-sample array.
_R_CAM_S, _R_CAM_X, _R_CAM_Y = 0, 1, 2
_R_BOX = 3
_R_BC_X, _R_BC_Y = 4, 5
_R_OC_X, _R_OC_Y = 6, 7
_R_F_X, _R_F_Y = 8, 9
_R_TRANS = 10            # rows 10..12
_R_PBETA = 13            # rows 13..22
_R_GBETA = 23            # rows 23..32
_N_SMALL = 33

_SMPL_PARENTS = (-1, 0, 0, 0, 1, 2, 3, 4, 5, 6, 7, 8, 9, 9, 9, 12, 13, 14, 16, 17, 18, 19)


# --------------------------------------------------------------------------------------
# Fused kernel
# --------------------------------------------------------------------------------------
def _smpl_loss_fused_kernel(img_size,
                            theta_ref,      # (6, J, B)   6d pose, component planes
                            gt_rot_ref,     # (9, J, B)   gt rotmats, row-major planes
                            small_ref,      # (33, B)     packed per-sample scalars
                            gt_j3d_ref,     # (3, J, B)
                            gt_j2d_ref,     # (2, J, B)
                            tmpl_ref,       # (3, J, 1)   synthetic rest-joint template
                            sdir_ref,       # (3, J, 10)  synthetic joint shape dirs
                            out_ref):       # (1, 8)      packed scalar losses
    nj = theta_ref.shape[1]
    b = theta_ref.shape[2]
    inv_b = 1.0 / b

    # ---- rotation_6d_to_matrix: per-plane Gram-Schmidt + cross product ----
    a1x, a1y, a1z = theta_ref[0], theta_ref[1], theta_ref[2]
    a2x, a2y, a2z = theta_ref[3], theta_ref[4], theta_ref[5]

    s1 = a1x * a1x + a1y * a1y + a1z * a1z
    inv1 = lax.rsqrt(jnp.maximum(s1, EPS_NORM_SQ))
    b1x, b1y, b1z = a1x * inv1, a1y * inv1, a1z * inv1

    dot12 = b1x * a2x + b1y * a2y + b1z * a2z
    u2x, u2y, u2z = a2x - dot12 * b1x, a2y - dot12 * b1y, a2z - dot12 * b1z
    su2 = u2x * u2x + u2y * u2y + u2z * u2z
    inv2 = lax.rsqrt(jnp.maximum(su2, EPS_NORM_SQ))
    b2x, b2y, b2z = u2x * inv2, u2y * inv2, u2z * inv2

    b3x = b1y * b2z - b1z * b2y
    b3y = b1z * b2x - b1x * b2z
    b3z = b1x * b2y - b1y * b2x
    rm = (b1x, b1y, b1z, b2x, b2y, b2z, b3x, b3y, b3z)   # row-major rows (b1; b2; b3)

    # ---- loss_beta: sum of squared error / b ----
    sm = small_ref[...]
    pbeta = sm[_R_PBETA:_R_PBETA + NUM_BETAS]            # (10, B)
    gbeta = sm[_R_GBETA:_R_GBETA + NUM_BETAS]            # (10, B)
    dbeta = pbeta - gbeta
    l_beta = jnp.sum(dbeta * dbeta) * inv_b

    # ---- loss_global_orient / loss_body_pose (root row + total - root) ----
    acc_rot = jnp.zeros((nj, b), jnp.float32)
    for i in range(9):
        d = rm[i] - gt_rot_ref[i]
        acc_rot = acc_rot + d * d
    rot_total = jnp.sum(acc_rot)
    rot_root = jnp.sum(acc_rot[0:1])
    l_go = rot_root * inv_b
    l_bp = (rot_total - rot_root) * inv_b

    # ---- loss_pose_6d: MSE([a1;a2][a1;a2]^T, I2).mean() ----
    g12 = a1x * a2x + a1y * a2y + a1z * a2z
    g22 = a2x * a2x + a2y * a2y + a2z * a2z
    acc6 = (s1 - 1.0) ** 2 + 2.0 * (g12 * g12) + (g22 - 1.0) ** 2
    l_6d = jnp.sum(acc6) / (4.0 * b * nj)

    # ---- weak-perspective camera -> global translation, L1(mean) trans loss ----
    cam_s = sm[_R_CAM_S:_R_CAM_S + 1]
    cam_x = sm[_R_CAM_X:_R_CAM_X + 1]
    cam_y = sm[_R_CAM_Y:_R_CAM_Y + 1]
    box = sm[_R_BOX:_R_BOX + 1]
    bcx = sm[_R_BC_X:_R_BC_X + 1]
    bcy = sm[_R_BC_Y:_R_BC_Y + 1]
    ocx = sm[_R_OC_X:_R_OC_X + 1]
    ocy = sm[_R_OC_Y:_R_OC_Y + 1]
    fx = sm[_R_F_X:_R_F_X + 1]
    fy = sm[_R_F_Y:_R_F_Y + 1]
    gtx = sm[_R_TRANS:_R_TRANS + 1]
    gty = sm[_R_TRANS + 1:_R_TRANS + 2]
    gtz = sm[_R_TRANS + 2:_R_TRANS + 3]

    inv_fx = pl.reciprocal(fx)
    inv_fy = pl.reciprocal(fy)
    tz_g = fx * pl.reciprocal(box * cam_s + EPS_CAM)
    tx_g = (cam_x * box + bcx - ocx) * inv_fx * tz_g
    ty_g = (cam_y * box + bcy - ocy) * inv_fy * tz_g
    l_trans = jnp.sum(jnp.abs(tx_g - gtx) + jnp.abs(ty_g - gty)
                      + jnp.abs(tz_g - gtz)) / (3.0 * b)

    # ---- local camera translation + normalized focal (used by 2-D projection) ----
    tx_l = cam_x * pl.reciprocal(cam_s + EPS_CAM)
    ty_l = cam_y * fx * pl.reciprocal(fy * cam_s + EPS_CAM)
    tz_l = fx * pl.reciprocal(img_size * cam_s + EPS_CAM)
    fnx = fx * (1.0 / img_size)
    fny = fy * (1.0 / img_size)

    # ---- synthetic SMPL rest joints: template + shapedirs . betas (VPU FMAs only) ----
    # TODO(synk): the real SMPLHLayer/SMPLXLayer loads blend shapes / a joint regressor
    # from a model file; here we use deterministic synthetic rest joints + rigid FK.
    rest = []
    for k in range(3):
        sd_k = sdir_ref[k]                                # (J, 10)
        r_k = tmpl_ref[k]                                 # (J, 1)
        for d in range(NUM_BETAS):
            r_k = r_k + sd_k[:, d:d + 1] * pbeta[d:d + 1]  # (J,1)*(1,B) -> (J,B)
        rest.append(r_k)

    # ---- forward kinematics, unrolled on (1, B) lanes-on-batch vectors (no MXU) ----
    r_loc = [[rm[i][j:j + 1] for i in range(9)] for j in range(nj)]
    rest_j = [[rest[k][j:j + 1] for k in range(3)] for j in range(nj)]

    glob_r = [None] * nj
    glob_t = [None] * nj
    glob_r[0] = r_loc[0]
    glob_t[0] = rest_j[0]
    for j in range(1, nj):
        p = _SMPL_PARENTS[j]
        rp, rl = glob_r[p], r_loc[j]
        glob_r[j] = [rp[rr * 3 + 0] * rl[cc] + rp[rr * 3 + 1] * rl[3 + cc]
                     + rp[rr * 3 + 2] * rl[6 + cc]
                     for rr in range(3) for cc in range(3)]
        off = [rest_j[j][k] - rest_j[p][k] for k in range(3)]
        glob_t[j] = [glob_t[p][rr] + rp[rr * 3 + 0] * off[0] + rp[rr * 3 + 1] * off[1]
                     + rp[rr * 3 + 2] * off[2] for rr in range(3)]

    # ---- 3-D joint L1 + perspective projection + 2-D joint L1 ----
    g3x, g3y, g3z = gt_j3d_ref[0], gt_j3d_ref[1], gt_j3d_ref[2]
    g2x, g2y = gt_j2d_ref[0], gt_j2d_ref[1]
    g3x0, g3y0, g3z0 = g3x[0:1], g3y[0:1], g3z[0:1]
    rx0, ry0, rz0 = glob_t[0]

    acc3 = jnp.zeros((1, b), jnp.float32)
    acc2 = jnp.zeros((1, b), jnp.float32)
    for j in range(nj):
        # root-centred prediction (the reference's second centring is a no-op, omitted)
        cjx = glob_t[j][0] - rx0
        cjy = glob_t[j][1] - ry0
        cjz = glob_t[j][2] - rz0
        acc3 = acc3 + (jnp.abs(cjx - (g3x[j:j + 1] - g3x0))
                       + jnp.abs(cjy - (g3y[j:j + 1] - g3y0))
                       + jnp.abs(cjz - (g3z[j:j + 1] - g3z0)))
        inv_z = pl.reciprocal(cjz + tz_l)
        u = (cjx + tx_l) * inv_z * fnx
        v = (cjy + ty_l) * inv_z * fny
        acc2 = acc2 + jnp.abs(u - g2x[j:j + 1]) + jnp.abs(v - g2y[j:j + 1])

    l_j3d = jnp.sum(acc3) * inv_b
    l_j2d = jnp.sum(acc2) * inv_b

    # ---- single packed scalar-loss write (one output tile / one DMA) ----
    s11 = lambda v: jnp.reshape(v, (1, 1))
    out_ref[...] = jnp.concatenate(
        [s11(l_beta), s11(l_go), s11(l_bp), s11(l_6d),
         s11(l_trans), s11(l_j3d), s11(l_j2d), jnp.zeros((1, 1), jnp.float32)],
        axis=1)


# --------------------------------------------------------------------------------------
# Synthetic SMPL parameters (deterministic, no checkpoint files)
# --------------------------------------------------------------------------------------
def make_smpl_params():
    k1, k2 = jax.random.split(jax.random.PRNGKey(42))
    j_template = 0.3 * jax.random.normal(k1, (NUM_JOINTS, 3), jnp.float32)
    j_shapedirs = 0.01 * jax.random.normal(k2, (NUM_JOINTS, 3, NUM_BETAS), jnp.float32)
    return j_template, j_shapedirs


# --------------------------------------------------------------------------------------
# Wrapper
# --------------------------------------------------------------------------------------
def smpl_loss(preds, targets, img_size=IMG_SIZE):
    pred_cam = preds['pred_cam'].astype(jnp.float32)
    b = pred_cam.shape[0]
    pred_betas = preds['pred_betas'].reshape(b, NUM_BETAS).astype(jnp.float32)
    theta6d = preds['pred_theta'].reshape(b, -1, 6).astype(jnp.float32)
    n_joints = theta6d.shape[1]
    assert n_joints == NUM_JOINTS  # synthetic FK uses the 22-joint SMPL-H tree

    gt_betas = targets['smpl_betas'].reshape(b, NUM_BETAS).astype(jnp.float32)
    gt_rotmat = targets['smpl_pose_rotmat'].reshape(b, n_joints, 9).astype(jnp.float32)
    gt_trans = targets['smpl_trans'].reshape(b, 3).astype(jnp.float32)
    box_size = targets['box_size'].reshape(b, 1).astype(jnp.float32)
    box_center = targets['box_center'].reshape(b, 2).astype(jnp.float32)
    optical_center = targets['optical_center'].reshape(b, 2).astype(jnp.float32)
    focal_length = targets['focal_length'].reshape(b, 2).astype(jnp.float32)
    gt_j3d = targets['person_joint_3d'].reshape(b, n_joints, 3).astype(jnp.float32)
    gt_j2d = targets['person_joint_2d'].reshape(b, n_joints, 2).astype(jnp.float32)

    # Lane-dense (batch-on-lanes) component-plane layouts.
    theta_t = jnp.transpose(theta6d, (2, 1, 0))           # (6, J, B)
    gt_rot_t = jnp.transpose(gt_rotmat, (2, 1, 0))        # (9, J, B)
    gt_j3d_t = jnp.transpose(gt_j3d, (2, 1, 0))           # (3, J, B)
    gt_j2d_t = jnp.transpose(gt_j2d, (2, 1, 0))           # (2, J, B)

    # All per-sample scalars/vectors packed into one (33, B) array -> single DMA.
    small = jnp.concatenate([pred_cam.T, box_size.T, box_center.T, optical_center.T,
                             focal_length.T, gt_trans.T, pred_betas.T, gt_betas.T],
                            axis=0)                       # (33, B)
    assert small.shape[0] == _N_SMALL

    j_template, j_shapedirs = make_smpl_params()
    tmpl_t = j_template.T[:, :, None]                     # (3, J, 1)
    sdir_t = jnp.transpose(j_shapedirs, (1, 0, 2))        # (3, J, 10)

    vmem = pl.BlockSpec(memory_space=pltpu.MemorySpace.VMEM)
    out = pl.pallas_call(
        functools.partial(_smpl_loss_fused_kernel, float(img_size)),
        out_shape=jax.ShapeDtypeStruct((1, 8), jnp.float32),
        in_specs=[vmem] * 7,
        out_specs=vmem,
    )(theta_t, gt_rot_t, small, gt_j3d_t, gt_j2d_t, tmpl_t, sdir_t)

    return {'loss_beta': out[0, 0],
            'loss_global_orient': out[0, 1],
            'loss_body_pose': out[0, 2],
            'loss_pose_6d': out[0, 3],
            'loss_trans': out[0, 4],
            'loss_joint_3d': out[0, 5],
            'loss_joint_2d': out[0, 6]}


if __name__ == "__main__":
    b = 2
    ks = jax.random.split(jax.random.PRNGKey(0), 16)

    pred_cam_s = 0.8 + 0.2 * jax.random.uniform(ks[0], (b, 1), jnp.float32)
    pred_cam_xy = 0.1 * jax.random.normal(ks[1], (b, 2), jnp.float32)
    preds = {
        'pred_cam': jnp.concatenate([pred_cam_s, pred_cam_xy], axis=-1),
        'pred_betas': 0.5 * jax.random.normal(ks[2], (b, NUM_BETAS), jnp.float32),
        'pred_theta': jax.random.normal(ks[3], (b, NUM_JOINTS * 6), jnp.float32),
    }
    targets = {
        'smpl_betas': 0.5 * jax.random.normal(ks[4], (b, NUM_BETAS), jnp.float32),
        'smpl_pose_rotmat': jax.random.normal(ks[5], (b, NUM_JOINTS, 3, 3), jnp.float32),
        'smpl_trans': jax.random.normal(ks[6], (b, 3), jnp.float32),
        'box_size': 150.0 + 100.0 * jax.random.uniform(ks[7], (b,), jnp.float32),
        'box_center': 500.0 * jax.random.uniform(ks[8], (b, 2), jnp.float32),
        'optical_center': 500.0 + 20.0 * jax.random.normal(ks[9], (b, 2), jnp.float32),
        'focal_length': 1000.0 + 50.0 * jax.random.uniform(ks[10], (b, 2), jnp.float32),
        'person_joint_3d': jax.random.normal(ks[11], (b, NUM_JOINTS, 3), jnp.float32),
        'person_joint_2d': jax.random.uniform(ks[12], (b, NUM_JOINTS, 2), jnp.float32),
    }

    losses = smpl_loss(preds, targets)
    losses = jax.block_until_ready(losses)
    assert all(bool(jnp.isfinite(v)) for v in losses.values())
    print("KERNEL_OK")
</pallas_src>

<mosaic_0001>
module attributes {stable_mosaic.version = 11 : i64} {
  func.func @_smpl_loss_fused_kernel(%arg0: memref<6x22x2xf32, #tpu.memory_space<vmem>>, %arg1: memref<9x22x2xf32, #tpu.memory_space<vmem>>, %arg2: memref<33x2xf32, #tpu.memory_space<vmem>>, %arg3: memref<3x22x2xf32, #tpu.memory_space<vmem>>, %arg4: memref<2x22x2xf32, #tpu.memory_space<vmem>>, %arg5: memref<3x22x1xf32, #tpu.memory_space<vmem>>, %arg6: memref<3x22x10xf32, #tpu.memory_space<vmem>>, %arg7: memref<1x8xf32, #tpu.memory_space<vmem>>) attributes {dimension_semantics = [], scalar_prefetch = 0 : i64, scratch_operands = 0 : i64, tpu.core_type = #tpu.core_type<tc>} {
    %c0 = arith.constant 0 : index
    %c0_0 = arith.constant 0 : index
    %c0_1 = arith.constant 0 : index
    %0 = vector.load %arg0[%c0, %c0_0, %c0_1] : memref<6x22x2xf32, #tpu.memory_space<vmem>>, vector<1x22x2xf32>
    %1 = vector.shape_cast %0 : vector<1x22x2xf32> to vector<22x2xf32>
    %c1 = arith.constant 1 : index
    %c0_2 = arith.constant 0 : index
    %c0_3 = arith.constant 0 : index
    %2 = vector.load %arg0[%c1, %c0_2, %c0_3] : memref<6x22x2xf32, #tpu.memory_space<vmem>>, vector<1x22x2xf32>
    %3 = vector.shape_cast %2 : vector<1x22x2xf32> to vector<22x2xf32>
    %c2 = arith.constant 2 : index
    %c0_4 = arith.constant 0 : index
    %c0_5 = arith.constant 0 : index
    %4 = vector.load %arg0[%c2, %c0_4, %c0_5] : memref<6x22x2xf32, #tpu.memory_space<vmem>>, vector<1x22x2xf32>
    %5 = vector.shape_cast %4 : vector<1x22x2xf32> to vector<22x2xf32>
    %c3 = arith.constant 3 : index
    %c0_6 = arith.constant 0 : index
    %c0_7 = arith.constant 0 : index
    %6 = vector.load %arg0[%c3, %c0_6, %c0_7] : memref<6x22x2xf32, #tpu.memory_space<vmem>>, vector<1x22x2xf32>
    %7 = vector.shape_cast %6 : vector<1x22x2xf32> to vector<22x2xf32>
    %c4 = arith.constant 4 : index
    %c0_8 = arith.constant 0 : index
    %c0_9 = arith.constant 0 : index
    %8 = vector.load %arg0[%c4, %c0_8, %c0_9] : memref<6x22x2xf32, #tpu.memory_space<vmem>>, vector<1x22x2xf32>
    %9 = vector.shape_cast %8 : vector<1x22x2xf32> to vector<22x2xf32>
    %c5 = arith.constant 5 : index
    %c0_10 = arith.constant 0 : index
    %c0_11 = arith.constant 0 : index
    %10 = vector.load %arg0[%c5, %c0_10, %c0_11] : memref<6x22x2xf32, #tpu.memory_space<vmem>>, vector<1x22x2xf32>
    %11 = vector.shape_cast %10 : vector<1x22x2xf32> to vector<22x2xf32>
    %12 = arith.mulf %1, %1 : vector<22x2xf32>
    %13 = arith.mulf %3, %3 : vector<22x2xf32>
    %14 = arith.addf %12, %13 : vector<22x2xf32>
    %15 = arith.mulf %5, %5 : vector<22x2xf32>
    %16 = arith.addf %14, %15 : vector<22x2xf32>
    %cst = arith.constant 1.000000e-24 : f32
    %17 = vector.broadcast %cst : f32 to vector<22x2xf32>
    %18 = arith.maximumf %16, %17 : vector<22x2xf32>
    %19 = math.rsqrt %18 : vector<22x2xf32>
    %20 = arith.mulf %1, %19 : vector<22x2xf32>
    %21 = arith.mulf %3, %19 : vector<22x2xf32>
    %22 = arith.mulf %5, %19 : vector<22x2xf32>
    %23 = arith.mulf %20, %7 : vector<22x2xf32>
    %24 = arith.mulf %21, %9 : vector<22x2xf32>
    %25 = arith.addf %23, %24 : vector<22x2xf32>
    %26 = arith.mulf %22, %11 : vector<22x2xf32>
    %27 = arith.addf %25, %26 : vector<22x2xf32>
    %28 = arith.mulf %27, %20 : vector<22x2xf32>
    %29 = arith.subf %7, %28 : vector<22x2xf32>
    %30 = arith.mulf %27, %21 : vector<22x2xf32>
    %31 = arith.subf %9, %30 : vector<22x2xf32>
    %32 = arith.mulf %27, %22 : vector<22x2xf32>
    %33 = arith.subf %11, %32 : vector<22x2xf32>
    %34 = arith.mulf %29, %29 : vector<22x2xf32>
    %35 = arith.mulf %31, %31 : vector<22x2xf32>
    %36 = arith.addf %34, %35 : vector<22x2xf32>
    %37 = arith.mulf %33, %33 : vector<22x2xf32>
    %38 = arith.addf %36, %37 : vector<22x2xf32>
    %cst_12 = arith.constant 1.000000e-24 : f32
    %39 = vector.broadcast %cst_12 : f32 to vector<22x2xf32>
    %40 = arith.maximumf %38, %39 : vector<22x2xf32>
    %41 = math.rsqrt %40 : vector<22x2xf32>
    %42 = arith.mulf %29, %41 : vector<22x2xf32>
    %43 = arith.mulf %31, %41 : vector<22x2xf32>
    %44 = arith.mulf %33, %41 : vector<22x2xf32>
    %45 = arith.mulf %21, %44 : vector<22x2xf32>
    %46 = arith.mulf %22, %43 : vector<22x2xf32>
    %47 = arith.subf %45, %46 : vector<22x2xf32>
    %48 = arith.mulf %22, %42 : vector<22x2xf32>
    %49 = arith.mulf %20, %44 : vector<22x2xf32>
    %50 = arith.subf %48, %49 : vector<22x2xf32>
    %51 = arith.mulf %20, %43 : vector<22x2xf32>
    %52 = arith.mulf %21, %42 : vector<22x2xf32>
    %53 = arith.subf %51, %52 : vector<22x2xf32>
    %c0_13 = arith.constant 0 : index
    %c0_14 = arith.constant 0 : index
    %54 = vector.load %arg2[%c0_13, %c0_14] : memref<33x2xf32, #tpu.memory_space<vmem>>, vector<33x2xf32>
    %55 = vector.extract_strided_slice %54 {offsets = [13, 0], sizes = [10, 2], strides = [1, 1]} : vector<33x2xf32> to vector<10x2xf32>
    %56 = vector.extract_strided_slice %54 {offsets = [23, 0], sizes = [10, 2], strides = [1, 1]} : vector<33x2xf32> to vector<10x2xf32>
    %57 = arith.subf %55, %56 : vector<10x2xf32>
    %58 = arith.mulf %57, %57 : vector<10x2xf32>
    %59 = vector.shape_cast %58 : vector<10x2xf32> to vector<1x10x2xf32>
    %cst_15 = arith.constant dense<0.000000e+00> : vector<1xf32>
    %60 = vector.multi_reduction <add>, %59, %cst_15 [1, 2] : vector<1x10x2xf32> to vector<1xf32>
    %61 = vector.shape_cast %60 : vector<1xf32> to vector<1x1x1xf32>
    %62 = vector.extract %61[0, 0, 0] : f32 from vector<1x1x1xf32>
    %cst_16 = arith.constant 5.000000e-01 : f32
    %63 = arith.mulf %62, %cst_16 : f32
    %cst_17 = arith.constant 0.000000e+00 : f32
    %64 = vector.broadcast %cst_17 : f32 to vector<22x2xf32>
    %c0_18 = arith.constant 0 : index
    %c0_19 = arith.constant 0 : index
    %c0_20 = arith.constant 0 : index
    %65 = vector.load %arg1[%c0_18, %c0_19, %c0_20] : memref<9x22x2xf32, #tpu.memory_space<vmem>>, vector<1x22x2xf32>
    %66 = vector.shape_cast %65 : vector<1x22x2xf32> to vector<22x2xf32>
    %67 = arith.subf %20, %66 : vector<22x2xf32>
    %68 = arith.mulf %67, %67 : vector<22x2xf32>
    %69 = arith.addf %64, %68 : vector<22x2xf32>
    %c1_21 = arith.constant 1 : index
    %c0_22 = arith.constant 0 : index
    %c0_23 = arith.constant 0 : index
    %70 = vector.load %arg1[%c1_21, %c0_22, %c0_23] : memref<9x22x2xf32, #tpu.memory_space<vmem>>, vector<1x22x2xf32>
    %71 = vector.shape_cast %70 : vector<1x22x2xf32> to vector<22x2xf32>
    %72 = arith.subf %21, %71 : vector<22x2xf32>
    %73 = arith.mulf %72, %72 : vector<22x2xf32>
    %74 = arith.addf %69, %73 : vector<22x2xf32>
    %c2_24 = arith.constant 2 : index
    %c0_25 = arith.constant 0 : index
    %c0_26 = arith.constant 0 : index
    %75 = vector.load %arg1[%c2_24, %c0_25, %c0_26] : memref<9x22x2xf32, #tpu.memory_space<vmem>>, vector<1x22x2xf32>
    %76 = vector.shape_cast %75 : vector<1x22x2xf32> to vector<22x2xf32>
    %77 = arith.subf %22, %76 : vector<22x2xf32>
    %78 = arith.mulf %77, %77 : vector<22x2xf32>
    %79 = arith.addf %74, %78 : vector<22x2xf32>
    %c3_27 = arith.constant 3 : index
    %c0_28 = arith.constant 0 : index
    %c0_29 = arith.constant 0 : index
    %80 = vector.load %arg1[%c3_27, %c0_28, %c0_29] : memref<9x22x2xf32, #tpu.memory_space<vmem>>, vector<1x22x2xf32>
    %81 = vector.shape_cast %80 : vector<1x22x2xf32> to vector<22x2xf32>
    %82 = arith.subf %42, %81 : vector<22x2xf32>
    %83 = arith.mulf %82, %82 : vector<22x2xf32>
    %84 = arith.addf %79, %83 : vector<22x2xf32>
    %c4_30 = arith.constant 4 : index
    %c0_31 = arith.constant 0 : index
    %c0_32 = arith.constant 0 : index
    %85 = vector.load %arg1[%c4_30, %c0_31, %c0_32] : memref<9x22x2xf32, #tpu.memory_space<vmem>>, vector<1x22x2xf32>
    %86 = vector.shape_cast %85 : vector<1x22x2xf32> to vector<22x2xf32>
    %87 = arith.subf %43, %86 : vector<22x2xf32>
    %88 = arith.mulf %87, %87 : vector<22x2xf32>
    %89 = arith.addf %84, %88 : vector<22x2xf32>
    %c5_33 = arith.constant 5 : index
    %c0_34 = arith.constant 0 : index
    %c0_35 = arith.constant 0 : index
    %90 = vector.load %arg1[%c5_33, %c0_34, %c0_35] : memref<9x22x2xf32, #tpu.memory_space<vmem>>, vector<1x22x2xf32>
    %91 = vector.shape_cast %90 : vector<1x22x2xf32> to vector<22x2xf32>
    %92 = arith.subf %44, %91 : vector<22x2xf32>
    %93 = arith.mulf %92, %92 : vector<22x2xf32>
    %94 = arith.addf %89, %93 : vector<22x2xf32>
    %c6 = arith.constant 6 : index
    %c0_36 = arith.constant 0 : index
    %c0_37 = arith.constant 0 : index
    %95 = vector.load %arg1[%c6, %c0_36, %c0_37] : memref<9x22x2xf32, #tpu.memory_space<vmem>>, vector<1x22x2xf32>
    %96 = vector.shape_cast %95 : vector<1x22x2xf32> to vector<22x2xf32>
    %97 = arith.subf %47, %96 : vector<22x2xf32>
    %98 = arith.mulf %97, %97 : vector<22x2xf32>
    %99 = arith.addf %94, %98 : vector<22x2xf32>
    %c7 = arith.constant 7 : index
    %c0_38 = arith.constant 0 : index
    %c0_39 = arith.constant 0 : index
    %100 = vector.load %arg1[%c7, %c0_38, %c0_39] : memref<9x22x2xf32, #tpu.memory_space<vmem>>, vector<1x22x2xf32>
    %101 = vector.shape_cast %100 : vector<1x22x2xf32> to vector<22x2xf32>
    %102 = arith.subf %50, %101 : vector<22x2xf32>
    %103 = arith.mulf %102, %102 : vector<22x2xf32>
    %104 = arith.addf %99, %103 : vector<22x2xf32>
    %c8 = arith.constant 8 : index
    %c0_40 = arith.constant 0 : index
    %c0_41 = arith.constant 0 : index
    %105 = vector.load %arg1[%c8, %c0_40, %c0_41] : memref<9x22x2xf32, #tpu.memory_space<vmem>>, vector<1x22x2xf32>
    %106 = vector.shape_cast %105 : vector<1x22x2xf32> to vector<22x2xf32>
    %107 = arith.subf %53, %106 : vector<22x2xf32>
    %108 = arith.mulf %107, %107 : vector<22x2xf32>
    %109 = arith.addf %104, %108 : vector<22x2xf32>
    %110 = vector.shape_cast %109 : vector<22x2xf32> to vector<1x22x2xf32>
    %cst_42 = arith.constant dense<0.000000e+00> : vector<1xf32>
    %111 = vector.multi_reduction <add>, %110, %cst_42 [1, 2] : vector<1x22x2xf32> to vector<1xf32>
    %112 = vector.shape_cast %111 : vector<1xf32> to vector<1x1x1xf32>
    %113 = vector.extract %112[0, 0, 0] : f32 from vector<1x1x1xf32>
    %114 = vector.extract_strided_slice %109 {offsets = [0, 0], sizes = [1, 2], strides = [1, 1]} : vector<22x2xf32> to vector<1x2xf32>
    %115 = vector.shape_cast %114 : vector<1x2xf32> to vector<1x1x2xf32>
    %cst_43 = arith.constant dense<0.000000e+00> : vector<1xf32>
    %116 = vector.multi_reduction <add>, %115, %cst_43 [1, 2] : vector<1x1x2xf32> to vector<1xf32>
    %117 = vector.shape_cast %116 : vector<1xf32> to vector<1x1x1xf32>
    %118 = vector.extract %117[0, 0, 0] : f32 from vector<1x1x1xf32>
    %cst_44 = arith.constant 5.000000e-01 : f32
    %119 = arith.mulf %118, %cst_44 : f32
    %120 = arith.subf %113, %118 : f32
    %cst_45 = arith.constant 5.000000e-01 : f32
    %121 = arith.mulf %120, %cst_45 : f32
    %122 = arith.mulf %1, %7 : vector<22x2xf32>
    %123 = arith.mulf %3, %9 : vector<22x2xf32>
    %124 = arith.addf %122, %123 : vector<22x2xf32>
    %125 = arith.mulf %5, %11 : vector<22x2xf32>
    %126 = arith.addf %124, %125 : vector<22x2xf32>
    %127 = arith.mulf %7, %7 : vector<22x2xf32>
    %128 = arith.mulf %9, %9 : vector<22x2xf32>
    %129 = arith.addf %127, %128 : vector<22x2xf32>
    %130 = arith.mulf %11, %11 : vector<22x2xf32>
    %131 = arith.addf %129, %130 : vector<22x2xf32>
    %cst_46 = arith.constant 1.000000e+00 : f32
    %132 = vector.broadcast %cst_46 : f32 to vector<22x2xf32>
    %133 = arith.subf %16, %132 : vector<22x2xf32>
    %134 = arith.mulf %133, %133 : vector<22x2xf32>
    %135 = arith.mulf %126, %126 : vector<22x2xf32>
    %cst_47 = arith.constant 2.000000e+00 : f32
    %136 = vector.broadcast %cst_47 : f32 to vector<22x2xf32>
    %137 = arith.mulf %136, %135 : vector<22x2xf32>
    %138 = arith.addf %134, %137 : vector<22x2xf32>
    %cst_48 = arith.constant 1.000000e+00 : f32
    %139 = vector.broadcast %cst_48 : f32 to vector<22x2xf32>
    %140 = arith.subf %131, %139 : vector<22x2xf32>
    %141 = arith.mulf %140, %140 : vector<22x2xf32>
    %142 = arith.addf %138, %141 : vector<22x2xf32>
    %143 = vector.shape_cast %142 : vector<22x2xf32> to vector<1x22x2xf32>
    %cst_49 = arith.constant dense<0.000000e+00> : vector<1xf32>
    %144 = vector.multi_reduction <add>, %143, %cst_49 [1, 2] : vector<1x22x2xf32> to vector<1xf32>
    %145 = vector.shape_cast %144 : vector<1xf32> to vector<1x1x1xf32>
    %146 = vector.extract %145[0, 0, 0] : f32 from vector<1x1x1xf32>
    %cst_50 = arith.constant 1.760000e+02 : f32
    %147 = arith.divf %146, %cst_50 : f32
    %148 = vector.extract_strided_slice %54 {offsets = [0, 0], sizes = [1, 2], strides = [1, 1]} : vector<33x2xf32> to vector<1x2xf32>
    %149 = vector.extract_strided_slice %54 {offsets = [1, 0], sizes = [1, 2], strides = [1, 1]} : vector<33x2xf32> to vector<1x2xf32>
    %150 = vector.extract_strided_slice %54 {offsets = [2, 0], sizes = [1, 2], strides = [1, 1]} : vector<33x2xf32> to vector<1x2xf32>
    %151 = vector.extract_strided_slice %54 {offsets = [3, 0], sizes = [1, 2], strides = [1, 1]} : vector<33x2xf32> to vector<1x2xf32>
    %152 = vector.extract_strided_slice %54 {offsets = [4, 0], sizes = [1, 2], strides = [1, 1]} : vector<33x2xf32> to vector<1x2xf32>
    %153 = vector.extract_strided_slice %54 {offsets = [5, 0], sizes = [1, 2], strides = [1, 1]} : vector<33x2xf32> to vector<1x2xf32>
    %154 = vector.extract_strided_slice %54 {offsets = [6, 0], sizes = [1, 2], strides = [1, 1]} : vector<33x2xf32> to vector<1x2xf32>
    %155 = vector.extract_strided_slice %54 {offsets = [7, 0], sizes = [1, 2], strides = [1, 1]} : vector<33x2xf32> to vector<1x2xf32>
    %156 = vector.extract_strided_slice %54 {offsets = [8, 0], sizes = [1, 2], strides = [1, 1]} : vector<33x2xf32> to vector<1x2xf32>
    %157 = vector.extract_strided_slice %54 {offsets = [9, 0], sizes = [1, 2], strides = [1, 1]} : vector<33x2xf32> to vector<1x2xf32>
    %158 = vector.extract_strided_slice %54 {offsets = [10, 0], sizes = [1, 2], strides = [1, 1]} : vector<33x2xf32> to vector<1x2xf32>
    %159 = vector.extract_strided_slice %54 {offsets = [11, 0], sizes = [1, 2], strides = [1, 1]} : vector<33x2xf32> to vector<1x2xf32>
    %160 = vector.extract_strided_slice %54 {offsets = [12, 0], sizes = [1, 2], strides = [1, 1]} : vector<33x2xf32> to vector<1x2xf32>
    %161 = tpu.reciprocal %156 : vector<1x2xf32> -> vector<1x2xf32>
    %162 = tpu.reciprocal %157 : vector<1x2xf32> -> vector<1x2xf32>
    %163 = arith.mulf %151, %148 : vector<1x2xf32>
    %cst_51 = arith.constant 9.99999971E-10 : f32
    %164 = vector.broadcast %cst_51 : f32 to vector<1x2xf32>
    %165 = arith.addf %163, %164 : vector<1x2xf32>
    %166 = tpu.reciprocal %165 : vector<1x2xf32> -> vector<1x2xf32>
    %167 = arith.mulf %156, %166 : vector<1x2xf32>
    %168 = arith.mulf %149, %151 : vector<1x2xf32>
    %169 = arith.addf %168, %152 : vector<1x2xf32>
    %170 = arith.subf %169, %154 : vector<1x2xf32>
    %171 = arith.mulf %170, %161 : vector<1x2xf32>
    %172 = arith.mulf %171, %167 : vector<1x2xf32>
    %173 = arith.mulf %150, %151 : vector<1x2xf32>
    %174 = arith.addf %173, %153 : vector<1x2xf32>
    %175 = arith.subf %174, %155 : vector<1x2xf32>
    %176 = arith.mulf %175, %162 : vector<1x2xf32>
    %177 = arith.mulf %176, %167 : vector<1x2xf32>
    %178 = arith.subf %172, %158 : vector<1x2xf32>
    %179 = math.absf %178 : vector<1x2xf32>
    %180 = arith.subf %177, %159 : vector<1x2xf32>
    %181 = math.absf %180 : vector<1x2xf32>
    %182 = arith.addf %179, %181 : vector<1x2xf32>
    %183 = arith.subf %167, %160 : vector<1x2xf32>
    %184 = math.absf %183 : vector<1x2xf32>
    %185 = arith.addf %182, %184 : vector<1x2xf32>
    %186 = vector.shape_cast %185 : vector<1x2xf32> to vector<1x1x2xf32>
    %cst_52 = arith.constant dense<0.000000e+00> : vector<1xf32>
    %187 = vector.multi_reduction <add>, %186, %cst_52 [1, 2] : vector<1x1x2xf32> to vector<1xf32>
    %188 = vector.shape_cast %187 : vector<1xf32> to vector<1x1x1xf32>
    %189 = vector.extract %188[0, 0, 0] : f32 from vector<1x1x1xf32>
    %cst_53 = arith.constant 6.000000e+00 : f32
    %190 = arith.divf %189, %cst_53 : f32
    %cst_54 = arith.constant 9.99999971E-10 : f32
    %191 = vector.broadcast %cst_54 : f32 to vector<1x2xf32>
    %192 = arith.addf %148, %191 : vector<1x2xf32>
    %193 = tpu.reciprocal %192 : vector<1x2xf32> -> vector<1x2xf32>
    %194 = arith.mulf %149, %193 : vector<1x2xf32>
    %195 = arith.mulf %150, %156 : vector<1x2xf32>
    %196 = arith.mulf %157, %148 : vector<1x2xf32>
    %cst_55 = arith.constant 9.99999971E-10 : f32
    %197 = vector.broadcast %cst_55 : f32 to vector<1x2xf32>
    %198 = arith.addf %196, %197 : vector<1x2xf32>
    %199 = tpu.reciprocal %198 : vector<1x2xf32> -> vector<1x2xf32>
    %200 = arith.mulf %195, %199 : vector<1x2xf32>
    %cst_56 = arith.constant 2.560000e+02 : f32
    %201 = vector.broadcast %cst_56 : f32 to vector<1x2xf32>
    %202 = arith.mulf %201, %148 : vector<1x2xf32>
    %cst_57 = arith.constant 9.99999971E-10 : f32
    %203 = vector.broadcast %cst_57 : f32 to vector<1x2xf32>
    %204 = arith.addf %202, %203 : vector<1x2xf32>
    %205 = tpu.reciprocal %204 : vector<1x2xf32> -> vector<1x2xf32>
    %206 = arith.mulf %156, %205 : vector<1x2xf32>
    %cst_58 = arith.constant 3.906250e-03 : f32
    %207 = vector.broadcast %cst_58 : f32 to vector<1x2xf32>
    %208 = arith.mulf %156, %207 : vector<1x2xf32>
    %cst_59 = arith.constant 3.906250e-03 : f32
    %209 = vector.broadcast %cst_59 : f32 to vector<1x2xf32>
    %210 = arith.mulf %157, %209 : vector<1x2xf32>
    %c0_60 = arith.constant 0 : index
    %c0_61 = arith.constant 0 : index
    %c0_62 = arith.constant 0 : index
    %211 = vector.load %arg6[%c0_60, %c0_61, %c0_62] : memref<3x22x10xf32, #tpu.memory_space<vmem>>, vector<1x22x10xf32>
    %212 = vector.shape_cast %211 : vector<1x22x10xf32> to vector<22x10xf32>
    %c0_63 = arith.constant 0 : index
    %c0_64 = arith.constant 0 : index
    %c0_65 = arith.constant 0 : index
    %213 = vector.load %arg5[%c0_63, %c0_64, %c0_65] : memref<3x22x1xf32, #tpu.memory_space<vmem>>, vector<1x22x1xf32>
    %214 = vector.shape_cast %213 : vector<1x22x1xf32> to vector<22x1xf32>
    %215 = vector.extract_strided_slice %212 {offsets = [0, 0], sizes = [22, 1], strides = [1, 1]} : vector<22x10xf32> to vector<22x1xf32>
    %216 = vector.extract_strided_slice %55 {offsets = [0, 0], sizes = [1, 2], strides = [1, 1]} : vector<10x2xf32> to vector<1x2xf32>
    %217 = vector.broadcast %215 : vector<22x1xf32> to vector<22x2xf32>
    %218 = vector.broadcast %216 : vector<1x2xf32> to vector<22x2xf32>
    %219 = arith.mulf %217, %218 : vector<22x2xf32>
    %220 = vector.broadcast %214 : vector<22x1xf32> to vector<22x2xf32>
    %221 = arith.addf %220, %219 : vector<22x2xf32>
    %222 = vector.extract_strided_slice %212 {offsets = [0, 1], sizes = [22, 1], strides = [1, 1]} : vector<22x10xf32> to vector<22x1xf32>
    %223 = vector.extract_strided_slice %55 {offsets = [1, 0], sizes = [1, 2], strides = [1, 1]} : vector<10x2xf32> to vector<1x2xf32>
    %224 = vector.broadcast %222 : vector<22x1xf32> to vector<22x2xf32>
    %225 = vector.broadcast %223 : vector<1x2xf32> to vector<22x2xf32>
    %226 = arith.mulf %224, %225 : vector<22x2xf32>
    %227 = arith.addf %221, %226 : vector<22x2xf32>
    %228 = vector.extract_strided_slice %212 {offsets = [0, 2], sizes = [22, 1], strides = [1, 1]} : vector<22x10xf32> to vector<22x1xf32>
    %229 = vector.extract_strided_slice %55 {offsets = [2, 0], sizes = [1, 2], strides = [1, 1]} : vector<10x2xf32> to vector<1x2xf32>
    %230 = vector.broadcast %228 : vector<22x1xf32> to vector<22x2xf32>
    %231 = vector.broadcast %229 : vector<1x2xf32> to vector<22x2xf32>
    %232 = arith.mulf %230, %231 : vector<22x2xf32>
    %233 = arith.addf %227, %232 : vector<22x2xf32>
    %234 = vector.extract_strided_slice %212 {offsets = [0, 3], sizes = [22, 1], strides = [1, 1]} : vector<22x10xf32> to vector<22x1xf32>
    %235 = vector.extract_strided_slice %55 {offsets = [3, 0], sizes = [1, 2], strides = [1, 1]} : vector<10x2xf32> to vector<1x2xf32>
    %236 = vector.broadcast %234 : vector<22x1xf32> to vector<22x2xf32>
    %237 = vector.broadcast %235 : vector<1x2xf32> to vector<22x2xf32>
    %238 = arith.mulf %236, %237 : vector<22x2xf32>
    %239 = arith.addf %233, %238 : vector<22x2xf32>
    %240 = vector.extract_strided_slice %212 {offsets = [0, 4], sizes = [22, 1], strides = [1, 1]} : vector<22x10xf32> to vector<22x1xf32>
    %241 = vector.extract_strided_slice %55 {offsets = [4, 0], sizes = [1, 2], strides = [1, 1]} : vector<10x2xf32> to vector<1x2xf32>
    %242 = vector.broadcast %240 : vector<22x1xf32> to vector<22x2xf32>
    %243 = vector.broadcast %241 : vector<1x2xf32> to vector<22x2xf32>
    %244 = arith.mulf %242, %243 : vector<22x2xf32>
    %245 = arith.addf %239, %244 : vector<22x2xf32>
    %246 = vector.extract_strided_slice %212 {offsets = [0, 5], sizes = [22, 1], strides = [1, 1]} : vector<22x10xf32> to vector<22x1xf32>
    %247 = vector.extract_strided_slice %55 {offsets = [5, 0], sizes = [1, 2], strides = [1, 1]} : vector<10x2xf32> to vector<1x2xf32>
    %248 = vector.broadcast %246 : vector<22x1xf32> to vector<22x2xf32>
    %249 = vector.broadcast %247 : vector<1x2xf32> to vector<22x2xf32>
    %250 = arith.mulf %248, %249 : vector<22x2xf32>
    %251 = arith.addf %245, %250 : vector<22x2xf32>
    %252 = vector.extract_strided_slice %212 {offsets = [0, 6], sizes = [22, 1], strides = [1, 1]} : vector<22x10xf32> to vector<22x1xf32>
    %253 = vector.extract_strided_slice %55 {offsets = [6, 0], sizes = [1, 2], strides = [1, 1]} : vector<10x2xf32> to vector<1x2xf32>
    %254 = vector.broadcast %252 : vector<22x1xf32> to vector<22x2xf32>
    %255 = vector.broadcast %253 : vector<1x2xf32> to vector<22x2xf32>
    %256 = arith.mulf %254, %255 : vector<22x2xf32>
    %257 = arith.addf %251, %256 : vector<22x2xf32>
    %258 = vector.extract_strided_slice %212 {offsets = [0, 7], sizes = [22, 1], strides = [1, 1]} : vector<22x10xf32> to vector<22x1xf32>
    %259 = vector.extract_strided_slice %55 {offsets = [7, 0], sizes = [1, 2], strides = [1, 1]} : vector<10x2xf32> to vector<1x2xf32>
    %260 = vector.broadcast %258 : vector<22x1xf32> to vector<22x2xf32>
    %261 = vector.broadcast %259 : vector<1x2xf32> to vector<22x2xf32>
    %262 = arith.mulf %260, %261 : vector<22x2xf32>
    %263 = arith.addf %257, %262 : vector<22x2xf32>
    %264 = vector.extract_strided_slice %212 {offsets = [0, 8], sizes = [22, 1], strides = [1, 1]} : vector<22x10xf32> to vector<22x1xf32>
    %265 = vector.extract_strided_slice %55 {offsets = [8, 0], sizes = [1, 2], strides = [1, 1]} : vector<10x2xf32> to vector<1x2xf32>
    %266 = vector.broadcast %264 : vector<22x1xf32> to vector<22x2xf32>
    %267 = vector.broadcast %265 : vector<1x2xf32> to vector<22x2xf32>
    %268 = arith.mulf %266, %267 : vector<22x2xf32>
    %269 = arith.addf %263, %268 : vector<22x2xf32>
    %270 = vector.extract_strided_slice %212 {offsets = [0, 9], sizes = [22, 1], strides = [1, 1]} : vector<22x10xf32> to vector<22x1xf32>
    %271 = vector.extract_strided_slice %55 {offsets = [9, 0], sizes = [1, 2], strides = [1, 1]} : vector<10x2xf32> to vector<1x2xf32>
    %272 = vector.broadcast %270 : vector<22x1xf32> to vector<22x2xf32>
    %273 = vector.broadcast %271 : vector<1x2xf32> to vector<22x2xf32>
    %274 = arith.mulf %272, %273 : vector<22x2xf32>
    %275 = arith.addf %269, %274 : vector<22x2xf32>
    %c1_66 = arith.constant 1 : index
    %c0_67 = arith.constant 0 : index
    %c0_68 = arith.constant 0 : index
    %276 = vector.load %arg6[%c1_66, %c0_67, %c0_68] : memref<3x22x10xf32, #tpu.memory_space<vmem>>, vector<1x22x10xf32>
    %277 = vector.shape_cast %276 : vector<1x22x10xf32> to vector<22x10xf32>
    %c1_69 = arith.constant 1 : index
    %c0_70 = arith.constant 0 : index
    %c0_71 = arith.constant 0 : index
    %278 = vector.load %arg5[%c1_69, %c0_70, %c0_71] : memref<3x22x1xf32, #tpu.memory_space<vmem>>, vector<1x22x1xf32>
    %279 = vector.shape_cast %278 : vector<1x22x1xf32> to vector<22x1xf32>
    %280 = vector.extract_strided_slice %277 {offsets = [0, 0], sizes = [22, 1], strides = [1, 1]} : vector<22x10xf32> to vector<22x1xf32>
    %281 = vector.extract_strided_slice %55 {offsets = [0, 0], sizes = [1, 2], strides = [1, 1]} : vector<10x2xf32> to vector<1x2xf32>
    %282 = vector.broadcast %280 : vector<22x1xf32> to vector<22x2xf32>
    %283 = vector.broadcast %281 : vector<1x2xf32> to vector<22x2xf32>
    %284 = arith.mulf %282, %283 : vector<22x2xf32>
    %285 = vector.broadcast %279 : vector<22x1xf32> to vector<22x2xf32>
    %286 = arith.addf %285, %284 : vector<22x2xf32>
    %287 = vector.extract_strided_slice %277 {offsets = [0, 1], sizes = [22, 1], strides = [1, 1]} : vector<22x10xf32> to vector<22x1xf32>
    %288 = vector.extract_strided_slice %55 {offsets = [1, 0], sizes = [1, 2], strides = [1, 1]} : vector<10x2xf32> to vector<1x2xf32>
    %289 = vector.broadcast %287 : vector<22x1xf32> to vector<22x2xf32>
    %290 = vector.broadcast %288 : vector<1x2xf32> to vector<22x2xf32>
    %291 = arith.mulf %289, %290 : vector<22x2xf32>
    %292 = arith.addf %286, %291 : vector<22x2xf32>
    %293 = vector.extract_strided_slice %277 {offsets = [0, 2], sizes = [22, 1], strides = [1, 1]} : vector<22x10xf32> to vector<22x1xf32>
    %294 = vector.extract_strided_slice %55 {offsets = [2, 0], sizes = [1, 2], strides = [1, 1]} : vector<10x2xf32> to vector<1x2xf32>
    %295 = vector.broadcast %293 : vector<22x1xf32> to vector<22x2xf32>
    %296 = vector.broadcast %294 : vector<1x2xf32> to vector<22x2xf32>
    %297 = arith.mulf %295, %296 : vector<22x2xf32>
    %298 = arith.addf %292, %297 : vector<22x2xf32>
    %299 = vector.extract_strided_slice %277 {offsets = [0, 3], sizes = [22, 1], strides = [1, 1]} : vector<22x10xf32> to vector<22x1xf32>
    %300 = vector.extract_strided_slice %55 {offsets = [3, 0], sizes = [1, 2], strides = [1, 1]} : vector<10x2xf32> to vector<1x2xf32>
    %301 = vector.broadcast %299 : vector<22x1xf32> to vector<22x2xf32>
    %302 = vector.broadcast %300 : vector<1x2xf32> to vector<22x2xf32>
    %303 = arith.mulf %301, %302 : vector<22x2xf32>
    %304 = arith.addf %298, %303 : vector<22x2xf32>
    %305 = vector.extract_strided_slice %277 {offsets = [0, 4], sizes = [22, 1], strides = [1, 1]} : vector<22x10xf32> to vector<22x1xf32>
    %306 = vector.extract_strided_slice %55 {offsets = [4, 0], sizes = [1, 2], strides = [1, 1]} : vector<10x2xf32> to vector<1x2xf32>
    %307 = vector.broadcast %305 : vector<22x1xf32> to vector<22x2xf32>
    %308 = vector.broadcast %306 : vector<1x2xf32> to vector<22x2xf32>
    %309 = arith.mulf %307, %308 : vector<22x2xf32>
    %310 = arith.addf %304, %309 : vector<22x2xf32>
    %311 = vector.extract_strided_slice %277 {offsets = [0, 5], sizes = [22, 1], strides = [1, 1]} : vector<22x10xf32> to vector<22x1xf32>
    %312 = vector.extract_strided_slice %55 {offsets = [5, 0], sizes = [1, 2], strides = [1, 1]} : vector<10x2xf32> to vector<1x2xf32>
    %313 = vector.broadcast %311 : vector<22x1xf32> to vector<22x2xf32>
    %314 = vector.broadcast %312 : vector<1x2xf32> to vector<22x2xf32>
    %315 = arith.mulf %313, %314 : vector<22x2xf32>
    %316 = arith.addf %310, %315 : vector<22x2xf32>
    %317 = vector.extract_strided_slice %277 {offsets = [0, 6], sizes = [22, 1], strides = [1, 1]} : vector<22x10xf32> to vector<22x1xf32>
    %318 = vector.extract_strided_slice %55 {offsets = [6, 0], sizes = [1, 2], strides = [1, 1]} : vector<10x2xf32> to vector<1x2xf32>
    %319 = vector.broadcast %317 : vector<22x1xf32> to vector<22x2xf32>
    %320 = vector.broadcast %318 : vector<1x2xf32> to vector<22x2xf32>
    %321 = arith.mulf %319, %320 : vector<22x2xf32>
    %322 = arith.addf %316, %321 : vector<22x2xf32>
    %323 = vector.extract_strided_slice %277 {offsets = [0, 7], sizes = [22, 1], strides = [1, 1]} : vector<22x10xf32> to vector<22x1xf32>
    %324 = vector.extract_strided_slice %55 {offsets = [7, 0], sizes = [1, 2], strides = [1, 1]} : vector<10x2xf32> to vector<1x2xf32>
    %325 = vector.broadcast %323 : vector<22x1xf32> to vector<22x2xf32>
    %326 = vector.broadcast %324 : vector<1x2xf32> to vector<22x2xf32>
    %327 = arith.mulf %325, %326 : vector<22x2xf32>
    %328 = arith.addf %322, %327 : vector<22x2xf32>
    %329 = vector.extract_strided_slice %277 {offsets = [0, 8], sizes = [22, 1], strides = [1, 1]} : vector<22x10xf32> to vector<22x1xf32>
    %330 = vector.extract_strided_slice %55 {offsets = [8, 0], sizes = [1, 2], strides = [1, 1]} : vector<10x2xf32> to vector<1x2xf32>
    %331 = vector.broadcast %329 : vector<22x1xf32> to vector<22x2xf32>
    %332 = vector.broadcast %330 : vector<1x2xf32> to vector<22x2xf32>
    %333 = arith.mulf %331, %332 : vector<22x2xf32>
    %334 = arith.addf %328, %333 : vector<22x2xf32>
    %335 = vector.extract_strided_slice %277 {offsets = [0, 9], sizes = [22, 1], strides = [1, 1]} : vector<22x10xf32> to vector<22x1xf32>
    %336 = vector.extract_strided_slice %55 {offsets = [9, 0], sizes = [1, 2], strides = [1, 1]} : vector<10x2xf32> to vector<1x2xf32>
    %337 = vector.broadcast %335 : vector<22x1xf32> to vector<22x2xf32>
    %338 = vector.broadcast %336 : vector<1x2xf32> to vector<22x2xf32>
    %339 = arith.mulf %337, %338 : vector<22x2xf32>
    %340 = arith.addf %334, %339 : vector<22x2xf32>
    %c2_72 = arith.constant 2 : index
    %c0_73 = arith.constant 0 : index
    %c0_74 = arith.constant 0 : index
    %341 = vector.load %arg6[%c2_72, %c0_73, %c0_74] : memref<3x22x10xf32, #tpu.memory_space<vmem>>, vector<1x22x10xf32>
    %342 = vector.shape_cast %341 : vector<1x22x10xf32> to vector<22x10xf32>
    %c2_75 = arith.constant 2 : index
    %c0_76 = arith.constant 0 : index
    %c0_77 = arith.constant 0 : index
    %343 = vector.load %arg5[%c2_75, %c0_76, %c0_77] : memref<3x22x1xf32, #tpu.memory_space<vmem>>, vector<1x22x1xf32>
    %344 = vector.shape_cast %343 : vector<1x22x1xf32> to vector<22x1xf32>
    %345 = vector.extract_strided_slice %342 {offsets = [0, 0], sizes = [22, 1], strides = [1, 1]} : vector<22x10xf32> to vector<22x1xf32>
    %346 = vector.extract_strided_slice %55 {offsets = [0, 0], sizes = [1, 2], strides = [1, 1]} : vector<10x2xf32> to vector<1x2xf32>
    %347 = vector.broadcast %345 : vector<22x1xf32> to vector<22x2xf32>
    %348 = vector.broadcast %346 : vector<1x2xf32> to vector<22x2xf32>
    %349 = arith.mulf %347, %348 : vector<22x2xf32>
    %350 = vector.broadcast %344 : vector<22x1xf32> to vector<22x2xf32>
    %351 = arith.addf %350, %349 : vector<22x2xf32>
    %352 = vector.extract_strided_slice %342 {offsets = [0, 1], sizes = [22, 1], strides = [1, 1]} : vector<22x10xf32> to vector<22x1xf32>
    %353 = vector.extract_strided_slice %55 {offsets = [1, 0], sizes = [1, 2], strides = [1, 1]} : vector<10x2xf32> to vector<1x2xf32>
    %354 = vector.broadcast %352 : vector<22x1xf32> to vector<22x2xf32>
    %355 = vector.broadcast %353 : vector<1x2xf32> to vector<22x2xf32>
    %356 = arith.mulf %354, %355 : vector<22x2xf32>
    %357 = arith.addf %351, %356 : vector<22x2xf32>
    %358 = vector.extract_strided_slice %342 {offsets = [0, 2], sizes = [22, 1], strides = [1, 1]} : vector<22x10xf32> to vector<22x1xf32>
    %359 = vector.extract_strided_slice %55 {offsets = [2, 0], sizes = [1, 2], strides = [1, 1]} : vector<10x2xf32> to vector<1x2xf32>
    %360 = vector.broadcast %358 : vector<22x1xf32> to vector<22x2xf32>
    %361 = vector.broadcast %359 : vector<1x2xf32> to vector<22x2xf32>
    %362 = arith.mulf %360, %361 : vector<22x2xf32>
    %363 = arith.addf %357, %362 : vector<22x2xf32>
    %364 = vector.extract_strided_slice %342 {offsets = [0, 3], sizes = [22, 1], strides = [1, 1]} : vector<22x10xf32> to vector<22x1xf32>
    %365 = vector.extract_strided_slice %55 {offsets = [3, 0], sizes = [1, 2], strides = [1, 1]} : vector<10x2xf32> to vector<1x2xf32>
    %366 = vector.broadcast %364 : vector<22x1xf32> to vector<22x2xf32>
    %367 = vector.broadcast %365 : vector<1x2xf32> to vector<22x2xf32>
    %368 = arith.mulf %366, %367 : vector<22x2xf32>
    %369 = arith.addf %363, %368 : vector<22x2xf32>
    %370 = vector.extract_strided_slice %342 {offsets = [0, 4], sizes = [22, 1], strides = [1, 1]} : vector<22x10xf32> to vector<22x1xf32>
    %371 = vector.extract_strided_slice %55 {offsets = [4, 0], sizes = [1, 2], strides = [1, 1]} : vector<10x2xf32> to vector<1x2xf32>
    %372 = vector.broadcast %370 : vector<22x1xf32> to vector<22x2xf32>
    %373 = vector.broadcast %371 : vector<1x2xf32> to vector<22x2xf32>
    %374 = arith.mulf %372, %373 : vector<22x2xf32>
    %375 = arith.addf %369, %374 : vector<22x2xf32>
    %376 = vector.extract_strided_slice %342 {offsets = [0, 5], sizes = [22, 1], strides = [1, 1]} : vector<22x10xf32> to vector<22x1xf32>
    %377 = vector.extract_strided_slice %55 {offsets = [5, 0], sizes = [1, 2], strides = [1, 1]} : vector<10x2xf32> to vector<1x2xf32>
    %378 = vector.broadcast %376 : vector<22x1xf32> to vector<22x2xf32>
    %379 = vector.broadcast %377 : vector<1x2xf32> to vector<22x2xf32>
    %380 = arith.mulf %378, %379 : vector<22x2xf32>
    %381 = arith.addf %375, %380 : vector<22x2xf32>
    %382 = vector.extract_strided_slice %342 {offsets = [0, 6], sizes = [22, 1], strides = [1, 1]} : vector<22x10xf32> to vector<22x1xf32>
    %383 = vector.extract_strided_slice %55 {offsets = [6, 0], sizes = [1, 2], strides = [1, 1]} : vector<10x2xf32> to vector<1x2xf32>
    %384 = vector.broadcast %382 : vector<22x1xf32> to vector<22x2xf32>
    %385 = vector.broadcast %383 : vector<1x2xf32> to vector<22x2xf32>
    %386 = arith.mulf %384, %385 : vector<22x2xf32>
    %387 = arith.addf %381, %386 : vector<22x2xf32>
    %388 = vector.extract_strided_slice %342 {offsets = [0, 7], sizes = [22, 1], strides = [1, 1]} : vector<22x10xf32> to vector<22x1xf32>
    %389 = vector.extract_strided_slice %55 {offsets = [7, 0], sizes = [1, 2], strides = [1, 1]} : vector<10x2xf32> to vector<1x2xf32>
    %390 = vector.broadcast %388 : vector<22x1xf32> to vector<22x2xf32>
    %391 = vector.broadcast %389 : vector<1x2xf32> to vector<22x2xf32>
    %392 = arith.mulf %390, %391 : vector<22x2xf32>
    %393 = arith.addf %387, %392 : vector<22x2xf32>
    %394 = vector.extract_strided_slice %342 {offsets = [0, 8], sizes = [22, 1], strides = [1, 1]} : vector<22x10xf32> to vector<22x1xf32>
    %395 = vector.extract_strided_slice %55 {offsets = [8, 0], sizes = [1, 2], strides = [1, 1]} : vector<10x2xf32> to vector<1x2xf32>
    %396 = vector.broadcast %394 : vector<22x1xf32> to vector<22x2xf32>
    %397 = vector.broadcast %395 : vector<1x2xf32> to vector<22x2xf32>
    %398 = arith.mulf %396, %397 : vector<22x2xf32>
    %399 = arith.addf %393, %398 : vector<22x2xf32>
    %400 = vector.extract_strided_slice %342 {offsets = [0, 9], sizes = [22, 1], strides = [1, 1]} : vector<22x10xf32> to vector<22x1xf32>
    %401 = vector.extract_strided_slice %55 {offsets = [9, 0], sizes = [1, 2], strides = [1, 1]} : vector<10x2xf32> to vector<1x2xf32>
    %402 = vector.broadcast %400 : vector<22x1xf32> to vector<22x2xf32>
    %403 = vector.broadcast %401 : vector<1x2xf32> to vector<22x2xf32>
    %404 = arith.mulf %402, %403 : vector<22x2xf32>
    %405 = arith.addf %399, %404 : vector<22x2xf32>
    %406 = vector.extract_strided_slice %20 {offsets = [0, 0], sizes = [1, 2], strides = [1, 1]} : vector<22x2xf32> to vector<1x2xf32>
    %407 = vector.extract_strided_slice %21 {offsets = [0, 0], sizes = [1, 2], strides = [1, 1]} : vector<22x2xf32> to vector<1x2xf32>
    %408 = vector.extract_strided_slice %22 {offsets = [0, 0], sizes = [1, 2], strides = [1, 1]} : vector<22x2xf32> to vector<1x2xf32>
    %409 = vector.extract_strided_slice %42 {offsets = [0, 0], sizes = [1, 2], strides = [1, 1]} : vector<22x2xf32> to vector<1x2xf32>
    %410 = vector.extract_strided_slice %43 {offsets = [0, 0], sizes = [1, 2], strides = [1, 1]} : vector<22x2xf32> to vector<1x2xf32>
    %411 = vector.extract_strided_slice %44 {offsets = [0, 0], sizes = [1, 2], strides = [1, 1]} : vector<22x2xf32> to vector<1x2xf32>
    %412 = vector.extract_strided_slice %47 {offsets = [0, 0], sizes = [1, 2], strides = [1, 1]} : vector<22x2xf32> to vector<1x2xf32>
    %413 = vector.extract_strided_slice %50 {offsets = [0, 0], sizes = [1, 2], strides = [1, 1]} : vector<22x2xf32> to vector<1x2xf32>
    %414 = vector.extract_strided_slice %53 {offsets = [0, 0], sizes = [1, 2], strides = [1, 1]} : vector<22x2xf32> to vector<1x2xf32>
    %415 = vector.extract_strided_slice %20 {offsets = [1, 0], sizes = [1, 2], strides = [1, 1]} : vector<22x2xf32> to vector<1x2xf32>
    %416 = vector.extract_strided_slice %21 {offsets = [1, 0], sizes = [1, 2], strides = [1, 1]} : vector<22x2xf32> to vector<1x2xf32>
    %417 = vector.extract_strided_slice %22 {offsets = [1, 0], sizes = [1, 2], strides = [1, 1]} : vector<22x2xf32> to vector<1x2xf32>
    %418 = vector.extract_strided_slice %42 {offsets = [1, 0], sizes = [1, 2], strides = [1, 1]} : vector<22x2xf32> to vector<1x2xf32>
    %419 = vector.extract_strided_slice %43 {offsets = [1, 0], sizes = [1, 2], strides = [1, 1]} : vector<22x2xf32> to vector<1x2xf32>
    %420 = vector.extract_strided_slice %44 {offsets = [1, 0], sizes = [1, 2], strides = [1, 1]} : vector<22x2xf32> to vector<1x2xf32>
    %421 = vector.extract_strided_slice %47 {offsets = [1, 0], sizes = [1, 2], strides = [1, 1]} : vector<22x2xf32> to vector<1x2xf32>
    %422 = vector.extract_strided_slice %50 {offsets = [1, 0], sizes = [1, 2], strides = [1, 1]} : vector<22x2xf32> to vector<1x2xf32>
    %423 = vector.extract_strided_slice %53 {offsets = [1, 0], sizes = [1, 2], strides = [1, 1]} : vector<22x2xf32> to vector<1x2xf32>
    %424 = vector.extract_strided_slice %20 {offsets = [2, 0], sizes = [1, 2], strides = [1, 1]} : vector<22x2xf32> to vector<1x2xf32>
    %425 = vector.extract_strided_slice %21 {offsets = [2, 0], sizes = [1, 2], strides = [1, 1]} : vector<22x2xf32> to vector<1x2xf32>
    %426 = vector.extract_strided_slice %22 {offsets = [2, 0], sizes = [1, 2], strides = [1, 1]} : vector<22x2xf32> to vector<1x2xf32>
    %427 = vector.extract_strided_slice %42 {offsets = [2, 0], sizes = [1, 2], strides = [1, 1]} : vector<22x2xf32> to vector<1x2xf32>
    %428 = vector.extract_strided_slice %43 {offsets = [2, 0], sizes = [1, 2], strides = [1, 1]} : vector<22x2xf32> to vector<1x2xf32>
    %429 = vector.extract_strided_slice %44 {offsets = [2, 0], sizes = [1, 2], strides = [1, 1]} : vector<22x2xf32> to vector<1x2xf32>
    %430 = vector.extract_strided_slice %47 {offsets = [2, 0], sizes = [1, 2], strides = [1, 1]} : vector<22x2xf32> to vector<1x2xf32>
    %431 = vector.extract_strided_slice %50 {offsets = [2, 0], sizes = [1, 2], strides = [1, 1]} : vector<22x2xf32> to vector<1x2xf32>
    %432 = vector.extract_strided_slice %53 {offsets = [2, 0], sizes = [1, 2], strides = [1, 1]} : vector<22x2xf32> to vector<1x2xf32>
    %433 = vector.extract_strided_slice %20 {offsets = [3, 0], sizes = [1, 2], strides = [1, 1]} : vector<22x2xf32> to vector<1x2xf32>
    %434 = vector.extract_strided_slice %21 {offsets = [3, 0], sizes = [1, 2], strides = [1, 1]} : vector<22x2xf32> to vector<1x2xf32>
    %435 = vector.extract_strided_slice %22 {offsets = [3, 0], sizes = [1, 2], strides = [1, 1]} : vector<22x2xf32> to vector<1x2xf32>
    %436 = vector.extract_strided_slice %42 {offsets = [3, 0], sizes = [1, 2], strides = [1, 1]} : vector<22x2xf32> to vector<1x2xf32>
    %437 = vector.extract_strided_slice %43 {offsets = [3, 0], sizes = [1, 2], strides = [1, 1]} : vector<22x2xf32> to vector<1x2xf32>
    %438 = vector.extract_strided_slice %44 {offsets = [3, 0], sizes = [1, 2], strides = [1, 1]} : vector<22x2xf32> to vector<1x2xf32>
    %439 = vector.extract_strided_slice %47 {offsets = [3, 0], sizes = [1, 2], strides = [1, 1]} : vector<22x2xf32> to vector<1x2xf32>
    %440 = vector.extract_strided_slice %50 {offsets = [3, 0], sizes = [1, 2], strides = [1, 1]} : vector<22x2xf32> to vector<1x2xf32>
    %441 = vector.extract_strided_slice %53 {offsets = [3, 0], sizes = [1, 2], strides = [1, 1]} : vector<22x2xf32> to vector<1x2xf32>
    %442 = vector.extract_strided_slice %20 {offsets = [4, 0], sizes = [1, 2], strides = [1, 1]} : vector<22x2xf32> to vector<1x2xf32>
    %443 = vector.extract_strided_slice %21 {offsets = [4, 0], sizes = [1, 2], strides = [1, 1]} : vector<22x2xf32> to vector<1x2xf32>
    %444 = vector.extract_strided_slice %22 {offsets = [4, 0], sizes = [1, 2], strides = [1, 1]} : vector<22x2xf32> to vector<1x2xf32>
    %445 = vector.extract_strided_slice %42 {offsets = [4, 0], sizes = [1, 2], strides = [1, 1]} : vector<22x2xf32> to vector<1x2xf32>
    %446 = vector.extract_strided_slice %43 {offsets = [4, 0], sizes = [1, 2], strides = [1, 1]} : vector<22x2xf32> to vector<1x2xf32>
    %447 = vector.extract_strided_slice %44 {offsets = [4, 0], sizes = [1, 2], strides = [1, 1]} : vector<22x2xf32> to vector<1x2xf32>
    %448 = vector.extract_strided_slice %47 {offsets = [4, 0], sizes = [1, 2], strides = [1, 1]} : vector<22x2xf32> to vector<1x2xf32>
    %449 = vector.extract_strided_slice %50 {offsets = [4, 0], sizes = [1, 2], strides = [1, 1]} : vector<22x2xf32> to vector<1x2xf32>
    %450 = vector.extract_strided_slice %53 {offsets = [4, 0], sizes = [1, 2], strides = [1, 1]} : vector<22x2xf32> to vector<1x2xf32>
    %451 = vector.extract_strided_slice %20 {offsets = [5, 0], sizes = [1, 2], strides = [1, 1]} : vector<22x2xf32> to vector<1x2xf32>
    %452 = vector.extract_strided_slice %21 {offsets = [5, 0], sizes = [1, 2], strides = [1, 1]} : vector<22x2xf32> to vector<1x2xf32>
    %453 = vector.extract_strided_slice %22 {offsets = [5, 0], sizes = [1, 2], strides = [1, 1]} : vector<22x2xf32> to vector<1x2xf32>
    %454 = vector.extract_strided_slice %42 {offsets = [5, 0], sizes = [1, 2], strides = [1, 1]} : vector<22x2xf32> to vector<1x2xf32>
    %455 = vector.extract_strided_slice %43 {offsets = [5, 0], sizes = [1, 2], strides = [1, 1]} : vector<22x2xf32> to vector<1x2xf32>
    %456 = vector.extract_strided_slice %44 {offsets = [5, 0], sizes = [1, 2], strides = [1, 1]} : vector<22x2xf32> to vector<1x2xf32>
    %457 = vector.extract_strided_slice %47 {offsets = [5, 0], sizes = [1, 2], strides = [1, 1]} : vector<22x2xf32> to vector<1x2xf32>
    %458 = vector.extract_strided_slice %50 {offsets = [5, 0], sizes = [1, 2], strides = [1, 1]} : vector<22x2xf32> to vector<1x2xf32>
    %459 = vector.extract_strided_slice %53 {offsets = [5, 0], sizes = [1, 2], strides = [1, 1]} : vector<22x2xf32> to vector<1x2xf32>
    %460 = vector.extract_strided_slice %20 {offsets = [6, 0], sizes = [1, 2], strides = [1, 1]} : vector<22x2xf32> to vector<1x2xf32>
    %461 = vector.extract_strided_slice %21 {offsets = [6, 0], sizes = [1, 2], strides = [1, 1]} : vector<22x2xf32> to vector<1x2xf32>
    %462 = vector.extract_strided_slice %22 {offsets = [6, 0], sizes = [1, 2], strides = [1, 1]} : vector<22x2xf32> to vector<1x2xf32>
    %463 = vector.extract_strided_slice %42 {offsets = [6, 0], sizes = [1, 2], strides = [1, 1]} : vector<22x2xf32> to vector<1x2xf32>
    %464 = vector.extract_strided_slice %43 {offsets = [6, 0], sizes = [1, 2], strides = [1, 1]} : vector<22x2xf32> to vector<1x2xf32>
    %465 = vector.extract_strided_slice %44 {offsets = [6, 0], sizes = [1, 2], strides = [1, 1]} : vector<22x2xf32> to vector<1x2xf32>
    %466 = vector.extract_strided_slice %47 {offsets = [6, 0], sizes = [1, 2], strides = [1, 1]} : vector<22x2xf32> to vector<1x2xf32>
    %467 = vector.extract_strided_slice %50 {offsets = [6, 0], sizes = [1, 2], strides = [1, 1]} : vector<22x2xf32> to vector<1x2xf32>
    %468 = vector.extract_strided_slice %53 {offsets = [6, 0], sizes = [1, 2], strides = [1, 1]} : vector<22x2xf32> to vector<1x2xf32>
    %469 = vector.extract_strided_slice %20 {offsets = [7, 0], sizes = [1, 2], strides = [1, 1]} : vector<22x2xf32> to vector<1x2xf32>
    %470 = vector.extract_strided_slice %21 {offsets = [7, 0], sizes = [1, 2], strides = [1, 1]} : vector<22x2xf32> to vector<1x2xf32>
    %471 = vector.extract_strided_slice %22 {offsets = [7, 0], sizes = [1, 2], strides = [1, 1]} : vector<22x2xf32> to vector<1x2xf32>
    %472 = vector.extract_strided_slice %42 {offsets = [7, 0], sizes = [1, 2], strides = [1, 1]} : vector<22x2xf32> to vector<1x2xf32>
    %473 = vector.extract_strided_slice %43 {offsets = [7, 0], sizes = [1, 2], strides = [1, 1]} : vector<22x2xf32> to vector<1x2xf32>
    %474 = vector.extract_strided_slice %44 {offsets = [7, 0], sizes = [1, 2], strides = [1, 1]} : vector<22x2xf32> to vector<1x2xf32>
    %475 = vector.extract_strided_slice %47 {offsets = [7, 0], sizes = [1, 2], strides = [1, 1]} : vector<22x2xf32> to vector<1x2xf32>
    %476 = vector.extract_strided_slice %50 {offsets = [7, 0], sizes = [1, 2], strides = [1, 1]} : vector<22x2xf32> to vector<1x2xf32>
    %477 = vector.extract_strided_slice %53 {offsets = [7, 0], sizes = [1, 2], strides = [1, 1]} : vector<22x2xf32> to vector<1x2xf32>
    %478 = vector.extract_strided_slice %20 {offsets = [8, 0], sizes = [1, 2], strides = [1, 1]} : vector<22x2xf32> to vector<1x2xf32>
    %479 = vector.extract_strided_slice %21 {offsets = [8, 0], sizes = [1, 2], strides = [1, 1]} : vector<22x2xf32> to vector<1x2xf32>
    %480 = vector.extract_strided_slice %22 {offsets = [8, 0], sizes = [1, 2], strides = [1, 1]} : vector<22x2xf32> to vector<1x2xf32>
    %481 = vector.extract_strided_slice %42 {offsets = [8, 0], sizes = [1, 2], strides = [1, 1]} : vector<22x2xf32> to vector<1x2xf32>
    %482 = vector.extract_strided_slice %43 {offsets = [8, 0], sizes = [1, 2], strides = [1, 1]} : vector<22x2xf32> to vector<1x2xf32>
    %483 = vector.extract_strided_slice %44 {offsets = [8, 0], sizes = [1, 2], strides = [1, 1]} : vector<22x2xf32> to vector<1x2xf32>
    %484 = vector.extract_strided_slice %47 {offsets = [8, 0], sizes = [1, 2], strides = [1, 1]} : vector<22x2xf32> to vector<1x2xf32>
    %485 = vector.extract_strided_slice %50 {offsets = [8, 0], sizes = [1, 2], strides = [1, 1]} : vector<22x2xf32> to vector<1x2xf32>
    %486 = vector.extract_strided_slice %53 {offsets = [8, 0], sizes = [1, 2], strides = [1, 1]} : vector<22x2xf32> to vector<1x2xf32>
    %487 = vector.extract_strided_slice %20 {offsets = [9, 0], sizes = [1, 2], strides = [1, 1]} : vector<22x2xf32> to vector<1x2xf32>
    %488 = vector.extract_strided_slice %21 {offsets = [9, 0], sizes = [1, 2], strides = [1, 1]} : vector<22x2xf32> to vector<1x2xf32>
    %489 = vector.extract_strided_slice %22 {offsets = [9, 0], sizes = [1, 2], strides = [1, 1]} : vector<22x2xf32> to vector<1x2xf32>
    %490 = vector.extract_strided_slice %42 {offsets = [9, 0], sizes = [1, 2], strides = [1, 1]} : vector<22x2xf32> to vector<1x2xf32>
    %491 = vector.extract_strided_slice %43 {offsets = [9, 0], sizes = [1, 2], strides = [1, 1]} : vector<22x2xf32> to vector<1x2xf32>
    %492 = vector.extract_strided_slice %44 {offsets = [9, 0], sizes = [1, 2], strides = [1, 1]} : vector<22x2xf32> to vector<1x2xf32>
    %493 = vector.extract_strided_slice %47 {offsets = [9, 0], sizes = [1, 2], strides = [1, 1]} : vector<22x2xf32> to vector<1x2xf32>
    %494 = vector.extract_strided_slice %50 {offsets = [9, 0], sizes = [1, 2], strides = [1, 1]} : vector<22x2xf32> to vector<1x2xf32>
    %495 = vector.extract_strided_slice %53 {offsets = [9, 0], sizes = [1, 2], strides = [1, 1]} : vector<22x2xf32> to vector<1x2xf32>
    %496 = vector.extract_strided_slice %20 {offsets = [12, 0], sizes = [1, 2], strides = [1, 1]} : vector<22x2xf32> to vector<1x2xf32>
    %497 = vector.extract_strided_slice %21 {offsets = [12, 0], sizes = [1, 2], strides = [1, 1]} : vector<22x2xf32> to vector<1x2xf32>
    %498 = vector.extract_strided_slice %22 {offsets = [12, 0], sizes = [1, 2], strides = [1, 1]} : vector<22x2xf32> to vector<1x2xf32>
    %499 = vector.extract_strided_slice %42 {offsets = [12, 0], sizes = [1, 2], strides = [1, 1]} : vector<22x2xf32> to vector<1x2xf32>
    %500 = vector.extract_strided_slice %43 {offsets = [12, 0], sizes = [1, 2], strides = [1, 1]} : vector<22x2xf32> to vector<1x2xf32>
    %501 = vector.extract_strided_slice %44 {offsets = [12, 0], sizes = [1, 2], strides = [1, 1]} : vector<22x2xf32> to vector<1x2xf32>
    %502 = vector.extract_strided_slice %47 {offsets = [12, 0], sizes = [1, 2], strides = [1, 1]} : vector<22x2xf32> to vector<1x2xf32>
    %503 = vector.extract_strided_slice %50 {offsets = [12, 0], sizes = [1, 2], strides = [1, 1]} : vector<22x2xf32> to vector<1x2xf32>
    %504 = vector.extract_strided_slice %53 {offsets = [12, 0], sizes = [1, 2], strides = [1, 1]} : vector<22x2xf32> to vector<1x2xf32>
    %505 = vector.extract_strided_slice %20 {offsets = [13, 0], sizes = [1, 2], strides = [1, 1]} : vector<22x2xf32> to vector<1x2xf32>
    %506 = vector.extract_strided_slice %21 {offsets = [13, 0], sizes = [1, 2], strides = [1, 1]} : vector<22x2xf32> to vector<1x2xf32>
    %507 = vector.extract_strided_slice %22 {offsets = [13, 0], sizes = [1, 2], strides = [1, 1]} : vector<22x2xf32> to vector<1x2xf32>
    %508 = vector.extract_strided_slice %42 {offsets = [13, 0], sizes = [1, 2], strides = [1, 1]} : vector<22x2xf32> to vector<1x2xf32>
    %509 = vector.extract_strided_slice %43 {offsets = [13, 0], sizes = [1, 2], strides = [1, 1]} : vector<22x2xf32> to vector<1x2xf32>
    %510 = vector.extract_strided_slice %44 {offsets = [13, 0], sizes = [1, 2], strides = [1, 1]} : vector<22x2xf32> to vector<1x2xf32>
    %511 = vector.extract_strided_slice %47 {offsets = [13, 0], sizes = [1, 2], strides = [1, 1]} : vector<22x2xf32> to vector<1x2xf32>
    %512 = vector.extract_strided_slice %50 {offsets = [13, 0], sizes = [1, 2], strides = [1, 1]} : vector<22x2xf32> to vector<1x2xf32>
    %513 = vector.extract_strided_slice %53 {offsets = [13, 0], sizes = [1, 2], strides = [1, 1]} : vector<22x2xf32> to vector<1x2xf32>
    %514 = vector.extract_strided_slice %20 {offsets = [14, 0], sizes = [1, 2], strides = [1, 1]} : vector<22x2xf32> to vector<1x2xf32>
    %515 = vector.extract_strided_slice %21 {offsets = [14, 0], sizes = [1, 2], strides = [1, 1]} : vector<22x2xf32> to vector<1x2xf32>
    %516 = vector.extract_strided_slice %22 {offsets = [14, 0], sizes = [1, 2], strides = [1, 1]} : vector<22x2xf32> to vector<1x2xf32>
    %517 = vector.extract_strided_slice %42 {offsets = [14, 0], sizes = [1, 2], strides = [1, 1]} : vector<22x2xf32> to vector<1x2xf32>
    %518 = vector.extract_strided_slice %43 {offsets = [14, 0], sizes = [1, 2], strides = [1, 1]} : vector<22x2xf32> to vector<1x2xf32>
    %519 = vector.extract_strided_slice %44 {offsets = [14, 0], sizes = [1, 2], strides = [1, 1]} : vector<22x2xf32> to vector<1x2xf32>
    %520 = vector.extract_strided_slice %47 {offsets = [14, 0], sizes = [1, 2], strides = [1, 1]} : vector<22x2xf32> to vector<1x2xf32>
    %521 = vector.extract_strided_slice %50 {offsets = [14, 0], sizes = [1, 2], strides = [1, 1]} : vector<22x2xf32> to vector<1x2xf32>
    %522 = vector.extract_strided_slice %53 {offsets = [14, 0], sizes = [1, 2], strides = [1, 1]} : vector<22x2xf32> to vector<1x2xf32>
    %523 = vector.extract_strided_slice %20 {offsets = [16, 0], sizes = [1, 2], strides = [1, 1]} : vector<22x2xf32> to vector<1x2xf32>
    %524 = vector.extract_strided_slice %21 {offsets = [16, 0], sizes = [1, 2], strides = [1, 1]} : vector<22x2xf32> to vector<1x2xf32>
    %525 = vector.extract_strided_slice %22 {offsets = [16, 0], sizes = [1, 2], strides = [1, 1]} : vector<22x2xf32> to vector<1x2xf32>
    %526 = vector.extract_strided_slice %42 {offsets = [16, 0], sizes = [1, 2], strides = [1, 1]} : vector<22x2xf32> to vector<1x2xf32>
    %527 = vector.extract_strided_slice %43 {offsets = [16, 0], sizes = [1, 2], strides = [1, 1]} : vector<22x2xf32> to vector<1x2xf32>
    %528 = vector.extract_strided_slice %44 {offsets = [16, 0], sizes = [1, 2], strides = [1, 1]} : vector<22x2xf32> to vector<1x2xf32>
    %529 = vector.extract_strided_slice %47 {offsets = [16, 0], sizes = [1, 2], strides = [1, 1]} : vector<22x2xf32> to vector<1x2xf32>
    %530 = vector.extract_strided_slice %50 {offsets = [16, 0], sizes = [1, 2], strides = [1, 1]} : vector<22x2xf32> to vector<1x2xf32>
    %531 = vector.extract_strided_slice %53 {offsets = [16, 0], sizes = [1, 2], strides = [1, 1]} : vector<22x2xf32> to vector<1x2xf32>
    %532 = vector.extract_strided_slice %20 {offsets = [17, 0], sizes = [1, 2], strides = [1, 1]} : vector<22x2xf32> to vector<1x2xf32>
    %533 = vector.extract_strided_slice %21 {offsets = [17, 0], sizes = [1, 2], strides = [1, 1]} : vector<22x2xf32> to vector<1x2xf32>
    %534 = vector.extract_strided_slice %22 {offsets = [17, 0], sizes = [1, 2], strides = [1, 1]} : vector<22x2xf32> to vector<1x2xf32>
    %535 = vector.extract_strided_slice %42 {offsets = [17, 0], sizes = [1, 2], strides = [1, 1]} : vector<22x2xf32> to vector<1x2xf32>
    %536 = vector.extract_strided_slice %43 {offsets = [17, 0], sizes = [1, 2], strides = [1, 1]} : vector<22x2xf32> to vector<1x2xf32>
    %537 = vector.extract_strided_slice %44 {offsets = [17, 0], sizes = [1, 2], strides = [1, 1]} : vector<22x2xf32> to vector<1x2xf32>
    %538 = vector.extract_strided_slice %47 {offsets = [17, 0], sizes = [1, 2], strides = [1, 1]} : vector<22x2xf32> to vector<1x2xf32>
    %539 = vector.extract_strided_slice %50 {offsets = [17, 0], sizes = [1, 2], strides = [1, 1]} : vector<22x2xf32> to vector<1x2xf32>
    %540 = vector.extract_strided_slice %53 {offsets = [17, 0], sizes = [1, 2], strides = [1, 1]} : vector<22x2xf32> to vector<1x2xf32>
    %541 = vector.extract_strided_slice %20 {offsets = [18, 0], sizes = [1, 2], strides = [1, 1]} : vector<22x2xf32> to vector<1x2xf32>
    %542 = vector.extract_strided_slice %21 {offsets = [18, 0], sizes = [1, 2], strides = [1, 1]} : vector<22x2xf32> to vector<1x2xf32>
    %543 = vector.extract_strided_slice %22 {offsets = [18, 0], sizes = [1, 2], strides = [1, 1]} : vector<22x2xf32> to vector<1x2xf32>
    %544 = vector.extract_strided_slice %42 {offsets = [18, 0], sizes = [1, 2], strides = [1, 1]} : vector<22x2xf32> to vector<1x2xf32>
    %545 = vector.extract_strided_slice %43 {offsets = [18, 0], sizes = [1, 2], strides = [1, 1]} : vector<22x2xf32> to vector<1x2xf32>
    %546 = vector.extract_strided_slice %44 {offsets = [18, 0], sizes = [1, 2], strides = [1, 1]} : vector<22x2xf32> to vector<1x2xf32>
    %547 = vector.extract_strided_slice %47 {offsets = [18, 0], sizes = [1, 2], strides = [1, 1]} : vector<22x2xf32> to vector<1x2xf32>
    %548 = vector.extract_strided_slice %50 {offsets = [18, 0], sizes = [1, 2], strides = [1, 1]} : vector<22x2xf32> to vector<1x2xf32>
    %549 = vector.extract_strided_slice %53 {offsets = [18, 0], sizes = [1, 2], strides = [1, 1]} : vector<22x2xf32> to vector<1x2xf32>
    %550 = vector.extract_strided_slice %20 {offsets = [19, 0], sizes = [1, 2], strides = [1, 1]} : vector<22x2xf32> to vector<1x2xf32>
    %551 = vector.extract_strided_slice %21 {offsets = [19, 0], sizes = [1, 2], strides = [1, 1]} : vector<22x2xf32> to vector<1x2xf32>
    %552 = vector.extract_strided_slice %22 {offsets = [19, 0], sizes = [1, 2], strides = [1, 1]} : vector<22x2xf32> to vector<1x2xf32>
    %553 = vector.extract_strided_slice %42 {offsets = [19, 0], sizes = [1, 2], strides = [1, 1]} : vector<22x2xf32> to vector<1x2xf32>
    %554 = vector.extract_strided_slice %43 {offsets = [19, 0], sizes = [1, 2], strides = [1, 1]} : vector<22x2xf32> to vector<1x2xf32>
    %555 = vector.extract_strided_slice %44 {offsets = [19, 0], sizes = [1, 2], strides = [1, 1]} : vector<22x2xf32> to vector<1x2xf32>
    %556 = vector.extract_strided_slice %47 {offsets = [19, 0], sizes = [1, 2], strides = [1, 1]} : vector<22x2xf32> to vector<1x2xf32>
    %557 = vector.extract_strided_slice %50 {offsets = [19, 0], sizes = [1, 2], strides = [1, 1]} : vector<22x2xf32> to vector<1x2xf32>
    %558 = vector.extract_strided_slice %53 {offsets = [19, 0], sizes = [1, 2], strides = [1, 1]} : vector<22x2xf32> to vector<1x2xf32>
    %559 = vector.extract_strided_slice %275 {offsets = [0, 0], sizes = [1, 2], strides = [1, 1]} : vector<22x2xf32> to vector<1x2xf32>
    %560 = vector.extract_strided_slice %340 {offsets = [0, 0], sizes = [1, 2], strides = [1, 1]} : vector<22x2xf32> to vector<1x2xf32>
    %561 = vector.extract_strided_slice %405 {offsets = [0, 0], sizes = [1, 2], strides = [1, 1]} : vector<22x2xf32> to vector<1x2xf32>
    %562 = vector.extract_strided_slice %275 {offsets = [1, 0], sizes = [1, 2], strides = [1, 1]} : vector<22x2xf32> to vector<1x2xf32>
    %563 = vector.extract_strided_slice %340 {offsets = [1, 0], sizes = [1, 2], strides = [1, 1]} : vector<22x2xf32> to vector<1x2xf32>
    %564 = vector.extract_strided_slice %405 {offsets = [1, 0], sizes = [1, 2], strides = [1, 1]} : vector<22x2xf32> to vector<1x2xf32>
    %565 = vector.extract_strided_slice %275 {offsets = [2, 0], sizes = [1, 2], strides = [1, 1]} : vector<22x2xf32> to vector<1x2xf32>
    %566 = vector.extract_strided_slice %340 {offsets = [2, 0], sizes = [1, 2], strides = [1, 1]} : vector<22x2xf32> to vector<1x2xf32>
    %567 = vector.extract_strided_slice %405 {offsets = [2, 0], sizes = [1, 2], strides = [1, 1]} : vector<22x2xf32> to vector<1x2xf32>
    %568 = vector.extract_strided_slice %275 {offsets = [3, 0], sizes = [1, 2], strides = [1, 1]} : vector<22x2xf32> to vector<1x2xf32>
    %569 = vector.extract_strided_slice %340 {offsets = [3, 0], sizes = [1, 2], strides = [1, 1]} : vector<22x2xf32> to vector<1x2xf32>
    %570 = vector.extract_strided_slice %405 {offsets = [3, 0], sizes = [1, 2], strides = [1, 1]} : vector<22x2xf32> to vector<1x2xf32>
    %571 = vector.extract_strided_slice %275 {offsets = [4, 0], sizes = [1, 2], strides = [1, 1]} : vector<22x2xf32> to vector<1x2xf32>
    %572 = vector.extract_strided_slice %340 {offsets = [4, 0], sizes = [1, 2], strides = [1, 1]} : vector<22x2xf32> to vector<1x2xf32>
    %573 = vector.extract_strided_slice %405 {offsets = [4, 0], sizes = [1, 2], strides = [1, 1]} : vector<22x2xf32> to vector<1x2xf32>
    %574 = vector.extract_strided_slice %275 {offsets = [5, 0], sizes = [1, 2], strides = [1, 1]} : vector<22x2xf32> to vector<1x2xf32>
    %575 = vector.extract_strided_slice %340 {offsets = [5, 0], sizes = [1, 2], strides = [1, 1]} : vector<22x2xf32> to vector<1x2xf32>
    %576 = vector.extract_strided_slice %405 {offsets = [5, 0], sizes = [1, 2], strides = [1, 1]} : vector<22x2xf32> to vector<1x2xf32>
    %577 = vector.extract_strided_slice %275 {offsets = [6, 0], sizes = [1, 2], strides = [1, 1]} : vector<22x2xf32> to vector<1x2xf32>
    %578 = vector.extract_strided_slice %340 {offsets = [6, 0], sizes = [1, 2], strides = [1, 1]} : vector<22x2xf32> to vector<1x2xf32>
    %579 = vector.extract_strided_slice %405 {offsets = [6, 0], sizes = [1, 2], strides = [1, 1]} : vector<22x2xf32> to vector<1x2xf32>
    %580 = vector.extract_strided_slice %275 {offsets = [7, 0], sizes = [1, 2], strides = [1, 1]} : vector<22x2xf32> to vector<1x2xf32>
    %581 = vector.extract_strided_slice %340 {offsets = [7, 0], sizes = [1, 2], strides = [1, 1]} : vector<22x2xf32> to vector<1x2xf32>
    %582 = vector.extract_strided_slice %405 {offsets = [7, 0], sizes = [1, 2], strides = [1, 1]} : vector<22x2xf32> to vector<1x2xf32>
    %583 = vector.extract_strided_slice %275 {offsets = [8, 0], sizes = [1, 2], strides = [1, 1]} : vector<22x2xf32> to vector<1x2xf32>
    %584 = vector.extract_strided_slice %340 {offsets = [8, 0], sizes = [1, 2], strides = [1, 1]} : vector<22x2xf32> to vector<1x2xf32>
    %585 = vector.extract_strided_slice %405 {offsets = [8, 0], sizes = [1, 2], strides = [1, 1]} : vector<22x2xf32> to vector<1x2xf32>
    %586 = vector.extract_strided_slice %275 {offsets = [9, 0], sizes = [1, 2], strides = [1, 1]} : vector<22x2xf32> to vector<1x2xf32>
    %587 = vector.extract_strided_slice %340 {offsets = [9, 0], sizes = [1, 2], strides = [1, 1]} : vector<22x2xf32> to vector<1x2xf32>
    %588 = vector.extract_strided_slice %405 {offsets = [9, 0], sizes = [1, 2], strides = [1, 1]} : vector<22x2xf32> to vector<1x2xf32>
    %589 = vector.extract_strided_slice %275 {offsets = [10, 0], sizes = [1, 2], strides = [1, 1]} : vector<22x2xf32> to vector<1x2xf32>
    %590 = vector.extract_strided_slice %340 {offsets = [10, 0], sizes = [1, 2], strides = [1, 1]} : vector<22x2xf32> to vector<1x2xf32>
    %591 = vector.extract_strided_slice %405 {offsets = [10, 0], sizes = [1, 2], strides = [1, 1]} : vector<22x2xf32> to vector<1x2xf32>
    %592 = vector.extract_strided_slice %275 {offsets = [11, 0], sizes = [1, 2], strides = [1, 1]} : vector<22x2xf32> to vector<1x2xf32>
    %593 = vector.extract_strided_slice %340 {offsets = [11, 0], sizes = [1, 2], strides = [1, 1]} : vector<22x2xf32> to vector<1x2xf32>
    %594 = vector.extract_strided_slice %405 {offsets = [11, 0], sizes = [1, 2], strides = [1, 1]} : vector<22x2xf32> to vector<1x2xf32>
    %595 = vector.extract_strided_slice %275 {offsets = [12, 0], sizes = [1, 2], strides = [1, 1]} : vector<22x2xf32> to vector<1x2xf32>
    %596 = vector.extract_strided_slice %340 {offsets = [12, 0], sizes = [1, 2], strides = [1, 1]} : vector<22x2xf32> to vector<1x2xf32>
    %597 = vector.extract_strided_slice %405 {offsets = [12, 0], sizes = [1, 2], strides = [1, 1]} : vector<22x2xf32> to vector<1x2xf32>
    %598 = vector.extract_strided_slice %275 {offsets = [13, 0], sizes = [1, 2], strides = [1, 1]} : vector<22x2xf32> to vector<1x2xf32>
    %599 = vector.extract_strided_slice %340 {offsets = [13, 0], sizes = [1, 2], strides = [1, 1]} : vector<22x2xf32> to vector<1x2xf32>
    %600 = vector.extract_strided_slice %405 {offsets = [13, 0], sizes = [1, 2], strides = [1, 1]} : vector<22x2xf32> to vector<1x2xf32>
    %601 = vector.extract_strided_slice %275 {offsets = [14, 0], sizes = [1, 2], strides = [1, 1]} : vector<22x2xf32> to vector<1x2xf32>
    %602 = vector.extract_strided_slice %340 {offsets = [14, 0], sizes = [1, 2], strides = [1, 1]} : vector<22x2xf32> to vector<1x2xf32>
    %603 = vector.extract_strided_slice %405 {offsets = [14, 0], sizes = [1, 2], strides = [1, 1]} : vector<22x2xf32> to vector<1x2xf32>
    %604 = vector.extract_strided_slice %275 {offsets = [15, 0], sizes = [1, 2], strides = [1, 1]} : vector<22x2xf32> to vector<1x2xf32>
    %605 = vector.extract_strided_slice %340 {offsets = [15, 0], sizes = [1, 2], strides = [1, 1]} : vector<22x2xf32> to vector<1x2xf32>
    %606 = vector.extract_strided_slice %405 {offsets = [15, 0], sizes = [1, 2], strides = [1, 1]} : vector<22x2xf32> to vector<1x2xf32>
    %607 = vector.extract_strided_slice %275 {offsets = [16, 0], sizes = [1, 2], strides = [1, 1]} : vector<22x2xf32> to vector<1x2xf32>
    %608 = vector.extract_strided_slice %340 {offsets = [16, 0], sizes = [1, 2], strides = [1, 1]} : vector<22x2xf32> to vector<1x2xf32>
    %609 = vector.extract_strided_slice %405 {offsets = [16, 0], sizes = [1, 2], strides = [1, 1]} : vector<22x2xf32> to vector<1x2xf32>
    %610 = vector.extract_strided_slice %275 {offsets = [17, 0], sizes = [1, 2], strides = [1, 1]} : vector<22x2xf32> to vector<1x2xf32>
    %611 = vector.extract_strided_slice %340 {offsets = [17, 0], sizes = [1, 2], strides = [1, 1]} : vector<22x2xf32> to vector<1x2xf32>
    %612 = vector.extract_strided_slice %405 {offsets = [17, 0], sizes = [1, 2], strides = [1, 1]} : vector<22x2xf32> to vector<1x2xf32>
    %613 = vector.extract_strided_slice %275 {offsets = [18, 0], sizes = [1, 2], strides = [1, 1]} : vector<22x2xf32> to vector<1x2xf32>
    %614 = vector.extract_strided_slice %340 {offsets = [18, 0], sizes = [1, 2], strides = [1, 1]} : vector<22x2xf32> to vector<1x2xf32>
    %615 = vector.extract_strided_slice %405 {offsets = [18, 0], sizes = [1, 2], strides = [1, 1]} : vector<22x2xf32> to vector<1x2xf32>
    %616 = vector.extract_strided_slice %275 {offsets = [19, 0], sizes = [1, 2], strides = [1, 1]} : vector<22x2xf32> to vector<1x2xf32>
    %617 = vector.extract_strided_slice %340 {offsets = [19, 0], sizes = [1, 2], strides = [1, 1]} : vector<22x2xf32> to vector<1x2xf32>
    %618 = vector.extract_strided_slice %405 {offsets = [19, 0], sizes = [1, 2], strides = [1, 1]} : vector<22x2xf32> to vector<1x2xf32>
    %619 = vector.extract_strided_slice %275 {offsets = [20, 0], sizes = [1, 2], strides = [1, 1]} : vector<22x2xf32> to vector<1x2xf32>
    %620 = vector.extract_strided_slice %340 {offsets = [20, 0], sizes = [1, 2], strides = [1, 1]} : vector<22x2xf32> to vector<1x2xf32>
    %621 = vector.extract_strided_slice %405 {offsets = [20, 0], sizes = [1, 2], strides = [1, 1]} : vector<22x2xf32> to vector<1x2xf32>
    %622 = vector.extract_strided_slice %275 {offsets = [21, 0], sizes = [1, 2], strides = [1, 1]} : vector<22x2xf32> to vector<1x2xf32>
    %623 = vector.extract_strided_slice %340 {offsets = [21, 0], sizes = [1, 2], strides = [1, 1]} : vector<22x2xf32> to vector<1x2xf32>
    %624 = vector.extract_strided_slice %405 {offsets = [21, 0], sizes = [1, 2], strides = [1, 1]} : vector<22x2xf32> to vector<1x2xf32>
    %625 = arith.mulf %406, %415 : vector<1x2xf32>
    %626 = arith.mulf %407, %418 : vector<1x2xf32>
    %627 = arith.addf %625, %626 : vector<1x2xf32>
    %628 = arith.mulf %408, %421 : vector<1x2xf32>
    %629 = arith.addf %627, %628 : vector<1x2xf32>
    %630 = arith.mulf %406, %416 : vector<1x2xf32>
    %631 = arith.mulf %407, %419 : vector<1x2xf32>
    %632 = arith.addf %630, %631 : vector<1x2xf32>
    %633 = arith.mulf %408, %422 : vector<1x2xf32>
    %634 = arith.addf %632, %633 : vector<1x2xf32>
    %635 = arith.mulf %406, %417 : vector<1x2xf32>
    %636 = arith.mulf %407, %420 : vector<1x2xf32>
    %637 = arith.addf %635, %636 : vector<1x2xf32>
    %638 = arith.mulf %408, %423 : vector<1x2xf32>
    %639 = arith.addf %637, %638 : vector<1x2xf32>
    %640 = arith.mulf %409, %415 : vector<1x2xf32>
    %641 = arith.mulf %410, %418 : vector<1x2xf32>
    %642 = arith.addf %640, %641 : vector<1x2xf32>
    %643 = arith.mulf %411, %421 : vector<1x2xf32>
    %644 = arith.addf %642, %643 : vector<1x2xf32>
    %645 = arith.mulf %409, %416 : vector<1x2xf32>
    %646 = arith.mulf %410, %419 : vector<1x2xf32>
    %647 = arith.addf %645, %646 : vector<1x2xf32>
    %648 = arith.mulf %411, %422 : vector<1x2xf32>
    %649 = arith.addf %647, %648 : vector<1x2xf32>
    %650 = arith.mulf %409, %417 : vector<1x2xf32>
    %651 = arith.mulf %410, %420 : vector<1x2xf32>
    %652 = arith.addf %650, %651 : vector<1x2xf32>
    %653 = arith.mulf %411, %423 : vector<1x2xf32>
    %654 = arith.addf %652, %653 : vector<1x2xf32>
    %655 = arith.mulf %412, %415 : vector<1x2xf32>
    %656 = arith.mulf %413, %418 : vector<1x2xf32>
    %657 = arith.addf %655, %656 : vector<1x2xf32>
    %658 = arith.mulf %414, %421 : vector<1x2xf32>
    %659 = arith.addf %657, %658 : vector<1x2xf32>
    %660 = arith.mulf %412, %416 : vector<1x2xf32>
    %661 = arith.mulf %413, %419 : vector<1x2xf32>
    %662 = arith.addf %660, %661 : vector<1x2xf32>
    %663 = arith.mulf %414, %422 : vector<1x2xf32>
    %664 = arith.addf %662, %663 : vector<1x2xf32>
    %665 = arith.mulf %412, %417 : vector<1x2xf32>
    %666 = arith.mulf %413, %420 : vector<1x2xf32>
    %667 = arith.addf %665, %666 : vector<1x2xf32>
    %668 = arith.mulf %414, %423 : vector<1x2xf32>
    %669 = arith.addf %667, %668 : vector<1x2xf32>
    %670 = arith.subf %562, %559 : vector<1x2xf32>
    %671 = arith.subf %563, %560 : vector<1x2xf32>
    %672 = arith.subf %564, %561 : vector<1x2xf32>
    %673 = arith.mulf %406, %670 : vector<1x2xf32>
    %674 = arith.addf %559, %673 : vector<1x2xf32>
    %675 = arith.mulf %407, %671 : vector<1x2xf32>
    %676 = arith.addf %674, %675 : vector<1x2xf32>
    %677 = arith.mulf %408, %672 : vector<1x2xf32>
    %678 = arith.addf %676, %677 : vector<1x2xf32>
    %679 = arith.mulf %409, %670 : vector<1x2xf32>
    %680 = arith.addf %560, %679 : vector<1x2xf32>
    %681 = arith.mulf %410, %671 : vector<1x2xf32>
    %682 = arith.addf %680, %681 : vector<1x2xf32>
    %683 = arith.mulf %411, %672 : vector<1x2xf32>
    %684 = arith.addf %682, %683 : vector<1x2xf32>
    %685 = arith.mulf %412, %670 : vector<1x2xf32>
    %686 = arith.addf %561, %685 : vector<1x2xf32>
    %687 = arith.mulf %413, %671 : vector<1x2xf32>
    %688 = arith.addf %686, %687 : vector<1x2xf32>
    %689 = arith.mulf %414, %672 : vector<1x2xf32>
    %690 = arith.addf %688, %689 : vector<1x2xf32>
    %691 = arith.mulf %406, %424 : vector<1x2xf32>
    %692 = arith.mulf %407, %427 : vector<1x2xf32>
    %693 = arith.addf %691, %692 : vector<1x2xf32>
    %694 = arith.mulf %408, %430 : vector<1x2xf32>
    %695 = arith.addf %693, %694 : vector<1x2xf32>
    %696 = arith.mulf %406, %425 : vector<1x2xf32>
    %697 = arith.mulf %407, %428 : vector<1x2xf32>
    %698 = arith.addf %696, %697 : vector<1x2xf32>
    %699 = arith.mulf %408, %431 : vector<1x2xf32>
    %700 = arith.addf %698, %699 : vector<1x2xf32>
    %701 = arith.mulf %406, %426 : vector<1x2xf32>
    %702 = arith.mulf %407, %429 : vector<1x2xf32>
    %703 = arith.addf %701, %702 : vector<1x2xf32>
    %704 = arith.mulf %408, %432 : vector<1x2xf32>
    %705 = arith.addf %703, %704 : vector<1x2xf32>
    %706 = arith.mulf %409, %424 : vector<1x2xf32>
    %707 = arith.mulf %410, %427 : vector<1x2xf32>
    %708 = arith.addf %706, %707 : vector<1x2xf32>
    %709 = arith.mulf %411, %430 : vector<1x2xf32>
    %710 = arith.addf %708, %709 : vector<1x2xf32>
    %711 = arith.mulf %409, %425 : vector<1x2xf32>
    %712 = arith.mulf %410, %428 : vector<1x2xf32>
    %713 = arith.addf %711, %712 : vector<1x2xf32>
    %714 = arith.mulf %411, %431 : vector<1x2xf32>
    %715 = arith.addf %713, %714 : vector<1x2xf32>
    %716 = arith.mulf %409, %426 : vector<1x2xf32>
    %717 = arith.mulf %410, %429 : vector<1x2xf32>
    %718 = arith.addf %716, %717 : vector<1x2xf32>
    %719 = arith.mulf %411, %432 : vector<1x2xf32>
    %720 = arith.addf %718, %719 : vector<1x2xf32>
    %721 = arith.mulf %412, %424 : vector<1x2xf32>
    %722 = arith.mulf %413, %427 : vector<1x2xf32>
    %723 = arith.addf %721, %722 : vector<1x2xf32>
    %724 = arith.mulf %414, %430 : vector<1x2xf32>
    %725 = arith.addf %723, %724 : vector<1x2xf32>
    %726 = arith.mulf %412, %425 : vector<1x2xf32>
    %727 = arith.mulf %413, %428 : vector<1x2xf32>
    %728 = arith.addf %726, %727 : vector<1x2xf32>
    %729 = arith.mulf %414, %431 : vector<1x2xf32>
    %730 = arith.addf %728, %729 : vector<1x2xf32>
    %731 = arith.mulf %412, %426 : vector<1x2xf32>
    %732 = arith.mulf %413, %429 : vector<1x2xf32>
    %733 = arith.addf %731, %732 : vector<1x2xf32>
    %734 = arith.mulf %414, %432 : vector<1x2xf32>
    %735 = arith.addf %733, %734 : vector<1x2xf32>
    %736 = arith.subf %565, %559 : vector<1x2xf32>
    %737 = arith.subf %566, %560 : vector<1x2xf32>
    %738 = arith.subf %567, %561 : vector<1x2xf32>
    %739 = arith.mulf %406, %736 : vector<1x2xf32>
    %740 = arith.addf %559, %739 : vector<1x2xf32>
    %741 = arith.mulf %407, %737 : vector<1x2xf32>
    %742 = arith.addf %740, %741 : vector<1x2xf32>
    %743 = arith.mulf %408, %738 : vector<1x2xf32>
    %744 = arith.addf %742, %743 : vector<1x2xf32>
    %745 = arith.mulf %409, %736 : vector<1x2xf32>
    %746 = arith.addf %560, %745 : vector<1x2xf32>
    %747 = arith.mulf %410, %737 : vector<1x2xf32>
    %748 = arith.addf %746, %747 : vector<1x2xf32>
    %749 = arith.mulf %411, %738 : vector<1x2xf32>
    %750 = arith.addf %748, %749 : vector<1x2xf32>
    %751 = arith.mulf %412, %736 : vector<1x2xf32>
    %752 = arith.addf %561, %751 : vector<1x2xf32>
    %753 = arith.mulf %413, %737 : vector<1x2xf32>
    %754 = arith.addf %752, %753 : vector<1x2xf32>
    %755 = arith.mulf %414, %738 : vector<1x2xf32>
    %756 = arith.addf %754, %755 : vector<1x2xf32>
    %757 = arith.mulf %406, %433 : vector<1x2xf32>
    %758 = arith.mulf %407, %436 : vector<1x2xf32>
    %759 = arith.addf %757, %758 : vector<1x2xf32>
    %760 = arith.mulf %408, %439 : vector<1x2xf32>
    %761 = arith.addf %759, %760 : vector<1x2xf32>
    %762 = arith.mulf %406, %434 : vector<1x2xf32>
    %763 = arith.mulf %407, %437 : vector<1x2xf32>
    %764 = arith.addf %762, %763 : vector<1x2xf32>
    %765 = arith.mulf %408, %440 : vector<1x2xf32>
    %766 = arith.addf %764, %765 : vector<1x2xf32>
    %767 = arith.mulf %406, %435 : vector<1x2xf32>
    %768 = arith.mulf %407, %438 : vector<1x2xf32>
    %769 = arith.addf %767, %768 : vector<1x2xf32>
    %770 = arith.mulf %408, %441 : vector<1x2xf32>
    %771 = arith.addf %769, %770 : vector<1x2xf32>
    %772 = arith.mulf %409, %433 : vector<1x2xf32>
    %773 = arith.mulf %410, %436 : vector<1x2xf32>
    %774 = arith.addf %772, %773 : vector<1x2xf32>
    %775 = arith.mulf %411, %439 : vector<1x2xf32>
    %776 = arith.addf %774, %775 : vector<1x2xf32>
    %777 = arith.mulf %409, %434 : vector<1x2xf32>
    %778 = arith.mulf %410, %437 : vector<1x2xf32>
    %779 = arith.addf %777, %778 : vector<1x2xf32>
    %780 = arith.mulf %411, %440 : vector<1x2xf32>
    %781 = arith.addf %779, %780 : vector<1x2xf32>
    %782 = arith.mulf %409, %435 : vector<1x2xf32>
    %783 = arith.mulf %410, %438 : vector<1x2xf32>
    %784 = arith.addf %782, %783 : vector<1x2xf32>
    %785 = arith.mulf %411, %441 : vector<1x2xf32>
    %786 = arith.addf %784, %785 : vector<1x2xf32>
    %787 = arith.mulf %412, %433 : vector<1x2xf32>
    %788 = arith.mulf %413, %436 : vector<1x2xf32>
    %789 = arith.addf %787, %788 : vector<1x2xf32>
    %790 = arith.mulf %414, %439 : vector<1x2xf32>
    %791 = arith.addf %789, %790 : vector<1x2xf32>
    %792 = arith.mulf %412, %434 : vector<1x2xf32>
    %793 = arith.mulf %413, %437 : vector<1x2xf32>
    %794 = arith.addf %792, %793 : vector<1x2xf32>
    %795 = arith.mulf %414, %440 : vector<1x2xf32>
    %796 = arith.addf %794, %795 : vector<1x2xf32>
    %797 = arith.mulf %412, %435 : vector<1x2xf32>
    %798 = arith.mulf %413, %438 : vector<1x2xf32>
    %799 = arith.addf %797, %798 : vector<1x2xf32>
    %800 = arith.mulf %414, %441 : vector<1x2xf32>
    %801 = arith.addf %799, %800 : vector<1x2xf32>
    %802 = arith.subf %568, %559 : vector<1x2xf32>
    %803 = arith.subf %569, %560 : vector<1x2xf32>
    %804 = arith.subf %570, %561 : vector<1x2xf32>
    %805 = arith.mulf %406, %802 : vector<1x2xf32>
    %806 = arith.addf %559, %805 : vector<1x2xf32>
    %807 = arith.mulf %407, %803 : vector<1x2xf32>
    %808 = arith.addf %806, %807 : vector<1x2xf32>
    %809 = arith.mulf %408, %804 : vector<1x2xf32>
    %810 = arith.addf %808, %809 : vector<1x2xf32>
    %811 = arith.mulf %409, %802 : vector<1x2xf32>
    %812 = arith.addf %560, %811 : vector<1x2xf32>
    %813 = arith.mulf %410, %803 : vector<1x2xf32>
    %814 = arith.addf %812, %813 : vector<1x2xf32>
    %815 = arith.mulf %411, %804 : vector<1x2xf32>
    %816 = arith.addf %814, %815 : vector<1x2xf32>
    %817 = arith.mulf %412, %802 : vector<1x2xf32>
    %818 = arith.addf %561, %817 : vector<1x2xf32>
    %819 = arith.mulf %413, %803 : vector<1x2xf32>
    %820 = arith.addf %818, %819 : vector<1x2xf32>
    %821 = arith.mulf %414, %804 : vector<1x2xf32>
    %822 = arith.addf %820, %821 : vector<1x2xf32>
    %823 = arith.mulf %629, %442 : vector<1x2xf32>
    %824 = arith.mulf %634, %445 : vector<1x2xf32>
    %825 = arith.addf %823, %824 : vector<1x2xf32>
    %826 = arith.mulf %639, %448 : vector<1x2xf32>
    %827 = arith.addf %825, %826 : vector<1x2xf32>
    %828 = arith.mulf %629, %443 : vector<1x2xf32>
    %829 = arith.mulf %634, %446 : vector<1x2xf32>
    %830 = arith.addf %828, %829 : vector<1x2xf32>
    %831 = arith.mulf %639, %449 : vector<1x2xf32>
    %832 = arith.addf %830, %831 : vector<1x2xf32>
    %833 = arith.mulf %629, %444 : vector<1x2xf32>
    %834 = arith.mulf %634, %447 : vector<1x2xf32>
    %835 = arith.addf %833, %834 : vector<1x2xf32>
    %836 = arith.mulf %639, %450 : vector<1x2xf32>
    %837 = arith.addf %835, %836 : vector<1x2xf32>
    %838 = arith.mulf %644, %442 : vector<1x2xf32>
    %839 = arith.mulf %649, %445 : vector<1x2xf32>
    %840 = arith.addf %838, %839 : vector<1x2xf32>
    %841 = arith.mulf %654, %448 : vector<1x2xf32>
    %842 = arith.addf %840, %841 : vector<1x2xf32>
    %843 = arith.mulf %644, %443 : vector<1x2xf32>
    %844 = arith.mulf %649, %446 : vector<1x2xf32>
    %845 = arith.addf %843, %844 : vector<1x2xf32>
    %846 = arith.mulf %654, %449 : vector<1x2xf32>
    %847 = arith.addf %845, %846 : vector<1x2xf32>
    %848 = arith.mulf %644, %444 : vector<1x2xf32>
    %849 = arith.mulf %649, %447 : vector<1x2xf32>
    %850 = arith.addf %848, %849 : vector<1x2xf32>
    %851 = arith.mulf %654, %450 : vector<1x2xf32>
    %852 = arith.addf %850, %851 : vector<1x2xf32>
    %853 = arith.mulf %659, %442 : vector<1x2xf32>
    %854 = arith.mulf %664, %445 : vector<1x2xf32>
    %855 = arith.addf %853, %854 : vector<1x2xf32>
    %856 = arith.mulf %669, %448 : vector<1x2xf32>
    %857 = arith.addf %855, %856 : vector<1x2xf32>
    %858 = arith.mulf %659, %443 : vector<1x2xf32>
    %859 = arith.mulf %664, %446 : vector<1x2xf32>
    %860 = arith.addf %858, %859 : vector<1x2xf32>
    %861 = arith.mulf %669, %449 : vector<1x2xf32>
    %862 = arith.addf %860, %861 : vector<1x2xf32>
    %863 = arith.mulf %659, %444 : vector<1x2xf32>
    %864 = arith.mulf %664, %447 : vector<1x2xf32>
    %865 = arith.addf %863, %864 : vector<1x2xf32>
    %866 = arith.mulf %669, %450 : vector<1x2xf32>
    %867 = arith.addf %865, %866 : vector<1x2xf32>
    %868 = arith.subf %571, %562 : vector<1x2xf32>
    %869 = arith.subf %572, %563 : vector<1x2xf32>
    %870 = arith.subf %573, %564 : vector<1x2xf32>
    %871 = arith.mulf %629, %868 : vector<1x2xf32>
    %872 = arith.addf %678, %871 : vector<1x2xf32>
    %873 = arith.mulf %634, %869 : vector<1x2xf32>
    %874 = arith.addf %872, %873 : vector<1x2xf32>
    %875 = arith.mulf %639, %870 : vector<1x2xf32>
    %876 = arith.addf %874, %875 : vector<1x2xf32>
    %877 = arith.mulf %644, %868 : vector<1x2xf32>
    %878 = arith.addf %684, %877 : vector<1x2xf32>
    %879 = arith.mulf %649, %869 : vector<1x2xf32>
    %880 = arith.addf %878, %879 : vector<1x2xf32>
    %881 = arith.mulf %654, %870 : vector<1x2xf32>
    %882 = arith.addf %880, %881 : vector<1x2xf32>
    %883 = arith.mulf %659, %868 : vector<1x2xf32>
    %884 = arith.addf %690, %883 : vector<1x2xf32>
    %885 = arith.mulf %664, %869 : vector<1x2xf32>
    %886 = arith.addf %884, %885 : vector<1x2xf32>
    %887 = arith.mulf %669, %870 : vector<1x2xf32>
    %888 = arith.addf %886, %887 : vector<1x2xf32>
    %889 = arith.mulf %695, %451 : vector<1x2xf32>
    %890 = arith.mulf %700, %454 : vector<1x2xf32>
    %891 = arith.addf %889, %890 : vector<1x2xf32>
    %892 = arith.mulf %705, %457 : vector<1x2xf32>
    %893 = arith.addf %891, %892 : vector<1x2xf32>
    %894 = arith.mulf %695, %452 : vector<1x2xf32>
    %895 = arith.mulf %700, %455 : vector<1x2xf32>
    %896 = arith.addf %894, %895 : vector<1x2xf32>
    %897 = arith.mulf %705, %458 : vector<1x2xf32>
    %898 = arith.addf %896, %897 : vector<1x2xf32>
    %899 = arith.mulf %695, %453 : vector<1x2xf32>
    %900 = arith.mulf %700, %456 : vector<1x2xf32>
    %901 = arith.addf %899, %900 : vector<1x2xf32>
    %902 = arith.mulf %705, %459 : vector<1x2xf32>
    %903 = arith.addf %901, %902 : vector<1x2xf32>
    %904 = arith.mulf %710, %451 : vector<1x2xf32>
    %905 = arith.mulf %715, %454 : vector<1x2xf32>
    %906 = arith.addf %904, %905 : vector<1x2xf32>
    %907 = arith.mulf %720, %457 : vector<1x2xf32>
    %908 = arith.addf %906, %907 : vector<1x2xf32>
    %909 = arith.mulf %710, %452 : vector<1x2xf32>
    %910 = arith.mulf %715, %455 : vector<1x2xf32>
    %911 = arith.addf %909, %910 : vector<1x2xf32>
    %912 = arith.mulf %720, %458 : vector<1x2xf32>
    %913 = arith.addf %911, %912 : vector<1x2xf32>
    %914 = arith.mulf %710, %453 : vector<1x2xf32>
    %915 = arith.mulf %715, %456 : vector<1x2xf32>
    %916 = arith.addf %914, %915 : vector<1x2xf32>
    %917 = arith.mulf %720, %459 : vector<1x2xf32>
    %918 = arith.addf %916, %917 : vector<1x2xf32>
    %919 = arith.mulf %725, %451 : vector<1x2xf32>
    %920 = arith.mulf %730, %454 : vector<1x2xf32>
    %921 = arith.addf %919, %920 : vector<1x2xf32>
    %922 = arith.mulf %735, %457 : vector<1x2xf32>
    %923 = arith.addf %921, %922 : vector<1x2xf32>
    %924 = arith.mulf %725, %452 : vector<1x2xf32>
    %925 = arith.mulf %730, %455 : vector<1x2xf32>
    %926 = arith.addf %924, %925 : vector<1x2xf32>
    %927 = arith.mulf %735, %458 : vector<1x2xf32>
    %928 = arith.addf %926, %927 : vector<1x2xf32>
    %929 = arith.mulf %725, %453 : vector<1x2xf32>
    %930 = arith.mulf %730, %456 : vector<1x2xf32>
    %931 = arith.addf %929, %930 : vector<1x2xf32>
    %932 = arith.mulf %735, %459 : vector<1x2xf32>
    %933 = arith.addf %931, %932 : vector<1x2xf32>
    %934 = arith.subf %574, %565 : vector<1x2xf32>
    %935 = arith.subf %575, %566 : vector<1x2xf32>
    %936 = arith.subf %576, %567 : vector<1x2xf32>
    %937 = arith.mulf %695, %934 : vector<1x2xf32>
    %938 = arith.addf %744, %937 : vector<1x2xf32>
    %939 = arith.mulf %700, %935 : vector<1x2xf32>
    %940 = arith.addf %938, %939 : vector<1x2xf32>
    %941 = arith.mulf %705, %936 : vector<1x2xf32>
    %942 = arith.addf %940, %941 : vector<1x2xf32>
    %943 = arith.mulf %710, %934 : vector<1x2xf32>
    %944 = arith.addf %750, %943 : vector<1x2xf32>
    %945 = arith.mulf %715, %935 : vector<1x2xf32>
    %946 = arith.addf %944, %945 : vector<1x2xf32>
    %947 = arith.mulf %720, %936 : vector<1x2xf32>
    %948 = arith.addf %946, %947 : vector<1x2xf32>
    %949 = arith.mulf %725, %934 : vector<1x2xf32>
    %950 = arith.addf %756, %949 : vector<1x2xf32>
    %951 = arith.mulf %730, %935 : vector<1x2xf32>
    %952 = arith.addf %950, %951 : vector<1x2xf32>
    %953 = arith.mulf %735, %936 : vector<1x2xf32>
    %954 = arith.addf %952, %953 : vector<1x2xf32>
    %955 = arith.mulf %761, %460 : vector<1x2xf32>
    %956 = arith.mulf %766, %463 : vector<1x2xf32>
    %957 = arith.addf %955, %956 : vector<1x2xf32>
    %958 = arith.mulf %771, %466 : vector<1x2xf32>
    %959 = arith.addf %957, %958 : vector<1x2xf32>
    %960 = arith.mulf %761, %461 : vector<1x2xf32>
    %961 = arith.mulf %766, %464 : vector<1x2xf32>
    %962 = arith.addf %960, %961 : vector<1x2xf32>
    %963 = arith.mulf %771, %467 : vector<1x2xf32>
    %964 = arith.addf %962, %963 : vector<1x2xf32>
    %965 = arith.mulf %761, %462 : vector<1x2xf32>
    %966 = arith.mulf %766, %465 : vector<1x2xf32>
    %967 = arith.addf %965, %966 : vector<1x2xf32>
    %968 = arith.mulf %771, %468 : vector<1x2xf32>
    %969 = arith.addf %967, %968 : vector<1x2xf32>
    %970 = arith.mulf %776, %460 : vector<1x2xf32>
    %971 = arith.mulf %781, %463 : vector<1x2xf32>
    %972 = arith.addf %970, %971 : vector<1x2xf32>
    %973 = arith.mulf %786, %466 : vector<1x2xf32>
    %974 = arith.addf %972, %973 : vector<1x2xf32>
    %975 = arith.mulf %776, %461 : vector<1x2xf32>
    %976 = arith.mulf %781, %464 : vector<1x2xf32>
    %977 = arith.addf %975, %976 : vector<1x2xf32>
    %978 = arith.mulf %786, %467 : vector<1x2xf32>
    %979 = arith.addf %977, %978 : vector<1x2xf32>
    %980 = arith.mulf %776, %462 : vector<1x2xf32>
    %981 = arith.mulf %781, %465 : vector<1x2xf32>
    %982 = arith.addf %980, %981 : vector<1x2xf32>
    %983 = arith.mulf %786, %468 : vector<1x2xf32>
    %984 = arith.addf %982, %983 : vector<1x2xf32>
    %985 = arith.mulf %791, %460 : vector<1x2xf32>
    %986 = arith.mulf %796, %463 : vector<1x2xf32>
    %987 = arith.addf %985, %986 : vector<1x2xf32>
    %988 = arith.mulf %801, %466 : vector<1x2xf32>
    %989 = arith.addf %987, %988 : vector<1x2xf32>
    %990 = arith.mulf %791, %461 : vector<1x2xf32>
    %991 = arith.mulf %796, %464 : vector<1x2xf32>
    %992 = arith.addf %990, %991 : vector<1x2xf32>
    %993 = arith.mulf %801, %467 : vector<1x2xf32>
    %994 = arith.addf %992, %993 : vector<1x2xf32>
    %995 = arith.mulf %791, %462 : vector<1x2xf32>
    %996 = arith.mulf %796, %465 : vector<1x2xf32>
    %997 = arith.addf %995, %996 : vector<1x2xf32>
    %998 = arith.mulf %801, %468 : vector<1x2xf32>
    %999 = arith.addf %997, %998 : vector<1x2xf32>
    %1000 = arith.subf %577, %568 : vector<1x2xf32>
    %1001 = arith.subf %578, %569 : vector<1x2xf32>
    %1002 = arith.subf %579, %570 : vector<1x2xf32>
    %1003 = arith.mulf %761, %1000 : vector<1x2xf32>
    %1004 = arith.addf %810, %1003 : vector<1x2xf32>
    %1005 = arith.mulf %766, %1001 : vector<1x2xf32>
    %1006 = arith.addf %1004, %1005 : vector<1x2xf32>
    %1007 = arith.mulf %771, %1002 : vector<1x2xf32>
    %1008 = arith.addf %1006, %1007 : vector<1x2xf32>
    %1009 = arith.mulf %776, %1000 : vector<1x2xf32>
    %1010 = arith.addf %816, %1009 : vector<1x2xf32>
    %1011 = arith.mulf %781, %1001 : vector<1x2xf32>
    %1012 = arith.addf %1010, %1011 : vector<1x2xf32>
    %1013 = arith.mulf %786, %1002 : vector<1x2xf32>
    %1014 = arith.addf %1012, %1013 : vector<1x2xf32>
    %1015 = arith.mulf %791, %1000 : vector<1x2xf32>
    %1016 = arith.addf %822, %1015 : vector<1x2xf32>
    %1017 = arith.mulf %796, %1001 : vector<1x2xf32>
    %1018 = arith.addf %1016, %1017 : vector<1x2xf32>
    %1019 = arith.mulf %801, %1002 : vector<1x2xf32>
    %1020 = arith.addf %1018, %1019 : vector<1x2xf32>
    %1021 = arith.mulf %827, %469 : vector<1x2xf32>
    %1022 = arith.mulf %832, %472 : vector<1x2xf32>
    %1023 = arith.addf %1021, %1022 : vector<1x2xf32>
    %1024 = arith.mulf %837, %475 : vector<1x2xf32>
    %1025 = arith.addf %1023, %1024 : vector<1x2xf32>
    %1026 = arith.mulf %827, %470 : vector<1x2xf32>
    %1027 = arith.mulf %832, %473 : vector<1x2xf32>
    %1028 = arith.addf %1026, %1027 : vector<1x2xf32>
    %1029 = arith.mulf %837, %476 : vector<1x2xf32>
    %1030 = arith.addf %1028, %1029 : vector<1x2xf32>
    %1031 = arith.mulf %827, %471 : vector<1x2xf32>
    %1032 = arith.mulf %832, %474 : vector<1x2xf32>
    %1033 = arith.addf %1031, %1032 : vector<1x2xf32>
    %1034 = arith.mulf %837, %477 : vector<1x2xf32>
    %1035 = arith.addf %1033, %1034 : vector<1x2xf32>
    %1036 = arith.mulf %842, %469 : vector<1x2xf32>
    %1037 = arith.mulf %847, %472 : vector<1x2xf32>
    %1038 = arith.addf %1036, %1037 : vector<1x2xf32>
    %1039 = arith.mulf %852, %475 : vector<1x2xf32>
    %1040 = arith.addf %1038, %1039 : vector<1x2xf32>
    %1041 = arith.mulf %842, %470 : vector<1x2xf32>
    %1042 = arith.mulf %847, %473 : vector<1x2xf32>
    %1043 = arith.addf %1041, %1042 : vector<1x2xf32>
    %1044 = arith.mulf %852, %476 : vector<1x2xf32>
    %1045 = arith.addf %1043, %1044 : vector<1x2xf32>
    %1046 = arith.mulf %842, %471 : vector<1x2xf32>
    %1047 = arith.mulf %847, %474 : vector<1x2xf32>
    %1048 = arith.addf %1046, %1047 : vector<1x2xf32>
    %1049 = arith.mulf %852, %477 : vector<1x2xf32>
    %1050 = arith.addf %1048, %1049 : vector<1x2xf32>
    %1051 = arith.mulf %857, %469 : vector<1x2xf32>
    %1052 = arith.mulf %862, %472 : vector<1x2xf32>
    %1053 = arith.addf %1051, %1052 : vector<1x2xf32>
    %1054 = arith.mulf %867, %475 : vector<1x2xf32>
    %1055 = arith.addf %1053, %1054 : vector<1x2xf32>
    %1056 = arith.mulf %857, %470 : vector<1x2xf32>
    %1057 = arith.mulf %862, %473 : vector<1x2xf32>
    %1058 = arith.addf %1056, %1057 : vector<1x2xf32>
    %1059 = arith.mulf %867, %476 : vector<1x2xf32>
    %1060 = arith.addf %1058, %1059 : vector<1x2xf32>
    %1061 = arith.mulf %857, %471 : vector<1x2xf32>
    %1062 = arith.mulf %862, %474 : vector<1x2xf32>
    %1063 = arith.addf %1061, %1062 : vector<1x2xf32>
    %1064 = arith.mulf %867, %477 : vector<1x2xf32>
    %1065 = arith.addf %1063, %1064 : vector<1x2xf32>
    %1066 = arith.subf %580, %571 : vector<1x2xf32>
    %1067 = arith.subf %581, %572 : vector<1x2xf32>
    %1068 = arith.subf %582, %573 : vector<1x2xf32>
    %1069 = arith.mulf %827, %1066 : vector<1x2xf32>
    %1070 = arith.addf %876, %1069 : vector<1x2xf32>
    %1071 = arith.mulf %832, %1067 : vector<1x2xf32>
    %1072 = arith.addf %1070, %1071 : vector<1x2xf32>
    %1073 = arith.mulf %837, %1068 : vector<1x2xf32>
    %1074 = arith.addf %1072, %1073 : vector<1x2xf32>
    %1075 = arith.mulf %842, %1066 : vector<1x2xf32>
    %1076 = arith.addf %882, %1075 : vector<1x2xf32>
    %1077 = arith.mulf %847, %1067 : vector<1x2xf32>
    %1078 = arith.addf %1076, %1077 : vector<1x2xf32>
    %1079 = arith.mulf %852, %1068 : vector<1x2xf32>
    %1080 = arith.addf %1078, %1079 : vector<1x2xf32>
    %1081 = arith.mulf %857, %1066 : vector<1x2xf32>
    %1082 = arith.addf %888, %1081 : vector<1x2xf32>
    %1083 = arith.mulf %862, %1067 : vector<1x2xf32>
    %1084 = arith.addf %1082, %1083 : vector<1x2xf32>
    %1085 = arith.mulf %867, %1068 : vector<1x2xf32>
    %1086 = arith.addf %1084, %1085 : vector<1x2xf32>
    %1087 = arith.mulf %893, %478 : vector<1x2xf32>
    %1088 = arith.mulf %898, %481 : vector<1x2xf32>
    %1089 = arith.addf %1087, %1088 : vector<1x2xf32>
    %1090 = arith.mulf %903, %484 : vector<1x2xf32>
    %1091 = arith.addf %1089, %1090 : vector<1x2xf32>
    %1092 = arith.mulf %893, %479 : vector<1x2xf32>
    %1093 = arith.mulf %898, %482 : vector<1x2xf32>
    %1094 = arith.addf %1092, %1093 : vector<1x2xf32>
    %1095 = arith.mulf %903, %485 : vector<1x2xf32>
    %1096 = arith.addf %1094, %1095 : vector<1x2xf32>
    %1097 = arith.mulf %893, %480 : vector<1x2xf32>
    %1098 = arith.mulf %898, %483 : vector<1x2xf32>
    %1099 = arith.addf %1097, %1098 : vector<1x2xf32>
    %1100 = arith.mulf %903, %486 : vector<1x2xf32>
    %1101 = arith.addf %1099, %1100 : vector<1x2xf32>
    %1102 = arith.mulf %908, %478 : vector<1x2xf32>
    %1103 = arith.mulf %913, %481 : vector<1x2xf32>
    %1104 = arith.addf %1102, %1103 : vector<1x2xf32>
    %1105 = arith.mulf %918, %484 : vector<1x2xf32>
    %1106 = arith.addf %1104, %1105 : vector<1x2xf32>
    %1107 = arith.mulf %908, %479 : vector<1x2xf32>
    %1108 = arith.mulf %913, %482 : vector<1x2xf32>
    %1109 = arith.addf %1107, %1108 : vector<1x2xf32>
    %1110 = arith.mulf %918, %485 : vector<1x2xf32>
    %1111 = arith.addf %1109, %1110 : vector<1x2xf32>
    %1112 = arith.mulf %908, %480 : vector<1x2xf32>
    %1113 = arith.mulf %913, %483 : vector<1x2xf32>
    %1114 = arith.addf %1112, %1113 : vector<1x2xf32>
    %1115 = arith.mulf %918, %486 : vector<1x2xf32>
    %1116 = arith.addf %1114, %1115 : vector<1x2xf32>
    %1117 = arith.mulf %923, %478 : vector<1x2xf32>
    %1118 = arith.mulf %928, %481 : vector<1x2xf32>
    %1119 = arith.addf %1117, %1118 : vector<1x2xf32>
    %1120 = arith.mulf %933, %484 : vector<1x2xf32>
    %1121 = arith.addf %1119, %1120 : vector<1x2xf32>
    %1122 = arith.mulf %923, %479 : vector<1x2xf32>
    %1123 = arith.mulf %928, %482 : vector<1x2xf32>
    %1124 = arith.addf %1122, %1123 : vector<1x2xf32>
    %1125 = arith.mulf %933, %485 : vector<1x2xf32>
    %1126 = arith.addf %1124, %1125 : vector<1x2xf32>
    %1127 = arith.mulf %923, %480 : vector<1x2xf32>
    %1128 = arith.mulf %928, %483 : vector<1x2xf32>
    %1129 = arith.addf %1127, %1128 : vector<1x2xf32>
    %1130 = arith.mulf %933, %486 : vector<1x2xf32>
    %1131 = arith.addf %1129, %1130 : vector<1x2xf32>
    %1132 = arith.subf %583, %574 : vector<1x2xf32>
    %1133 = arith.subf %584, %575 : vector<1x2xf32>
    %1134 = arith.subf %585, %576 : vector<1x2xf32>
    %1135 = arith.mulf %893, %1132 : vector<1x2xf32>
    %1136 = arith.addf %942, %1135 : vector<1x2xf32>
    %1137 = arith.mulf %898, %1133 : vector<1x2xf32>
    %1138 = arith.addf %1136, %1137 : vector<1x2xf32>
    %1139 = arith.mulf %903, %1134 : vector<1x2xf32>
    %1140 = arith.addf %1138, %1139 : vector<1x2xf32>
    %1141 = arith.mulf %908, %1132 : vector<1x2xf32>
    %1142 = arith.addf %948, %1141 : vector<1x2xf32>
    %1143 = arith.mulf %913, %1133 : vector<1x2xf32>
    %1144 = arith.addf %1142, %1143 : vector<1x2xf32>
    %1145 = arith.mulf %918, %1134 : vector<1x2xf32>
    %1146 = arith.addf %1144, %1145 : vector<1x2xf32>
    %1147 = arith.mulf %923, %1132 : vector<1x2xf32>
    %1148 = arith.addf %954, %1147 : vector<1x2xf32>
    %1149 = arith.mulf %928, %1133 : vector<1x2xf32>
    %1150 = arith.addf %1148, %1149 : vector<1x2xf32>
    %1151 = arith.mulf %933, %1134 : vector<1x2xf32>
    %1152 = arith.addf %1150, %1151 : vector<1x2xf32>
    %1153 = arith.mulf %959, %487 : vector<1x2xf32>
    %1154 = arith.mulf %964, %490 : vector<1x2xf32>
    %1155 = arith.addf %1153, %1154 : vector<1x2xf32>
    %1156 = arith.mulf %969, %493 : vector<1x2xf32>
    %1157 = arith.addf %1155, %1156 : vector<1x2xf32>
    %1158 = arith.mulf %959, %488 : vector<1x2xf32>
    %1159 = arith.mulf %964, %491 : vector<1x2xf32>
    %1160 = arith.addf %1158, %1159 : vector<1x2xf32>
    %1161 = arith.mulf %969, %494 : vector<1x2xf32>
    %1162 = arith.addf %1160, %1161 : vector<1x2xf32>
    %1163 = arith.mulf %959, %489 : vector<1x2xf32>
    %1164 = arith.mulf %964, %492 : vector<1x2xf32>
    %1165 = arith.addf %1163, %1164 : vector<1x2xf32>
    %1166 = arith.mulf %969, %495 : vector<1x2xf32>
    %1167 = arith.addf %1165, %1166 : vector<1x2xf32>
    %1168 = arith.mulf %974, %487 : vector<1x2xf32>
    %1169 = arith.mulf %979, %490 : vector<1x2xf32>
    %1170 = arith.addf %1168, %1169 : vector<1x2xf32>
    %1171 = arith.mulf %984, %493 : vector<1x2xf32>
    %1172 = arith.addf %1170, %1171 : vector<1x2xf32>
    %1173 = arith.mulf %974, %488 : vector<1x2xf32>
    %1174 = arith.mulf %979, %491 : vector<1x2xf32>
    %1175 = arith.addf %1173, %1174 : vector<1x2xf32>
    %1176 = arith.mulf %984, %494 : vector<1x2xf32>
    %1177 = arith.addf %1175, %1176 : vector<1x2xf32>
    %1178 = arith.mulf %974, %489 : vector<1x2xf32>
    %1179 = arith.mulf %979, %492 : vector<1x2xf32>
    %1180 = arith.addf %1178, %1179 : vector<1x2xf32>
    %1181 = arith.mulf %984, %495 : vector<1x2xf32>
    %1182 = arith.addf %1180, %1181 : vector<1x2xf32>
    %1183 = arith.mulf %989, %487 : vector<1x2xf32>
    %1184 = arith.mulf %994, %490 : vector<1x2xf32>
    %1185 = arith.addf %1183, %1184 : vector<1x2xf32>
    %1186 = arith.mulf %999, %493 : vector<1x2xf32>
    %1187 = arith.addf %1185, %1186 : vector<1x2xf32>
    %1188 = arith.mulf %989, %488 : vector<1x2xf32>
    %1189 = arith.mulf %994, %491 : vector<1x2xf32>
    %1190 = arith.addf %1188, %1189 : vector<1x2xf32>
    %1191 = arith.mulf %999, %494 : vector<1x2xf32>
    %1192 = arith.addf %1190, %1191 : vector<1x2xf32>
    %1193 = arith.mulf %989, %489 : vector<1x2xf32>
    %1194 = arith.mulf %994, %492 : vector<1x2xf32>
    %1195 = arith.addf %1193, %1194 : vector<1x2xf32>
    %1196 = arith.mulf %999, %495 : vector<1x2xf32>
    %1197 = arith.addf %1195, %1196 : vector<1x2xf32>
    %1198 = arith.subf %586, %577 : vector<1x2xf32>
    %1199 = arith.subf %587, %578 : vector<1x2xf32>
    %1200 = arith.subf %588, %579 : vector<1x2xf32>
    %1201 = arith.mulf %959, %1198 : vector<1x2xf32>
    %1202 = arith.addf %1008, %1201 : vector<1x2xf32>
    %1203 = arith.mulf %964, %1199 : vector<1x2xf32>
    %1204 = arith.addf %1202, %1203 : vector<1x2xf32>
    %1205 = arith.mulf %969, %1200 : vector<1x2xf32>
    %1206 = arith.addf %1204, %1205 : vector<1x2xf32>
    %1207 = arith.mulf %974, %1198 : vector<1x2xf32>
    %1208 = arith.addf %1014, %1207 : vector<1x2xf32>
    %1209 = arith.mulf %979, %1199 : vector<1x2xf32>
    %1210 = arith.addf %1208, %1209 : vector<1x2xf32>
    %1211 = arith.mulf %984, %1200 : vector<1x2xf32>
    %1212 = arith.addf %1210, %1211 : vector<1x2xf32>
    %1213 = arith.mulf %989, %1198 : vector<1x2xf32>
    %1214 = arith.addf %1020, %1213 : vector<1x2xf32>
    %1215 = arith.mulf %994, %1199 : vector<1x2xf32>
    %1216 = arith.addf %1214, %1215 : vector<1x2xf32>
    %1217 = arith.mulf %999, %1200 : vector<1x2xf32>
    %1218 = arith.addf %1216, %1217 : vector<1x2xf32>
    %1219 = arith.subf %589, %580 : vector<1x2xf32>
    %1220 = arith.subf %590, %581 : vector<1x2xf32>
    %1221 = arith.subf %591, %582 : vector<1x2xf32>
    %1222 = arith.mulf %1025, %1219 : vector<1x2xf32>
    %1223 = arith.addf %1074, %1222 : vector<1x2xf32>
    %1224 = arith.mulf %1030, %1220 : vector<1x2xf32>
    %1225 = arith.addf %1223, %1224 : vector<1x2xf32>
    %1226 = arith.mulf %1035, %1221 : vector<1x2xf32>
    %1227 = arith.addf %1225, %1226 : vector<1x2xf32>
    %1228 = arith.mulf %1040, %1219 : vector<1x2xf32>
    %1229 = arith.addf %1080, %1228 : vector<1x2xf32>
    %1230 = arith.mulf %1045, %1220 : vector<1x2xf32>
    %1231 = arith.addf %1229, %1230 : vector<1x2xf32>
    %1232 = arith.mulf %1050, %1221 : vector<1x2xf32>
    %1233 = arith.addf %1231, %1232 : vector<1x2xf32>
    %1234 = arith.mulf %1055, %1219 : vector<1x2xf32>
    %1235 = arith.addf %1086, %1234 : vector<1x2xf32>
    %1236 = arith.mulf %1060, %1220 : vector<1x2xf32>
    %1237 = arith.addf %1235, %1236 : vector<1x2xf32>
    %1238 = arith.mulf %1065, %1221 : vector<1x2xf32>
    %1239 = arith.addf %1237, %1238 : vector<1x2xf32>
    %1240 = arith.subf %592, %583 : vector<1x2xf32>
    %1241 = arith.subf %593, %584 : vector<1x2xf32>
    %1242 = arith.subf %594, %585 : vector<1x2xf32>
    %1243 = arith.mulf %1091, %1240 : vector<1x2xf32>
    %1244 = arith.addf %1140, %1243 : vector<1x2xf32>
    %1245 = arith.mulf %1096, %1241 : vector<1x2xf32>
    %1246 = arith.addf %1244, %1245 : vector<1x2xf32>
    %1247 = arith.mulf %1101, %1242 : vector<1x2xf32>
    %1248 = arith.addf %1246, %1247 : vector<1x2xf32>
    %1249 = arith.mulf %1106, %1240 : vector<1x2xf32>
    %1250 = arith.addf %1146, %1249 : vector<1x2xf32>
    %1251 = arith.mulf %1111, %1241 : vector<1x2xf32>
    %1252 = arith.addf %1250, %1251 : vector<1x2xf32>
    %1253 = arith.mulf %1116, %1242 : vector<1x2xf32>
    %1254 = arith.addf %1252, %1253 : vector<1x2xf32>
    %1255 = arith.mulf %1121, %1240 : vector<1x2xf32>
    %1256 = arith.addf %1152, %1255 : vector<1x2xf32>
    %1257 = arith.mulf %1126, %1241 : vector<1x2xf32>
    %1258 = arith.addf %1256, %1257 : vector<1x2xf32>
    %1259 = arith.mulf %1131, %1242 : vector<1x2xf32>
    %1260 = arith.addf %1258, %1259 : vector<1x2xf32>
    %1261 = arith.mulf %1157, %496 : vector<1x2xf32>
    %1262 = arith.mulf %1162, %499 : vector<1x2xf32>
    %1263 = arith.addf %1261, %1262 : vector<1x2xf32>
    %1264 = arith.mulf %1167, %502 : vector<1x2xf32>
    %1265 = arith.addf %1263, %1264 : vector<1x2xf32>
    %1266 = arith.mulf %1157, %497 : vector<1x2xf32>
    %1267 = arith.mulf %1162, %500 : vector<1x2xf32>
    %1268 = arith.addf %1266, %1267 : vector<1x2xf32>
    %1269 = arith.mulf %1167, %503 : vector<1x2xf32>
    %1270 = arith.addf %1268, %1269 : vector<1x2xf32>
    %1271 = arith.mulf %1157, %498 : vector<1x2xf32>
    %1272 = arith.mulf %1162, %501 : vector<1x2xf32>
    %1273 = arith.addf %1271, %1272 : vector<1x2xf32>
    %1274 = arith.mulf %1167, %504 : vector<1x2xf32>
    %1275 = arith.addf %1273, %1274 : vector<1x2xf32>
    %1276 = arith.mulf %1172, %496 : vector<1x2xf32>
    %1277 = arith.mulf %1177, %499 : vector<1x2xf32>
    %1278 = arith.addf %1276, %1277 : vector<1x2xf32>
    %1279 = arith.mulf %1182, %502 : vector<1x2xf32>
    %1280 = arith.addf %1278, %1279 : vector<1x2xf32>
    %1281 = arith.mulf %1172, %497 : vector<1x2xf32>
    %1282 = arith.mulf %1177, %500 : vector<1x2xf32>
    %1283 = arith.addf %1281, %1282 : vector<1x2xf32>
    %1284 = arith.mulf %1182, %503 : vector<1x2xf32>
    %1285 = arith.addf %1283, %1284 : vector<1x2xf32>
    %1286 = arith.mulf %1172, %498 : vector<1x2xf32>
    %1287 = arith.mulf %1177, %501 : vector<1x2xf32>
    %1288 = arith.addf %1286, %1287 : vector<1x2xf32>
    %1289 = arith.mulf %1182, %504 : vector<1x2xf32>
    %1290 = arith.addf %1288, %1289 : vector<1x2xf32>
    %1291 = arith.mulf %1187, %496 : vector<1x2xf32>
    %1292 = arith.mulf %1192, %499 : vector<1x2xf32>
    %1293 = arith.addf %1291, %1292 : vector<1x2xf32>
    %1294 = arith.mulf %1197, %502 : vector<1x2xf32>
    %1295 = arith.addf %1293, %1294 : vector<1x2xf32>
    %1296 = arith.mulf %1187, %497 : vector<1x2xf32>
    %1297 = arith.mulf %1192, %500 : vector<1x2xf32>
    %1298 = arith.addf %1296, %1297 : vector<1x2xf32>
    %1299 = arith.mulf %1197, %503 : vector<1x2xf32>
    %1300 = arith.addf %1298, %1299 : vector<1x2xf32>
    %1301 = arith.mulf %1187, %498 : vector<1x2xf32>
    %1302 = arith.mulf %1192, %501 : vector<1x2xf32>
    %1303 = arith.addf %1301, %1302 : vector<1x2xf32>
    %1304 = arith.mulf %1197, %504 : vector<1x2xf32>
    %1305 = arith.addf %1303, %1304 : vector<1x2xf32>
    %1306 = arith.subf %595, %586 : vector<1x2xf32>
    %1307 = arith.subf %596, %587 : vector<1x2xf32>
    %1308 = arith.subf %597, %588 : vector<1x2xf32>
    %1309 = arith.mulf %1157, %1306 : vector<1x2xf32>
    %1310 = arith.addf %1206, %1309 : vector<1x2xf32>
    %1311 = arith.mulf %1162, %1307 : vector<1x2xf32>
    %1312 = arith.addf %1310, %1311 : vector<1x2xf32>
    %1313 = arith.mulf %1167, %1308 : vector<1x2xf32>
    %1314 = arith.addf %1312, %1313 : vector<1x2xf32>
    %1315 = arith.mulf %1172, %1306 : vector<1x2xf32>
    %1316 = arith.addf %1212, %1315 : vector<1x2xf32>
    %1317 = arith.mulf %1177, %1307 : vector<1x2xf32>
    %1318 = arith.addf %1316, %1317 : vector<1x2xf32>
    %1319 = arith.mulf %1182, %1308 : vector<1x2xf32>
    %1320 = arith.addf %1318, %1319 : vector<1x2xf32>
    %1321 = arith.mulf %1187, %1306 : vector<1x2xf32>
    %1322 = arith.addf %1218, %1321 : vector<1x2xf32>
    %1323 = arith.mulf %1192, %1307 : vector<1x2xf32>
    %1324 = arith.addf %1322, %1323 : vector<1x2xf32>
    %1325 = arith.mulf %1197, %1308 : vector<1x2xf32>
    %1326 = arith.addf %1324, %1325 : vector<1x2xf32>
    %1327 = arith.mulf %1157, %505 : vector<1x2xf32>
    %1328 = arith.mulf %1162, %508 : vector<1x2xf32>
    %1329 = arith.addf %1327, %1328 : vector<1x2xf32>
    %1330 = arith.mulf %1167, %511 : vector<1x2xf32>
    %1331 = arith.addf %1329, %1330 : vector<1x2xf32>
    %1332 = arith.mulf %1157, %506 : vector<1x2xf32>
    %1333 = arith.mulf %1162, %509 : vector<1x2xf32>
    %1334 = arith.addf %1332, %1333 : vector<1x2xf32>
    %1335 = arith.mulf %1167, %512 : vector<1x2xf32>
    %1336 = arith.addf %1334, %1335 : vector<1x2xf32>
    %1337 = arith.mulf %1157, %507 : vector<1x2xf32>
    %1338 = arith.mulf %1162, %510 : vector<1x2xf32>
    %1339 = arith.addf %1337, %1338 : vector<1x2xf32>
    %1340 = arith.mulf %1167, %513 : vector<1x2xf32>
    %1341 = arith.addf %1339, %1340 : vector<1x2xf32>
    %1342 = arith.mulf %1172, %505 : vector<1x2xf32>
    %1343 = arith.mulf %1177, %508 : vector<1x2xf32>
    %1344 = arith.addf %1342, %1343 : vector<1x2xf32>
    %1345 = arith.mulf %1182, %511 : vector<1x2xf32>
    %1346 = arith.addf %1344, %1345 : vector<1x2xf32>
    %1347 = arith.mulf %1172, %506 : vector<1x2xf32>
    %1348 = arith.mulf %1177, %509 : vector<1x2xf32>
    %1349 = arith.addf %1347, %1348 : vector<1x2xf32>
    %1350 = arith.mulf %1182, %512 : vector<1x2xf32>
    %1351 = arith.addf %1349, %1350 : vector<1x2xf32>
    %1352 = arith.mulf %1172, %507 : vector<1x2xf32>
    %1353 = arith.mulf %1177, %510 : vector<1x2xf32>
    %1354 = arith.addf %1352, %1353 : vector<1x2xf32>
    %1355 = arith.mulf %1182, %513 : vector<1x2xf32>
    %1356 = arith.addf %1354, %1355 : vector<1x2xf32>
    %1357 = arith.mulf %1187, %505 : vector<1x2xf32>
    %1358 = arith.mulf %1192, %508 : vector<1x2xf32>
    %1359 = arith.addf %1357, %1358 : vector<1x2xf32>
    %1360 = arith.mulf %1197, %511 : vector<1x2xf32>
    %1361 = arith.addf %1359, %1360 : vector<1x2xf32>
    %1362 = arith.mulf %1187, %506 : vector<1x2xf32>
    %1363 = arith.mulf %1192, %509 : vector<1x2xf32>
    %1364 = arith.addf %1362, %1363 : vector<1x2xf32>
    %1365 = arith.mulf %1197, %512 : vector<1x2xf32>
    %1366 = arith.addf %1364, %1365 : vector<1x2xf32>
    %1367 = arith.mulf %1187, %507 : vector<1x2xf32>
    %1368 = arith.mulf %1192, %510 : vector<1x2xf32>
    %1369 = arith.addf %1367, %1368 : vector<1x2xf32>
    %1370 = arith.mulf %1197, %513 : vector<1x2xf32>
    %1371 = arith.addf %1369, %1370 : vector<1x2xf32>
    %1372 = arith.subf %598, %586 : vector<1x2xf32>
    %1373 = arith.subf %599, %587 : vector<1x2xf32>
    %1374 = arith.subf %600, %588 : vector<1x2xf32>
    %1375 = arith.mulf %1157, %1372 : vector<1x2xf32>
    %1376 = arith.addf %1206, %1375 : vector<1x2xf32>
    %1377 = arith.mulf %1162, %1373 : vector<1x2xf32>
    %1378 = arith.addf %1376, %1377 : vector<1x2xf32>
    %1379 = arith.mulf %1167, %1374 : vector<1x2xf32>
    %1380 = arith.addf %1378, %1379 : vector<1x2xf32>
    %1381 = arith.mulf %1172, %1372 : vector<1x2xf32>
    %1382 = arith.addf %1212, %1381 : vector<1x2xf32>
    %1383 = arith.mulf %1177, %1373 : vector<1x2xf32>
    %1384 = arith.addf %1382, %1383 : vector<1x2xf32>
    %1385 = arith.mulf %1182, %1374 : vector<1x2xf32>
    %1386 = arith.addf %1384, %1385 : vector<1x2xf32>
    %1387 = arith.mulf %1187, %1372 : vector<1x2xf32>
    %1388 = arith.addf %1218, %1387 : vector<1x2xf32>
    %1389 = arith.mulf %1192, %1373 : vector<1x2xf32>
    %1390 = arith.addf %1388, %1389 : vector<1x2xf32>
    %1391 = arith.mulf %1197, %1374 : vector<1x2xf32>
    %1392 = arith.addf %1390, %1391 : vector<1x2xf32>
    %1393 = arith.mulf %1157, %514 : vector<1x2xf32>
    %1394 = arith.mulf %1162, %517 : vector<1x2xf32>
    %1395 = arith.addf %1393, %1394 : vector<1x2xf32>
    %1396 = arith.mulf %1167, %520 : vector<1x2xf32>
    %1397 = arith.addf %1395, %1396 : vector<1x2xf32>
    %1398 = arith.mulf %1157, %515 : vector<1x2xf32>
    %1399 = arith.mulf %1162, %518 : vector<1x2xf32>
    %1400 = arith.addf %1398, %1399 : vector<1x2xf32>
    %1401 = arith.mulf %1167, %521 : vector<1x2xf32>
    %1402 = arith.addf %1400, %1401 : vector<1x2xf32>
    %1403 = arith.mulf %1157, %516 : vector<1x2xf32>
    %1404 = arith.mulf %1162, %519 : vector<1x2xf32>
    %1405 = arith.addf %1403, %1404 : vector<1x2xf32>
    %1406 = arith.mulf %1167, %522 : vector<1x2xf32>
    %1407 = arith.addf %1405, %1406 : vector<1x2xf32>
    %1408 = arith.mulf %1172, %514 : vector<1x2xf32>
    %1409 = arith.mulf %1177, %517 : vector<1x2xf32>
    %1410 = arith.addf %1408, %1409 : vector<1x2xf32>
    %1411 = arith.mulf %1182, %520 : vector<1x2xf32>
    %1412 = arith.addf %1410, %1411 : vector<1x2xf32>
    %1413 = arith.mulf %1172, %515 : vector<1x2xf32>
    %1414 = arith.mulf %1177, %518 : vector<1x2xf32>
    %1415 = arith.addf %1413, %1414 : vector<1x2xf32>
    %1416 = arith.mulf %1182, %521 : vector<1x2xf32>
    %1417 = arith.addf %1415, %1416 : vector<1x2xf32>
    %1418 = arith.mulf %1172, %516 : vector<1x2xf32>
    %1419 = arith.mulf %1177, %519 : vector<1x2xf32>
    %1420 = arith.addf %1418, %1419 : vector<1x2xf32>
    %1421 = arith.mulf %1182, %522 : vector<1x2xf32>
    %1422 = arith.addf %1420, %1421 : vector<1x2xf32>
    %1423 = arith.mulf %1187, %514 : vector<1x2xf32>
    %1424 = arith.mulf %1192, %517 : vector<1x2xf32>
    %1425 = arith.addf %1423, %1424 : vector<1x2xf32>
    %1426 = arith.mulf %1197, %520 : vector<1x2xf32>
    %1427 = arith.addf %1425, %1426 : vector<1x2xf32>
    %1428 = arith.mulf %1187, %515 : vector<1x2xf32>
    %1429 = arith.mulf %1192, %518 : vector<1x2xf32>
    %1430 = arith.addf %1428, %1429 : vector<1x2xf32>
    %1431 = arith.mulf %1197, %521 : vector<1x2xf32>
    %1432 = arith.addf %1430, %1431 : vector<1x2xf32>
    %1433 = arith.mulf %1187, %516 : vector<1x2xf32>
    %1434 = arith.mulf %1192, %519 : vector<1x2xf32>
    %1435 = arith.addf %1433, %1434 : vector<1x2xf32>
    %1436 = arith.mulf %1197, %522 : vector<1x2xf32>
    %1437 = arith.addf %1435, %1436 : vector<1x2xf32>
    %1438 = arith.subf %601, %586 : vector<1x2xf32>
    %1439 = arith.subf %602, %587 : vector<1x2xf32>
    %1440 = arith.subf %603, %588 : vector<1x2xf32>
    %1441 = arith.mulf %1157, %1438 : vector<1x2xf32>
    %1442 = arith.addf %1206, %1441 : vector<1x2xf32>
    %1443 = arith.mulf %1162, %1439 : vector<1x2xf32>
    %1444 = arith.addf %1442, %1443 : vector<1x2xf32>
    %1445 = arith.mulf %1167, %1440 : vector<1x2xf32>
    %1446 = arith.addf %1444, %1445 : vector<1x2xf32>
    %1447 = arith.mulf %1172, %1438 : vector<1x2xf32>
    %1448 = arith.addf %1212, %1447 : vector<1x2xf32>
    %1449 = arith.mulf %1177, %1439 : vector<1x2xf32>
    %1450 = arith.addf %1448, %1449 : vector<1x2xf32>
    %1451 = arith.mulf %1182, %1440 : vector<1x2xf32>
    %1452 = arith.addf %1450, %1451 : vector<1x2xf32>
    %1453 = arith.mulf %1187, %1438 : vector<1x2xf32>
    %1454 = arith.addf %1218, %1453 : vector<1x2xf32>
    %1455 = arith.mulf %1192, %1439 : vector<1x2xf32>
    %1456 = arith.addf %1454, %1455 : vector<1x2xf32>
    %1457 = arith.mulf %1197, %1440 : vector<1x2xf32>
    %1458 = arith.addf %1456, %1457 : vector<1x2xf32>
    %1459 = arith.subf %604, %595 : vector<1x2xf32>
    %1460 = arith.subf %605, %596 : vector<1x2xf32>
    %1461 = arith.subf %606, %597 : vector<1x2xf32>
    %1462 = arith.mulf %1265, %1459 : vector<1x2xf32>
    %1463 = arith.addf %1314, %1462 : vector<1x2xf32>
    %1464 = arith.mulf %1270, %1460 : vector<1x2xf32>
    %1465 = arith.addf %1463, %1464 : vector<1x2xf32>
    %1466 = arith.mulf %1275, %1461 : vector<1x2xf32>
    %1467 = arith.addf %1465, %1466 : vector<1x2xf32>
    %1468 = arith.mulf %1280, %1459 : vector<1x2xf32>
    %1469 = arith.addf %1320, %1468 : vector<1x2xf32>
    %1470 = arith.mulf %1285, %1460 : vector<1x2xf32>
    %1471 = arith.addf %1469, %1470 : vector<1x2xf32>
    %1472 = arith.mulf %1290, %1461 : vector<1x2xf32>
    %1473 = arith.addf %1471, %1472 : vector<1x2xf32>
    %1474 = arith.mulf %1295, %1459 : vector<1x2xf32>
    %1475 = arith.addf %1326, %1474 : vector<1x2xf32>
    %1476 = arith.mulf %1300, %1460 : vector<1x2xf32>
    %1477 = arith.addf %1475, %1476 : vector<1x2xf32>
    %1478 = arith.mulf %1305, %1461 : vector<1x2xf32>
    %1479 = arith.addf %1477, %1478 : vector<1x2xf32>
    %1480 = arith.mulf %1331, %523 : vector<1x2xf32>
    %1481 = arith.mulf %1336, %526 : vector<1x2xf32>
    %1482 = arith.addf %1480, %1481 : vector<1x2xf32>
    %1483 = arith.mulf %1341, %529 : vector<1x2xf32>
    %1484 = arith.addf %1482, %1483 : vector<1x2xf32>
    %1485 = arith.mulf %1331, %524 : vector<1x2xf32>
    %1486 = arith.mulf %1336, %527 : vector<1x2xf32>
    %1487 = arith.addf %1485, %1486 : vector<1x2xf32>
    %1488 = arith.mulf %1341, %530 : vector<1x2xf32>
    %1489 = arith.addf %1487, %1488 : vector<1x2xf32>
    %1490 = arith.mulf %1331, %525 : vector<1x2xf32>
    %1491 = arith.mulf %1336, %528 : vector<1x2xf32>
    %1492 = arith.addf %1490, %1491 : vector<1x2xf32>
    %1493 = arith.mulf %1341, %531 : vector<1x2xf32>
    %1494 = arith.addf %1492, %1493 : vector<1x2xf32>
    %1495 = arith.mulf %1346, %523 : vector<1x2xf32>
    %1496 = arith.mulf %1351, %526 : vector<1x2xf32>
    %1497 = arith.addf %1495, %1496 : vector<1x2xf32>
    %1498 = arith.mulf %1356, %529 : vector<1x2xf32>
    %1499 = arith.addf %1497, %1498 : vector<1x2xf32>
    %1500 = arith.mulf %1346, %524 : vector<1x2xf32>
    %1501 = arith.mulf %1351, %527 : vector<1x2xf32>
    %1502 = arith.addf %1500, %1501 : vector<1x2xf32>
    %1503 = arith.mulf %1356, %530 : vector<1x2xf32>
    %1504 = arith.addf %1502, %1503 : vector<1x2xf32>
    %1505 = arith.mulf %1346, %525 : vector<1x2xf32>
    %1506 = arith.mulf %1351, %528 : vector<1x2xf32>
    %1507 = arith.addf %1505, %1506 : vector<1x2xf32>
    %1508 = arith.mulf %1356, %531 : vector<1x2xf32>
    %1509 = arith.addf %1507, %1508 : vector<1x2xf32>
    %1510 = arith.mulf %1361, %523 : vector<1x2xf32>
    %1511 = arith.mulf %1366, %526 : vector<1x2xf32>
    %1512 = arith.addf %1510, %1511 : vector<1x2xf32>
    %1513 = arith.mulf %1371, %529 : vector<1x2xf32>
    %1514 = arith.addf %1512, %1513 : vector<1x2xf32>
    %1515 = arith.mulf %1361, %524 : vector<1x2xf32>
    %1516 = arith.mulf %1366, %527 : vector<1x2xf32>
    %1517 = arith.addf %1515, %1516 : vector<1x2xf32>
    %1518 = arith.mulf %1371, %530 : vector<1x2xf32>
    %1519 = arith.addf %1517, %1518 : vector<1x2xf32>
    %1520 = arith.mulf %1361, %525 : vector<1x2xf32>
    %1521 = arith.mulf %1366, %528 : vector<1x2xf32>
    %1522 = arith.addf %1520, %1521 : vector<1x2xf32>
    %1523 = arith.mulf %1371, %531 : vector<1x2xf32>
    %1524 = arith.addf %1522, %1523 : vector<1x2xf32>
    %1525 = arith.subf %607, %598 : vector<1x2xf32>
    %1526 = arith.subf %608, %599 : vector<1x2xf32>
    %1527 = arith.subf %609, %600 : vector<1x2xf32>
    %1528 = arith.mulf %1331, %1525 : vector<1x2xf32>
    %1529 = arith.addf %1380, %1528 : vector<1x2xf32>
    %1530 = arith.mulf %1336, %1526 : vector<1x2xf32>
    %1531 = arith.addf %1529, %1530 : vector<1x2xf32>
    %1532 = arith.mulf %1341, %1527 : vector<1x2xf32>
    %1533 = arith.addf %1531, %1532 : vector<1x2xf32>
    %1534 = arith.mulf %1346, %1525 : vector<1x2xf32>
    %1535 = arith.addf %1386, %1534 : vector<1x2xf32>
    %1536 = arith.mulf %1351, %1526 : vector<1x2xf32>
    %1537 = arith.addf %1535, %1536 : vector<1x2xf32>
    %1538 = arith.mulf %1356, %1527 : vector<1x2xf32>
    %1539 = arith.addf %1537, %1538 : vector<1x2xf32>
    %1540 = arith.mulf %1361, %1525 : vector<1x2xf32>
    %1541 = arith.addf %1392, %1540 : vector<1x2xf32>
    %1542 = arith.mulf %1366, %1526 : vector<1x2xf32>
    %1543 = arith.addf %1541, %1542 : vector<1x2xf32>
    %1544 = arith.mulf %1371, %1527 : vector<1x2xf32>
    %1545 = arith.addf %1543, %1544 : vector<1x2xf32>
    %1546 = arith.mulf %1397, %532 : vector<1x2xf32>
    %1547 = arith.mulf %1402, %535 : vector<1x2xf32>
    %1548 = arith.addf %1546, %1547 : vector<1x2xf32>
    %1549 = arith.mulf %1407, %538 : vector<1x2xf32>
    %1550 = arith.addf %1548, %1549 : vector<1x2xf32>
    %1551 = arith.mulf %1397, %533 : vector<1x2xf32>
    %1552 = arith.mulf %1402, %536 : vector<1x2xf32>
    %1553 = arith.addf %1551, %1552 : vector<1x2xf32>
    %1554 = arith.mulf %1407, %539 : vector<1x2xf32>
    %1555 = arith.addf %1553, %1554 : vector<1x2xf32>
    %1556 = arith.mulf %1397, %534 : vector<1x2xf32>
    %1557 = arith.mulf %1402, %537 : vector<1x2xf32>
    %1558 = arith.addf %1556, %1557 : vector<1x2xf32>
    %1559 = arith.mulf %1407, %540 : vector<1x2xf32>
    %1560 = arith.addf %1558, %1559 : vector<1x2xf32>
    %1561 = arith.mulf %1412, %532 : vector<1x2xf32>
    %1562 = arith.mulf %1417, %535 : vector<1x2xf32>
    %1563 = arith.addf %1561, %1562 : vector<1x2xf32>
    %1564 = arith.mulf %1422, %538 : vector<1x2xf32>
    %1565 = arith.addf %1563, %1564 : vector<1x2xf32>
    %1566 = arith.mulf %1412, %533 : vector<1x2xf32>
    %1567 = arith.mulf %1417, %536 : vector<1x2xf32>
    %1568 = arith.addf %1566, %1567 : vector<1x2xf32>
    %1569 = arith.mulf %1422, %539 : vector<1x2xf32>
    %1570 = arith.addf %1568, %1569 : vector<1x2xf32>
    %1571 = arith.mulf %1412, %534 : vector<1x2xf32>
    %1572 = arith.mulf %1417, %537 : vector<1x2xf32>
    %1573 = arith.addf %1571, %1572 : vector<1x2xf32>
    %1574 = arith.mulf %1422, %540 : vector<1x2xf32>
    %1575 = arith.addf %1573, %1574 : vector<1x2xf32>
    %1576 = arith.mulf %1427, %532 : vector<1x2xf32>
    %1577 = arith.mulf %1432, %535 : vector<1x2xf32>
    %1578 = arith.addf %1576, %1577 : vector<1x2xf32>
    %1579 = arith.mulf %1437, %538 : vector<1x2xf32>
    %1580 = arith.addf %1578, %1579 : vector<1x2xf32>
    %1581 = arith.mulf %1427, %533 : vector<1x2xf32>
    %1582 = arith.mulf %1432, %536 : vector<1x2xf32>
    %1583 = arith.addf %1581, %1582 : vector<1x2xf32>
    %1584 = arith.mulf %1437, %539 : vector<1x2xf32>
    %1585 = arith.addf %1583, %1584 : vector<1x2xf32>
    %1586 = arith.mulf %1427, %534 : vector<1x2xf32>
    %1587 = arith.mulf %1432, %537 : vector<1x2xf32>
    %1588 = arith.addf %1586, %1587 : vector<1x2xf32>
    %1589 = arith.mulf %1437, %540 : vector<1x2xf32>
    %1590 = arith.addf %1588, %1589 : vector<1x2xf32>
    %1591 = arith.subf %610, %601 : vector<1x2xf32>
    %1592 = arith.subf %611, %602 : vector<1x2xf32>
    %1593 = arith.subf %612, %603 : vector<1x2xf32>
    %1594 = arith.mulf %1397, %1591 : vector<1x2xf32>
    %1595 = arith.addf %1446, %1594 : vector<1x2xf32>
    %1596 = arith.mulf %1402, %1592 : vector<1x2xf32>
    %1597 = arith.addf %1595, %1596 : vector<1x2xf32>
    %1598 = arith.mulf %1407, %1593 : vector<1x2xf32>
    %1599 = arith.addf %1597, %1598 : vector<1x2xf32>
    %1600 = arith.mulf %1412, %1591 : vector<1x2xf32>
    %1601 = arith.addf %1452, %1600 : vector<1x2xf32>
    %1602 = arith.mulf %1417, %1592 : vector<1x2xf32>
    %1603 = arith.addf %1601, %1602 : vector<1x2xf32>
    %1604 = arith.mulf %1422, %1593 : vector<1x2xf32>
    %1605 = arith.addf %1603, %1604 : vector<1x2xf32>
    %1606 = arith.mulf %1427, %1591 : vector<1x2xf32>
    %1607 = arith.addf %1458, %1606 : vector<1x2xf32>
    %1608 = arith.mulf %1432, %1592 : vector<1x2xf32>
    %1609 = arith.addf %1607, %1608 : vector<1x2xf32>
    %1610 = arith.mulf %1437, %1593 : vector<1x2xf32>
    %1611 = arith.addf %1609, %1610 : vector<1x2xf32>
    %1612 = arith.mulf %1484, %541 : vector<1x2xf32>
    %1613 = arith.mulf %1489, %544 : vector<1x2xf32>
    %1614 = arith.addf %1612, %1613 : vector<1x2xf32>
    %1615 = arith.mulf %1494, %547 : vector<1x2xf32>
    %1616 = arith.addf %1614, %1615 : vector<1x2xf32>
    %1617 = arith.mulf %1484, %542 : vector<1x2xf32>
    %1618 = arith.mulf %1489, %545 : vector<1x2xf32>
    %1619 = arith.addf %1617, %1618 : vector<1x2xf32>
    %1620 = arith.mulf %1494, %548 : vector<1x2xf32>
    %1621 = arith.addf %1619, %1620 : vector<1x2xf32>
    %1622 = arith.mulf %1484, %543 : vector<1x2xf32>
    %1623 = arith.mulf %1489, %546 : vector<1x2xf32>
    %1624 = arith.addf %1622, %1623 : vector<1x2xf32>
    %1625 = arith.mulf %1494, %549 : vector<1x2xf32>
    %1626 = arith.addf %1624, %1625 : vector<1x2xf32>
    %1627 = arith.mulf %1499, %541 : vector<1x2xf32>
    %1628 = arith.mulf %1504, %544 : vector<1x2xf32>
    %1629 = arith.addf %1627, %1628 : vector<1x2xf32>
    %1630 = arith.mulf %1509, %547 : vector<1x2xf32>
    %1631 = arith.addf %1629, %1630 : vector<1x2xf32>
    %1632 = arith.mulf %1499, %542 : vector<1x2xf32>
    %1633 = arith.mulf %1504, %545 : vector<1x2xf32>
    %1634 = arith.addf %1632, %1633 : vector<1x2xf32>
    %1635 = arith.mulf %1509, %548 : vector<1x2xf32>
    %1636 = arith.addf %1634, %1635 : vector<1x2xf32>
    %1637 = arith.mulf %1499, %543 : vector<1x2xf32>
    %1638 = arith.mulf %1504, %546 : vector<1x2xf32>
    %1639 = arith.addf %1637, %1638 : vector<1x2xf32>
    %1640 = arith.mulf %1509, %549 : vector<1x2xf32>
    %1641 = arith.addf %1639, %1640 : vector<1x2xf32>
    %1642 = arith.mulf %1514, %541 : vector<1x2xf32>
    %1643 = arith.mulf %1519, %544 : vector<1x2xf32>
    %1644 = arith.addf %1642, %1643 : vector<1x2xf32>
    %1645 = arith.mulf %1524, %547 : vector<1x2xf32>
    %1646 = arith.addf %1644, %1645 : vector<1x2xf32>
    %1647 = arith.mulf %1514, %542 : vector<1x2xf32>
    %1648 = arith.mulf %1519, %545 : vector<1x2xf32>
    %1649 = arith.addf %1647, %1648 : vector<1x2xf32>
    %1650 = arith.mulf %1524, %548 : vector<1x2xf32>
    %1651 = arith.addf %1649, %1650 : vector<1x2xf32>
    %1652 = arith.mulf %1514, %543 : vector<1x2xf32>
    %1653 = arith.mulf %1519, %546 : vector<1x2xf32>
    %1654 = arith.addf %1652, %1653 : vector<1x2xf32>
    %1655 = arith.mulf %1524, %549 : vector<1x2xf32>
    %1656 = arith.addf %1654, %1655 : vector<1x2xf32>
    %1657 = arith.subf %613, %607 : vector<1x2xf32>
    %1658 = arith.subf %614, %608 : vector<1x2xf32>
    %1659 = arith.subf %615, %609 : vector<1x2xf32>
    %1660 = arith.mulf %1484, %1657 : vector<1x2xf32>
    %1661 = arith.addf %1533, %1660 : vector<1x2xf32>
    %1662 = arith.mulf %1489, %1658 : vector<1x2xf32>
    %1663 = arith.addf %1661, %1662 : vector<1x2xf32>
    %1664 = arith.mulf %1494, %1659 : vector<1x2xf32>
    %1665 = arith.addf %1663, %1664 : vector<1x2xf32>
    %1666 = arith.mulf %1499, %1657 : vector<1x2xf32>
    %1667 = arith.addf %1539, %1666 : vector<1x2xf32>
    %1668 = arith.mulf %1504, %1658 : vector<1x2xf32>
    %1669 = arith.addf %1667, %1668 : vector<1x2xf32>
    %1670 = arith.mulf %1509, %1659 : vector<1x2xf32>
    %1671 = arith.addf %1669, %1670 : vector<1x2xf32>
    %1672 = arith.mulf %1514, %1657 : vector<1x2xf32>
    %1673 = arith.addf %1545, %1672 : vector<1x2xf32>
    %1674 = arith.mulf %1519, %1658 : vector<1x2xf32>
    %1675 = arith.addf %1673, %1674 : vector<1x2xf32>
    %1676 = arith.mulf %1524, %1659 : vector<1x2xf32>
    %1677 = arith.addf %1675, %1676 : vector<1x2xf32>
    %1678 = arith.mulf %1550, %550 : vector<1x2xf32>
    %1679 = arith.mulf %1555, %553 : vector<1x2xf32>
    %1680 = arith.addf %1678, %1679 : vector<1x2xf32>
    %1681 = arith.mulf %1560, %556 : vector<1x2xf32>
    %1682 = arith.addf %1680, %1681 : vector<1x2xf32>
    %1683 = arith.mulf %1550, %551 : vector<1x2xf32>
    %1684 = arith.mulf %1555, %554 : vector<1x2xf32>
    %1685 = arith.addf %1683, %1684 : vector<1x2xf32>
    %1686 = arith.mulf %1560, %557 : vector<1x2xf32>
    %1687 = arith.addf %1685, %1686 : vector<1x2xf32>
    %1688 = arith.mulf %1550, %552 : vector<1x2xf32>
    %1689 = arith.mulf %1555, %555 : vector<1x2xf32>
    %1690 = arith.addf %1688, %1689 : vector<1x2xf32>
    %1691 = arith.mulf %1560, %558 : vector<1x2xf32>
    %1692 = arith.addf %1690, %1691 : vector<1x2xf32>
    %1693 = arith.mulf %1565, %550 : vector<1x2xf32>
    %1694 = arith.mulf %1570, %553 : vector<1x2xf32>
    %1695 = arith.addf %1693, %1694 : vector<1x2xf32>
    %1696 = arith.mulf %1575, %556 : vector<1x2xf32>
    %1697 = arith.addf %1695, %1696 : vector<1x2xf32>
    %1698 = arith.mulf %1565, %551 : vector<1x2xf32>
    %1699 = arith.mulf %1570, %554 : vector<1x2xf32>
    %1700 = arith.addf %1698, %1699 : vector<1x2xf32>
    %1701 = arith.mulf %1575, %557 : vector<1x2xf32>
    %1702 = arith.addf %1700, %1701 : vector<1x2xf32>
    %1703 = arith.mulf %1565, %552 : vector<1x2xf32>
    %1704 = arith.mulf %1570, %555 : vector<1x2xf32>
    %1705 = arith.addf %1703, %1704 : vector<1x2xf32>
    %1706 = arith.mulf %1575, %558 : vector<1x2xf32>
    %1707 = arith.addf %1705, %1706 : vector<1x2xf32>
    %1708 = arith.mulf %1580, %550 : vector<1x2xf32>
    %1709 = arith.mulf %1585, %553 : vector<1x2xf32>
    %1710 = arith.addf %1708, %1709 : vector<1x2xf32>
    %1711 = arith.mulf %1590, %556 : vector<1x2xf32>
    %1712 = arith.addf %1710, %1711 : vector<1x2xf32>
    %1713 = arith.mulf %1580, %551 : vector<1x2xf32>
    %1714 = arith.mulf %1585, %554 : vector<1x2xf32>
    %1715 = arith.addf %1713, %1714 : vector<1x2xf32>
    %1716 = arith.mulf %1590, %557 : vector<1x2xf32>
    %1717 = arith.addf %1715, %1716 : vector<1x2xf32>
    %1718 = arith.mulf %1580, %552 : vector<1x2xf32>
    %1719 = arith.mulf %1585, %555 : vector<1x2xf32>
    %1720 = arith.addf %1718, %1719 : vector<1x2xf32>
    %1721 = arith.mulf %1590, %558 : vector<1x2xf32>
    %1722 = arith.addf %1720, %1721 : vector<1x2xf32>
    %1723 = arith.subf %616, %610 : vector<1x2xf32>
    %1724 = arith.subf %617, %611 : vector<1x2xf32>
    %1725 = arith.subf %618, %612 : vector<1x2xf32>
    %1726 = arith.mulf %1550, %1723 : vector<1x2xf32>
    %1727 = arith.addf %1599, %1726 : vector<1x2xf32>
    %1728 = arith.mulf %1555, %1724 : vector<1x2xf32>
    %1729 = arith.addf %1727, %1728 : vector<1x2xf32>
    %1730 = arith.mulf %1560, %1725 : vector<1x2xf32>
    %1731 = arith.addf %1729, %1730 : vector<1x2xf32>
    %1732 = arith.mulf %1565, %1723 : vector<1x2xf32>
    %1733 = arith.addf %1605, %1732 : vector<1x2xf32>
    %1734 = arith.mulf %1570, %1724 : vector<1x2xf32>
    %1735 = arith.addf %1733, %1734 : vector<1x2xf32>
    %1736 = arith.mulf %1575, %1725 : vector<1x2xf32>
    %1737 = arith.addf %1735, %1736 : vector<1x2xf32>
    %1738 = arith.mulf %1580, %1723 : vector<1x2xf32>
    %1739 = arith.addf %1611, %1738 : vector<1x2xf32>
    %1740 = arith.mulf %1585, %1724 : vector<1x2xf32>
    %1741 = arith.addf %1739, %1740 : vector<1x2xf32>
    %1742 = arith.mulf %1590, %1725 : vector<1x2xf32>
    %1743 = arith.addf %1741, %1742 : vector<1x2xf32>
    %1744 = arith.subf %619, %613 : vector<1x2xf32>
    %1745 = arith.subf %620, %614 : vector<1x2xf32>
    %1746 = arith.subf %621, %615 : vector<1x2xf32>
    %1747 = arith.mulf %1616, %1744 : vector<1x2xf32>
    %1748 = arith.addf %1665, %1747 : vector<1x2xf32>
    %1749 = arith.mulf %1621, %1745 : vector<1x2xf32>
    %1750 = arith.addf %1748, %1749 : vector<1x2xf32>
    %1751 = arith.mulf %1626, %1746 : vector<1x2xf32>
    %1752 = arith.addf %1750, %1751 : vector<1x2xf32>
    %1753 = arith.mulf %1631, %1744 : vector<1x2xf32>
    %1754 = arith.addf %1671, %1753 : vector<1x2xf32>
    %1755 = arith.mulf %1636, %1745 : vector<1x2xf32>
    %1756 = arith.addf %1754, %1755 : vector<1x2xf32>
    %1757 = arith.mulf %1641, %1746 : vector<1x2xf32>
    %1758 = arith.addf %1756, %1757 : vector<1x2xf32>
    %1759 = arith.mulf %1646, %1744 : vector<1x2xf32>
    %1760 = arith.addf %1677, %1759 : vector<1x2xf32>
    %1761 = arith.mulf %1651, %1745 : vector<1x2xf32>
    %1762 = arith.addf %1760, %1761 : vector<1x2xf32>
    %1763 = arith.mulf %1656, %1746 : vector<1x2xf32>
    %1764 = arith.addf %1762, %1763 : vector<1x2xf32>
    %1765 = arith.subf %622, %616 : vector<1x2xf32>
    %1766 = arith.subf %623, %617 : vector<1x2xf32>
    %1767 = arith.subf %624, %618 : vector<1x2xf32>
    %1768 = arith.mulf %1682, %1765 : vector<1x2xf32>
    %1769 = arith.addf %1731, %1768 : vector<1x2xf32>
    %1770 = arith.mulf %1687, %1766 : vector<1x2xf32>
    %1771 = arith.addf %1769, %1770 : vector<1x2xf32>
    %1772 = arith.mulf %1692, %1767 : vector<1x2xf32>
    %1773 = arith.addf %1771, %1772 : vector<1x2xf32>
    %1774 = arith.mulf %1697, %1765 : vector<1x2xf32>
    %1775 = arith.addf %1737, %1774 : vector<1x2xf32>
    %1776 = arith.mulf %1702, %1766 : vector<1x2xf32>
    %1777 = arith.addf %1775, %1776 : vector<1x2xf32>
    %1778 = arith.mulf %1707, %1767 : vector<1x2xf32>
    %1779 = arith.addf %1777, %1778 : vector<1x2xf32>
    %1780 = arith.mulf %1712, %1765 : vector<1x2xf32>
    %1781 = arith.addf %1743, %1780 : vector<1x2xf32>
    %1782 = arith.mulf %1717, %1766 : vector<1x2xf32>
    %1783 = arith.addf %1781, %1782 : vector<1x2xf32>
    %1784 = arith.mulf %1722, %1767 : vector<1x2xf32>
    %1785 = arith.addf %1783, %1784 : vector<1x2xf32>
    %c0_78 = arith.constant 0 : index
    %c0_79 = arith.constant 0 : index
    %c0_80 = arith.constant 0 : index
    %1786 = vector.load %arg3[%c0_78, %c0_79, %c0_80] : memref<3x22x2xf32, #tpu.memory_space<vmem>>, vector<1x22x2xf32>
    %1787 = vector.shape_cast %1786 : vector<1x22x2xf32> to vector<22x2xf32>
    %c1_81 = arith.constant 1 : index
    %c0_82 = arith.constant 0 : index
    %c0_83 = arith.constant 0 : index
    %1788 = vector.load %arg3[%c1_81, %c0_82, %c0_83] : memref<3x22x2xf32, #tpu.memory_space<vmem>>, vector<1x22x2xf32>
    %1789 = vector.shape_cast %1788 : vector<1x22x2xf32> to vector<22x2xf32>
    %c2_84 = arith.constant 2 : index
    %c0_85 = arith.constant 0 : index
    %c0_86 = arith.constant 0 : index
    %1790 = vector.load %arg3[%c2_84, %c0_85, %c0_86] : memref<3x22x2xf32, #tpu.memory_space<vmem>>, vector<1x22x2xf32>
    %1791 = vector.shape_cast %1790 : vector<1x22x2xf32> to vector<22x2xf32>
    %c0_87 = arith.constant 0 : index
    %c0_88 = arith.constant 0 : index
    %c0_89 = arith.constant 0 : index
    %1792 = vector.load %arg4[%c0_87, %c0_88, %c0_89] : memref<2x22x2xf32, #tpu.memory_space<vmem>>, vector<1x22x2xf32>
    %1793 = vector.shape_cast %1792 : vector<1x22x2xf32> to vector<22x2xf32>
    %c1_90 = arith.constant 1 : index
    %c0_91 = arith.constant 0 : index
    %c0_92 = arith.constant 0 : index
    %1794 = vector.load %arg4[%c1_90, %c0_91, %c0_92] : memref<2x22x2xf32, #tpu.memory_space<vmem>>, vector<1x22x2xf32>
    %1795 = vector.shape_cast %1794 : vector<1x22x2xf32> to vector<22x2xf32>
    %1796 = vector.extract_strided_slice %1787 {offsets = [0, 0], sizes = [1, 2], strides = [1, 1]} : vector<22x2xf32> to vector<1x2xf32>
    %1797 = vector.extract_strided_slice %1789 {offsets = [0, 0], sizes = [1, 2], strides = [1, 1]} : vector<22x2xf32> to vector<1x2xf32>
    %1798 = vector.extract_strided_slice %1791 {offsets = [0, 0], sizes = [1, 2], strides = [1, 1]} : vector<22x2xf32> to vector<1x2xf32>
    %cst_93 = arith.constant 0.000000e+00 : f32
    %1799 = vector.broadcast %cst_93 : f32 to vector<1x2xf32>
    %cst_94 = arith.constant 0.000000e+00 : f32
    %1800 = vector.broadcast %cst_94 : f32 to vector<1x2xf32>
    %1801 = arith.subf %559, %559 : vector<1x2xf32>
    %1802 = arith.subf %560, %560 : vector<1x2xf32>
    %1803 = arith.subf %561, %561 : vector<1x2xf32>
    %1804 = vector.extract_strided_slice %1787 {offsets = [0, 0], sizes = [1, 2], strides = [1, 1]} : vector<22x2xf32> to vector<1x2xf32>
    %1805 = arith.subf %1804, %1796 : vector<1x2xf32>
    %1806 = arith.subf %1801, %1805 : vector<1x2xf32>
    %1807 = math.absf %1806 : vector<1x2xf32>
    %1808 = vector.extract_strided_slice %1789 {offsets = [0, 0], sizes = [1, 2], strides = [1, 1]} : vector<22x2xf32> to vector<1x2xf32>
    %1809 = arith.subf %1808, %1797 : vector<1x2xf32>
    %1810 = arith.subf %1802, %1809 : vector<1x2xf32>
    %1811 = math.absf %1810 : vector<1x2xf32>
    %1812 = arith.addf %1807, %1811 : vector<1x2xf32>
    %1813 = vector.extract_strided_slice %1791 {offsets = [0, 0], sizes = [1, 2], strides = [1, 1]} : vector<22x2xf32> to vector<1x2xf32>
    %1814 = arith.subf %1813, %1798 : vector<1x2xf32>
    %1815 = arith.subf %1803, %1814 : vector<1x2xf32>
    %1816 = math.absf %1815 : vector<1x2xf32>
    %1817 = arith.addf %1812, %1816 : vector<1x2xf32>
    %1818 = arith.addf %1799, %1817 : vector<1x2xf32>
    %1819 = arith.addf %1803, %206 : vector<1x2xf32>
    %1820 = tpu.reciprocal %1819 : vector<1x2xf32> -> vector<1x2xf32>
    %1821 = arith.addf %1801, %194 : vector<1x2xf32>
    %1822 = arith.mulf %1821, %1820 : vector<1x2xf32>
    %1823 = arith.mulf %1822, %208 : vector<1x2xf32>
    %1824 = arith.addf %1802, %200 : vector<1x2xf32>
    %1825 = arith.mulf %1824, %1820 : vector<1x2xf32>
    %1826 = arith.mulf %1825, %210 : vector<1x2xf32>
    %1827 = vector.extract_strided_slice %1793 {offsets = [0, 0], sizes = [1, 2], strides = [1, 1]} : vector<22x2xf32> to vector<1x2xf32>
    %1828 = arith.subf %1823, %1827 : vector<1x2xf32>
    %1829 = math.absf %1828 : vector<1x2xf32>
    %1830 = arith.addf %1800, %1829 : vector<1x2xf32>
    %1831 = vector.extract_strided_slice %1795 {offsets = [0, 0], sizes = [1, 2], strides = [1, 1]} : vector<22x2xf32> to vector<1x2xf32>
    %1832 = arith.subf %1826, %1831 : vector<1x2xf32>
    %1833 = math.absf %1832 : vector<1x2xf32>
    %1834 = arith.addf %1830, %1833 : vector<1x2xf32>
    %1835 = arith.subf %678, %559 : vector<1x2xf32>
    %1836 = arith.subf %684, %560 : vector<1x2xf32>
    %1837 = arith.subf %690, %561 : vector<1x2xf32>
    %1838 = vector.extract_strided_slice %1787 {offsets = [1, 0], sizes = [1, 2], strides = [1, 1]} : vector<22x2xf32> to vector<1x2xf32>
    %1839 = arith.subf %1838, %1796 : vector<1x2xf32>
    %1840 = arith.subf %1835, %1839 : vector<1x2xf32>
    %1841 = math.absf %1840 : vector<1x2xf32>
    %1842 = vector.extract_strided_slice %1789 {offsets = [1, 0], sizes = [1, 2], strides = [1, 1]} : vector<22x2xf32> to vector<1x2xf32>
    %1843 = arith.subf %1842, %1797 : vector<1x2xf32>
    %1844 = arith.subf %1836, %1843 : vector<1x2xf32>
    %1845 = math.absf %1844 : vector<1x2xf32>
    %1846 = arith.addf %1841, %1845 : vector<1x2xf32>
    %1847 = vector.extract_strided_slice %1791 {offsets = [1, 0], sizes = [1, 2], strides = [1, 1]} : vector<22x2xf32> to vector<1x2xf32>
    %1848 = arith.subf %1847, %1798 : vector<1x2xf32>
    %1849 = arith.subf %1837, %1848 : vector<1x2xf32>
    %1850 = math.absf %1849 : vector<1x2xf32>
    %1851 = arith.addf %1846, %1850 : vector<1x2xf32>
    %1852 = arith.addf %1818, %1851 : vector<1x2xf32>
    %1853 = arith.addf %1837, %206 : vector<1x2xf32>
    %1854 = tpu.reciprocal %1853 : vector<1x2xf32> -> vector<1x2xf32>
    %1855 = arith.addf %1835, %194 : vector<1x2xf32>
    %1856 = arith.mulf %1855, %1854 : vector<1x2xf32>
    %1857 = arith.mulf %1856, %208 : vector<1x2xf32>
    %1858 = arith.addf %1836, %200 : vector<1x2xf32>
    %1859 = arith.mulf %1858, %1854 : vector<1x2xf32>
    %1860 = arith.mulf %1859, %210 : vector<1x2xf32>
    %1861 = vector.extract_strided_slice %1793 {offsets = [1, 0], sizes = [1, 2], strides = [1, 1]} : vector<22x2xf32> to vector<1x2xf32>
    %1862 = arith.subf %1857, %1861 : vector<1x2xf32>
    %1863 = math.absf %1862 : vector<1x2xf32>
    %1864 = arith.addf %1834, %1863 : vector<1x2xf32>
    %1865 = vector.extract_strided_slice %1795 {offsets = [1, 0], sizes = [1, 2], strides = [1, 1]} : vector<22x2xf32> to vector<1x2xf32>
    %1866 = arith.subf %1860, %1865 : vector<1x2xf32>
    %1867 = math.absf %1866 : vector<1x2xf32>
    %1868 = arith.addf %1864, %1867 : vector<1x2xf32>
    %1869 = arith.subf %744, %559 : vector<1x2xf32>
    %1870 = arith.subf %750, %560 : vector<1x2xf32>
    %1871 = arith.subf %756, %561 : vector<1x2xf32>
    %1872 = vector.extract_strided_slice %1787 {offsets = [2, 0], sizes = [1, 2], strides = [1, 1]} : vector<22x2xf32> to vector<1x2xf32>
    %1873 = arith.subf %1872, %1796 : vector<1x2xf32>
    %1874 = arith.subf %1869, %1873 : vector<1x2xf32>
    %1875 = math.absf %1874 : vector<1x2xf32>
    %1876 = vector.extract_strided_slice %1789 {offsets = [2, 0], sizes = [1, 2], strides = [1, 1]} : vector<22x2xf32> to vector<1x2xf32>
    %1877 = arith.subf %1876, %1797 : vector<1x2xf32>
    %1878 = arith.subf %1870, %1877 : vector<1x2xf32>
    %1879 = math.absf %1878 : vector<1x2xf32>
    %1880 = arith.addf %1875, %1879 : vector<1x2xf32>
    %1881 = vector.extract_strided_slice %1791 {offsets = [2, 0], sizes = [1, 2], strides = [1, 1]} : vector<22x2xf32> to vector<1x2xf32>
    %1882 = arith.subf %1881, %1798 : vector<1x2xf32>
    %1883 = arith.subf %1871, %1882 : vector<1x2xf32>
    %1884 = math.absf %1883 : vector<1x2xf32>
    %1885 = arith.addf %1880, %1884 : vector<1x2xf32>
    %1886 = arith.addf %1852, %1885 : vector<1x2xf32>
    %1887 = arith.addf %1871, %206 : vector<1x2xf32>
    %1888 = tpu.reciprocal %1887 : vector<1x2xf32> -> vector<1x2xf32>
    %1889 = arith.addf %1869, %194 : vector<1x2xf32>
    %1890 = arith.mulf %1889, %1888 : vector<1x2xf32>
    %1891 = arith.mulf %1890, %208 : vector<1x2xf32>
    %1892 = arith.addf %1870, %200 : vector<1x2xf32>
    %1893 = arith.mulf %1892, %1888 : vector<1x2xf32>
    %1894 = arith.mulf %1893, %210 : vector<1x2xf32>
    %1895 = vector.extract_strided_slice %1793 {offsets = [2, 0], sizes = [1, 2], strides = [1, 1]} : vector<22x2xf32> to vector<1x2xf32>
    %1896 = arith.subf %1891, %1895 : vector<1x2xf32>
    %1897 = math.absf %1896 : vector<1x2xf32>
    %1898 = arith.addf %1868, %1897 : vector<1x2xf32>
    %1899 = vector.extract_strided_slice %1795 {offsets = [2, 0], sizes = [1, 2], strides = [1, 1]} : vector<22x2xf32> to vector<1x2xf32>
    %1900 = arith.subf %1894, %1899 : vector<1x2xf32>
    %1901 = math.absf %1900 : vector<1x2xf32>
    %1902 = arith.addf %1898, %1901 : vector<1x2xf32>
    %1903 = arith.subf %810, %559 : vector<1x2xf32>
    %1904 = arith.subf %816, %560 : vector<1x2xf32>
    %1905 = arith.subf %822, %561 : vector<1x2xf32>
    %1906 = vector.extract_strided_slice %1787 {offsets = [3, 0], sizes = [1, 2], strides = [1, 1]} : vector<22x2xf32> to vector<1x2xf32>
    %1907 = arith.subf %1906, %1796 : vector<1x2xf32>
    %1908 = arith.subf %1903, %1907 : vector<1x2xf32>
    %1909 = math.absf %1908 : vector<1x2xf32>
    %1910 = vector.extract_strided_slice %1789 {offsets = [3, 0], sizes = [1, 2], strides = [1, 1]} : vector<22x2xf32> to vector<1x2xf32>
    %1911 = arith.subf %1910, %1797 : vector<1x2xf32>
    %1912 = arith.subf %1904, %1911 : vector<1x2xf32>
    %1913 = math.absf %1912 : vector<1x2xf32>
    %1914 = arith.addf %1909, %1913 : vector<1x2xf32>
    %1915 = vector.extract_strided_slice %1791 {offsets = [3, 0], sizes = [1, 2], strides = [1, 1]} : vector<22x2xf32> to vector<1x2xf32>
    %1916 = arith.subf %1915, %1798 : vector<1x2xf32>
    %1917 = arith.subf %1905, %1916 : vector<1x2xf32>
    %1918 = math.absf %1917 : vector<1x2xf32>
    %1919 = arith.addf %1914, %1918 : vector<1x2xf32>
    %1920 = arith.addf %1886, %1919 : vector<1x2xf32>
    %1921 = arith.addf %1905, %206 : vector<1x2xf32>
    %1922 = tpu.reciprocal %1921 : vector<1x2xf32> -> vector<1x2xf32>
    %1923 = arith.addf %1903, %194 : vector<1x2xf32>
    %1924 = arith.mulf %1923, %1922 : vector<1x2xf32>
    %1925 = arith.mulf %1924, %208 : vector<1x2xf32>
    %1926 = arith.addf %1904, %200 : vector<1x2xf32>
    %1927 = arith.mulf %1926, %1922 : vector<1x2xf32>
    %1928 = arith.mulf %1927, %210 : vector<1x2xf32>
    %1929 = vector.extract_strided_slice %1793 {offsets = [3, 0], sizes = [1, 2], strides = [1, 1]} : vector<22x2xf32> to vector<1x2xf32>
    %1930 = arith.subf %1925, %1929 : vector<1x2xf32>
    %1931 = math.absf %1930 : vector<1x2xf32>
    %1932 = arith.addf %1902, %1931 : vector<1x2xf32>
    %1933 = vector.extract_strided_slice %1795 {offsets = [3, 0], sizes = [1, 2], strides = [1, 1]} : vector<22x2xf32> to vector<1x2xf32>
    %1934 = arith.subf %1928, %1933 : vector<1x2xf32>
    %1935 = math.absf %1934 : vector<1x2xf32>
    %1936 = arith.addf %1932, %1935 : vector<1x2xf32>
    %1937 = arith.subf %876, %559 : vector<1x2xf32>
    %1938 = arith.subf %882, %560 : vector<1x2xf32>
    %1939 = arith.subf %888, %561 : vector<1x2xf32>
    %1940 = vector.extract_strided_slice %1787 {offsets = [4, 0], sizes = [1, 2], strides = [1, 1]} : vector<22x2xf32> to vector<1x2xf32>
    %1941 = arith.subf %1940, %1796 : vector<1x2xf32>
    %1942 = arith.subf %1937, %1941 : vector<1x2xf32>
    %1943 = math.absf %1942 : vector<1x2xf32>
    %1944 = vector.extract_strided_slice %1789 {offsets = [4, 0], sizes = [1, 2], strides = [1, 1]} : vector<22x2xf32> to vector<1x2xf32>
    %1945 = arith.subf %1944, %1797 : vector<1x2xf32>
    %1946 = arith.subf %1938, %1945 : vector<1x2xf32>
    %1947 = math.absf %1946 : vector<1x2xf32>
    %1948 = arith.addf %1943, %1947 : vector<1x2xf32>
    %1949 = vector.extract_strided_slice %1791 {offsets = [4, 0], sizes = [1, 2], strides = [1, 1]} : vector<22x2xf32> to vector<1x2xf32>
    %1950 = arith.subf %1949, %1798 : vector<1x2xf32>
    %1951 = arith.subf %1939, %1950 : vector<1x2xf32>
    %1952 = math.absf %1951 : vector<1x2xf32>
    %1953 = arith.addf %1948, %1952 : vector<1x2xf32>
    %1954 = arith.addf %1920, %1953 : vector<1x2xf32>
    %1955 = arith.addf %1939, %206 : vector<1x2xf32>
    %1956 = tpu.reciprocal %1955 : vector<1x2xf32> -> vector<1x2xf32>
    %1957 = arith.addf %1937, %194 : vector<1x2xf32>
    %1958 = arith.mulf %1957, %1956 : vector<1x2xf32>
    %1959 = arith.mulf %1958, %208 : vector<1x2xf32>
    %1960 = arith.addf %1938, %200 : vector<1x2xf32>
    %1961 = arith.mulf %1960, %1956 : vector<1x2xf32>
    %1962 = arith.mulf %1961, %210 : vector<1x2xf32>
    %1963 = vector.extract_strided_slice %1793 {offsets = [4, 0], sizes = [1, 2], strides = [1, 1]} : vector<22x2xf32> to vector<1x2xf32>
    %1964 = arith.subf %1959, %1963 : vector<1x2xf32>
    %1965 = math.absf %1964 : vector<1x2xf32>
    %1966 = arith.addf %1936, %1965 : vector<1x2xf32>
    %1967 = vector.extract_strided_slice %1795 {offsets = [4, 0], sizes = [1, 2], strides = [1, 1]} : vector<22x2xf32> to vector<1x2xf32>
    %1968 = arith.subf %1962, %1967 : vector<1x2xf32>
    %1969 = math.absf %1968 : vector<1x2xf32>
    %1970 = arith.addf %1966, %1969 : vector<1x2xf32>
    %1971 = arith.subf %942, %559 : vector<1x2xf32>
    %1972 = arith.subf %948, %560 : vector<1x2xf32>
    %1973 = arith.subf %954, %561 : vector<1x2xf32>
    %1974 = vector.extract_strided_slice %1787 {offsets = [5, 0], sizes = [1, 2], strides = [1, 1]} : vector<22x2xf32> to vector<1x2xf32>
    %1975 = arith.subf %1974, %1796 : vector<1x2xf32>
    %1976 = arith.subf %1971, %1975 : vector<1x2xf32>
    %1977 = math.absf %1976 : vector<1x2xf32>
    %1978 = vector.extract_strided_slice %1789 {offsets = [5, 0], sizes = [1, 2], strides = [1, 1]} : vector<22x2xf32> to vector<1x2xf32>
    %1979 = arith.subf %1978, %1797 : vector<1x2xf32>
    %1980 = arith.subf %1972, %1979 : vector<1x2xf32>
    %1981 = math.absf %1980 : vector<1x2xf32>
    %1982 = arith.addf %1977, %1981 : vector<1x2xf32>
    %1983 = vector.extract_strided_slice %1791 {offsets = [5, 0], sizes = [1, 2], strides = [1, 1]} : vector<22x2xf32> to vector<1x2xf32>
    %1984 = arith.subf %1983, %1798 : vector<1x2xf32>
    %1985 = arith.subf %1973, %1984 : vector<1x2xf32>
    %1986 = math.absf %1985 : vector<1x2xf32>
    %1987 = arith.addf %1982, %1986 : vector<1x2xf32>
    %1988 = arith.addf %1954, %1987 : vector<1x2xf32>
    %1989 = arith.addf %1973, %206 : vector<1x2xf32>
    %1990 = tpu.reciprocal %1989 : vector<1x2xf32> -> vector<1x2xf32>
    %1991 = arith.addf %1971, %194 : vector<1x2xf32>
    %1992 = arith.mulf %1991, %1990 : vector<1x2xf32>
    %1993 = arith.mulf %1992, %208 : vector<1x2xf32>
    %1994 = arith.addf %1972, %200 : vector<1x2xf32>
    %1995 = arith.mulf %1994, %1990 : vector<1x2xf32>
    %1996 = arith.mulf %1995, %210 : vector<1x2xf32>
    %1997 = vector.extract_strided_slice %1793 {offsets = [5, 0], sizes = [1, 2], strides = [1, 1]} : vector<22x2xf32> to vector<1x2xf32>
    %1998 = arith.subf %1993, %1997 : vector<1x2xf32>
    %1999 = math.absf %1998 : vector<1x2xf32>
    %2000 = arith.addf %1970, %1999 : vector<1x2xf32>
    %2001 = vector.extract_strided_slice %1795 {offsets = [5, 0], sizes = [1, 2], strides = [1, 1]} : vector<22x2xf32> to vector<1x2xf32>
    %2002 = arith.subf %1996, %2001 : vector<1x2xf32>
    %2003 = math.absf %2002 : vector<1x2xf32>
    %2004 = arith.addf %2000, %2003 : vector<1x2xf32>
    %2005 = arith.subf %1008, %559 : vector<1x2xf32>
    %2006 = arith.subf %1014, %560 : vector<1x2xf32>
    %2007 = arith.subf %1020, %561 : vector<1x2xf32>
    %2008 = vector.extract_strided_slice %1787 {offsets = [6, 0], sizes = [1, 2], strides = [1, 1]} : vector<22x2xf32> to vector<1x2xf32>
    %2009 = arith.subf %2008, %1796 : vector<1x2xf32>
    %2010 = arith.subf %2005, %2009 : vector<1x2xf32>
    %2011 = math.absf %2010 : vector<1x2xf32>
    %2012 = vector.extract_strided_slice %1789 {offsets = [6, 0], sizes = [1, 2], strides = [1, 1]} : vector<22x2xf32> to vector<1x2xf32>
    %2013 = arith.subf %2012, %1797 : vector<1x2xf32>
    %2014 = arith.subf %2006, %2013 : vector<1x2xf32>
    %2015 = math.absf %2014 : vector<1x2xf32>
    %2016 = arith.addf %2011, %2015 : vector<1x2xf32>
    %2017 = vector.extract_strided_slice %1791 {offsets = [6, 0], sizes = [1, 2], strides = [1, 1]} : vector<22x2xf32> to vector<1x2xf32>
    %2018 = arith.subf %2017, %1798 : vector<1x2xf32>
    %2019 = arith.subf %2007, %2018 : vector<1x2xf32>
    %2020 = math.absf %2019 : vector<1x2xf32>
    %2021 = arith.addf %2016, %2020 : vector<1x2xf32>
    %2022 = arith.addf %1988, %2021 : vector<1x2xf32>
    %2023 = arith.addf %2007, %206 : vector<1x2xf32>
    %2024 = tpu.reciprocal %2023 : vector<1x2xf32> -> vector<1x2xf32>
    %2025 = arith.addf %2005, %194 : vector<1x2xf32>
    %2026 = arith.mulf %2025, %2024 : vector<1x2xf32>
    %2027 = arith.mulf %2026, %208 : vector<1x2xf32>
    %2028 = arith.addf %2006, %200 : vector<1x2xf32>
    %2029 = arith.mulf %2028, %2024 : vector<1x2xf32>
    %2030 = arith.mulf %2029, %210 : vector<1x2xf32>
    %2031 = vector.extract_strided_slice %1793 {offsets = [6, 0], sizes = [1, 2], strides = [1, 1]} : vector<22x2xf32> to vector<1x2xf32>
    %2032 = arith.subf %2027, %2031 : vector<1x2xf32>
    %2033 = math.absf %2032 : vector<1x2xf32>
    %2034 = arith.addf %2004, %2033 : vector<1x2xf32>
    %2035 = vector.extract_strided_slice %1795 {offsets = [6, 0], sizes = [1, 2], strides = [1, 1]} : vector<22x2xf32> to vector<1x2xf32>
    %2036 = arith.subf %2030, %2035 : vector<1x2xf32>
    %2037 = math.absf %2036 : vector<1x2xf32>
    %2038 = arith.addf %2034, %2037 : vector<1x2xf32>
    %2039 = arith.subf %1074, %559 : vector<1x2xf32>
    %2040 = arith.subf %1080, %560 : vector<1x2xf32>
    %2041 = arith.subf %1086, %561 : vector<1x2xf32>
    %2042 = vector.extract_strided_slice %1787 {offsets = [7, 0], sizes = [1, 2], strides = [1, 1]} : vector<22x2xf32> to vector<1x2xf32>
    %2043 = arith.subf %2042, %1796 : vector<1x2xf32>
    %2044 = arith.subf %2039, %2043 : vector<1x2xf32>
    %2045 = math.absf %2044 : vector<1x2xf32>
    %2046 = vector.extract_strided_slice %1789 {offsets = [7, 0], sizes = [1, 2], strides = [1, 1]} : vector<22x2xf32> to vector<1x2xf32>
    %2047 = arith.subf %2046, %1797 : vector<1x2xf32>
    %2048 = arith.subf %2040, %2047 : vector<1x2xf32>
    %2049 = math.absf %2048 : vector<1x2xf32>
    %2050 = arith.addf %2045, %2049 : vector<1x2xf32>
    %2051 = vector.extract_strided_slice %1791 {offsets = [7, 0], sizes = [1, 2], strides = [1, 1]} : vector<22x2xf32> to vector<1x2xf32>
    %2052 = arith.subf %2051, %1798 : vector<1x2xf32>
    %2053 = arith.subf %2041, %2052 : vector<1x2xf32>
    %2054 = math.absf %2053 : vector<1x2xf32>
    %2055 = arith.addf %2050, %2054 : vector<1x2xf32>
    %2056 = arith.addf %2022, %2055 : vector<1x2xf32>
    %2057 = arith.addf %2041, %206 : vector<1x2xf32>
    %2058 = tpu.reciprocal %2057 : vector<1x2xf32> -> vector<1x2xf32>
    %2059 = arith.addf %2039, %194 : vector<1x2xf32>
    %2060 = arith.mulf %2059, %2058 : vector<1x2xf32>
    %2061 = arith.mulf %2060, %208 : vector<1x2xf32>
    %2062 = arith.addf %2040, %200 : vector<1x2xf32>
    %2063 = arith.mulf %2062, %2058 : vector<1x2xf32>
    %2064 = arith.mulf %2063, %210 : vector<1x2xf32>
    %2065 = vector.extract_strided_slice %1793 {offsets = [7, 0], sizes = [1, 2], strides = [1, 1]} : vector<22x2xf32> to vector<1x2xf32>
    %2066 = arith.subf %2061, %2065 : vector<1x2xf32>
    %2067 = math.absf %2066 : vector<1x2xf32>
    %2068 = arith.addf %2038, %2067 : vector<1x2xf32>
    %2069 = vector.extract_strided_slice %1795 {offsets = [7, 0], sizes = [1, 2], strides = [1, 1]} : vector<22x2xf32> to vector<1x2xf32>
    %2070 = arith.subf %2064, %2069 : vector<1x2xf32>
    %2071 = math.absf %2070 : vector<1x2xf32>
    %2072 = arith.addf %2068, %2071 : vector<1x2xf32>
    %2073 = arith.subf %1140, %559 : vector<1x2xf32>
    %2074 = arith.subf %1146, %560 : vector<1x2xf32>
    %2075 = arith.subf %1152, %561 : vector<1x2xf32>
    %2076 = vector.extract_strided_slice %1787 {offsets = [8, 0], sizes = [1, 2], strides = [1, 1]} : vector<22x2xf32> to vector<1x2xf32>
    %2077 = arith.subf %2076, %1796 : vector<1x2xf32>
    %2078 = arith.subf %2073, %2077 : vector<1x2xf32>
    %2079 = math.absf %2078 : vector<1x2xf32>
    %2080 = vector.extract_strided_slice %1789 {offsets = [8, 0], sizes = [1, 2], strides = [1, 1]} : vector<22x2xf32> to vector<1x2xf32>
    %2081 = arith.subf %2080, %1797 : vector<1x2xf32>
    %2082 = arith.subf %2074, %2081 : vector<1x2xf32>
    %2083 = math.absf %2082 : vector<1x2xf32>
    %2084 = arith.addf %2079, %2083 : vector<1x2xf32>
    %2085 = vector.extract_strided_slice %1791 {offsets = [8, 0], sizes = [1, 2], strides = [1, 1]} : vector<22x2xf32> to vector<1x2xf32>
    %2086 = arith.subf %2085, %1798 : vector<1x2xf32>
    %2087 = arith.subf %2075, %2086 : vector<1x2xf32>
    %2088 = math.absf %2087 : vector<1x2xf32>
    %2089 = arith.addf %2084, %2088 : vector<1x2xf32>
    %2090 = arith.addf %2056, %2089 : vector<1x2xf32>
    %2091 = arith.addf %2075, %206 : vector<1x2xf32>
    %2092 = tpu.reciprocal %2091 : vector<1x2xf32> -> vector<1x2xf32>
    %2093 = arith.addf %2073, %194 : vector<1x2xf32>
    %2094 = arith.mulf %2093, %2092 : vector<1x2xf32>
    %2095 = arith.mulf %2094, %208 : vector<1x2xf32>
    %2096 = arith.addf %2074, %200 : vector<1x2xf32>
    %2097 = arith.mulf %2096, %2092 : vector<1x2xf32>
    %2098 = arith.mulf %2097, %210 : vector<1x2xf32>
    %2099 = vector.extract_strided_slice %1793 {offsets = [8, 0], sizes = [1, 2], strides = [1, 1]} : vector<22x2xf32> to vector<1x2xf32>
    %2100 = arith.subf %2095, %2099 : vector<1x2xf32>
    %2101 = math.absf %2100 : vector<1x2xf32>
    %2102 = arith.addf %2072, %2101 : vector<1x2xf32>
    %2103 = vector.extract_strided_slice %1795 {offsets = [8, 0], sizes = [1, 2], strides = [1, 1]} : vector<22x2xf32> to vector<1x2xf32>
    %2104 = arith.subf %2098, %2103 : vector<1x2xf32>
    %2105 = math.absf %2104 : vector<1x2xf32>
    %2106 = arith.addf %2102, %2105 : vector<1x2xf32>
    %2107 = arith.subf %1206, %559 : vector<1x2xf32>
    %2108 = arith.subf %1212, %560 : vector<1x2xf32>
    %2109 = arith.subf %1218, %561 : vector<1x2xf32>
    %2110 = vector.extract_strided_slice %1787 {offsets = [9, 0], sizes = [1, 2], strides = [1, 1]} : vector<22x2xf32> to vector<1x2xf32>
    %2111 = arith.subf %2110, %1796 : vector<1x2xf32>
    %2112 = arith.subf %2107, %2111 : vector<1x2xf32>
    %2113 = math.absf %2112 : vector<1x2xf32>
    %2114 = vector.extract_strided_slice %1789 {offsets = [9, 0], sizes = [1, 2], strides = [1, 1]} : vector<22x2xf32> to vector<1x2xf32>
    %2115 = arith.subf %2114, %1797 : vector<1x2xf32>
    %2116 = arith.subf %2108, %2115 : vector<1x2xf32>
    %2117 = math.absf %2116 : vector<1x2xf32>
    %2118 = arith.addf %2113, %2117 : vector<1x2xf32>
    %2119 = vector.extract_strided_slice %1791 {offsets = [9, 0], sizes = [1, 2], strides = [1, 1]} : vector<22x2xf32> to vector<1x2xf32>
    %2120 = arith.subf %2119, %1798 : vector<1x2xf32>
    %2121 = arith.subf %2109, %2120 : vector<1x2xf32>
    %2122 = math.absf %2121 : vector<1x2xf32>
    %2123 = arith.addf %2118, %2122 : vector<1x2xf32>
    %2124 = arith.addf %2090, %2123 : vector<1x2xf32>
    %2125 = arith.addf %2109, %206 : vector<1x2xf32>
    %2126 = tpu.reciprocal %2125 : vector<1x2xf32> -> vector<1x2xf32>
    %2127 = arith.addf %2107, %194 : vector<1x2xf32>
    %2128 = arith.mulf %2127, %2126 : vector<1x2xf32>
    %2129 = arith.mulf %2128, %208 : vector<1x2xf32>
    %2130 = arith.addf %2108, %200 : vector<1x2xf32>
    %2131 = arith.mulf %2130, %2126 : vector<1x2xf32>
    %2132 = arith.mulf %2131, %210 : vector<1x2xf32>
    %2133 = vector.extract_strided_slice %1793 {offsets = [9, 0], sizes = [1, 2], strides = [1, 1]} : vector<22x2xf32> to vector<1x2xf32>
    %2134 = arith.subf %2129, %2133 : vector<1x2xf32>
    %2135 = math.absf %2134 : vector<1x2xf32>
    %2136 = arith.addf %2106, %2135 : vector<1x2xf32>
    %2137 = vector.extract_strided_slice %1795 {offsets = [9, 0], sizes = [1, 2], strides = [1, 1]} : vector<22x2xf32> to vector<1x2xf32>
    %2138 = arith.subf %2132, %2137 : vector<1x2xf32>
    %2139 = math.absf %2138 : vector<1x2xf32>
    %2140 = arith.addf %2136, %2139 : vector<1x2xf32>
    %2141 = arith.subf %1227, %559 : vector<1x2xf32>
    %2142 = arith.subf %1233, %560 : vector<1x2xf32>
    %2143 = arith.subf %1239, %561 : vector<1x2xf32>
    %2144 = vector.extract_strided_slice %1787 {offsets = [10, 0], sizes = [1, 2], strides = [1, 1]} : vector<22x2xf32> to vector<1x2xf32>
    %2145 = arith.subf %2144, %1796 : vector<1x2xf32>
    %2146 = arith.subf %2141, %2145 : vector<1x2xf32>
    %2147 = math.absf %2146 : vector<1x2xf32>
    %2148 = vector.extract_strided_slice %1789 {offsets = [10, 0], sizes = [1, 2], strides = [1, 1]} : vector<22x2xf32> to vector<1x2xf32>
    %2149 = arith.subf %2148, %1797 : vector<1x2xf32>
    %2150 = arith.subf %2142, %2149 : vector<1x2xf32>
    %2151 = math.absf %2150 : vector<1x2xf32>
    %2152 = arith.addf %2147, %2151 : vector<1x2xf32>
    %2153 = vector.extract_strided_slice %1791 {offsets = [10, 0], sizes = [1, 2], strides = [1, 1]} : vector<22x2xf32> to vector<1x2xf32>
    %2154 = arith.subf %2153, %1798 : vector<1x2xf32>
    %2155 = arith.subf %2143, %2154 : vector<1x2xf32>
    %2156 = math.absf %2155 : vector<1x2xf32>
    %2157 = arith.addf %2152, %2156 : vector<1x2xf32>
    %2158 = arith.addf %2124, %2157 : vector<1x2xf32>
    %2159 = arith.addf %2143, %206 : vector<1x2xf32>
    %2160 = tpu.reciprocal %2159 : vector<1x2xf32> -> vector<1x2xf32>
    %2161 = arith.addf %2141, %194 : vector<1x2xf32>
    %2162 = arith.mulf %2161, %2160 : vector<1x2xf32>
    %2163 = arith.mulf %2162, %208 : vector<1x2xf32>
    %2164 = arith.addf %2142, %200 : vector<1x2xf32>
    %2165 = arith.mulf %2164, %2160 : vector<1x2xf32>
    %2166 = arith.mulf %2165, %210 : vector<1x2xf32>
    %2167 = vector.extract_strided_slice %1793 {offsets = [10, 0], sizes = [1, 2], strides = [1, 1]} : vector<22x2xf32> to vector<1x2xf32>
    %2168 = arith.subf %2163, %2167 : vector<1x2xf32>
    %2169 = math.absf %2168 : vector<1x2xf32>
    %2170 = arith.addf %2140, %2169 : vector<1x2xf32>
    %2171 = vector.extract_strided_slice %1795 {offsets = [10, 0], sizes = [1, 2], strides = [1, 1]} : vector<22x2xf32> to vector<1x2xf32>
    %2172 = arith.subf %2166, %2171 : vector<1x2xf32>
    %2173 = math.absf %2172 : vector<1x2xf32>
    %2174 = arith.addf %2170, %2173 : vector<1x2xf32>
    %2175 = arith.subf %1248, %559 : vector<1x2xf32>
    %2176 = arith.subf %1254, %560 : vector<1x2xf32>
    %2177 = arith.subf %1260, %561 : vector<1x2xf32>
    %2178 = vector.extract_strided_slice %1787 {offsets = [11, 0], sizes = [1, 2], strides = [1, 1]} : vector<22x2xf32> to vector<1x2xf32>
    %2179 = arith.subf %2178, %1796 : vector<1x2xf32>
    %2180 = arith.subf %2175, %2179 : vector<1x2xf32>
    %2181 = math.absf %2180 : vector<1x2xf32>
    %2182 = vector.extract_strided_slice %1789 {offsets = [11, 0], sizes = [1, 2], strides = [1, 1]} : vector<22x2xf32> to vector<1x2xf32>
    %2183 = arith.subf %2182, %1797 : vector<1x2xf32>
    %2184 = arith.subf %2176, %2183 : vector<1x2xf32>
    %2185 = math.absf %2184 : vector<1x2xf32>
    %2186 = arith.addf %2181, %2185 : vector<1x2xf32>
    %2187 = vector.extract_strided_slice %1791 {offsets = [11, 0], sizes = [1, 2], strides = [1, 1]} : vector<22x2xf32> to vector<1x2xf32>
    %2188 = arith.subf %2187, %1798 : vector<1x2xf32>
    %2189 = arith.subf %2177, %2188 : vector<1x2xf32>
    %2190 = math.absf %2189 : vector<1x2xf32>
    %2191 = arith.addf %2186, %2190 : vector<1x2xf32>
    %2192 = arith.addf %2158, %2191 : vector<1x2xf32>
    %2193 = arith.addf %2177, %206 : vector<1x2xf32>
    %2194 = tpu.reciprocal %2193 : vector<1x2xf32> -> vector<1x2xf32>
    %2195 = arith.addf %2175, %194 : vector<1x2xf32>
    %2196 = arith.mulf %2195, %2194 : vector<1x2xf32>
    %2197 = arith.mulf %2196, %208 : vector<1x2xf32>
    %2198 = arith.addf %2176, %200 : vector<1x2xf32>
    %2199 = arith.mulf %2198, %2194 : vector<1x2xf32>
    %2200 = arith.mulf %2199, %210 : vector<1x2xf32>
    %2201 = vector.extract_strided_slice %1793 {offsets = [11, 0], sizes = [1, 2], strides = [1, 1]} : vector<22x2xf32> to vector<1x2xf32>
    %2202 = arith.subf %2197, %2201 : vector<1x2xf32>
    %2203 = math.absf %2202 : vector<1x2xf32>
    %2204 = arith.addf %2174, %2203 : vector<1x2xf32>
    %2205 = vector.extract_strided_slice %1795 {offsets = [11, 0], sizes = [1, 2], strides = [1, 1]} : vector<22x2xf32> to vector<1x2xf32>
    %2206 = arith.subf %2200, %2205 : vector<1x2xf32>
    %2207 = math.absf %2206 : vector<1x2xf32>
    %2208 = arith.addf %2204, %2207 : vector<1x2xf32>
    %2209 = arith.subf %1314, %559 : vector<1x2xf32>
    %2210 = arith.subf %1320, %560 : vector<1x2xf32>
    %2211 = arith.subf %1326, %561 : vector<1x2xf32>
    %2212 = vector.extract_strided_slice %1787 {offsets = [12, 0], sizes = [1, 2], strides = [1, 1]} : vector<22x2xf32> to vector<1x2xf32>
    %2213 = arith.subf %2212, %1796 : vector<1x2xf32>
    %2214 = arith.subf %2209, %2213 : vector<1x2xf32>
    %2215 = math.absf %2214 : vector<1x2xf32>
    %2216 = vector.extract_strided_slice %1789 {offsets = [12, 0], sizes = [1, 2], strides = [1, 1]} : vector<22x2xf32> to vector<1x2xf32>
    %2217 = arith.subf %2216, %1797 : vector<1x2xf32>
    %2218 = arith.subf %2210, %2217 : vector<1x2xf32>
    %2219 = math.absf %2218 : vector<1x2xf32>
    %2220 = arith.addf %2215, %2219 : vector<1x2xf32>
    %2221 = vector.extract_strided_slice %1791 {offsets = [12, 0], sizes = [1, 2], strides = [1, 1]} : vector<22x2xf32> to vector<1x2xf32>
    %2222 = arith.subf %2221, %1798 : vector<1x2xf32>
    %2223 = arith.subf %2211, %2222 : vector<1x2xf32>
    %2224 = math.absf %2223 : vector<1x2xf32>
    %2225 = arith.addf %2220, %2224 : vector<1x2xf32>
    %2226 = arith.addf %2192, %2225 : vector<1x2xf32>
    %2227 = arith.addf %2211, %206 : vector<1x2xf32>
    %2228 = tpu.reciprocal %2227 : vector<1x2xf32> -> vector<1x2xf32>
    %2229 = arith.addf %2209, %194 : vector<1x2xf32>
    %2230 = arith.mulf %2229, %2228 : vector<1x2xf32>
    %2231 = arith.mulf %2230, %208 : vector<1x2xf32>
    %2232 = arith.addf %2210, %200 : vector<1x2xf32>
    %2233 = arith.mulf %2232, %2228 : vector<1x2xf32>
    %2234 = arith.mulf %2233, %210 : vector<1x2xf32>
    %2235 = vector.extract_strided_slice %1793 {offsets = [12, 0], sizes = [1, 2], strides = [1, 1]} : vector<22x2xf32> to vector<1x2xf32>
    %2236 = arith.subf %2231, %2235 : vector<1x2xf32>
    %2237 = math.absf %2236 : vector<1x2xf32>
    %2238 = arith.addf %2208, %2237 : vector<1x2xf32>
    %2239 = vector.extract_strided_slice %1795 {offsets = [12, 0], sizes = [1, 2], strides = [1, 1]} : vector<22x2xf32> to vector<1x2xf32>
    %2240 = arith.subf %2234, %2239 : vector<1x2xf32>
    %2241 = math.absf %2240 : vector<1x2xf32>
    %2242 = arith.addf %2238, %2241 : vector<1x2xf32>
    %2243 = arith.subf %1380, %559 : vector<1x2xf32>
    %2244 = arith.subf %1386, %560 : vector<1x2xf32>
    %2245 = arith.subf %1392, %561 : vector<1x2xf32>
    %2246 = vector.extract_strided_slice %1787 {offsets = [13, 0], sizes = [1, 2], strides = [1, 1]} : vector<22x2xf32> to vector<1x2xf32>
    %2247 = arith.subf %2246, %1796 : vector<1x2xf32>
    %2248 = arith.subf %2243, %2247 : vector<1x2xf32>
    %2249 = math.absf %2248 : vector<1x2xf32>
    %2250 = vector.extract_strided_slice %1789 {offsets = [13, 0], sizes = [1, 2], strides = [1, 1]} : vector<22x2xf32> to vector<1x2xf32>
    %2251 = arith.subf %2250, %1797 : vector<1x2xf32>
    %2252 = arith.subf %2244, %2251 : vector<1x2xf32>
    %2253 = math.absf %2252 : vector<1x2xf32>
    %2254 = arith.addf %2249, %2253 : vector<1x2xf32>
    %2255 = vector.extract_strided_slice %1791 {offsets = [13, 0], sizes = [1, 2], strides = [1, 1]} : vector<22x2xf32> to vector<1x2xf32>
    %2256 = arith.subf %2255, %1798 : vector<1x2xf32>
    %2257 = arith.subf %2245, %2256 : vector<1x2xf32>
    %2258 = math.absf %2257 : vector<1x2xf32>
    %2259 = arith.addf %2254, %2258 : vector<1x2xf32>
    %2260 = arith.addf %2226, %2259 : vector<1x2xf32>
    %2261 = arith.addf %2245, %206 : vector<1x2xf32>
    %2262 = tpu.reciprocal %2261 : vector<1x2xf32> -> vector<1x2xf32>
    %2263 = arith.addf %2243, %194 : vector<1x2xf32>
    %2264 = arith.mulf %2263, %2262 : vector<1x2xf32>
    %2265 = arith.mulf %2264, %208 : vector<1x2xf32>
    %2266 = arith.addf %2244, %200 : vector<1x2xf32>
    %2267 = arith.mulf %2266, %2262 : vector<1x2xf32>
    %2268 = arith.mulf %2267, %210 : vector<1x2xf32>
    %2269 = vector.extract_strided_slice %1793 {offsets = [13, 0], sizes = [1, 2], strides = [1, 1]} : vector<22x2xf32> to vector<1x2xf32>
    %2270 = arith.subf %2265, %2269 : vector<1x2xf32>
    %2271 = math.absf %2270 : vector<1x2xf32>
    %2272 = arith.addf %2242, %2271 : vector<1x2xf32>
    %2273 = vector.extract_strided_slice %1795 {offsets = [13, 0], sizes = [1, 2], strides = [1, 1]} : vector<22x2xf32> to vector<1x2xf32>
    %2274 = arith.subf %2268, %2273 : vector<1x2xf32>
    %2275 = math.absf %2274 : vector<1x2xf32>
    %2276 = arith.addf %2272, %2275 : vector<1x2xf32>
    %2277 = arith.subf %1446, %559 : vector<1x2xf32>
    %2278 = arith.subf %1452, %560 : vector<1x2xf32>
    %2279 = arith.subf %1458, %561 : vector<1x2xf32>
    %2280 = vector.extract_strided_slice %1787 {offsets = [14, 0], sizes = [1, 2], strides = [1, 1]} : vector<22x2xf32> to vector<1x2xf32>
    %2281 = arith.subf %2280, %1796 : vector<1x2xf32>
    %2282 = arith.subf %2277, %2281 : vector<1x2xf32>
    %2283 = math.absf %2282 : vector<1x2xf32>
    %2284 = vector.extract_strided_slice %1789 {offsets = [14, 0], sizes = [1, 2], strides = [1, 1]} : vector<22x2xf32> to vector<1x2xf32>
    %2285 = arith.subf %2284, %1797 : vector<1x2xf32>
    %2286 = arith.subf %2278, %2285 : vector<1x2xf32>
    %2287 = math.absf %2286 : vector<1x2xf32>
    %2288 = arith.addf %2283, %2287 : vector<1x2xf32>
    %2289 = vector.extract_strided_slice %1791 {offsets = [14, 0], sizes = [1, 2], strides = [1, 1]} : vector<22x2xf32> to vector<1x2xf32>
    %2290 = arith.subf %2289, %1798 : vector<1x2xf32>
    %2291 = arith.subf %2279, %2290 : vector<1x2xf32>
    %2292 = math.absf %2291 : vector<1x2xf32>
    %2293 = arith.addf %2288, %2292 : vector<1x2xf32>
    %2294 = arith.addf %2260, %2293 : vector<1x2xf32>
    %2295 = arith.addf %2279, %206 : vector<1x2xf32>
    %2296 = tpu.reciprocal %2295 : vector<1x2xf32> -> vector<1x2xf32>
    %2297 = arith.addf %2277, %194 : vector<1x2xf32>
    %2298 = arith.mulf %2297, %2296 : vector<1x2xf32>
    %2299 = arith.mulf %2298, %208 : vector<1x2xf32>
    %2300 = arith.addf %2278, %200 : vector<1x2xf32>
    %2301 = arith.mulf %2300, %2296 : vector<1x2xf32>
    %2302 = arith.mulf %2301, %210 : vector<1x2xf32>
    %2303 = vector.extract_strided_slice %1793 {offsets = [14, 0], sizes = [1, 2], strides = [1, 1]} : vector<22x2xf32> to vector<1x2xf32>
    %2304 = arith.subf %2299, %2303 : vector<1x2xf32>
    %2305 = math.absf %2304 : vector<1x2xf32>
    %2306 = arith.addf %2276, %2305 : vector<1x2xf32>
    %2307 = vector.extract_strided_slice %1795 {offsets = [14, 0], sizes = [1, 2], strides = [1, 1]} : vector<22x2xf32> to vector<1x2xf32>
    %2308 = arith.subf %2302, %2307 : vector<1x2xf32>
    %2309 = math.absf %2308 : vector<1x2xf32>
    %2310 = arith.addf %2306, %2309 : vector<1x2xf32>
    %2311 = arith.subf %1467, %559 : vector<1x2xf32>
    %2312 = arith.subf %1473, %560 : vector<1x2xf32>
    %2313 = arith.subf %1479, %561 : vector<1x2xf32>
    %2314 = vector.extract_strided_slice %1787 {offsets = [15, 0], sizes = [1, 2], strides = [1, 1]} : vector<22x2xf32> to vector<1x2xf32>
    %2315 = arith.subf %2314, %1796 : vector<1x2xf32>
    %2316 = arith.subf %2311, %2315 : vector<1x2xf32>
    %2317 = math.absf %2316 : vector<1x2xf32>
    %2318 = vector.extract_strided_slice %1789 {offsets = [15, 0], sizes = [1, 2], strides = [1, 1]} : vector<22x2xf32> to vector<1x2xf32>
    %2319 = arith.subf %2318, %1797 : vector<1x2xf32>
    %2320 = arith.subf %2312, %2319 : vector<1x2xf32>
    %2321 = math.absf %2320 : vector<1x2xf32>
    %2322 = arith.addf %2317, %2321 : vector<1x2xf32>
    %2323 = vector.extract_strided_slice %1791 {offsets = [15, 0], sizes = [1, 2], strides = [1, 1]} : vector<22x2xf32> to vector<1x2xf32>
    %2324 = arith.subf %2323, %1798 : vector<1x2xf32>
    %2325 = arith.subf %2313, %2324 : vector<1x2xf32>
    %2326 = math.absf %2325 : vector<1x2xf32>
    %2327 = arith.addf %2322, %2326 : vector<1x2xf32>
    %2328 = arith.addf %2294, %2327 : vector<1x2xf32>
    %2329 = arith.addf %2313, %206 : vector<1x2xf32>
    %2330 = tpu.reciprocal %2329 : vector<1x2xf32> -> vector<1x2xf32>
    %2331 = arith.addf %2311, %194 : vector<1x2xf32>
    %2332 = arith.mulf %2331, %2330 : vector<1x2xf32>
    %2333 = arith.mulf %2332, %208 : vector<1x2xf32>
    %2334 = arith.addf %2312, %200 : vector<1x2xf32>
    %2335 = arith.mulf %2334, %2330 : vector<1x2xf32>
    %2336 = arith.mulf %2335, %210 : vector<1x2xf32>
    %2337 = vector.extract_strided_slice %1793 {offsets = [15, 0], sizes = [1, 2], strides = [1, 1]} : vector<22x2xf32> to vector<1x2xf32>
    %2338 = arith.subf %2333, %2337 : vector<1x2xf32>
    %2339 = math.absf %2338 : vector<1x2xf32>
    %2340 = arith.addf %2310, %2339 : vector<1x2xf32>
    %2341 = vector.extract_strided_slice %1795 {offsets = [15, 0], sizes = [1, 2], strides = [1, 1]} : vector<22x2xf32> to vector<1x2xf32>
    %2342 = arith.subf %2336, %2341 : vector<1x2xf32>
    %2343 = math.absf %2342 : vector<1x2xf32>
    %2344 = arith.addf %2340, %2343 : vector<1x2xf32>
    %2345 = arith.subf %1533, %559 : vector<1x2xf32>
    %2346 = arith.subf %1539, %560 : vector<1x2xf32>
    %2347 = arith.subf %1545, %561 : vector<1x2xf32>
    %2348 = vector.extract_strided_slice %1787 {offsets = [16, 0], sizes = [1, 2], strides = [1, 1]} : vector<22x2xf32> to vector<1x2xf32>
    %2349 = arith.subf %2348, %1796 : vector<1x2xf32>
    %2350 = arith.subf %2345, %2349 : vector<1x2xf32>
    %2351 = math.absf %2350 : vector<1x2xf32>
    %2352 = vector.extract_strided_slice %1789 {offsets = [16, 0], sizes = [1, 2], strides = [1, 1]} : vector<22x2xf32> to vector<1x2xf32>
    %2353 = arith.subf %2352, %1797 : vector<1x2xf32>
    %2354 = arith.subf %2346, %2353 : vector<1x2xf32>
    %2355 = math.absf %2354 : vector<1x2xf32>
    %2356 = arith.addf %2351, %2355 : vector<1x2xf32>
    %2357 = vector.extract_strided_slice %1791 {offsets = [16, 0], sizes = [1, 2], strides = [1, 1]} : vector<22x2xf32> to vector<1x2xf32>
    %2358 = arith.subf %2357, %1798 : vector<1x2xf32>
    %2359 = arith.subf %2347, %2358 : vector<1x2xf32>
    %2360 = math.absf %2359 : vector<1x2xf32>
    %2361 = arith.addf %2356, %2360 : vector<1x2xf32>
    %2362 = arith.addf %2328, %2361 : vector<1x2xf32>
    %2363 = arith.addf %2347, %206 : vector<1x2xf32>
    %2364 = tpu.reciprocal %2363 : vector<1x2xf32> -> vector<1x2xf32>
    %2365 = arith.addf %2345, %194 : vector<1x2xf32>
    %2366 = arith.mulf %2365, %2364 : vector<1x2xf32>
    %2367 = arith.mulf %2366, %208 : vector<1x2xf32>
    %2368 = arith.addf %2346, %200 : vector<1x2xf32>
    %2369 = arith.mulf %2368, %2364 : vector<1x2xf32>
    %2370 = arith.mulf %2369, %210 : vector<1x2xf32>
    %2371 = vector.extract_strided_slice %1793 {offsets = [16, 0], sizes = [1, 2], strides = [1, 1]} : vector<22x2xf32> to vector<1x2xf32>
    %2372 = arith.subf %2367, %2371 : vector<1x2xf32>
    %2373 = math.absf %2372 : vector<1x2xf32>
    %2374 = arith.addf %2344, %2373 : vector<1x2xf32>
    %2375 = vector.extract_strided_slice %1795 {offsets = [16, 0], sizes = [1, 2], strides = [1, 1]} : vector<22x2xf32> to vector<1x2xf32>
    %2376 = arith.subf %2370, %2375 : vector<1x2xf32>
    %2377 = math.absf %2376 : vector<1x2xf32>
    %2378 = arith.addf %2374, %2377 : vector<1x2xf32>
    %2379 = arith.subf %1599, %559 : vector<1x2xf32>
    %2380 = arith.subf %1605, %560 : vector<1x2xf32>
    %2381 = arith.subf %1611, %561 : vector<1x2xf32>
    %2382 = vector.extract_strided_slice %1787 {offsets = [17, 0], sizes = [1, 2], strides = [1, 1]} : vector<22x2xf32> to vector<1x2xf32>
    %2383 = arith.subf %2382, %1796 : vector<1x2xf32>
    %2384 = arith.subf %2379, %2383 : vector<1x2xf32>
    %2385 = math.absf %2384 : vector<1x2xf32>
    %2386 = vector.extract_strided_slice %1789 {offsets = [17, 0], sizes = [1, 2], strides = [1, 1]} : vector<22x2xf32> to vector<1x2xf32>
    %2387 = arith.subf %2386, %1797 : vector<1x2xf32>
    %2388 = arith.subf %2380, %2387 : vector<1x2xf32>
    %2389 = math.absf %2388 : vector<1x2xf32>
    %2390 = arith.addf %2385, %2389 : vector<1x2xf32>
    %2391 = vector.extract_strided_slice %1791 {offsets = [17, 0], sizes = [1, 2], strides = [1, 1]} : vector<22x2xf32> to vector<1x2xf32>
    %2392 = arith.subf %2391, %1798 : vector<1x2xf32>
    %2393 = arith.subf %2381, %2392 : vector<1x2xf32>
    %2394 = math.absf %2393 : vector<1x2xf32>
    %2395 = arith.addf %2390, %2394 : vector<1x2xf32>
    %2396 = arith.addf %2362, %2395 : vector<1x2xf32>
    %2397 = arith.addf %2381, %206 : vector<1x2xf32>
    %2398 = tpu.reciprocal %2397 : vector<1x2xf32> -> vector<1x2xf32>
    %2399 = arith.addf %2379, %194 : vector<1x2xf32>
    %2400 = arith.mulf %2399, %2398 : vector<1x2xf32>
    %2401 = arith.mulf %2400, %208 : vector<1x2xf32>
    %2402 = arith.addf %2380, %200 : vector<1x2xf32>
    %2403 = arith.mulf %2402, %2398 : vector<1x2xf32>
    %2404 = arith.mulf %2403, %210 : vector<1x2xf32>
    %2405 = vector.extract_strided_slice %1793 {offsets = [17, 0], sizes = [1, 2], strides = [1, 1]} : vector<22x2xf32> to vector<1x2xf32>
    %2406 = arith.subf %2401, %2405 : vector<1x2xf32>
    %2407 = math.absf %2406 : vector<1x2xf32>
    %2408 = arith.addf %2378, %2407 : vector<1x2xf32>
    %2409 = vector.extract_strided_slice %1795 {offsets = [17, 0], sizes = [1, 2], strides = [1, 1]} : vector<22x2xf32> to vector<1x2xf32>
    %2410 = arith.subf %2404, %2409 : vector<1x2xf32>
    %2411 = math.absf %2410 : vector<1x2xf32>
    %2412 = arith.addf %2408, %2411 : vector<1x2xf32>
    %2413 = arith.subf %1665, %559 : vector<1x2xf32>
    %2414 = arith.subf %1671, %560 : vector<1x2xf32>
    %2415 = arith.subf %1677, %561 : vector<1x2xf32>
    %2416 = vector.extract_strided_slice %1787 {offsets = [18, 0], sizes = [1, 2], strides = [1, 1]} : vector<22x2xf32> to vector<1x2xf32>
    %2417 = arith.subf %2416, %1796 : vector<1x2xf32>
    %2418 = arith.subf %2413, %2417 : vector<1x2xf32>
    %2419 = math.absf %2418 : vector<1x2xf32>
    %2420 = vector.extract_strided_slice %1789 {offsets = [18, 0], sizes = [1, 2], strides = [1, 1]} : vector<22x2xf32> to vector<1x2xf32>
    %2421 = arith.subf %2420, %1797 : vector<1x2xf32>
    %2422 = arith.subf %2414, %2421 : vector<1x2xf32>
    %2423 = math.absf %2422 : vector<1x2xf32>
    %2424 = arith.addf %2419, %2423 : vector<1x2xf32>
    %2425 = vector.extract_strided_slice %1791 {offsets = [18, 0], sizes = [1, 2], strides = [1, 1]} : vector<22x2xf32> to vector<1x2xf32>
    %2426 = arith.subf %2425, %1798 : vector<1x2xf32>
    %2427 = arith.subf %2415, %2426 : vector<1x2xf32>
    %2428 = math.absf %2427 : vector<1x2xf32>
    %2429 = arith.addf %2424, %2428 : vector<1x2xf32>
    %2430 = arith.addf %2396, %2429 : vector<1x2xf32>
    %2431 = arith.addf %2415, %206 : vector<1x2xf32>
    %2432 = tpu.reciprocal %2431 : vector<1x2xf32> -> vector<1x2xf32>
    %2433 = arith.addf %2413, %194 : vector<1x2xf32>
    %2434 = arith.mulf %2433, %2432 : vector<1x2xf32>
    %2435 = arith.mulf %2434, %208 : vector<1x2xf32>
    %2436 = arith.addf %2414, %200 : vector<1x2xf32>
    %2437 = arith.mulf %2436, %2432 : vector<1x2xf32>
    %2438 = arith.mulf %2437, %210 : vector<1x2xf32>
    %2439 = vector.extract_strided_slice %1793 {offsets = [18, 0], sizes = [1, 2], strides = [1, 1]} : vector<22x2xf32> to vector<1x2xf32>
    %2440 = arith.subf %2435, %2439 : vector<1x2xf32>
    %2441 = math.absf %2440 : vector<1x2xf32>
    %2442 = arith.addf %2412, %2441 : vector<1x2xf32>
    %2443 = vector.extract_strided_slice %1795 {offsets = [18, 0], sizes = [1, 2], strides = [1, 1]} : vector<22x2xf32> to vector<1x2xf32>
    %2444 = arith.subf %2438, %2443 : vector<1x2xf32>
    %2445 = math.absf %2444 : vector<1x2xf32>
    %2446 = arith.addf %2442, %2445 : vector<1x2xf32>
    %2447 = arith.subf %1731, %559 : vector<1x2xf32>
    %2448 = arith.subf %1737, %560 : vector<1x2xf32>
    %2449 = arith.subf %1743, %561 : vector<1x2xf32>
    %2450 = vector.extract_strided_slice %1787 {offsets = [19, 0], sizes = [1, 2], strides = [1, 1]} : vector<22x2xf32> to vector<1x2xf32>
    %2451 = arith.subf %2450, %1796 : vector<1x2xf32>
    %2452 = arith.subf %2447, %2451 : vector<1x2xf32>
    %2453 = math.absf %2452 : vector<1x2xf32>
    %2454 = vector.extract_strided_slice %1789 {offsets = [19, 0], sizes = [1, 2], strides = [1, 1]} : vector<22x2xf32> to vector<1x2xf32>
    %2455 = arith.subf %2454, %1797 : vector<1x2xf32>
    %2456 = arith.subf %2448, %2455 : vector<1x2xf32>
    %2457 = math.absf %2456 : vector<1x2xf32>
    %2458 = arith.addf %2453, %2457 : vector<1x2xf32>
    %2459 = vector.extract_strided_slice %1791 {offsets = [19, 0], sizes = [1, 2], strides = [1, 1]} : vector<22x2xf32> to vector<1x2xf32>
    %2460 = arith.subf %2459, %1798 : vector<1x2xf32>
    %2461 = arith.subf %2449, %2460 : vector<1x2xf32>
    %2462 = math.absf %2461 : vector<1x2xf32>
    %2463 = arith.addf %2458, %2462 : vector<1x2xf32>
    %2464 = arith.addf %2430, %2463 : vector<1x2xf32>
    %2465 = arith.addf %2449, %206 : vector<1x2xf32>
    %2466 = tpu.reciprocal %2465 : vector<1x2xf32> -> vector<1x2xf32>
    %2467 = arith.addf %2447, %194 : vector<1x2xf32>
    %2468 = arith.mulf %2467, %2466 : vector<1x2xf32>
    %2469 = arith.mulf %2468, %208 : vector<1x2xf32>
    %2470 = arith.addf %2448, %200 : vector<1x2xf32>
    %2471 = arith.mulf %2470, %2466 : vector<1x2xf32>
    %2472 = arith.mulf %2471, %210 : vector<1x2xf32>
    %2473 = vector.extract_strided_slice %1793 {offsets = [19, 0], sizes = [1, 2], strides = [1, 1]} : vector<22x2xf32> to vector<1x2xf32>
    %2474 = arith.subf %2469, %2473 : vector<1x2xf32>
    %2475 = math.absf %2474 : vector<1x2xf32>
    %2476 = arith.addf %2446, %2475 : vector<1x2xf32>
    %2477 = vector.extract_strided_slice %1795 {offsets = [19, 0], sizes = [1, 2], strides = [1, 1]} : vector<22x2xf32> to vector<1x2xf32>
    %2478 = arith.subf %2472, %2477 : vector<1x2xf32>
    %2479 = math.absf %2478 : vector<1x2xf32>
    %2480 = arith.addf %2476, %2479 : vector<1x2xf32>
    %2481 = arith.subf %1752, %559 : vector<1x2xf32>
    %2482 = arith.subf %1758, %560 : vector<1x2xf32>
    %2483 = arith.subf %1764, %561 : vector<1x2xf32>
    %2484 = vector.extract_strided_slice %1787 {offsets = [20, 0], sizes = [1, 2], strides = [1, 1]} : vector<22x2xf32> to vector<1x2xf32>
    %2485 = arith.subf %2484, %1796 : vector<1x2xf32>
    %2486 = arith.subf %2481, %2485 : vector<1x2xf32>
    %2487 = math.absf %2486 : vector<1x2xf32>
    %2488 = vector.extract_strided_slice %1789 {offsets = [20, 0], sizes = [1, 2], strides = [1, 1]} : vector<22x2xf32> to vector<1x2xf32>
    %2489 = arith.subf %2488, %1797 : vector<1x2xf32>
    %2490 = arith.subf %2482, %2489 : vector<1x2xf32>
    %2491 = math.absf %2490 : vector<1x2xf32>
    %2492 = arith.addf %2487, %2491 : vector<1x2xf32>
    %2493 = vector.extract_strided_slice %1791 {offsets = [20, 0], sizes = [1, 2], strides = [1, 1]} : vector<22x2xf32> to vector<1x2xf32>
    %2494 = arith.subf %2493, %1798 : vector<1x2xf32>
    %2495 = arith.subf %2483, %2494 : vector<1x2xf32>
    %2496 = math.absf %2495 : vector<1x2xf32>
    %2497 = arith.addf %2492, %2496 : vector<1x2xf32>
    %2498 = arith.addf %2464, %2497 : vector<1x2xf32>
    %2499 = arith.addf %2483, %206 : vector<1x2xf32>
    %2500 = tpu.reciprocal %2499 : vector<1x2xf32> -> vector<1x2xf32>
    %2501 = arith.addf %2481, %194 : vector<1x2xf32>
    %2502 = arith.mulf %2501, %2500 : vector<1x2xf32>
    %2503 = arith.mulf %2502, %208 : vector<1x2xf32>
    %2504 = arith.addf %2482, %200 : vector<1x2xf32>
    %2505 = arith.mulf %2504, %2500 : vector<1x2xf32>
    %2506 = arith.mulf %2505, %210 : vector<1x2xf32>
    %2507 = vector.extract_strided_slice %1793 {offsets = [20, 0], sizes = [1, 2], strides = [1, 1]} : vector<22x2xf32> to vector<1x2xf32>
    %2508 = arith.subf %2503, %2507 : vector<1x2xf32>
    %2509 = math.absf %2508 : vector<1x2xf32>
    %2510 = arith.addf %2480, %2509 : vector<1x2xf32>
    %2511 = vector.extract_strided_slice %1795 {offsets = [20, 0], sizes = [1, 2], strides = [1, 1]} : vector<22x2xf32> to vector<1x2xf32>
    %2512 = arith.subf %2506, %2511 : vector<1x2xf32>
    %2513 = math.absf %2512 : vector<1x2xf32>
    %2514 = arith.addf %2510, %2513 : vector<1x2xf32>
    %2515 = arith.subf %1773, %559 : vector<1x2xf32>
    %2516 = arith.subf %1779, %560 : vector<1x2xf32>
    %2517 = arith.subf %1785, %561 : vector<1x2xf32>
    %2518 = vector.extract_strided_slice %1787 {offsets = [21, 0], sizes = [1, 2], strides = [1, 1]} : vector<22x2xf32> to vector<1x2xf32>
    %2519 = arith.subf %2518, %1796 : vector<1x2xf32>
    %2520 = arith.subf %2515, %2519 : vector<1x2xf32>
    %2521 = math.absf %2520 : vector<1x2xf32>
    %2522 = vector.extract_strided_slice %1789 {offsets = [21, 0], sizes = [1, 2], strides = [1, 1]} : vector<22x2xf32> to vector<1x2xf32>
    %2523 = arith.subf %2522, %1797 : vector<1x2xf32>
    %2524 = arith.subf %2516, %2523 : vector<1x2xf32>
    %2525 = math.absf %2524 : vector<1x2xf32>
    %2526 = arith.addf %2521, %2525 : vector<1x2xf32>
    %2527 = vector.extract_strided_slice %1791 {offsets = [21, 0], sizes = [1, 2], strides = [1, 1]} : vector<22x2xf32> to vector<1x2xf32>
    %2528 = arith.subf %2527, %1798 : vector<1x2xf32>
    %2529 = arith.subf %2517, %2528 : vector<1x2xf32>
    %2530 = math.absf %2529 : vector<1x2xf32>
    %2531 = arith.addf %2526, %2530 : vector<1x2xf32>
    %2532 = arith.addf %2498, %2531 : vector<1x2xf32>
    %2533 = arith.addf %2517, %206 : vector<1x2xf32>
    %2534 = tpu.reciprocal %2533 : vector<1x2xf32> -> vector<1x2xf32>
    %2535 = arith.addf %2515, %194 : vector<1x2xf32>
    %2536 = arith.mulf %2535, %2534 : vector<1x2xf32>
    %2537 = arith.mulf %2536, %208 : vector<1x2xf32>
    %2538 = arith.addf %2516, %200 : vector<1x2xf32>
    %2539 = arith.mulf %2538, %2534 : vector<1x2xf32>
    %2540 = arith.mulf %2539, %210 : vector<1x2xf32>
    %2541 = vector.extract_strided_slice %1793 {offsets = [21, 0], sizes = [1, 2], strides = [1, 1]} : vector<22x2xf32> to vector<1x2xf32>
    %2542 = arith.subf %2537, %2541 : vector<1x2xf32>
    %2543 = math.absf %2542 : vector<1x2xf32>
    %2544 = arith.addf %2514, %2543 : vector<1x2xf32>
    %2545 = vector.extract_strided_slice %1795 {offsets = [21, 0], sizes = [1, 2], strides = [1, 1]} : vector<22x2xf32> to vector<1x2xf32>
    %2546 = arith.subf %2540, %2545 : vector<1x2xf32>
    %2547 = math.absf %2546 : vector<1x2xf32>
    %2548 = arith.addf %2544, %2547 : vector<1x2xf32>
    %2549 = vector.shape_cast %2532 : vector<1x2xf32> to vector<1x1x2xf32>
    %cst_95 = arith.constant dense<0.000000e+00> : vector<1xf32>
    %2550 = vector.multi_reduction <add>, %2549, %cst_95 [1, 2] : vector<1x1x2xf32> to vector<1xf32>
    %2551 = vector.shape_cast %2550 : vector<1xf32> to vector<1x1x1xf32>
    %2552 = vector.extract %2551[0, 0, 0] : f32 from vector<1x1x1xf32>
    %cst_96 = arith.constant 5.000000e-01 : f32
    %2553 = arith.mulf %2552, %cst_96 : f32
    %2554 = vector.shape_cast %2548 : vector<1x2xf32> to vector<1x1x2xf32>
    %cst_97 = arith.constant dense<0.000000e+00> : vector<1xf32>
    %2555 = vector.multi_reduction <add>, %2554, %cst_97 [1, 2] : vector<1x1x2xf32> to vector<1xf32>
    %2556 = vector.shape_cast %2555 : vector<1xf32> to vector<1x1x1xf32>
    %2557 = vector.extract %2556[0, 0, 0] : f32 from vector<1x1x1xf32>
    %cst_98 = arith.constant 5.000000e-01 : f32
    %2558 = arith.mulf %2557, %cst_98 : f32
    %2559 = vector.broadcast %63 : f32 to vector<1x1xf32>
    %2560 = vector.broadcast %119 : f32 to vector<1x1xf32>
    %2561 = vector.broadcast %121 : f32 to vector<1x1xf32>
    %2562 = vector.broadcast %147 : f32 to vector<1x1xf32>
    %2563 = vector.broadcast %190 : f32 to vector<1x1xf32>
    %2564 = vector.broadcast %2553 : f32 to vector<1x1xf32>
    %2565 = vector.broadcast %2558 : f32 to vector<1x1xf32>
    %cst_99 = arith.constant 0.000000e+00 : f32
    %2566 = vector.broadcast %cst_99 : f32 to vector<1x1xf32>
    %2567 = tpu.concatenate %2559, %2560, %2561, %2562, %2563, %2564, %2565, %2566 in 1 : vector<1x1xf32>, vector<1x1xf32>, vector<1x1xf32>, vector<1x1xf32>, vector<1x1xf32>, vector<1x1xf32>, vector<1x1xf32>, vector<1x1xf32> -> vector<1x8xf32>
    %c0_100 = arith.constant 0 : index
    %c0_101 = arith.constant 0 : index
    %2568 = vector.load %arg7[%c0_100, %c0_101] : memref<1x8xf32, #tpu.memory_space<vmem>>, vector<1x8xf32>
    tpu.vector_store %arg7[%c0_100, %c0_101], %2567 {strides = array<i32>} : memref<1x8xf32, #tpu.memory_space<vmem>>, vector<1x8xf32>,
    return
  }
}

</mosaic_0001>

<llo_original>
// kernel: tpu_custom_call.1
$region0: #{tpu_custom_call.1}
  #allocation0 [shape = 'u32[]', space=smem, size = 0x4, offset = 0x4, fixed_abs, tag = 'smem constant byte address 0x4 - core index']
  #allocation1 [shape = 'u32[144,128]{1,0:T(1,128)}', space=vmem, size = 0x12000, scoped, tag = 'internal scratch']
  %s0 = inlined_call_operand.vmem [shape: f32[6,22,2], index: 0, kind: input, shape index: {}]
  %s1 = inlined_call_operand.vmem [shape: f32[9,22,2], index: 1, kind: input, shape index: {}]
  %s2 = inlined_call_operand.vmem [shape: f32[33,2], index: 2, kind: input, shape index: {}]
  %s3 = inlined_call_operand.vmem [shape: f32[3,22,2], index: 3, kind: input, shape index: {}]
  %s4 = inlined_call_operand.vmem [shape: f32[2,22,2], index: 4, kind: input, shape index: {}]
  %s5 = inlined_call_operand.vmem [shape: f32[3,22,1], index: 5, kind: input, shape index: {}]
  %s6 = inlined_call_operand.vmem [shape: f32[3,22,10], index: 6, kind: input, shape index: {}]
  %s7 = inlined_call_operand.hbm [shape: f32[1,8], index: 7, kind: output, shape index: {}]
  %s8 = sld [smem:[#allocation0]]
  $region38: #{tpu_custom_call.1} parent=0
    _
  %s10 = ssub.s32 1, %s8
  %s11 = scalar_select 0, %s10, %s8
  $region1: #{tpu_custom_call.1} parent=0
    #allocation2 [shape = 'u8[512]{0}', space=vmem, size = 0x400, scoped, tag = 'output window, operand 0, single buffered']
    #allocation3 [shape = 's32[1]{0}', space=sflag, size = 0x4, scoped, tag = 'scoped memory for tpu_custom_call.1']
    %12 = vsyncpa [#allocation3], 0
    // Predicated region
    $region2: #{tpu_custom_call.1} parent=1 // pred_check
      _
    $region3: #{tpu_custom_call.1} parent=1 // pred_check_branch
      %14 = sbr.rel (0) target = $region5
    $region4: #{tpu_custom_call.1} parent=1 // pred_region
      _
    $region5: #{tpu_custom_call.1} parent=1 // pred_fallthru
      _
    // Predicated region
    $region6: #{tpu_custom_call.1} parent=1 // pred_check
      _
    $region7: #{tpu_custom_call.1} parent=1 // pred_check_branch
      %16 = sbr.rel (0) target = $region9
    $region8: #{tpu_custom_call.1} parent=1 // pred_region
      _
    $region9: #{tpu_custom_call.1} parent=1 // pred_fallthru
      _
    // Predicated region
    $region10: #{tpu_custom_call.1} parent=1 // pred_check
      _
    $region11: #{tpu_custom_call.1} parent=1 // pred_check_branch
      %18 = sbr.rel (0) target = $region13
    $region12: #{tpu_custom_call.1} parent=1 // pred_region
      _
    $region13: #{tpu_custom_call.1} parent=1 // pred_fallthru
      _
    // Predicated region
    $region14: #{tpu_custom_call.1} parent=1 // pred_check
      _
    $region15: #{tpu_custom_call.1} parent=1 // pred_check_branch
      %20 = sbr.rel (0) target = $region17
    $region16: #{tpu_custom_call.1} parent=1 // pred_region
      _
    $region17: #{tpu_custom_call.1} parent=1 // pred_fallthru
      _
    // Predicated region
    $region18: #{tpu_custom_call.1} parent=1 // pred_check
      _
    $region19: #{tpu_custom_call.1} parent=1 // pred_check_branch
      %22 = sbr.rel (0) target = $region21
    $region20: #{tpu_custom_call.1} parent=1 // pred_region
      _
    $region21: #{tpu_custom_call.1} parent=1 // pred_fallthru
      _
    // Predicated region
    $region22: #{tpu_custom_call.1} parent=1 // pred_check
      _
    $region23: #{tpu_custom_call.1} parent=1 // pred_check_branch
      %24 = sbr.rel (0) target = $region25
    $region24: #{tpu_custom_call.1} parent=1 // pred_region
      _
    $region25: #{tpu_custom_call.1} parent=1 // pred_fallthru
      _
    // Predicated region
    $region26: #{tpu_custom_call.1} parent=1 // pred_check
      _
    $region27: #{tpu_custom_call.1} parent=1 // pred_check_branch
      %26 = sbr.rel (0) target = $region29
    $region28: #{tpu_custom_call.1} parent=1 // pred_region
      _
    $region29: #{tpu_custom_call.1} parent=1 // pred_fallthru
      _
    %v27 = vld [vmem:[%s0] sm:$0xff]
    %v28 = vld [vmem:[%s0 + $0x8] sm:$0xff]
    %v29 = vld [vmem:[%s0 + $0x10] sm:$0x3f]
    %s30 = scalar_lea.vmem %s0, 24
    %v31 = vld [vmem:[%s30] sm:$0xff]
    %v32 = vld [vmem:[%s30 + $0x8] sm:$0xff]
    %v33 = vld [vmem:[%s30 + $0x10] sm:$0x3f]
    %s34 = scalar_lea.vmem %s0, 48
    %v35 = vld [vmem:[%s34] sm:$0xff]
    %v36 = vld [vmem:[%s34 + $0x8] sm:$0xff]
    %v37 = vld [vmem:[%s34 + $0x10] sm:$0x3f]
    %s38 = scalar_lea.vmem %s0, 72
    %v39 = vld [vmem:[%s38] sm:$0xff]
    %v40 = vld [vmem:[%s38 + $0x8] sm:$0xff]
    %v41 = vld [vmem:[%s38 + $0x10] sm:$0x3f]
    %s42 = scalar_lea.vmem %s0, 96
    %v43 = vld [vmem:[%s42] sm:$0xff]
    %v44 = vld [vmem:[%s42 + $0x8] sm:$0xff]
    %v45 = vld [vmem:[%s42 + $0x10] sm:$0x3f]
    %s46 = scalar_lea.vmem %s0, 120
    %v47 = vld [vmem:[%s46] sm:$0xff]
    %v48 = vld [vmem:[%s46 + $0x8] sm:$0xff]
    %v49 = vld [vmem:[%s46 + $0x10] sm:$0x3f]
    %v50 = vmul.f32 %v27, %v27
    %v51 = vmul.f32 %v28, %v28
    %v52 = vmul.f32 %v29, %v29
    %v53 = vmul.f32 %v31, %v31
    %v54 = vmul.f32 %v32, %v32
    %v55 = vmul.f32 %v33, %v33
    %v56 = vadd.f32 %v50, %v53
    %v57 = vadd.f32 %v51, %v54
    %v58 = vadd.f32 %v52, %v55
    %v59 = vmul.f32 %v35, %v35
    %v60 = vmul.f32 %v36, %v36
    %v61 = vmul.f32 %v37, %v37
    %v62 = vadd.f32 %v56, %v59
    %v63 = vadd.f32 %v57, %v60
    %v64 = vadd.f32 %v58, %v61
    %v65 = vmax.f32 %v62, 1e-24
    %v66 = vmax.f32 %v63, 1e-24
    %v67 = vmax.f32 %v64, 1e-24
    %v68 = vrsqrt.pop %v65
    %v69 = vrsqrt.pop %v66
    %v70 = vrsqrt.pop %v67
    %v71 = vmul.f32 %v27, %v68
    %v72 = vmul.f32 %v28, %v69
    %v73 = vmul.f32 %v29, %v70
    %v74 = vmul.f32 %v31, %v68
    %v75 = vmul.f32 %v32, %v69
    %v76 = vmul.f32 %v33, %v70
    %v77 = vmul.f32 %v35, %v68
    %v78 = vmul.f32 %v36, %v69
    %v79 = vmul.f32 %v37, %v70
    %v80 = vmul.f32 %v71, %v39
    %v81 = vmul.f32 %v72, %v40
    %v82 = vmul.f32 %v73, %v41
    %v83 = vmul.f32 %v74, %v43
    %v84 = vmul.f32 %v75, %v44
    %v85 = vmul.f32 %v76, %v45
    %v86 = vadd.f32 %v80, %v83
    %v87 = vadd.f32 %v81, %v84
    %v88 = vadd.f32 %v82, %v85
    %v89 = vmul.f32 %v77, %v47
    %v90 = vmul.f32 %v78, %v48
    %v91 = vmul.f32 %v79, %v49
    %v92 = vadd.f32 %v86, %v89
    %v93 = vadd.f32 %v87, %v90
    %v94 = vadd.f32 %v88, %v91
    %v95 = vmul.f32 %v92, %v71
    %v96 = vmul.f32 %v93, %v72
    %v97 = vmul.f32 %v94, %v73
    %v98 = vsub.f32 %v39, %v95
    %v99 = vsub.f32 %v40, %v96
    %v100 = vsub.f32 %v41, %v97
    %v101 = vmul.f32 %v92, %v74
    %v102 = vmul.f32 %v93, %v75
    %v103 = vmul.f32 %v94, %v76
    %v104 = vsub.f32 %v43, %v101
    %v105 = vsub.f32 %v44, %v102
    %v106 = vsub.f32 %v45, %v103
    %v107 = vmul.f32 %v92, %v77
    %v108 = vmul.f32 %v93, %v78
    %v109 = vmul.f32 %v94, %v79
    %v110 = vsub.f32 %v47, %v107
    %v111 = vsub.f32 %v48, %v108
    %v112 = vsub.f32 %v49, %v109
    %v113 = vmul.f32 %v98, %v98
    %v114 = vmul.f32 %v99, %v99
    %v115 = vmul.f32 %v100, %v100
    %v116 = vmul.f32 %v104, %v104
    %v117 = vmul.f32 %v105, %v105
    %v118 = vmul.f32 %v106, %v106
    %v119 = vadd.f32 %v113, %v116
    %v120 = vadd.f32 %v114, %v117
    %v121 = vadd.f32 %v115, %v118
    %v122 = vmul.f32 %v110, %v110
    %v123 = vmul.f32 %v111, %v111
    %v124 = vmul.f32 %v112, %v112
    %v125 = vadd.f32 %v119, %v122
    %v126 = vadd.f32 %v120, %v123
    %v127 = vadd.f32 %v121, %v124
    %v128 = vmax.f32 %v125, 1e-24
    %v129 = vmax.f32 %v126, 1e-24
    %v130 = vmax.f32 %v127, 1e-24
    %v131 = vrsqrt.pop %v128
    %v132 = vrsqrt.pop %v129
    %v133 = vrsqrt.pop %v130
    %v134 = vmul.f32 %v98, %v131
    %v135 = vmul.f32 %v99, %v132
    %v136 = vmul.f32 %v100, %v133
    %v137 = vmul.f32 %v104, %v131
    %v138 = vmul.f32 %v105, %v132
    %v139 = vmul.f32 %v106, %v133
    %v140 = vmul.f32 %v110, %v131
    %v141 = vmul.f32 %v111, %v132
    %v142 = vmul.f32 %v112, %v133
    %v143 = vmul.f32 %v74, %v140
    %v144 = vmul.f32 %v75, %v141
    %v145 = vmul.f32 %v76, %v142
    %v146 = vmul.f32 %v77, %v137
    %v147 = vmul.f32 %v78, %v138
    %v148 = vmul.f32 %v79, %v139
    %v149 = vsub.f32 %v143, %v146
    %v150 = vsub.f32 %v144, %v147
    %v151 = vsub.f32 %v145, %v148
    %v152 = vmul.f32 %v77, %v134
    %v153 = vmul.f32 %v78, %v135
    %v154 = vmul.f32 %v79, %v136
    %v155 = vmul.f32 %v71, %v140
    %v156 = vmul.f32 %v72, %v141
    %v157 = vmul.f32 %v73, %v142
    %v158 = vsub.f32 %v152, %v155
    %v159 = vsub.f32 %v153, %v156
    %v160 = vsub.f32 %v154, %v157
    %v161 = vmul.f32 %v71, %v137
    %v162 = vmul.f32 %v72, %v138
    %v163 = vmul.f32 %v73, %v139
    %v164 = vmul.f32 %v74, %v134
    %v165 = vmul.f32 %v75, %v135
    %v166 = vmul.f32 %v76, %v136
    %v167 = vsub.f32 %v161, %v164
    %v168 = vsub.f32 %v162, %v165
    %v169 = vsub.f32 %v163, %v166
    %v170 = vld [vmem:[%s2] sm:$0xff]
    %v171 = vld [vmem:[%s2 + $0x8] sm:$0xff]
    %v172 = vld [vmem:[%s2 + $0x10] sm:$0xff]
    %v173 = vld [vmem:[%s2 + $0x18] sm:$0xff]
    %v174 = vld [vmem:[%s2 + $0x20] sm:$0x1]
    %vm178 = vcmask 1045504
    %v179 = vrot.slane %v172, 2
    %v180 = vrot.slane %v173, 2
    %v181 = vsel %vm178, %v179, %v180
    %v182 = vrot.slane %v174, 2
    %v183 = vsel %vm178, %v180, %v182
    %v186 = vsub.f32 %v171, %v181
    %v187 = vsub.f32 %v172, %v183
    %v188 = vmul.f32 %v186, %v186
    %v189 = vmul.f32 %v187, %v187
    %vm192 = vcmask 1042432
    %v193 = vrot.slane %v188, 5
    %v194 = vrot.slane %v189, 5
    %v195 = vsel %vm192, %v193, %v194
    %vm198 = vcmask 15360
    %v199 = vsel %vm198, %v195, 0.0
    %vm200 = vcmask 9216
    %v201 = vsel %vm200, %v194, 0.0
    %v202 = vadd.f32 %v199, %v201
    %203 = vadd.xlane.f32.xlu0 %v202
    %v204 = vpop.xlane.xlu0 %203
    %v205 = vrot.slane %v204, 4
    %v206 = vadd.f32 %v204, %v205
    %v207 = vrot.slane %v206, 2
    %v208 = vadd.f32 %v206, %v207
    %v209 = vrot.slane %v208, 1
    %v210 = vadd.f32 %v208, %v209
    %s211 = vtos %v210
    %s212 = smul.f32 %s211, 0.5
    %v213 = vld [vmem:[%s1] sm:$0xff]
    %v214 = vld [vmem:[%s1 + $0x8] sm:$0xff]
    %v215 = vld [vmem:[%s1 + $0x10] sm:$0x3f]
    %v216 = vsub.f32 %v71, %v213
    %v217 = vsub.f32 %v72, %v214
    %v218 = vsub.f32 %v73, %v215
    %v219 = vmul.f32 %v216, %v216
    %v220 = vmul.f32 %v217, %v217
    %v221 = vmul.f32 %v218, %v218
    %v222 = vadd.f32 %v219, 0.0
    %v223 = vadd.f32 %v220, 0.0
    %v224 = vadd.f32 %v221, 0.0
    %s225 = scalar_lea.vmem %s1, 24
    %v226 = vld [vmem:[%s225] sm:$0xff]
    %v227 = vld [vmem:[%s225 + $0x8] sm:$0xff]
    %v228 = vld [vmem:[%s225 + $0x10] sm:$0x3f]
    %v229 = vsub.f32 %v74, %v226
    %v230 = vsub.f32 %v75, %v227
    %v231 = vsub.f32 %v76, %v228
    %v232 = vmul.f32 %v229, %v229
    %v233 = vmul.f32 %v230, %v230
    %v234 = vmul.f32 %v231, %v231
    %v235 = vadd.f32 %v222, %v232
    %v236 = vadd.f32 %v223, %v233
    %v237 = vadd.f32 %v224, %v234
    %s238 = scalar_lea.vmem %s1, 48
    %v239 = vld [vmem:[%s238] sm:$0xff]
    %v240 = vld [vmem:[%s238 + $0x8] sm:$0xff]
    %v241 = vld [vmem:[%s238 + $0x10] sm:$0x3f]
    %v242 = vsub.f32 %v77, %v239
    %v243 = vsub.f32 %v78, %v240
    %v244 = vsub.f32 %v79, %v241
    %v245 = vmul.f32 %v242, %v242
    %v246 = vmul.f32 %v243, %v243
    %v247 = vmul.f32 %v244, %v244
    %v248 = vadd.f32 %v235, %v245
    %v249 = vadd.f32 %v236, %v246
    %v250 = vadd.f32 %v237, %v247
    %s251 = scalar_lea.vmem %s1, 72
    %v252 = vld [vmem:[%s251] sm:$0xff]
    %v253 = vld [vmem:[%s251 + $0x8] sm:$0xff]
    %v254 = vld [vmem:[%s251 + $0x10] sm:$0x3f]
    %v255 = vsub.f32 %v134, %v252
    %v256 = vsub.f32 %v135, %v253
    %v257 = vsub.f32 %v136, %v254
    %v258 = vmul.f32 %v255, %v255
    %v259 = vmul.f32 %v256, %v256
    %v260 = vmul.f32 %v257, %v257
    %v261 = vadd.f32 %v248, %v258
    %v262 = vadd.f32 %v249, %v259
    %v263 = vadd.f32 %v250, %v260
    %s264 = scalar_lea.vmem %s1, 96
    %v265 = vld [vmem:[%s264] sm:$0xff]
    %v266 = vld [vmem:[%s264 + $0x8] sm:$0xff]
    %v267 = vld [vmem:[%s264 + $0x10] sm:$0x3f]
    %v268 = vsub.f32 %v137, %v265
    %v269 = vsub.f32 %v138, %v266
    %v270 = vsub.f32 %v139, %v267
    %v271 = vmul.f32 %v268, %v268
    %v272 = vmul.f32 %v269, %v269
    %v273 = vmul.f32 %v270, %v270
    %v274 = vadd.f32 %v261, %v271
    %v275 = vadd.f32 %v262, %v272
    %v276 = vadd.f32 %v263, %v273
    %s277 = scalar_lea.vmem %s1, 120
    %v278 = vld [vmem:[%s277] sm:$0xff]
    %v279 = vld [vmem:[%s277 + $0x8] sm:$0xff]
    %v280 = vld [vmem:[%s277 + $0x10] sm:$0x3f]
    %v281 = vsub.f32 %v140, %v278
    %v282 = vsub.f32 %v141, %v279
    %v283 = vsub.f32 %v142, %v280
    %v284 = vmul.f32 %v281, %v281
    %v285 = vmul.f32 %v282, %v282
    %v286 = vmul.f32 %v283, %v283
    %v287 = vadd.f32 %v274, %v284
    %v288 = vadd.f32 %v275, %v285
    %v289 = vadd.f32 %v276, %v286
    %s290 = scalar_lea.vmem %s1, 144
    %v291 = vld [vmem:[%s290] sm:$0xff]
    %v292 = vld [vmem:[%s290 + $0x8] sm:$0xff]
    %v293 = vld [vmem:[%s290 + $0x10] sm:$0x3f]
    %v294 = vsub.f32 %v149, %v291
    %v295 = vsub.f32 %v150, %v292
    %v296 = vsub.f32 %v151, %v293
    %v297 = vmul.f32 %v294, %v294
    %v298 = vmul.f32 %v295, %v295
    %v299 = vmul.f32 %v296, %v296
    %v300 = vadd.f32 %v287, %v297
    %v301 = vadd.f32 %v288, %v298
    %v302 = vadd.f32 %v289, %v299
    %s303 = scalar_lea.vmem %s1, 168
    %v304 = vld [vmem:[%s303] sm:$0xff]
    %v305 = vld [vmem:[%s303 + $0x8] sm:$0xff]
    %v306 = vld [vmem:[%s303 + $0x10] sm:$0x3f]
    %v307 = vsub.f32 %v158, %v304
    %v308 = vsub.f32 %v159, %v305
    %v309 = vsub.f32 %v160, %v306
    %v310 = vmul.f32 %v307, %v307
    %v311 = vmul.f32 %v308, %v308
    %v312 = vmul.f32 %v309, %v309
    %v313 = vadd.f32 %v300, %v310
    %v314 = vadd.f32 %v301, %v311
    %v315 = vadd.f32 %v302, %v312
    %s316 = scalar_lea.vmem %s1, 192
    %v317 = vld [vmem:[%s316] sm:$0xff]
    %v318 = vld [vmem:[%s316 + $0x8] sm:$0xff]
    %v319 = vld [vmem:[%s316 + $0x10] sm:$0x3f]
    %v320 = vsub.f32 %v167, %v317
    %v321 = vsub.f32 %v168, %v318
    %v322 = vsub.f32 %v169, %v319
    %v323 = vmul.f32 %v320, %v320
    %v324 = vmul.f32 %v321, %v321
    %v325 = vmul.f32 %v322, %v322
    %v326 = vadd.f32 %v313, %v323
    %v327 = vadd.f32 %v314, %v324
    %v328 = vadd.f32 %v315, %v325
    %v329 = vsel %vm198, %v326, 0.0
    %v330 = vsel %vm198, %v327, 0.0
    %v331 = vadd.f32 %v329, %v330
    %vm332 = vcmask 13312
    %v333 = vsel %vm332, %v328, 0.0
    %v334 = vadd.f32 %v331, %v333
    %335 = vadd.xlane.f32.xlu0 %v334
    %v336 = vpop.xlane.xlu0 %335
    %v337 = vrot.slane %v336, 4
    %v338 = vadd.f32 %v336, %v337
    %v339 = vrot.slane %v338, 2
    %v340 = vadd.f32 %v338, %v339
    %v341 = vrot.slane %v340, 1
    %v342 = vadd.f32 %v340, %v341
    %s343 = vtos %v342
    %vm344 = vcmask 8192
    %v345 = vsel %vm344, %v326, 0.0
    %346 = vadd.xlane.f32.xlu0 %v345
    %v347 = vpop.xlane.xlu0 %346
    %v348 = vrot.slane %v347, 4
    %v349 = vadd.f32 %v347, %v348
    %v350 = vrot.slane %v349, 2
    %v351 = vadd.f32 %v349, %v350
    %v352 = vrot.slane %v351, 1
    %v353 = vadd.f32 %v351, %v352
    %s354 = vtos %v353
    %s355 = smul.f32 %s354, 0.5
    %s356 = ssub.f32 %s343, %s354
    %s357 = smul.f32 %s356, 0.5
    %v358 = vmul.f32 %v27, %v39
    %v359 = vmul.f32 %v28, %v40
    %v360 = vmul.f32 %v29, %v41
    %v361 = vmul.f32 %v31, %v43
    %v362 = vmul.f32 %v32, %v44
    %v363 = vmul.f32 %v33, %v45
    %v364 = vadd.f32 %v358, %v361
    %v365 = vadd.f32 %v359, %v362
    %v366 = vadd.f32 %v360, %v363
    %v367 = vmul.f32 %v35, %v47
    %v368 = vmul.f32 %v36, %v48
    %v369 = vmul.f32 %v37, %v49
    %v370 = vadd.f32 %v364, %v367
    %v371 = vadd.f32 %v365, %v368
    %v372 = vadd.f32 %v366, %v369
    %v373 = vmul.f32 %v39, %v39
    %v374 = vmul.f32 %v40, %v40
    %v375 = vmul.f32 %v41, %v41
    %v376 = vmul.f32 %v43, %v43
    %v377 = vmul.f32 %v44, %v44
    %v378 = vmul.f32 %v45, %v45
    %v379 = vadd.f32 %v373, %v376
    %v380 = vadd.f32 %v374, %v377
    %v381 = vadd.f32 %v375, %v378
    %v382 = vmul.f32 %v47, %v47
    %v383 = vmul.f32 %v48, %v48
    %v384 = vmul.f32 %v49, %v49
    %v385 = vadd.f32 %v379, %v382
    %v386 = vadd.f32 %v380, %v383
    %v387 = vadd.f32 %v381, %v384
    %v388 = vsub.f32 %v62, 1.0
    %v389 = vsub.f32 %v63, 1.0
    %v390 = vsub.f32 %v64, 1.0
    %v391 = vmul.f32 %v388, %v388
    %v392 = vmul.f32 %v389, %v389
    %v393 = vmul.f32 %v390, %v390
    %v394 = vmul.f32 %v370, %v370
    %v395 = vmul.f32 %v371, %v371
    %v396 = vmul.f32 %v372, %v372
    %v397 = vmul.f32 %v394, 2.0
    %v398 = vmul.f32 %v395, 2.0
    %v399 = vmul.f32 %v396, 2.0
    %v400 = vadd.f32 %v391, %v397
    %v401 = vadd.f32 %v392, %v398
    %v402 = vadd.f32 %v393, %v399
    %v403 = vsub.f32 %v385, 1.0
    %v404 = vsub.f32 %v386, 1.0
    %v405 = vsub.f32 %v387, 1.0
    %v406 = vmul.f32 %v403, %v403
    %v407 = vmul.f32 %v404, %v404
    %v408 = vmul.f32 %v405, %v405
    %v409 = vadd.f32 %v400, %v406
    %v410 = vadd.f32 %v401, %v407
    %v411 = vadd.f32 %v402, %v408
    %v412 = vsel %vm198, %v409, 0.0
    %v413 = vsel %vm198, %v410, 0.0
    %v414 = vadd.f32 %v412, %v413
    %v415 = vsel %vm332, %v411, 0.0
    %v416 = vadd.f32 %v414, %v415
    %417 = vadd.xlane.f32.xlu0 %v416
    %v418 = vpop.xlane.xlu0 %417
    %v419 = vrot.slane %v418, 4
    %v420 = vadd.f32 %v418, %v419
    %v421 = vrot.slane %v420, 2
    %v422 = vadd.f32 %v420, %v421
    %v423 = vrot.slane %v422, 1
    %v424 = vadd.f32 %v422, %v423
    %s425 = vtos %v424
    %v426 = vrcp.pop 176.0
    %s427 = vtos %v426
    %s428 = smul.f32 %s425, %s427
    %v429 = vrcp.pop %v171
    %v431 = vrot.slane %v170, 5
    %v433 = vmul.f32 %v170, %v431
    %v434 = vadd.f32 %v433, 1e-09
    %v435 = vrcp.pop %v434
    %v437 = vrot.slane %v435, 3
    %v439 = vmul.f32 %v171, %v437
    %v440 = vrot.slane %v170, 2
    %v442 = vmul.f32 %v170, %v440
    %v443 = vrot.slane %v170, 3
    %v445 = vadd.f32 %v442, %v443
    %v446 = vsub.f32 %v445, %v431
    %v448 = vrot.slane %v429, 7
    %v450 = vmul.f32 %v446, %v448
    %v452 = vrot.slane %v439, 7
    %v454 = vmul.f32 %v450, %v452
    %v455 = vrot.slane %v170, 1
    %v457 = vmul.f32 %v170, %v455
    %v458 = vadd.f32 %v457, %v443
    %v459 = vsub.f32 %v458, %v431
    %v460 = vmul.f32 %v459, %v448
    %v461 = vrot.slane %v439, 6
    %v463 = vmul.f32 %v460, %v461
    %v465 = vrot.slane %v171, 1
    %v467 = vsub.f32 %v454, %v465
    %v468 = vand.u32 2147483647, %v467
    %v469 = vsub.f32 %v463, %v465
    %v470 = vand.u32 2147483647, %v469
    %v472 = vrot.slane %v470, 1
    %v474 = vadd.f32 %v468, %v472
    %v475 = vrot.slane %v171, 4
    %v477 = vsub.f32 %v439, %v475
    %v478 = vand.u32 2147483647, %v477
    %v480 = vrot.slane %v478, 7
    %v482 = vadd.f32 %v474, %v480
    %v484 = vrot.slane %v482, 1
    %v486 = vsel %vm344, %v484, 0.0
    %487 = vadd.xlane.f32.xlu0 %v486
    %v488 = vpop.xlane.xlu0 %487
    %v489 = vrot.slane %v488, 4
    %v490 = vadd.f32 %v488, %v489
    %v491 = vrot.slane %v490, 2
    %v492 = vadd.f32 %v490, %v491
    %v493 = vrot.slane %v492, 1
    %v494 = vadd.f32 %v492, %v493
    %s495 = vtos %v494
    %v496 = vrcp.pop 6.0
    %s497 = vtos %v496
    %s498 = smul.f32 %s495, %s497
    %v499 = vadd.f32 %v170, 1e-09
    %v500 = vrcp.pop %v499
    %v502 = vrot.slane %v500, 7
    %v504 = vmul.f32 %v170, %v502
    %v505 = vrot.slane %v171, 6
    %v507 = vmul.f32 %v170, %v505
    %v508 = vrot.slane %v170, 7
    %v510 = vmul.f32 %v171, %v508
    %v511 = vadd.f32 %v510, 1e-09
    %v512 = vrcp.pop %v511
    %v514 = vrot.slane %v512, 7
    %v516 = vmul.f32 %v507, %v514
    %v517 = vmul.f32 %v170, 256.0
    %v518 = vadd.f32 %v517, 1e-09
    %v519 = vrcp.pop %v518
    %v520 = vmul.f32 %v171, %v519
    %v521 = vmul.f32 %v171, 0.00390625
    %v522 = vld [vmem:[%s6] sm:$0xff]
    %v523 = vld [vmem:[%s6 + $0x8] sm:$0xff]
    %v524 = vld [vmem:[%s6 + $0x10] sm:$0x3f]
    %v525 = vld [vmem:[%s5] sm:$0xff]
    %v526 = vld [vmem:[%s5 + $0x8] sm:$0xff]
    %v527 = vld [vmem:[%s5 + $0x10] sm:$0x3f]
    %529 = vset.pattern.permute.xlu0 0
    %530 = vperm.xlu0 %529, %v522
    %v531 = vpop.permute.xlu0 %530
    %534 = vset.pattern.permute.xlu0 0
    %535 = vperm.xlu0 %534, %v523
    %v536 = vpop.permute.xlu0 %535
    %539 = vset.pattern.permute.xlu0 0
    %540 = vperm.xlu0 %539, %v524
    %v541 = vpop.permute.xlu0 %540
    %v543 = vlaneseq
    %v544 = vshrl.u32 %v543, 7
    %v545 = vsub.s32 5, %v544
    %v546 = vrot.slane %v171, %v545
    %v547 = vmul.f32 %v531, %v546
    %v548 = vmul.f32 %v536, %v546
    %v549 = vmul.f32 %v541, %v546
    %551 = vset.pattern.permute.xlu0 0
    %552 = vperm.xlu0 %551, %v525
    %v553 = vpop.permute.xlu0 %552
    %556 = vset.pattern.permute.xlu0 0
    %557 = vperm.xlu0 %556, %v526
    %v558 = vpop.permute.xlu0 %557
    %561 = vset.pattern.permute.xlu0 0
    %562 = vperm.xlu0 %561, %v527
    %v563 = vpop.permute.xlu0 %562
    %v565 = vadd.f32 %v553, %v547
    %v566 = vadd.f32 %v558, %v548
    %v567 = vadd.f32 %v563, %v549
    %568 = vset.pattern.permute.xlu0 1
    %569 = vperm.xlu0 %568, %v522
    %v570 = vpop.permute.xlu0 %569
    %572 = vset.pattern.permute.xlu0 1
    %573 = vperm.xlu0 %572, %v523
    %v574 = vpop.permute.xlu0 %573
    %576 = vset.pattern.permute.xlu0 1
    %577 = vperm.xlu0 %576, %v524
    %v578 = vpop.permute.xlu0 %577
    %v580 = vlaneseq
    %v581 = vshrl.u32 %v580, 7
    %v582 = vsub.s32 6, %v581
    %v583 = vrot.slane %v171, %v582
    %v584 = vmul.f32 %v570, %v583
    %v585 = vmul.f32 %v574, %v583
    %v586 = vmul.f32 %v578, %v583
    %v587 = vadd.f32 %v565, %v584
    %v588 = vadd.f32 %v566, %v585
    %v589 = vadd.f32 %v567, %v586
    %590 = vset.pattern.permute.xlu0 2
    %591 = vperm.xlu0 %590, %v522
    %v592 = vpop.permute.xlu0 %591
    %594 = vset.pattern.permute.xlu0 2
    %595 = vperm.xlu0 %594, %v523
    %v596 = vpop.permute.xlu0 %595
    %598 = vset.pattern.permute.xlu0 2
    %599 = vperm.xlu0 %598, %v524
    %v600 = vpop.permute.xlu0 %599
    %v602 = vlaneseq
    %v603 = vshrl.u32 %v602, 7
    %v604 = vsub.s32 7, %v603
    %v605 = vrot.slane %v171, %v604
    %v606 = vmul.f32 %v592, %v605
    %v607 = vmul.f32 %v596, %v605
    %v608 = vmul.f32 %v600, %v605
    %v609 = vadd.f32 %v587, %v606
    %v610 = vadd.f32 %v588, %v607
    %v611 = vadd.f32 %v589, %v608
    %612 = vset.pattern.permute.xlu0 3
    %613 = vperm.xlu0 %612, %v522
    %v614 = vpop.permute.xlu0 %613
    %616 = vset.pattern.permute.xlu0 3
    %617 = vperm.xlu0 %616, %v523
    %v618 = vpop.permute.xlu0 %617
    %620 = vset.pattern.permute.xlu0 3
    %621 = vperm.xlu0 %620, %v524
    %v622 = vpop.permute.xlu0 %621
    %v624 = vlaneseq
    %v625 = vshrl.u32 %v624, 7
    %v626 = vsub.s32 0, %v625
    %v627 = vrot.slane %v172, %v626
    %v628 = vmul.f32 %v614, %v627
    %v629 = vmul.f32 %v618, %v627
    %v630 = vmul.f32 %v622, %v627
    %v631 = vadd.f32 %v609, %v628
    %v632 = vadd.f32 %v610, %v629
    %v633 = vadd.f32 %v611, %v630
    %634 = vset.pattern.permute.xlu0 4
    %635 = vperm.xlu0 %634, %v522
    %v636 = vpop.permute.xlu0 %635
    %638 = vset.pattern.permute.xlu0 4
    %639 = vperm.xlu0 %638, %v523
    %v640 = vpop.permute.xlu0 %639
    %642 = vset.pattern.permute.xlu0 4
    %643 = vperm.xlu0 %642, %v524
    %v644 = vpop.permute.xlu0 %643
    %v646 = vlaneseq
    %v647 = vshrl.u32 %v646, 7
    %v648 = vsub.s32 1, %v647
    %v649 = vrot.slane %v172, %v648
    %v650 = vmul.f32 %v636, %v649
    %v651 = vmul.f32 %v640, %v649
    %v652 = vmul.f32 %v644, %v649
    %v653 = vadd.f32 %v631, %v650
    %v654 = vadd.f32 %v632, %v651
    %v655 = vadd.f32 %v633, %v652
    %656 = vset.pattern.permute.xlu0 5
    %657 = vperm.xlu0 %656, %v522
    %v658 = vpop.permute.xlu0 %657
    %660 = vset.pattern.permute.xlu0 5
    %661 = vperm.xlu0 %660, %v523
    %v662 = vpop.permute.xlu0 %661
    %664 = vset.pattern.permute.xlu0 5
    %665 = vperm.xlu0 %664, %v524
    %v666 = vpop.permute.xlu0 %665
    %v668 = vlaneseq
    %v669 = vshrl.u32 %v668, 7
    %v670 = vsub.s32 2, %v669
    %v671 = vrot.slane %v172, %v670
    %v672 = vmul.f32 %v658, %v671
    %v673 = vmul.f32 %v662, %v671
    %v674 = vmul.f32 %v666, %v671
    %v675 = vadd.f32 %v653, %v672
    %v676 = vadd.f32 %v654, %v673
    %v677 = vadd.f32 %v655, %v674
    %678 = vset.pattern.permute.xlu0 6
    %679 = vperm.xlu0 %678, %v522
    %v680 = vpop.permute.xlu0 %679
    %682 = vset.pattern.permute.xlu0 6
    %683 = vperm.xlu0 %682, %v523
    %v684 = vpop.permute.xlu0 %683
    %686 = vset.pattern.permute.xlu0 6
    %687 = vperm.xlu0 %686, %v524
    %v688 = vpop.permute.xlu0 %687
    %v690 = vlaneseq
    %v691 = vshrl.u32 %v690, 7
    %v692 = vsub.s32 3, %v691
    %v693 = vrot.slane %v172, %v692
    %v694 = vmul.f32 %v680, %v693
    %v695 = vmul.f32 %v684, %v693
    %v696 = vmul.f32 %v688, %v693
    %v697 = vadd.f32 %v675, %v694
    %v698 = vadd.f32 %v676, %v695
    %v699 = vadd.f32 %v677, %v696
    %700 = vset.pattern.permute.xlu0 7
    %701 = vperm.xlu0 %700, %v522
    %v702 = vpop.permute.xlu0 %701
    %704 = vset.pattern.permute.xlu0 7
    %705 = vperm.xlu0 %704, %v523
    %v706 = vpop.permute.xlu0 %705
    %708 = vset.pattern.permute.xlu0 7
    %709 = vperm.xlu0 %708, %v524
    %v710 = vpop.permute.xlu0 %709
    %v712 = vlaneseq
    %v713 = vshrl.u32 %v712, 7
    %v714 = vsub.s32 4, %v713
    %v715 = vrot.slane %v172, %v714
    %v716 = vmul.f32 %v702, %v715
    %v717 = vmul.f32 %v706, %v715
    %v718 = vmul.f32 %v710, %v715
    %v719 = vadd.f32 %v697, %v716
    %v720 = vadd.f32 %v698, %v717
    %v721 = vadd.f32 %v699, %v718
    %722 = vset.pattern.permute.xlu0 8
    %723 = vperm.xlu0 %722, %v522
    %v724 = vpop.permute.xlu0 %723
    %726 = vset.pattern.permute.xlu0 8
    %727 = vperm.xlu0 %726, %v523
    %v728 = vpop.permute.xlu0 %727
    %730 = vset.pattern.permute.xlu0 8
    %731 = vperm.xlu0 %730, %v524
    %v732 = vpop.permute.xlu0 %731
    %v734 = vlaneseq
    %v735 = vshrl.u32 %v734, 7
    %v736 = vsub.s32 5, %v735
    %v737 = vrot.slane %v172, %v736
    %v738 = vmul.f32 %v724, %v737
    %v739 = vmul.f32 %v728, %v737
    %v740 = vmul.f32 %v732, %v737
    %v741 = vadd.f32 %v719, %v738
    %v742 = vadd.f32 %v720, %v739
    %v743 = vadd.f32 %v721, %v740
    %744 = vset.pattern.permute.xlu0 9
    %745 = vperm.xlu0 %744, %v522
    %v746 = vpop.permute.xlu0 %745
    %748 = vset.pattern.permute.xlu0 9
    %749 = vperm.xlu0 %748, %v523
    %v750 = vpop.permute.xlu0 %749
    %752 = vset.pattern.permute.xlu0 9
    %753 = vperm.xlu0 %752, %v524
    %v754 = vpop.permute.xlu0 %753
    %v756 = vlaneseq
    %v757 = vshrl.u32 %v756, 7
    %v758 = vsub.s32 6, %v757
    %v759 = vrot.slane %v172, %v758
    %v760 = vmul.f32 %v746, %v759
    %v761 = vmul.f32 %v750, %v759
    %v762 = vmul.f32 %v754, %v759
    %v763 = vadd.f32 %v741, %v760
    %v764 = vadd.f32 %v742, %v761
    %v765 = vadd.f32 %v743, %v762
    %s766 = scalar_lea.vmem %s6, 24
    %v767 = vld [vmem:[%s766] sm:$0xff]
    %v768 = vld [vmem:[%s766 + $0x8] sm:$0xff]
    %v769 = vld [vmem:[%s766 + $0x10] sm:$0x3f]
    %s770 = scalar_lea.vmem %s5, 24
    %v771 = vld [vmem:[%s770] sm:$0xff]
    %v772 = vld [vmem:[%s770 + $0x8] sm:$0xff]
    %v773 = vld [vmem:[%s770 + $0x10] sm:$0x3f]
    %775 = vset.pattern.permute.xlu0 0
    %776 = vperm.xlu0 %775, %v767
    %v777 = vpop.permute.xlu0 %776
    %780 = vset.pattern.permute.xlu0 0
    %781 = vperm.xlu0 %780, %v768
    %v782 = vpop.permute.xlu0 %781
    %785 = vset.pattern.permute.xlu0 0
    %786 = vperm.xlu0 %785, %v769
    %v787 = vpop.permute.xlu0 %786
    %v789 = vmul.f32 %v777, %v546
    %v790 = vmul.f32 %v782, %v546
    %v791 = vmul.f32 %v787, %v546
    %793 = vset.pattern.permute.xlu0 0
    %794 = vperm.xlu0 %793, %v771
    %v795 = vpop.permute.xlu0 %794
    %798 = vset.pattern.permute.xlu0 0
    %799 = vperm.xlu0 %798, %v772
    %v800 = vpop.permute.xlu0 %799
    %803 = vset.pattern.permute.xlu0 0
    %804 = vperm.xlu0 %803, %v773
    %v805 = vpop.permute.xlu0 %804
    %v807 = vadd.f32 %v795, %v789
    %v808 = vadd.f32 %v800, %v790
    %v809 = vadd.f32 %v805, %v791
    %810 = vset.pattern.permute.xlu0 1
    %811 = vperm.xlu0 %810, %v767
    %v812 = vpop.permute.xlu0 %811
    %814 = vset.pattern.permute.xlu0 1
    %815 = vperm.xlu0 %814, %v768
    %v816 = vpop.permute.xlu0 %815
    %818 = vset.pattern.permute.xlu0 1
    %819 = vperm.xlu0 %818, %v769
    %v820 = vpop.permute.xlu0 %819
    %v822 = vmul.f32 %v812, %v583
    %v823 = vmul.f32 %v816, %v583
    %v824 = vmul.f32 %v820, %v583
    %v825 = vadd.f32 %v807, %v822
    %v826 = vadd.f32 %v808, %v823
    %v827 = vadd.f32 %v809, %v824
    %828 = vset.pattern.permute.xlu0 2
    %829 = vperm.xlu0 %828, %v767
    %v830 = vpop.permute.xlu0 %829
    %832 = vset.pattern.permute.xlu0 2
    %833 = vperm.xlu0 %832, %v768
    %v834 = vpop.permute.xlu0 %833
    %836 = vset.pattern.permute.xlu0 2
    %837 = vperm.xlu0 %836, %v769
    %v838 = vpop.permute.xlu0 %837
    %v840 = vmul.f32 %v830, %v605
    %v841 = vmul.f32 %v834, %v605
    %v842 = vmul.f32 %v838, %v605
    %v843 = vadd.f32 %v825, %v840
    %v844 = vadd.f32 %v826, %v841
    %v845 = vadd.f32 %v827, %v842
    %846 = vset.pattern.permute.xlu0 3
    %847 = vperm.xlu0 %846, %v767
    %v848 = vpop.permute.xlu0 %847
    %850 = vset.pattern.permute.xlu0 3
    %851 = vperm.xlu0 %850, %v768
    %v852 = vpop.permute.xlu0 %851
    %854 = vset.pattern.permute.xlu0 3
    %855 = vperm.xlu0 %854, %v769
    %v856 = vpop.permute.xlu0 %855
    %v858 = vmul.f32 %v848, %v627
    %v859 = vmul.f32 %v852, %v627
    %v860 = vmul.f32 %v856, %v627
    %v861 = vadd.f32 %v843, %v858
    %v862 = vadd.f32 %v844, %v859
    %v863 = vadd.f32 %v845, %v860
    %864 = vset.pattern.permute.xlu0 4
    %865 = vperm.xlu0 %864, %v767
    %v866 = vpop.permute.xlu0 %865
    %868 = vset.pattern.permute.xlu0 4
    %869 = vperm.xlu0 %868, %v768
    %v870 = vpop.permute.xlu0 %869
    %872 = vset.pattern.permute.xlu0 4
    %873 = vperm.xlu0 %872, %v769
    %v874 = vpop.permute.xlu0 %873
    %v876 = vmul.f32 %v866, %v649
    %v877 = vmul.f32 %v870, %v649
    %v878 = vmul.f32 %v874, %v649
    %v879 = vadd.f32 %v861, %v876
    %v880 = vadd.f32 %v862, %v877
    %v881 = vadd.f32 %v863, %v878
    %882 = vset.pattern.permute.xlu0 5
    %883 = vperm.xlu0 %882, %v767
    %v884 = vpop.permute.xlu0 %883
    %886 = vset.pattern.permute.xlu0 5
    %887 = vperm.xlu0 %886, %v768
    %v888 = vpop.permute.xlu0 %887
    %890 = vset.pattern.permute.xlu0 5
    %891 = vperm.xlu0 %890, %v769
    %v892 = vpop.permute.xlu0 %891
    %v894 = vmul.f32 %v884, %v671
    %v895 = vmul.f32 %v888, %v671
    %v896 = vmul.f32 %v892, %v671
    %v897 = vadd.f32 %v879, %v894
    %v898 = vadd.f32 %v880, %v895
    %v899 = vadd.f32 %v881, %v896
    %900 = vset.pattern.permute.xlu0 6
    %901 = vperm.xlu0 %900, %v767
    %v902 = vpop.permute.xlu0 %901
    %904 = vset.pattern.permute.xlu0 6
    %905 = vperm.xlu0 %904, %v768
    %v906 = vpop.permute.xlu0 %905
    %908 = vset.pattern.permute.xlu0 6
    %909 = vperm.xlu0 %908, %v769
    %v910 = vpop.permute.xlu0 %909
    %v912 = vmul.f32 %v902, %v693
    %v913 = vmul.f32 %v906, %v693
    %v914 = vmul.f32 %v910, %v693
    %v915 = vadd.f32 %v897, %v912
    %v916 = vadd.f32 %v898, %v913
    %v917 = vadd.f32 %v899, %v914
    %918 = vset.pattern.permute.xlu0 7
    %919 = vperm.xlu0 %918, %v767
    %v920 = vpop.permute.xlu0 %919
    %922 = vset.pattern.permute.xlu0 7
    %923 = vperm.xlu0 %922, %v768
    %v924 = vpop.permute.xlu0 %923
    %926 = vset.pattern.permute.xlu0 7
    %927 = vperm.xlu0 %926, %v769
    %v928 = vpop.permute.xlu0 %927
    %v930 = vmul.f32 %v920, %v715
    %v931 = vmul.f32 %v924, %v715
    %v932 = vmul.f32 %v928, %v715
    %v933 = vadd.f32 %v915, %v930
    %v934 = vadd.f32 %v916, %v931
    %v935 = vadd.f32 %v917, %v932
    %936 = vset.pattern.permute.xlu0 8
    %937 = vperm.xlu0 %936, %v767
    %v938 = vpop.permute.xlu0 %937
    %940 = vset.pattern.permute.xlu0 8
    %941 = vperm.xlu0 %940, %v768
    %v942 = vpop.permute.xlu0 %941
    %944 = vset.pattern.permute.xlu0 8
    %945 = vperm.xlu0 %944, %v769
    %v946 = vpop.permute.xlu0 %945
    %v948 = vmul.f32 %v938, %v737
    %v949 = vmul.f32 %v942, %v737
    %v950 = vmul.f32 %v946, %v737
    %v951 = vadd.f32 %v933, %v948
    %v952 = vadd.f32 %v934, %v949
    %v953 = vadd.f32 %v935, %v950
    %954 = vset.pattern.permute.xlu0 9
    %955 = vperm.xlu0 %954, %v767
    %v956 = vpop.permute.xlu0 %955
    %958 = vset.pattern.permute.xlu0 9
    %959 = vperm.xlu0 %958, %v768
    %v960 = vpop.permute.xlu0 %959
    %962 = vset.pattern.permute.xlu0 9
    %963 = vperm.xlu0 %962, %v769
    %v964 = vpop.permute.xlu0 %963
    %v966 = vmul.f32 %v956, %v759
    %v967 = vmul.f32 %v960, %v759
    %v968 = vmul.f32 %v964, %v759
    %v969 = vadd.f32 %v951, %v966
    %v970 = vadd.f32 %v952, %v967
    %v971 = vadd.f32 %v953, %v968
    %s972 = scalar_lea.vmem %s6, 48
    %v973 = vld [vmem:[%s972] sm:$0xff]
    %v974 = vld [vmem:[%s972 + $0x8] sm:$0xff]
    %v975 = vld [vmem:[%s972 + $0x10] sm:$0x3f]
    %s976 = scalar_lea.vmem %s5, 48
    %v977 = vld [vmem:[%s976] sm:$0xff]
    %v978 = vld [vmem:[%s976 + $0x8] sm:$0xff]
    %v979 = vld [vmem:[%s976 + $0x10] sm:$0x3f]
    %981 = vset.pattern.permute.xlu0 0
    %982 = vperm.xlu0 %981, %v973
    %v983 = vpop.permute.xlu0 %982
    %986 = vset.pattern.permute.xlu0 0
    %987 = vperm.xlu0 %986, %v974
    %v988 = vpop.permute.xlu0 %987
    %991 = vset.pattern.permute.xlu0 0
    %992 = vperm.xlu0 %991, %v975
    %v993 = vpop.permute.xlu0 %992
    %v995 = vmul.f32 %v983, %v546
    %v996 = vmul.f32 %v988, %v546
    %v997 = vmul.f32 %v993, %v546
    %999 = vset.pattern.permute.xlu0 0
    %1000 = vperm.xlu0 %999, %v977
    %v1001 = vpop.permute.xlu0 %1000
    %1004 = vset.pattern.permute.xlu0 0
    %1005 = vperm.xlu0 %1004, %v978
    %v1006 = vpop.permute.xlu0 %1005
    %1009 = vset.pattern.permute.xlu0 0
    %1010 = vperm.xlu0 %1009, %v979
    %v1011 = vpop.permute.xlu0 %1010
    %v1013 = vadd.f32 %v1001, %v995
    %v1014 = vadd.f32 %v1006, %v996
    %v1015 = vadd.f32 %v1011, %v997
    %1016 = vset.pattern.permute.xlu0 1
    %1017 = vperm.xlu0 %1016, %v973
    %v1018 = vpop.permute.xlu0 %1017
    %1020 = vset.pattern.permute.xlu0 1
    %1021 = vperm.xlu0 %1020, %v974
    %v1022 = vpop.permute.xlu0 %1021
    %1024 = vset.pattern.permute.xlu0 1
    %1025 = vperm.xlu0 %1024, %v975
    %v1026 = vpop.permute.xlu0 %1025
    %v1028 = vmul.f32 %v1018, %v583
    %v1029 = vmul.f32 %v1022, %v583
    %v1030 = vmul.f32 %v1026, %v583
    %v1031 = vadd.f32 %v1013, %v1028
    %v1032 = vadd.f32 %v1014, %v1029
    %v1033 = vadd.f32 %v1015, %v1030
    %1034 = vset.pattern.permute.xlu0 2
    %1035 = vperm.xlu0 %1034, %v973
    %v1036 = vpop.permute.xlu0 %1035
    %1038 = vset.pattern.permute.xlu0 2
    %1039 = vperm.xlu0 %1038, %v974
    %v1040 = vpop.permute.xlu0 %1039
    %1042 = vset.pattern.permute.xlu0 2
    %1043 = vperm.xlu0 %1042, %v975
    %v1044 = vpop.permute.xlu0 %1043
    %v1046 = vmul.f32 %v1036, %v605
    %v1047 = vmul.f32 %v1040, %v605
    %v1048 = vmul.f32 %v1044, %v605
    %v1049 = vadd.f32 %v1031, %v1046
    %v1050 = vadd.f32 %v1032, %v1047
    %v1051 = vadd.f32 %v1033, %v1048
    %1052 = vset.pattern.permute.xlu0 3
    %1053 = vperm.xlu0 %1052, %v973
    %v1054 = vpop.permute.xlu0 %1053
    %1056 = vset.pattern.permute.xlu0 3
    %1057 = vperm.xlu0 %1056, %v974
    %v1058 = vpop.permute.xlu0 %1057
    %1060 = vset.pattern.permute.xlu0 3
    %1061 = vperm.xlu0 %1060, %v975
    %v1062 = vpop.permute.xlu0 %1061
    %v1064 = vmul.f32 %v1054, %v627
    %v1065 = vmul.f32 %v1058, %v627
    %v1066 = vmul.f32 %v1062, %v627
    %v1067 = vadd.f32 %v1049, %v1064
    %v1068 = vadd.f32 %v1050, %v1065
    %v1069 = vadd.f32 %v1051, %v1066
    %1070 = vset.pattern.permute.xlu0 4
    %1071 = vperm.xlu0 %1070, %v973
    %v1072 = vpop.permute.xlu0 %1071
    %1074 = vset.pattern.permute.xlu0 4
    %1075 = vperm.xlu0 %1074, %v974
    %v1076 = vpop.permute.xlu0 %1075
    %1078 = vset.pattern.permute.xlu0 4
    %1079 = vperm.xlu0 %1078, %v975
    %v1080 = vpop.permute.xlu0 %1079
    %v1082 = vmul.f32 %v1072, %v649
    %v1083 = vmul.f32 %v1076, %v649
    %v1084 = vmul.f32 %v1080, %v649
    %v1085 = vadd.f32 %v1067, %v1082
    %v1086 = vadd.f32 %v1068, %v1083
    %v1087 = vadd.f32 %v1069, %v1084
    %1088 = vset.pattern.permute.xlu0 5
    %1089 = vperm.xlu0 %1088, %v973
    %v1090 = vpop.permute.xlu0 %1089
    %1092 = vset.pattern.permute.xlu0 5
    %1093 = vperm.xlu0 %1092, %v974
    %v1094 = vpop.permute.xlu0 %1093
    %1096 = vset.pattern.permute.xlu0 5
    %1097 = vperm.xlu0 %1096, %v975
    %v1098 = vpop.permute.xlu0 %1097
    %v1100 = vmul.f32 %v1090, %v671
    %v1101 = vmul.f32 %v1094, %v671
    %v1102 = vmul.f32 %v1098, %v671
    %v1103 = vadd.f32 %v1085, %v1100
    %v1104 = vadd.f32 %v1086, %v1101
    %v1105 = vadd.f32 %v1087, %v1102
    %1106 = vset.pattern.permute.xlu0 6
    %1107 = vperm.xlu0 %1106, %v973
    %v1108 = vpop.permute.xlu0 %1107
    %1110 = vset.pattern.permute.xlu0 6
    %1111 = vperm.xlu0 %1110, %v974
    %v1112 = vpop.permute.xlu0 %1111
    %1114 = vset.pattern.permute.xlu0 6
    %1115 = vperm.xlu0 %1114, %v975
    %v1116 = vpop.permute.xlu0 %1115
    %v1118 = vmul.f32 %v1108, %v693
    %v1119 = vmul.f32 %v1112, %v693
    %v1120 = vmul.f32 %v1116, %v693
    %v1121 = vadd.f32 %v1103, %v1118
    %v1122 = vadd.f32 %v1104, %v1119
    %v1123 = vadd.f32 %v1105, %v1120
    %1124 = vset.pattern.permute.xlu0 7
    %1125 = vperm.xlu0 %1124, %v973
    %v1126 = vpop.permute.xlu0 %1125
    %1128 = vset.pattern.permute.xlu0 7
    %1129 = vperm.xlu0 %1128, %v974
    %v1130 = vpop.permute.xlu0 %1129
    %1132 = vset.pattern.permute.xlu0 7
    %1133 = vperm.xlu0 %1132, %v975
    %v1134 = vpop.permute.xlu0 %1133
    %v1136 = vmul.f32 %v1126, %v715
    %v1137 = vmul.f32 %v1130, %v715
    %v1138 = vmul.f32 %v1134, %v715
    %v1139 = vadd.f32 %v1121, %v1136
    %v1140 = vadd.f32 %v1122, %v1137
    %v1141 = vadd.f32 %v1123, %v1138
    %1142 = vset.pattern.permute.xlu0 8
    %1143 = vperm.xlu0 %1142, %v973
    %v1144 = vpop.permute.xlu0 %1143
    %1146 = vset.pattern.permute.xlu0 8
    %1147 = vperm.xlu0 %1146, %v974
    %v1148 = vpop.permute.xlu0 %1147
    %1150 = vset.pattern.permute.xlu0 8
    %1151 = vperm.xlu0 %1150, %v975
    %v1152 = vpop.permute.xlu0 %1151
    %v1154 = vmul.f32 %v1144, %v737
    %v1155 = vmul.f32 %v1148, %v737
    %v1156 = vmul.f32 %v1152, %v737
    %v1157 = vadd.f32 %v1139, %v1154
    %v1158 = vadd.f32 %v1140, %v1155
    %v1159 = vadd.f32 %v1141, %v1156
    %1160 = vset.pattern.permute.xlu0 9
    %1161 = vperm.xlu0 %1160, %v973
    %v1162 = vpop.permute.xlu0 %1161
    %1164 = vset.pattern.permute.xlu0 9
    %1165 = vperm.xlu0 %1164, %v974
    %v1166 = vpop.permute.xlu0 %1165
    %1168 = vset.pattern.permute.xlu0 9
    %1169 = vperm.xlu0 %1168, %v975
    %v1170 = vpop.permute.xlu0 %1169
    %v1172 = vmul.f32 %v1162, %v759
    %v1173 = vmul.f32 %v1166, %v759
    %v1174 = vmul.f32 %v1170, %v759
    %v1175 = vadd.f32 %v1157, %v1172
    %v1176 = vadd.f32 %v1158, %v1173
    %v1177 = vadd.f32 %v1159, %v1174
    %v1179 = vrot.slane %v71, 1
    %v1181 = vmul.f32 %v71, %v1179
    %v1183 = vrot.slane %v134, 1
    %v1185 = vmul.f32 %v74, %v1183
    %v1186 = vadd.f32 %v1181, %v1185
    %v1188 = vrot.slane %v149, 1
    %v1190 = vmul.f32 %v77, %v1188
    %v1191 = vadd.f32 %v1186, %v1190
    %v1193 = vrot.slane %v74, 1
    %v1195 = vmul.f32 %v71, %v1193
    %v1197 = vrot.slane %v137, 1
    %v1199 = vmul.f32 %v74, %v1197
    %v1200 = vadd.f32 %v1195, %v1199
    %v1202 = vrot.slane %v158, 1
    %v1204 = vmul.f32 %v77, %v1202
    %v1205 = vadd.f32 %v1200, %v1204
    %v1207 = vrot.slane %v77, 1
    %v1209 = vmul.f32 %v71, %v1207
    %v1211 = vrot.slane %v140, 1
    %v1213 = vmul.f32 %v74, %v1211
    %v1214 = vadd.f32 %v1209, %v1213
    %v1216 = vrot.slane %v167, 1
    %v1218 = vmul.f32 %v77, %v1216
    %v1219 = vadd.f32 %v1214, %v1218
    %v1220 = vmul.f32 %v134, %v1179
    %v1221 = vmul.f32 %v137, %v1183
    %v1222 = vadd.f32 %v1220, %v1221
    %v1223 = vmul.f32 %v140, %v1188
    %v1224 = vadd.f32 %v1222, %v1223
    %v1225 = vmul.f32 %v134, %v1193
    %v1226 = vmul.f32 %v137, %v1197
    %v1227 = vadd.f32 %v1225, %v1226
    %v1228 = vmul.f32 %v140, %v1202
    %v1229 = vadd.f32 %v1227, %v1228
    %v1230 = vmul.f32 %v134, %v1207
    %v1231 = vmul.f32 %v137, %v1211
    %v1232 = vadd.f32 %v1230, %v1231
    %v1233 = vmul.f32 %v140, %v1216
    %v1234 = vadd.f32 %v1232, %v1233
    %v1235 = vmul.f32 %v149, %v1179
    %v1236 = vmul.f32 %v158, %v1183
    %v1237 = vadd.f32 %v1235, %v1236
    %v1238 = vmul.f32 %v167, %v1188
    %v1239 = vadd.f32 %v1237, %v1238
    %v1240 = vmul.f32 %v149, %v1193
    %v1241 = vmul.f32 %v158, %v1197
    %v1242 = vadd.f32 %v1240, %v1241
    %v1243 = vmul.f32 %v167, %v1202
    %v1244 = vadd.f32 %v1242, %v1243
    %v1245 = vmul.f32 %v149, %v1207
    %v1246 = vmul.f32 %v158, %v1211
    %v1247 = vadd.f32 %v1245, %v1246
    %v1248 = vmul.f32 %v167, %v1216
    %v1249 = vadd.f32 %v1247, %v1248
    %v1251 = vrot.slane %v763, 7
    %v1253 = vsub.f32 %v763, %v1251
    %v1255 = vrot.slane %v969, 7
    %v1257 = vsub.f32 %v969, %v1255
    %v1259 = vrot.slane %v1175, 7
    %v1261 = vsub.f32 %v1175, %v1259
    %v1263 = vrot.slane %v1253, 1
    %v1265 = vmul.f32 %v71, %v1263
    %v1266 = vadd.f32 %v763, %v1265
    %v1268 = vrot.slane %v1257, 1
    %v1270 = vmul.f32 %v74, %v1268
    %v1271 = vadd.f32 %v1266, %v1270
    %v1273 = vrot.slane %v1261, 1
    %v1275 = vmul.f32 %v77, %v1273
    %v1276 = vadd.f32 %v1271, %v1275
    %v1277 = vmul.f32 %v134, %v1263
    %v1278 = vadd.f32 %v969, %v1277
    %v1279 = vmul.f32 %v137, %v1268
    %v1280 = vadd.f32 %v1278, %v1279
    %v1281 = vmul.f32 %v140, %v1273
    %v1282 = vadd.f32 %v1280, %v1281
    %v1283 = vmul.f32 %v149, %v1263
    %v1284 = vadd.f32 %v1175, %v1283
    %v1285 = vmul.f32 %v158, %v1268
    %v1286 = vadd.f32 %v1284, %v1285
    %v1287 = vmul.f32 %v167, %v1273
    %v1288 = vadd.f32 %v1286, %v1287
    %v1289 = vrot.slane %v71, 2
    %v1291 = vmul.f32 %v71, %v1289
    %v1292 = vrot.slane %v134, 2
    %v1294 = vmul.f32 %v74, %v1292
    %v1295 = vadd.f32 %v1291, %v1294
    %v1296 = vrot.slane %v149, 2
    %v1298 = vmul.f32 %v77, %v1296
    %v1299 = vadd.f32 %v1295, %v1298
    %v1300 = vrot.slane %v74, 2
    %v1302 = vmul.f32 %v71, %v1300
    %v1303 = vrot.slane %v137, 2
    %v1305 = vmul.f32 %v74, %v1303
    %v1306 = vadd.f32 %v1302, %v1305
    %v1307 = vrot.slane %v158, 2
    %v1309 = vmul.f32 %v77, %v1307
    %v1310 = vadd.f32 %v1306, %v1309
    %v1311 = vrot.slane %v77, 2
    %v1313 = vmul.f32 %v71, %v1311
    %v1314 = vrot.slane %v140, 2
    %v1316 = vmul.f32 %v74, %v1314
    %v1317 = vadd.f32 %v1313, %v1316
    %v1318 = vrot.slane %v167, 2
    %v1320 = vmul.f32 %v77, %v1318
    %v1321 = vadd.f32 %v1317, %v1320
    %v1322 = vmul.f32 %v134, %v1289
    %v1323 = vmul.f32 %v137, %v1292
    %v1324 = vadd.f32 %v1322, %v1323
    %v1325 = vmul.f32 %v140, %v1296
    %v1326 = vadd.f32 %v1324, %v1325
    %v1327 = vmul.f32 %v134, %v1300
    %v1328 = vmul.f32 %v137, %v1303
    %v1329 = vadd.f32 %v1327, %v1328
    %v1330 = vmul.f32 %v140, %v1307
    %v1331 = vadd.f32 %v1329, %v1330
    %v1332 = vmul.f32 %v134, %v1311
    %v1333 = vmul.f32 %v137, %v1314
    %v1334 = vadd.f32 %v1332, %v1333
    %v1335 = vmul.f32 %v140, %v1318
    %v1336 = vadd.f32 %v1334, %v1335
    %v1337 = vmul.f32 %v149, %v1289
    %v1338 = vmul.f32 %v158, %v1292
    %v1339 = vadd.f32 %v1337, %v1338
    %v1340 = vmul.f32 %v167, %v1296
    %v1341 = vadd.f32 %v1339, %v1340
    %v1342 = vmul.f32 %v149, %v1300
    %v1343 = vmul.f32 %v158, %v1303
    %v1344 = vadd.f32 %v1342, %v1343
    %v1345 = vmul.f32 %v167, %v1307
    %v1346 = vadd.f32 %v1344, %v1345
    %v1347 = vmul.f32 %v149, %v1311
    %v1348 = vmul.f32 %v158, %v1314
    %v1349 = vadd.f32 %v1347, %v1348
    %v1350 = vmul.f32 %v167, %v1318
    %v1351 = vadd.f32 %v1349, %v1350
    %v1352 = vrot.slane %v763, 6
    %v1354 = vsub.f32 %v763, %v1352
    %v1355 = vrot.slane %v969, 6
    %v1357 = vsub.f32 %v969, %v1355
    %v1358 = vrot.slane %v1175, 6
    %v1360 = vsub.f32 %v1175, %v1358
    %v1362 = vrot.slane %v1354, 2
    %v1364 = vmul.f32 %v71, %v1362
    %v1365 = vadd.f32 %v763, %v1364
    %v1367 = vrot.slane %v1357, 2
    %v1369 = vmul.f32 %v74, %v1367
    %v1370 = vadd.f32 %v1365, %v1369
    %v1372 = vrot.slane %v1360, 2
    %v1374 = vmul.f32 %v77, %v1372
    %v1375 = vadd.f32 %v1370, %v1374
    %v1376 = vmul.f32 %v134, %v1362
    %v1377 = vadd.f32 %v969, %v1376
    %v1378 = vmul.f32 %v137, %v1367
    %v1379 = vadd.f32 %v1377, %v1378
    %v1380 = vmul.f32 %v140, %v1372
    %v1381 = vadd.f32 %v1379, %v1380
    %v1382 = vmul.f32 %v149, %v1362
    %v1383 = vadd.f32 %v1175, %v1382
    %v1384 = vmul.f32 %v158, %v1367
    %v1385 = vadd.f32 %v1383, %v1384
    %v1386 = vmul.f32 %v167, %v1372
    %v1387 = vadd.f32 %v1385, %v1386
    %v1388 = vrot.slane %v71, 3
    %v1390 = vmul.f32 %v71, %v1388
    %v1391 = vrot.slane %v134, 3
    %v1393 = vmul.f32 %v74, %v1391
    %v1394 = vadd.f32 %v1390, %v1393
    %v1395 = vrot.slane %v149, 3
    %v1397 = vmul.f32 %v77, %v1395
    %v1398 = vadd.f32 %v1394, %v1397
    %v1399 = vrot.slane %v74, 3
    %v1401 = vmul.f32 %v71, %v1399
    %v1402 = vrot.slane %v137, 3
    %v1404 = vmul.f32 %v74, %v1402
    %v1405 = vadd.f32 %v1401, %v1404
    %v1406 = vrot.slane %v158, 3
    %v1408 = vmul.f32 %v77, %v1406
    %v1409 = vadd.f32 %v1405, %v1408
    %v1410 = vrot.slane %v77, 3
    %v1412 = vmul.f32 %v71, %v1410
    %v1413 = vrot.slane %v140, 3
    %v1415 = vmul.f32 %v74, %v1413
    %v1416 = vadd.f32 %v1412, %v1415
    %v1417 = vrot.slane %v167, 3
    %v1419 = vmul.f32 %v77, %v1417
    %v1420 = vadd.f32 %v1416, %v1419
    %v1421 = vmul.f32 %v134, %v1388
    %v1422 = vmul.f32 %v137, %v1391
    %v1423 = vadd.f32 %v1421, %v1422
    %v1424 = vmul.f32 %v140, %v1395
    %v1425 = vadd.f32 %v1423, %v1424
    %v1426 = vmul.f32 %v134, %v1399
    %v1427 = vmul.f32 %v137, %v1402
    %v1428 = vadd.f32 %v1426, %v1427
    %v1429 = vmul.f32 %v140, %v1406
    %v1430 = vadd.f32 %v1428, %v1429
    %v1431 = vmul.f32 %v134, %v1410
    %v1432 = vmul.f32 %v137, %v1413
    %v1433 = vadd.f32 %v1431, %v1432
    %v1434 = vmul.f32 %v140, %v1417
    %v1435 = vadd.f32 %v1433, %v1434
    %v1436 = vmul.f32 %v149, %v1388
    %v1437 = vmul.f32 %v158, %v1391
    %v1438 = vadd.f32 %v1436, %v1437
    %v1439 = vmul.f32 %v167, %v1395
    %v1440 = vadd.f32 %v1438, %v1439
    %v1441 = vmul.f32 %v149, %v1399
    %v1442 = vmul.f32 %v158, %v1402
    %v1443 = vadd.f32 %v1441, %v1442
    %v1444 = vmul.f32 %v167, %v1406
    %v1445 = vadd.f32 %v1443, %v1444
    %v1446 = vmul.f32 %v149, %v1410
    %v1447 = vmul.f32 %v158, %v1413
    %v1448 = vadd.f32 %v1446, %v1447
    %v1449 = vmul.f32 %v167, %v1417
    %v1450 = vadd.f32 %v1448, %v1449
    %v1451 = vrot.slane %v763, 5
    %v1453 = vsub.f32 %v763, %v1451
    %v1454 = vrot.slane %v969, 5
    %v1456 = vsub.f32 %v969, %v1454
    %v1457 = vrot.slane %v1175, 5
    %v1459 = vsub.f32 %v1175, %v1457
    %v1461 = vrot.slane %v1453, 3
    %v1463 = vmul.f32 %v71, %v1461
    %v1464 = vadd.f32 %v763, %v1463
    %v1466 = vrot.slane %v1456, 3
    %v1468 = vmul.f32 %v74, %v1466
    %v1469 = vadd.f32 %v1464, %v1468
    %v1471 = vrot.slane %v1459, 3
    %v1473 = vmul.f32 %v77, %v1471
    %v1474 = vadd.f32 %v1469, %v1473
    %v1475 = vmul.f32 %v134, %v1461
    %v1476 = vadd.f32 %v969, %v1475
    %v1477 = vmul.f32 %v137, %v1466
    %v1478 = vadd.f32 %v1476, %v1477
    %v1479 = vmul.f32 %v140, %v1471
    %v1480 = vadd.f32 %v1478, %v1479
    %v1481 = vmul.f32 %v149, %v1461
    %v1482 = vadd.f32 %v1175, %v1481
    %v1483 = vmul.f32 %v158, %v1466
    %v1484 = vadd.f32 %v1482, %v1483
    %v1485 = vmul.f32 %v167, %v1471
    %v1486 = vadd.f32 %v1484, %v1485
    %v1487 = vrot.slane %v71, 4
    %v1489 = vmul.f32 %v1191, %v1487
    %v1490 = vrot.slane %v134, 4
    %v1492 = vmul.f32 %v1205, %v1490
    %v1493 = vadd.f32 %v1489, %v1492
    %v1494 = vrot.slane %v149, 4
    %v1496 = vmul.f32 %v1219, %v1494
    %v1497 = vadd.f32 %v1493, %v1496
    %v1498 = vrot.slane %v74, 4
    %v1500 = vmul.f32 %v1191, %v1498
    %v1501 = vrot.slane %v137, 4
    %v1503 = vmul.f32 %v1205, %v1501
    %v1504 = vadd.f32 %v1500, %v1503
    %v1505 = vrot.slane %v158, 4
    %v1507 = vmul.f32 %v1219, %v1505
    %v1508 = vadd.f32 %v1504, %v1507
    %v1509 = vrot.slane %v77, 4
    %v1511 = vmul.f32 %v1191, %v1509
    %v1512 = vrot.slane %v140, 4
    %v1514 = vmul.f32 %v1205, %v1512
    %v1515 = vadd.f32 %v1511, %v1514
    %v1516 = vrot.slane %v167, 4
    %v1518 = vmul.f32 %v1219, %v1516
    %v1519 = vadd.f32 %v1515, %v1518
    %v1520 = vmul.f32 %v1224, %v1487
    %v1521 = vmul.f32 %v1229, %v1490
    %v1522 = vadd.f32 %v1520, %v1521
    %v1523 = vmul.f32 %v1234, %v1494
    %v1524 = vadd.f32 %v1522, %v1523
    %v1525 = vmul.f32 %v1224, %v1498
    %v1526 = vmul.f32 %v1229, %v1501
    %v1527 = vadd.f32 %v1525, %v1526
    %v1528 = vmul.f32 %v1234, %v1505
    %v1529 = vadd.f32 %v1527, %v1528
    %v1530 = vmul.f32 %v1224, %v1509
    %v1531 = vmul.f32 %v1229, %v1512
    %v1532 = vadd.f32 %v1530, %v1531
    %v1533 = vmul.f32 %v1234, %v1516
    %v1534 = vadd.f32 %v1532, %v1533
    %v1535 = vmul.f32 %v1239, %v1487
    %v1536 = vmul.f32 %v1244, %v1490
    %v1537 = vadd.f32 %v1535, %v1536
    %v1538 = vmul.f32 %v1249, %v1494
    %v1539 = vadd.f32 %v1537, %v1538
    %v1540 = vmul.f32 %v1239, %v1498
    %v1541 = vmul.f32 %v1244, %v1501
    %v1542 = vadd.f32 %v1540, %v1541
    %v1543 = vmul.f32 %v1249, %v1505
    %v1544 = vadd.f32 %v1542, %v1543
    %v1545 = vmul.f32 %v1239, %v1509
    %v1546 = vmul.f32 %v1244, %v1512
    %v1547 = vadd.f32 %v1545, %v1546
    %v1548 = vmul.f32 %v1249, %v1516
    %v1549 = vadd.f32 %v1547, %v1548
    %v1550 = vrot.slane %v1453, 4
    %v1552 = vmul.f32 %v1191, %v1550
    %v1553 = vadd.f32 %v1276, %v1552
    %v1554 = vrot.slane %v1456, 4
    %v1556 = vmul.f32 %v1205, %v1554
    %v1557 = vadd.f32 %v1553, %v1556
    %v1558 = vrot.slane %v1459, 4
    %v1560 = vmul.f32 %v1219, %v1558
    %v1561 = vadd.f32 %v1557, %v1560
    %v1562 = vmul.f32 %v1224, %v1550
    %v1563 = vadd.f32 %v1282, %v1562
    %v1564 = vmul.f32 %v1229, %v1554
    %v1565 = vadd.f32 %v1563, %v1564
    %v1566 = vmul.f32 %v1234, %v1558
    %v1567 = vadd.f32 %v1565, %v1566
    %v1568 = vmul.f32 %v1239, %v1550
    %v1569 = vadd.f32 %v1288, %v1568
    %v1570 = vmul.f32 %v1244, %v1554
    %v1571 = vadd.f32 %v1569, %v1570
    %v1572 = vmul.f32 %v1249, %v1558
    %v1573 = vadd.f32 %v1571, %v1572
    %v1574 = vrot.slane %v71, 5
    %v1576 = vmul.f32 %v1299, %v1574
    %v1577 = vrot.slane %v134, 5
    %v1579 = vmul.f32 %v1310, %v1577
    %v1580 = vadd.f32 %v1576, %v1579
    %v1581 = vrot.slane %v149, 5
    %v1583 = vmul.f32 %v1321, %v1581
    %v1584 = vadd.f32 %v1580, %v1583
    %v1585 = vrot.slane %v74, 5
    %v1587 = vmul.f32 %v1299, %v1585
    %v1588 = vrot.slane %v137, 5
    %v1590 = vmul.f32 %v1310, %v1588
    %v1591 = vadd.f32 %v1587, %v1590
    %v1592 = vrot.slane %v158, 5
    %v1594 = vmul.f32 %v1321, %v1592
    %v1595 = vadd.f32 %v1591, %v1594
    %v1596 = vrot.slane %v77, 5
    %v1598 = vmul.f32 %v1299, %v1596
    %v1599 = vrot.slane %v140, 5
    %v1601 = vmul.f32 %v1310, %v1599
    %v1602 = vadd.f32 %v1598, %v1601
    %v1603 = vrot.slane %v167, 5
    %v1605 = vmul.f32 %v1321, %v1603
    %v1606 = vadd.f32 %v1602, %v1605
    %v1607 = vmul.f32 %v1326, %v1574
    %v1608 = vmul.f32 %v1331, %v1577
    %v1609 = vadd.f32 %v1607, %v1608
    %v1610 = vmul.f32 %v1336, %v1581
    %v1611 = vadd.f32 %v1609, %v1610
    %v1612 = vmul.f32 %v1326, %v1585
    %v1613 = vmul.f32 %v1331, %v1588
    %v1614 = vadd.f32 %v1612, %v1613
    %v1615 = vmul.f32 %v1336, %v1592
    %v1616 = vadd.f32 %v1614, %v1615
    %v1617 = vmul.f32 %v1326, %v1596
    %v1618 = vmul.f32 %v1331, %v1599
    %v1619 = vadd.f32 %v1617, %v1618
    %v1620 = vmul.f32 %v1336, %v1603
    %v1621 = vadd.f32 %v1619, %v1620
    %v1622 = vmul.f32 %v1341, %v1574
    %v1623 = vmul.f32 %v1346, %v1577
    %v1624 = vadd.f32 %v1622, %v1623
    %v1625 = vmul.f32 %v1351, %v1581
    %v1626 = vadd.f32 %v1624, %v1625
    %v1627 = vmul.f32 %v1341, %v1585
    %v1628 = vmul.f32 %v1346, %v1588
    %v1629 = vadd.f32 %v1627, %v1628
    %v1630 = vmul.f32 %v1351, %v1592
    %v1631 = vadd.f32 %v1629, %v1630
    %v1632 = vmul.f32 %v1341, %v1596
    %v1633 = vmul.f32 %v1346, %v1599
    %v1634 = vadd.f32 %v1632, %v1633
    %v1635 = vmul.f32 %v1351, %v1603
    %v1636 = vadd.f32 %v1634, %v1635
    %v1637 = vrot.slane %v1453, 5
    %v1639 = vmul.f32 %v1299, %v1637
    %v1640 = vadd.f32 %v1375, %v1639
    %v1641 = vrot.slane %v1456, 5
    %v1643 = vmul.f32 %v1310, %v1641
    %v1644 = vadd.f32 %v1640, %v1643
    %v1645 = vrot.slane %v1459, 5
    %v1647 = vmul.f32 %v1321, %v1645
    %v1648 = vadd.f32 %v1644, %v1647
    %v1649 = vmul.f32 %v1326, %v1637
    %v1650 = vadd.f32 %v1381, %v1649
    %v1651 = vmul.f32 %v1331, %v1641
    %v1652 = vadd.f32 %v1650, %v1651
    %v1653 = vmul.f32 %v1336, %v1645
    %v1654 = vadd.f32 %v1652, %v1653
    %v1655 = vmul.f32 %v1341, %v1637
    %v1656 = vadd.f32 %v1387, %v1655
    %v1657 = vmul.f32 %v1346, %v1641
    %v1658 = vadd.f32 %v1656, %v1657
    %v1659 = vmul.f32 %v1351, %v1645
    %v1660 = vadd.f32 %v1658, %v1659
    %v1661 = vrot.slane %v71, 6
    %v1663 = vmul.f32 %v1398, %v1661
    %v1664 = vrot.slane %v134, 6
    %v1666 = vmul.f32 %v1409, %v1664
    %v1667 = vadd.f32 %v1663, %v1666
    %v1668 = vrot.slane %v149, 6
    %v1670 = vmul.f32 %v1420, %v1668
    %v1671 = vadd.f32 %v1667, %v1670
    %v1672 = vrot.slane %v74, 6
    %v1674 = vmul.f32 %v1398, %v1672
    %v1675 = vrot.slane %v137, 6
    %v1677 = vmul.f32 %v1409, %v1675
    %v1678 = vadd.f32 %v1674, %v1677
    %v1679 = vrot.slane %v158, 6
    %v1681 = vmul.f32 %v1420, %v1679
    %v1682 = vadd.f32 %v1678, %v1681
    %v1683 = vrot.slane %v77, 6
    %v1685 = vmul.f32 %v1398, %v1683
    %v1686 = vrot.slane %v140, 6
    %v1688 = vmul.f32 %v1409, %v1686
    %v1689 = vadd.f32 %v1685, %v1688
    %v1690 = vrot.slane %v167, 6
    %v1692 = vmul.f32 %v1420, %v1690
    %v1693 = vadd.f32 %v1689, %v1692
    %v1694 = vmul.f32 %v1425, %v1661
    %v1695 = vmul.f32 %v1430, %v1664
    %v1696 = vadd.f32 %v1694, %v1695
    %v1697 = vmul.f32 %v1435, %v1668
    %v1698 = vadd.f32 %v1696, %v1697
    %v1699 = vmul.f32 %v1425, %v1672
    %v1700 = vmul.f32 %v1430, %v1675
    %v1701 = vadd.f32 %v1699, %v1700
    %v1702 = vmul.f32 %v1435, %v1679
    %v1703 = vadd.f32 %v1701, %v1702
    %v1704 = vmul.f32 %v1425, %v1683
    %v1705 = vmul.f32 %v1430, %v1686
    %v1706 = vadd.f32 %v1704, %v1705
    %v1707 = vmul.f32 %v1435, %v1690
    %v1708 = vadd.f32 %v1706, %v1707
    %v1709 = vmul.f32 %v1440, %v1661
    %v1710 = vmul.f32 %v1445, %v1664
    %v1711 = vadd.f32 %v1709, %v1710
    %v1712 = vmul.f32 %v1450, %v1668
    %v1713 = vadd.f32 %v1711, %v1712
    %v1714 = vmul.f32 %v1440, %v1672
    %v1715 = vmul.f32 %v1445, %v1675
    %v1716 = vadd.f32 %v1714, %v1715
    %v1717 = vmul.f32 %v1450, %v1679
    %v1718 = vadd.f32 %v1716, %v1717
    %v1719 = vmul.f32 %v1440, %v1683
    %v1720 = vmul.f32 %v1445, %v1686
    %v1721 = vadd.f32 %v1719, %v1720
    %v1722 = vmul.f32 %v1450, %v1690
    %v1723 = vadd.f32 %v1721, %v1722
    %v1724 = vrot.slane %v1453, 6
    %v1726 = vmul.f32 %v1398, %v1724
    %v1727 = vadd.f32 %v1474, %v1726
    %v1728 = vrot.slane %v1456, 6
    %v1730 = vmul.f32 %v1409, %v1728
    %v1731 = vadd.f32 %v1727, %v1730
    %v1732 = vrot.slane %v1459, 6
    %v1734 = vmul.f32 %v1420, %v1732
    %v1735 = vadd.f32 %v1731, %v1734
    %v1736 = vmul.f32 %v1425, %v1724
    %v1737 = vadd.f32 %v1480, %v1736
    %v1738 = vmul.f32 %v1430, %v1728
    %v1739 = vadd.f32 %v1737, %v1738
    %v1740 = vmul.f32 %v1435, %v1732
    %v1741 = vadd.f32 %v1739, %v1740
    %v1742 = vmul.f32 %v1440, %v1724
    %v1743 = vadd.f32 %v1486, %v1742
    %v1744 = vmul.f32 %v1445, %v1728
    %v1745 = vadd.f32 %v1743, %v1744
    %v1746 = vmul.f32 %v1450, %v1732
    %v1747 = vadd.f32 %v1745, %v1746
    %v1748 = vrot.slane %v71, 7
    %v1750 = vmul.f32 %v1497, %v1748
    %v1751 = vrot.slane %v134, 7
    %v1753 = vmul.f32 %v1508, %v1751
    %v1754 = vadd.f32 %v1750, %v1753
    %v1755 = vrot.slane %v149, 7
    %v1757 = vmul.f32 %v1519, %v1755
    %v1758 = vadd.f32 %v1754, %v1757
    %v1759 = vrot.slane %v74, 7
    %v1761 = vmul.f32 %v1497, %v1759
    %v1762 = vrot.slane %v137, 7
    %v1764 = vmul.f32 %v1508, %v1762
    %v1765 = vadd.f32 %v1761, %v1764
    %v1766 = vrot.slane %v158, 7
    %v1768 = vmul.f32 %v1519, %v1766
    %v1769 = vadd.f32 %v1765, %v1768
    %v1770 = vrot.slane %v77, 7
    %v1772 = vmul.f32 %v1497, %v1770
    %v1773 = vrot.slane %v140, 7
    %v1775 = vmul.f32 %v1508, %v1773
    %v1776 = vadd.f32 %v1772, %v1775
    %v1777 = vrot.slane %v167, 7
    %v1779 = vmul.f32 %v1519, %v1777
    %v1780 = vadd.f32 %v1776, %v1779
    %v1781 = vmul.f32 %v1524, %v1748
    %v1782 = vmul.f32 %v1529, %v1751
    %v1783 = vadd.f32 %v1781, %v1782
    %v1784 = vmul.f32 %v1534, %v1755
    %v1785 = vadd.f32 %v1783, %v1784
    %v1786 = vmul.f32 %v1524, %v1759
    %v1787 = vmul.f32 %v1529, %v1762
    %v1788 = vadd.f32 %v1786, %v1787
    %v1789 = vmul.f32 %v1534, %v1766
    %v1790 = vadd.f32 %v1788, %v1789
    %v1791 = vmul.f32 %v1524, %v1770
    %v1792 = vmul.f32 %v1529, %v1773
    %v1793 = vadd.f32 %v1791, %v1792
    %v1794 = vmul.f32 %v1534, %v1777
    %v1795 = vadd.f32 %v1793, %v1794
    %v1796 = vmul.f32 %v1539, %v1748
    %v1797 = vmul.f32 %v1544, %v1751
    %v1798 = vadd.f32 %v1796, %v1797
    %v1799 = vmul.f32 %v1549, %v1755
    %v1800 = vadd.f32 %v1798, %v1799
    %v1801 = vmul.f32 %v1539, %v1759
    %v1802 = vmul.f32 %v1544, %v1762
    %v1803 = vadd.f32 %v1801, %v1802
    %v1804 = vmul.f32 %v1549, %v1766
    %v1805 = vadd.f32 %v1803, %v1804
    %v1806 = vmul.f32 %v1539, %v1770
    %v1807 = vmul.f32 %v1544, %v1773
    %v1808 = vadd.f32 %v1806, %v1807
    %v1809 = vmul.f32 %v1549, %v1777
    %v1810 = vadd.f32 %v1808, %v1809
    %v1811 = vrot.slane %v1453, 7
    %v1813 = vmul.f32 %v1497, %v1811
    %v1814 = vadd.f32 %v1561, %v1813
    %v1815 = vrot.slane %v1456, 7
    %v1817 = vmul.f32 %v1508, %v1815
    %v1818 = vadd.f32 %v1814, %v1817
    %v1819 = vrot.slane %v1459, 7
    %v1821 = vmul.f32 %v1519, %v1819
    %v1822 = vadd.f32 %v1818, %v1821
    %v1823 = vmul.f32 %v1524, %v1811
    %v1824 = vadd.f32 %v1567, %v1823
    %v1825 = vmul.f32 %v1529, %v1815
    %v1826 = vadd.f32 %v1824, %v1825
    %v1827 = vmul.f32 %v1534, %v1819
    %v1828 = vadd.f32 %v1826, %v1827
    %v1829 = vmul.f32 %v1539, %v1811
    %v1830 = vadd.f32 %v1573, %v1829
    %v1831 = vmul.f32 %v1544, %v1815
    %v1832 = vadd.f32 %v1830, %v1831
    %v1833 = vmul.f32 %v1549, %v1819
    %v1834 = vadd.f32 %v1832, %v1833
    %v1835 = vmul.f32 %v1584, %v72
    %v1836 = vmul.f32 %v1595, %v135
    %v1837 = vadd.f32 %v1835, %v1836
    %v1838 = vmul.f32 %v1606, %v150
    %v1839 = vadd.f32 %v1837, %v1838
    %v1840 = vmul.f32 %v1584, %v75
    %v1841 = vmul.f32 %v1595, %v138
    %v1842 = vadd.f32 %v1840, %v1841
    %v1843 = vmul.f32 %v1606, %v159
    %v1844 = vadd.f32 %v1842, %v1843
    %v1845 = vmul.f32 %v1584, %v78
    %v1846 = vmul.f32 %v1595, %v141
    %v1847 = vadd.f32 %v1845, %v1846
    %v1848 = vmul.f32 %v1606, %v168
    %v1849 = vadd.f32 %v1847, %v1848
    %v1850 = vmul.f32 %v1611, %v72
    %v1851 = vmul.f32 %v1616, %v135
    %v1852 = vadd.f32 %v1850, %v1851
    %v1853 = vmul.f32 %v1621, %v150
    %v1854 = vadd.f32 %v1852, %v1853
    %v1855 = vmul.f32 %v1611, %v75
    %v1856 = vmul.f32 %v1616, %v138
    %v1857 = vadd.f32 %v1855, %v1856
    %v1858 = vmul.f32 %v1621, %v159
    %v1859 = vadd.f32 %v1857, %v1858
    %v1860 = vmul.f32 %v1611, %v78
    %v1861 = vmul.f32 %v1616, %v141
    %v1862 = vadd.f32 %v1860, %v1861
    %v1863 = vmul.f32 %v1621, %v168
    %v1864 = vadd.f32 %v1862, %v1863
    %v1865 = vmul.f32 %v1626, %v72
    %v1866 = vmul.f32 %v1631, %v135
    %v1867 = vadd.f32 %v1865, %v1866
    %v1868 = vmul.f32 %v1636, %v150
    %v1869 = vadd.f32 %v1867, %v1868
    %v1870 = vmul.f32 %v1626, %v75
    %v1871 = vmul.f32 %v1631, %v138
    %v1872 = vadd.f32 %v1870, %v1871
    %v1873 = vmul.f32 %v1636, %v159
    %v1874 = vadd.f32 %v1872, %v1873
    %v1875 = vmul.f32 %v1626, %v78
    %v1876 = vmul.f32 %v1631, %v141
    %v1877 = vadd.f32 %v1875, %v1876
    %v1878 = vmul.f32 %v1636, %v168
    %v1879 = vadd.f32 %v1877, %v1878
    %v1880 = vsub.f32 %v764, %v1451
    %v1881 = vsub.f32 %v970, %v1454
    %v1882 = vsub.f32 %v1176, %v1457
    %v1883 = vmul.f32 %v1584, %v1880
    %v1884 = vadd.f32 %v1648, %v1883
    %v1885 = vmul.f32 %v1595, %v1881
    %v1886 = vadd.f32 %v1884, %v1885
    %v1887 = vmul.f32 %v1606, %v1882
    %v1888 = vadd.f32 %v1886, %v1887
    %v1889 = vmul.f32 %v1611, %v1880
    %v1890 = vadd.f32 %v1654, %v1889
    %v1891 = vmul.f32 %v1616, %v1881
    %v1892 = vadd.f32 %v1890, %v1891
    %v1893 = vmul.f32 %v1621, %v1882
    %v1894 = vadd.f32 %v1892, %v1893
    %v1895 = vmul.f32 %v1626, %v1880
    %v1896 = vadd.f32 %v1660, %v1895
    %v1897 = vmul.f32 %v1631, %v1881
    %v1898 = vadd.f32 %v1896, %v1897
    %v1899 = vmul.f32 %v1636, %v1882
    %v1900 = vadd.f32 %v1898, %v1899
    %v1902 = vrot.slane %v72, 1
    %v1904 = vmul.f32 %v1671, %v1902
    %v1906 = vrot.slane %v135, 1
    %v1908 = vmul.f32 %v1682, %v1906
    %v1909 = vadd.f32 %v1904, %v1908
    %v1911 = vrot.slane %v150, 1
    %v1913 = vmul.f32 %v1693, %v1911
    %v1914 = vadd.f32 %v1909, %v1913
    %v1916 = vrot.slane %v75, 1
    %v1918 = vmul.f32 %v1671, %v1916
    %v1920 = vrot.slane %v138, 1
    %v1922 = vmul.f32 %v1682, %v1920
    %v1923 = vadd.f32 %v1918, %v1922
    %v1925 = vrot.slane %v159, 1
    %v1927 = vmul.f32 %v1693, %v1925
    %v1928 = vadd.f32 %v1923, %v1927
    %v1930 = vrot.slane %v78, 1
    %v1932 = vmul.f32 %v1671, %v1930
    %v1934 = vrot.slane %v141, 1
    %v1936 = vmul.f32 %v1682, %v1934
    %v1937 = vadd.f32 %v1932, %v1936
    %v1939 = vrot.slane %v168, 1
    %v1941 = vmul.f32 %v1693, %v1939
    %v1942 = vadd.f32 %v1937, %v1941
    %v1943 = vmul.f32 %v1698, %v1902
    %v1944 = vmul.f32 %v1703, %v1906
    %v1945 = vadd.f32 %v1943, %v1944
    %v1946 = vmul.f32 %v1708, %v1911
    %v1947 = vadd.f32 %v1945, %v1946
    %v1948 = vmul.f32 %v1698, %v1916
    %v1949 = vmul.f32 %v1703, %v1920
    %v1950 = vadd.f32 %v1948, %v1949
    %v1951 = vmul.f32 %v1708, %v1925
    %v1952 = vadd.f32 %v1950, %v1951
    %v1953 = vmul.f32 %v1698, %v1930
    %v1954 = vmul.f32 %v1703, %v1934
    %v1955 = vadd.f32 %v1953, %v1954
    %v1956 = vmul.f32 %v1708, %v1939
    %v1957 = vadd.f32 %v1955, %v1956
    %v1958 = vmul.f32 %v1713, %v1902
    %v1959 = vmul.f32 %v1718, %v1906
    %v1960 = vadd.f32 %v1958, %v1959
    %v1961 = vmul.f32 %v1723, %v1911
    %v1962 = vadd.f32 %v1960, %v1961
    %v1963 = vmul.f32 %v1713, %v1916
    %v1964 = vmul.f32 %v1718, %v1920
    %v1965 = vadd.f32 %v1963, %v1964
    %v1966 = vmul.f32 %v1723, %v1925
    %v1967 = vadd.f32 %v1965, %v1966
    %v1968 = vmul.f32 %v1713, %v1930
    %v1969 = vmul.f32 %v1718, %v1934
    %v1970 = vadd.f32 %v1968, %v1969
    %v1971 = vmul.f32 %v1723, %v1939
    %v1972 = vadd.f32 %v1970, %v1971
    %v1974 = vrot.slane %v1880, 1
    %v1976 = vmul.f32 %v1671, %v1974
    %v1977 = vadd.f32 %v1735, %v1976
    %v1979 = vrot.slane %v1881, 1
    %v1981 = vmul.f32 %v1682, %v1979
    %v1982 = vadd.f32 %v1977, %v1981
    %v1984 = vrot.slane %v1882, 1
    %v1986 = vmul.f32 %v1693, %v1984
    %v1987 = vadd.f32 %v1982, %v1986
    %v1988 = vmul.f32 %v1698, %v1974
    %v1989 = vadd.f32 %v1741, %v1988
    %v1990 = vmul.f32 %v1703, %v1979
    %v1991 = vadd.f32 %v1989, %v1990
    %v1992 = vmul.f32 %v1708, %v1984
    %v1993 = vadd.f32 %v1991, %v1992
    %v1994 = vmul.f32 %v1713, %v1974
    %v1995 = vadd.f32 %v1747, %v1994
    %v1996 = vmul.f32 %v1718, %v1979
    %v1997 = vadd.f32 %v1995, %v1996
    %v1998 = vmul.f32 %v1723, %v1984
    %v1999 = vadd.f32 %v1997, %v1998
    %v2000 = vrot.slane %v1880, 2
    %v2002 = vmul.f32 %v1758, %v2000
    %v2003 = vadd.f32 %v1822, %v2002
    %v2004 = vrot.slane %v1881, 2
    %v2006 = vmul.f32 %v1769, %v2004
    %v2007 = vadd.f32 %v2003, %v2006
    %v2008 = vrot.slane %v1882, 2
    %v2010 = vmul.f32 %v1780, %v2008
    %v2011 = vadd.f32 %v2007, %v2010
    %v2012 = vmul.f32 %v1785, %v2000
    %v2013 = vadd.f32 %v1828, %v2012
    %v2014 = vmul.f32 %v1790, %v2004
    %v2015 = vadd.f32 %v2013, %v2014
    %v2016 = vmul.f32 %v1795, %v2008
    %v2017 = vadd.f32 %v2015, %v2016
    %v2018 = vmul.f32 %v1800, %v2000
    %v2019 = vadd.f32 %v1834, %v2018
    %v2020 = vmul.f32 %v1805, %v2004
    %v2021 = vadd.f32 %v2019, %v2020
    %v2022 = vmul.f32 %v1810, %v2008
    %v2023 = vadd.f32 %v2021, %v2022
    %v2025 = vrot.slane %v764, 5
    %v2027 = vsub.f32 %v764, %v2025
    %v2029 = vrot.slane %v970, 5
    %v2031 = vsub.f32 %v970, %v2029
    %v2033 = vrot.slane %v1176, 5
    %v2035 = vsub.f32 %v1176, %v2033
    %v2037 = vrot.slane %v2027, 3
    %v2039 = vmul.f32 %v1839, %v2037
    %v2040 = vadd.f32 %v1888, %v2039
    %v2042 = vrot.slane %v2031, 3
    %v2044 = vmul.f32 %v1844, %v2042
    %v2045 = vadd.f32 %v2040, %v2044
    %v2047 = vrot.slane %v2035, 3
    %v2049 = vmul.f32 %v1849, %v2047
    %v2050 = vadd.f32 %v2045, %v2049
    %v2051 = vmul.f32 %v1854, %v2037
    %v2052 = vadd.f32 %v1894, %v2051
    %v2053 = vmul.f32 %v1859, %v2042
    %v2054 = vadd.f32 %v2052, %v2053
    %v2055 = vmul.f32 %v1864, %v2047
    %v2056 = vadd.f32 %v2054, %v2055
    %v2057 = vmul.f32 %v1869, %v2037
    %v2058 = vadd.f32 %v1900, %v2057
    %v2059 = vmul.f32 %v1874, %v2042
    %v2060 = vadd.f32 %v2058, %v2059
    %v2061 = vmul.f32 %v1879, %v2047
    %v2062 = vadd.f32 %v2060, %v2061
    %v2063 = vrot.slane %v72, 4
    %v2065 = vmul.f32 %v1914, %v2063
    %v2066 = vrot.slane %v135, 4
    %v2068 = vmul.f32 %v1928, %v2066
    %v2069 = vadd.f32 %v2065, %v2068
    %v2070 = vrot.slane %v150, 4
    %v2072 = vmul.f32 %v1942, %v2070
    %v2073 = vadd.f32 %v2069, %v2072
    %v2074 = vrot.slane %v75, 4
    %v2076 = vmul.f32 %v1914, %v2074
    %v2077 = vrot.slane %v138, 4
    %v2079 = vmul.f32 %v1928, %v2077
    %v2080 = vadd.f32 %v2076, %v2079
    %v2081 = vrot.slane %v159, 4
    %v2083 = vmul.f32 %v1942, %v2081
    %v2084 = vadd.f32 %v2080, %v2083
    %v2085 = vrot.slane %v78, 4
    %v2087 = vmul.f32 %v1914, %v2085
    %v2088 = vrot.slane %v141, 4
    %v2090 = vmul.f32 %v1928, %v2088
    %v2091 = vadd.f32 %v2087, %v2090
    %v2092 = vrot.slane %v168, 4
    %v2094 = vmul.f32 %v1942, %v2092
    %v2095 = vadd.f32 %v2091, %v2094
    %v2096 = vmul.f32 %v1947, %v2063
    %v2097 = vmul.f32 %v1952, %v2066
    %v2098 = vadd.f32 %v2096, %v2097
    %v2099 = vmul.f32 %v1957, %v2070
    %v2100 = vadd.f32 %v2098, %v2099
    %v2101 = vmul.f32 %v1947, %v2074
    %v2102 = vmul.f32 %v1952, %v2077
    %v2103 = vadd.f32 %v2101, %v2102
    %v2104 = vmul.f32 %v1957, %v2081
    %v2105 = vadd.f32 %v2103, %v2104
    %v2106 = vmul.f32 %v1947, %v2085
    %v2107 = vmul.f32 %v1952, %v2088
    %v2108 = vadd.f32 %v2106, %v2107
    %v2109 = vmul.f32 %v1957, %v2092
    %v2110 = vadd.f32 %v2108, %v2109
    %v2111 = vmul.f32 %v1962, %v2063
    %v2112 = vmul.f32 %v1967, %v2066
    %v2113 = vadd.f32 %v2111, %v2112
    %v2114 = vmul.f32 %v1972, %v2070
    %v2115 = vadd.f32 %v2113, %v2114
    %v2116 = vmul.f32 %v1962, %v2074
    %v2117 = vmul.f32 %v1967, %v2077
    %v2118 = vadd.f32 %v2116, %v2117
    %v2119 = vmul.f32 %v1972, %v2081
    %v2120 = vadd.f32 %v2118, %v2119
    %v2121 = vmul.f32 %v1962, %v2085
    %v2122 = vmul.f32 %v1967, %v2088
    %v2123 = vadd.f32 %v2121, %v2122
    %v2124 = vmul.f32 %v1972, %v2092
    %v2125 = vadd.f32 %v2123, %v2124
    %v2126 = vrot.slane %v2027, 4
    %v2128 = vmul.f32 %v1914, %v2126
    %v2129 = vadd.f32 %v1987, %v2128
    %v2130 = vrot.slane %v2031, 4
    %v2132 = vmul.f32 %v1928, %v2130
    %v2133 = vadd.f32 %v2129, %v2132
    %v2134 = vrot.slane %v2035, 4
    %v2136 = vmul.f32 %v1942, %v2134
    %v2137 = vadd.f32 %v2133, %v2136
    %v2138 = vmul.f32 %v1947, %v2126
    %v2139 = vadd.f32 %v1993, %v2138
    %v2140 = vmul.f32 %v1952, %v2130
    %v2141 = vadd.f32 %v2139, %v2140
    %v2142 = vmul.f32 %v1957, %v2134
    %v2143 = vadd.f32 %v2141, %v2142
    %v2144 = vmul.f32 %v1962, %v2126
    %v2145 = vadd.f32 %v1999, %v2144
    %v2146 = vmul.f32 %v1967, %v2130
    %v2147 = vadd.f32 %v2145, %v2146
    %v2148 = vmul.f32 %v1972, %v2134
    %v2149 = vadd.f32 %v2147, %v2148
    %v2150 = vrot.slane %v72, 5
    %v2152 = vmul.f32 %v1914, %v2150
    %v2153 = vrot.slane %v135, 5
    %v2155 = vmul.f32 %v1928, %v2153
    %v2156 = vadd.f32 %v2152, %v2155
    %v2157 = vrot.slane %v150, 5
    %v2159 = vmul.f32 %v1942, %v2157
    %v2160 = vadd.f32 %v2156, %v2159
    %v2161 = vrot.slane %v75, 5
    %v2163 = vmul.f32 %v1914, %v2161
    %v2164 = vrot.slane %v138, 5
    %v2166 = vmul.f32 %v1928, %v2164
    %v2167 = vadd.f32 %v2163, %v2166
    %v2168 = vrot.slane %v159, 5
    %v2170 = vmul.f32 %v1942, %v2168
    %v2171 = vadd.f32 %v2167, %v2170
    %v2172 = vrot.slane %v78, 5
    %v2174 = vmul.f32 %v1914, %v2172
    %v2175 = vrot.slane %v141, 5
    %v2177 = vmul.f32 %v1928, %v2175
    %v2178 = vadd.f32 %v2174, %v2177
    %v2179 = vrot.slane %v168, 5
    %v2181 = vmul.f32 %v1942, %v2179
    %v2182 = vadd.f32 %v2178, %v2181
    %v2183 = vmul.f32 %v1947, %v2150
    %v2184 = vmul.f32 %v1952, %v2153
    %v2185 = vadd.f32 %v2183, %v2184
    %v2186 = vmul.f32 %v1957, %v2157
    %v2187 = vadd.f32 %v2185, %v2186
    %v2188 = vmul.f32 %v1947, %v2161
    %v2189 = vmul.f32 %v1952, %v2164
    %v2190 = vadd.f32 %v2188, %v2189
    %v2191 = vmul.f32 %v1957, %v2168
    %v2192 = vadd.f32 %v2190, %v2191
    %v2193 = vmul.f32 %v1947, %v2172
    %v2194 = vmul.f32 %v1952, %v2175
    %v2195 = vadd.f32 %v2193, %v2194
    %v2196 = vmul.f32 %v1957, %v2179
    %v2197 = vadd.f32 %v2195, %v2196
    %v2198 = vmul.f32 %v1962, %v2150
    %v2199 = vmul.f32 %v1967, %v2153
    %v2200 = vadd.f32 %v2198, %v2199
    %v2201 = vmul.f32 %v1972, %v2157
    %v2202 = vadd.f32 %v2200, %v2201
    %v2203 = vmul.f32 %v1962, %v2161
    %v2204 = vmul.f32 %v1967, %v2164
    %v2205 = vadd.f32 %v2203, %v2204
    %v2206 = vmul.f32 %v1972, %v2168
    %v2207 = vadd.f32 %v2205, %v2206
    %v2208 = vmul.f32 %v1962, %v2172
    %v2209 = vmul.f32 %v1967, %v2175
    %v2210 = vadd.f32 %v2208, %v2209
    %v2211 = vmul.f32 %v1972, %v2179
    %v2212 = vadd.f32 %v2210, %v2211
    %v2213 = vrot.slane %v764, 4
    %v2215 = vsub.f32 %v764, %v2213
    %v2216 = vrot.slane %v970, 4
    %v2218 = vsub.f32 %v970, %v2216
    %v2219 = vrot.slane %v1176, 4
    %v2221 = vsub.f32 %v1176, %v2219
    %v2223 = vrot.slane %v2215, 5
    %v2225 = vmul.f32 %v1914, %v2223
    %v2226 = vadd.f32 %v1987, %v2225
    %v2228 = vrot.slane %v2218, 5
    %v2230 = vmul.f32 %v1928, %v2228
    %v2231 = vadd.f32 %v2226, %v2230
    %v2233 = vrot.slane %v2221, 5
    %v2235 = vmul.f32 %v1942, %v2233
    %v2236 = vadd.f32 %v2231, %v2235
    %v2237 = vmul.f32 %v1947, %v2223
    %v2238 = vadd.f32 %v1993, %v2237
    %v2239 = vmul.f32 %v1952, %v2228
    %v2240 = vadd.f32 %v2238, %v2239
    %v2241 = vmul.f32 %v1957, %v2233
    %v2242 = vadd.f32 %v2240, %v2241
    %v2243 = vmul.f32 %v1962, %v2223
    %v2244 = vadd.f32 %v1999, %v2243
    %v2245 = vmul.f32 %v1967, %v2228
    %v2246 = vadd.f32 %v2244, %v2245
    %v2247 = vmul.f32 %v1972, %v2233
    %v2248 = vadd.f32 %v2246, %v2247
    %v2249 = vrot.slane %v72, 6
    %v2251 = vmul.f32 %v1914, %v2249
    %v2252 = vrot.slane %v135, 6
    %v2254 = vmul.f32 %v1928, %v2252
    %v2255 = vadd.f32 %v2251, %v2254
    %v2256 = vrot.slane %v150, 6
    %v2258 = vmul.f32 %v1942, %v2256
    %v2259 = vadd.f32 %v2255, %v2258
    %v2260 = vrot.slane %v75, 6
    %v2262 = vmul.f32 %v1914, %v2260
    %v2263 = vrot.slane %v138, 6
    %v2265 = vmul.f32 %v1928, %v2263
    %v2266 = vadd.f32 %v2262, %v2265
    %v2267 = vrot.slane %v159, 6
    %v2269 = vmul.f32 %v1942, %v2267
    %v2270 = vadd.f32 %v2266, %v2269
    %v2271 = vrot.slane %v78, 6
    %v2273 = vmul.f32 %v1914, %v2271
    %v2274 = vrot.slane %v141, 6
    %v2276 = vmul.f32 %v1928, %v2274
    %v2277 = vadd.f32 %v2273, %v2276
    %v2278 = vrot.slane %v168, 6
    %v2280 = vmul.f32 %v1942, %v2278
    %v2281 = vadd.f32 %v2277, %v2280
    %v2282 = vmul.f32 %v1947, %v2249
    %v2283 = vmul.f32 %v1952, %v2252
    %v2284 = vadd.f32 %v2282, %v2283
    %v2285 = vmul.f32 %v1957, %v2256
    %v2286 = vadd.f32 %v2284, %v2285
    %v2287 = vmul.f32 %v1947, %v2260
    %v2288 = vmul.f32 %v1952, %v2263
    %v2289 = vadd.f32 %v2287, %v2288
    %v2290 = vmul.f32 %v1957, %v2267
    %v2291 = vadd.f32 %v2289, %v2290
    %v2292 = vmul.f32 %v1947, %v2271
    %v2293 = vmul.f32 %v1952, %v2274
    %v2294 = vadd.f32 %v2292, %v2293
    %v2295 = vmul.f32 %v1957, %v2278
    %v2296 = vadd.f32 %v2294, %v2295
    %v2297 = vmul.f32 %v1962, %v2249
    %v2298 = vmul.f32 %v1967, %v2252
    %v2299 = vadd.f32 %v2297, %v2298
    %v2300 = vmul.f32 %v1972, %v2256
    %v2301 = vadd.f32 %v2299, %v2300
    %v2302 = vmul.f32 %v1962, %v2260
    %v2303 = vmul.f32 %v1967, %v2263
    %v2304 = vadd.f32 %v2302, %v2303
    %v2305 = vmul.f32 %v1972, %v2267
    %v2306 = vadd.f32 %v2304, %v2305
    %v2307 = vmul.f32 %v1962, %v2271
    %v2308 = vmul.f32 %v1967, %v2274
    %v2309 = vadd.f32 %v2307, %v2308
    %v2310 = vmul.f32 %v1972, %v2278
    %v2311 = vadd.f32 %v2309, %v2310
    %v2312 = vrot.slane %v764, 3
    %v2314 = vsub.f32 %v764, %v2312
    %v2315 = vrot.slane %v970, 3
    %v2317 = vsub.f32 %v970, %v2315
    %v2318 = vrot.slane %v1176, 3
    %v2320 = vsub.f32 %v1176, %v2318
    %v2322 = vrot.slane %v2314, 6
    %v2324 = vmul.f32 %v1914, %v2322
    %v2325 = vadd.f32 %v1987, %v2324
    %v2327 = vrot.slane %v2317, 6
    %v2329 = vmul.f32 %v1928, %v2327
    %v2330 = vadd.f32 %v2325, %v2329
    %v2332 = vrot.slane %v2320, 6
    %v2334 = vmul.f32 %v1942, %v2332
    %v2335 = vadd.f32 %v2330, %v2334
    %v2336 = vmul.f32 %v1947, %v2322
    %v2337 = vadd.f32 %v1993, %v2336
    %v2338 = vmul.f32 %v1952, %v2327
    %v2339 = vadd.f32 %v2337, %v2338
    %v2340 = vmul.f32 %v1957, %v2332
    %v2341 = vadd.f32 %v2339, %v2340
    %v2342 = vmul.f32 %v1962, %v2322
    %v2343 = vadd.f32 %v1999, %v2342
    %v2344 = vmul.f32 %v1967, %v2327
    %v2345 = vadd.f32 %v2343, %v2344
    %v2346 = vmul.f32 %v1972, %v2332
    %v2347 = vadd.f32 %v2345, %v2346
    %v2348 = vrot.slane %v2027, 7
    %v2350 = vmul.f32 %v2073, %v2348
    %v2351 = vadd.f32 %v2137, %v2350
    %v2352 = vrot.slane %v2031, 7
    %v2354 = vmul.f32 %v2084, %v2352
    %v2355 = vadd.f32 %v2351, %v2354
    %v2356 = vrot.slane %v2035, 7
    %v2358 = vmul.f32 %v2095, %v2356
    %v2359 = vadd.f32 %v2355, %v2358
    %v2360 = vmul.f32 %v2100, %v2348
    %v2361 = vadd.f32 %v2143, %v2360
    %v2362 = vmul.f32 %v2105, %v2352
    %v2363 = vadd.f32 %v2361, %v2362
    %v2364 = vmul.f32 %v2110, %v2356
    %v2365 = vadd.f32 %v2363, %v2364
    %v2366 = vmul.f32 %v2115, %v2348
    %v2367 = vadd.f32 %v2149, %v2366
    %v2368 = vmul.f32 %v2120, %v2352
    %v2369 = vadd.f32 %v2367, %v2368
    %v2370 = vmul.f32 %v2125, %v2356
    %v2371 = vadd.f32 %v2369, %v2370
    %v2372 = vmul.f32 %v2160, %v73
    %v2373 = vmul.f32 %v2171, %v136
    %v2374 = vadd.f32 %v2372, %v2373
    %v2375 = vmul.f32 %v2182, %v151
    %v2376 = vadd.f32 %v2374, %v2375
    %v2377 = vmul.f32 %v2160, %v76
    %v2378 = vmul.f32 %v2171, %v139
    %v2379 = vadd.f32 %v2377, %v2378
    %v2380 = vmul.f32 %v2182, %v160
    %v2381 = vadd.f32 %v2379, %v2380
    %v2382 = vmul.f32 %v2160, %v79
    %v2383 = vmul.f32 %v2171, %v142
    %v2384 = vadd.f32 %v2382, %v2383
    %v2385 = vmul.f32 %v2182, %v169
    %v2386 = vadd.f32 %v2384, %v2385
    %v2387 = vmul.f32 %v2187, %v73
    %v2388 = vmul.f32 %v2192, %v136
    %v2389 = vadd.f32 %v2387, %v2388
    %v2390 = vmul.f32 %v2197, %v151
    %v2391 = vadd.f32 %v2389, %v2390
    %v2392 = vmul.f32 %v2187, %v76
    %v2393 = vmul.f32 %v2192, %v139
    %v2394 = vadd.f32 %v2392, %v2393
    %v2395 = vmul.f32 %v2197, %v160
    %v2396 = vadd.f32 %v2394, %v2395
    %v2397 = vmul.f32 %v2187, %v79
    %v2398 = vmul.f32 %v2192, %v142
    %v2399 = vadd.f32 %v2397, %v2398
    %v2400 = vmul.f32 %v2197, %v169
    %v2401 = vadd.f32 %v2399, %v2400
    %v2402 = vmul.f32 %v2202, %v73
    %v2403 = vmul.f32 %v2207, %v136
    %v2404 = vadd.f32 %v2402, %v2403
    %v2405 = vmul.f32 %v2212, %v151
    %v2406 = vadd.f32 %v2404, %v2405
    %v2407 = vmul.f32 %v2202, %v76
    %v2408 = vmul.f32 %v2207, %v139
    %v2409 = vadd.f32 %v2407, %v2408
    %v2410 = vmul.f32 %v2212, %v160
    %v2411 = vadd.f32 %v2409, %v2410
    %v2412 = vmul.f32 %v2202, %v79
    %v2413 = vmul.f32 %v2207, %v142
    %v2414 = vadd.f32 %v2412, %v2413
    %v2415 = vmul.f32 %v2212, %v169
    %v2416 = vadd.f32 %v2414, %v2415
    %v2417 = vsub.f32 %v765, %v2025
    %v2418 = vsub.f32 %v971, %v2029
    %v2419 = vsub.f32 %v1177, %v2033
    %v2420 = vmul.f32 %v2160, %v2417
    %v2421 = vadd.f32 %v2236, %v2420
    %v2422 = vmul.f32 %v2171, %v2418
    %v2423 = vadd.f32 %v2421, %v2422
    %v2424 = vmul.f32 %v2182, %v2419
    %v2425 = vadd.f32 %v2423, %v2424
    %v2426 = vmul.f32 %v2187, %v2417
    %v2427 = vadd.f32 %v2242, %v2426
    %v2428 = vmul.f32 %v2192, %v2418
    %v2429 = vadd.f32 %v2427, %v2428
    %v2430 = vmul.f32 %v2197, %v2419
    %v2431 = vadd.f32 %v2429, %v2430
    %v2432 = vmul.f32 %v2202, %v2417
    %v2433 = vadd.f32 %v2248, %v2432
    %v2434 = vmul.f32 %v2207, %v2418
    %v2435 = vadd.f32 %v2433, %v2434
    %v2436 = vmul.f32 %v2212, %v2419
    %v2437 = vadd.f32 %v2435, %v2436
    %v2439 = vrot.slane %v73, 1
    %v2441 = vmul.f32 %v2259, %v2439
    %v2443 = vrot.slane %v136, 1
    %v2445 = vmul.f32 %v2270, %v2443
    %v2446 = vadd.f32 %v2441, %v2445
    %v2448 = vrot.slane %v151, 1
    %v2450 = vmul.f32 %v2281, %v2448
    %v2451 = vadd.f32 %v2446, %v2450
    %v2453 = vrot.slane %v76, 1
    %v2455 = vmul.f32 %v2259, %v2453
    %v2457 = vrot.slane %v139, 1
    %v2459 = vmul.f32 %v2270, %v2457
    %v2460 = vadd.f32 %v2455, %v2459
    %v2462 = vrot.slane %v160, 1
    %v2464 = vmul.f32 %v2281, %v2462
    %v2465 = vadd.f32 %v2460, %v2464
    %v2467 = vrot.slane %v79, 1
    %v2469 = vmul.f32 %v2259, %v2467
    %v2471 = vrot.slane %v142, 1
    %v2473 = vmul.f32 %v2270, %v2471
    %v2474 = vadd.f32 %v2469, %v2473
    %v2476 = vrot.slane %v169, 1
    %v2478 = vmul.f32 %v2281, %v2476
    %v2479 = vadd.f32 %v2474, %v2478
    %v2480 = vmul.f32 %v2286, %v2439
    %v2481 = vmul.f32 %v2291, %v2443
    %v2482 = vadd.f32 %v2480, %v2481
    %v2483 = vmul.f32 %v2296, %v2448
    %v2484 = vadd.f32 %v2482, %v2483
    %v2485 = vmul.f32 %v2286, %v2453
    %v2486 = vmul.f32 %v2291, %v2457
    %v2487 = vadd.f32 %v2485, %v2486
    %v2488 = vmul.f32 %v2296, %v2462
    %v2489 = vadd.f32 %v2487, %v2488
    %v2490 = vmul.f32 %v2286, %v2467
    %v2491 = vmul.f32 %v2291, %v2471
    %v2492 = vadd.f32 %v2490, %v2491
    %v2493 = vmul.f32 %v2296, %v2476
    %v2494 = vadd.f32 %v2492, %v2493
    %v2495 = vmul.f32 %v2301, %v2439
    %v2496 = vmul.f32 %v2306, %v2443
    %v2497 = vadd.f32 %v2495, %v2496
    %v2498 = vmul.f32 %v2311, %v2448
    %v2499 = vadd.f32 %v2497, %v2498
    %v2500 = vmul.f32 %v2301, %v2453
    %v2501 = vmul.f32 %v2306, %v2457
    %v2502 = vadd.f32 %v2500, %v2501
    %v2503 = vmul.f32 %v2311, %v2462
    %v2504 = vadd.f32 %v2502, %v2503
    %v2505 = vmul.f32 %v2301, %v2467
    %v2506 = vmul.f32 %v2306, %v2471
    %v2507 = vadd.f32 %v2505, %v2506
    %v2508 = vmul.f32 %v2311, %v2476
    %v2509 = vadd.f32 %v2507, %v2508
    %v2511 = vrot.slane %v2417, 1
    %v2513 = vmul.f32 %v2259, %v2511
    %v2514 = vadd.f32 %v2335, %v2513
    %v2516 = vrot.slane %v2418, 1
    %v2518 = vmul.f32 %v2270, %v2516
    %v2519 = vadd.f32 %v2514, %v2518
    %v2521 = vrot.slane %v2419, 1
    %v2523 = vmul.f32 %v2281, %v2521
    %v2524 = vadd.f32 %v2519, %v2523
    %v2525 = vmul.f32 %v2286, %v2511
    %v2526 = vadd.f32 %v2341, %v2525
    %v2527 = vmul.f32 %v2291, %v2516
    %v2528 = vadd.f32 %v2526, %v2527
    %v2529 = vmul.f32 %v2296, %v2521
    %v2530 = vadd.f32 %v2528, %v2529
    %v2531 = vmul.f32 %v2301, %v2511
    %v2532 = vadd.f32 %v2347, %v2531
    %v2533 = vmul.f32 %v2306, %v2516
    %v2534 = vadd.f32 %v2532, %v2533
    %v2535 = vmul.f32 %v2311, %v2521
    %v2536 = vadd.f32 %v2534, %v2535
    %v2537 = vrot.slane %v73, 2
    %v2539 = vmul.f32 %v2376, %v2537
    %v2540 = vrot.slane %v136, 2
    %v2542 = vmul.f32 %v2381, %v2540
    %v2543 = vadd.f32 %v2539, %v2542
    %v2544 = vrot.slane %v151, 2
    %v2546 = vmul.f32 %v2386, %v2544
    %v2547 = vadd.f32 %v2543, %v2546
    %v2548 = vrot.slane %v76, 2
    %v2550 = vmul.f32 %v2376, %v2548
    %v2551 = vrot.slane %v139, 2
    %v2553 = vmul.f32 %v2381, %v2551
    %v2554 = vadd.f32 %v2550, %v2553
    %v2555 = vrot.slane %v160, 2
    %v2557 = vmul.f32 %v2386, %v2555
    %v2558 = vadd.f32 %v2554, %v2557
    %v2559 = vrot.slane %v79, 2
    %v2561 = vmul.f32 %v2376, %v2559
    %v2562 = vrot.slane %v142, 2
    %v2564 = vmul.f32 %v2381, %v2562
    %v2565 = vadd.f32 %v2561, %v2564
    %v2566 = vrot.slane %v169, 2
    %v2568 = vmul.f32 %v2386, %v2566
    %v2569 = vadd.f32 %v2565, %v2568
    %v2570 = vmul.f32 %v2391, %v2537
    %v2571 = vmul.f32 %v2396, %v2540
    %v2572 = vadd.f32 %v2570, %v2571
    %v2573 = vmul.f32 %v2401, %v2544
    %v2574 = vadd.f32 %v2572, %v2573
    %v2575 = vmul.f32 %v2391, %v2548
    %v2576 = vmul.f32 %v2396, %v2551
    %v2577 = vadd.f32 %v2575, %v2576
    %v2578 = vmul.f32 %v2401, %v2555
    %v2579 = vadd.f32 %v2577, %v2578
    %v2580 = vmul.f32 %v2391, %v2559
    %v2581 = vmul.f32 %v2396, %v2562
    %v2582 = vadd.f32 %v2580, %v2581
    %v2583 = vmul.f32 %v2401, %v2566
    %v2584 = vadd.f32 %v2582, %v2583
    %v2585 = vmul.f32 %v2406, %v2537
    %v2586 = vmul.f32 %v2411, %v2540
    %v2587 = vadd.f32 %v2585, %v2586
    %v2588 = vmul.f32 %v2416, %v2544
    %v2589 = vadd.f32 %v2587, %v2588
    %v2590 = vmul.f32 %v2406, %v2548
    %v2591 = vmul.f32 %v2411, %v2551
    %v2592 = vadd.f32 %v2590, %v2591
    %v2593 = vmul.f32 %v2416, %v2555
    %v2594 = vadd.f32 %v2592, %v2593
    %v2595 = vmul.f32 %v2406, %v2559
    %v2596 = vmul.f32 %v2411, %v2562
    %v2597 = vadd.f32 %v2595, %v2596
    %v2598 = vmul.f32 %v2416, %v2566
    %v2599 = vadd.f32 %v2597, %v2598
    %v2601 = vrot.slane %v765, 6
    %v2603 = vsub.f32 %v765, %v2601
    %v2605 = vrot.slane %v971, 6
    %v2607 = vsub.f32 %v971, %v2605
    %v2609 = vrot.slane %v1177, 6
    %v2611 = vsub.f32 %v1177, %v2609
    %v2613 = vrot.slane %v2603, 2
    %v2615 = vmul.f32 %v2376, %v2613
    %v2616 = vadd.f32 %v2425, %v2615
    %v2618 = vrot.slane %v2607, 2
    %v2620 = vmul.f32 %v2381, %v2618
    %v2621 = vadd.f32 %v2616, %v2620
    %v2623 = vrot.slane %v2611, 2
    %v2625 = vmul.f32 %v2386, %v2623
    %v2626 = vadd.f32 %v2621, %v2625
    %v2627 = vmul.f32 %v2391, %v2613
    %v2628 = vadd.f32 %v2431, %v2627
    %v2629 = vmul.f32 %v2396, %v2618
    %v2630 = vadd.f32 %v2628, %v2629
    %v2631 = vmul.f32 %v2401, %v2623
    %v2632 = vadd.f32 %v2630, %v2631
    %v2633 = vmul.f32 %v2406, %v2613
    %v2634 = vadd.f32 %v2437, %v2633
    %v2635 = vmul.f32 %v2411, %v2618
    %v2636 = vadd.f32 %v2634, %v2635
    %v2637 = vmul.f32 %v2416, %v2623
    %v2638 = vadd.f32 %v2636, %v2637
    %v2639 = vrot.slane %v73, 3
    %v2641 = vmul.f32 %v2451, %v2639
    %v2642 = vrot.slane %v136, 3
    %v2644 = vmul.f32 %v2465, %v2642
    %v2645 = vadd.f32 %v2641, %v2644
    %v2646 = vrot.slane %v151, 3
    %v2648 = vmul.f32 %v2479, %v2646
    %v2649 = vadd.f32 %v2645, %v2648
    %v2650 = vrot.slane %v76, 3
    %v2652 = vmul.f32 %v2451, %v2650
    %v2653 = vrot.slane %v139, 3
    %v2655 = vmul.f32 %v2465, %v2653
    %v2656 = vadd.f32 %v2652, %v2655
    %v2657 = vrot.slane %v160, 3
    %v2659 = vmul.f32 %v2479, %v2657
    %v2660 = vadd.f32 %v2656, %v2659
    %v2661 = vrot.slane %v79, 3
    %v2663 = vmul.f32 %v2451, %v2661
    %v2664 = vrot.slane %v142, 3
    %v2666 = vmul.f32 %v2465, %v2664
    %v2667 = vadd.f32 %v2663, %v2666
    %v2668 = vrot.slane %v169, 3
    %v2670 = vmul.f32 %v2479, %v2668
    %v2671 = vadd.f32 %v2667, %v2670
    %v2672 = vmul.f32 %v2484, %v2639
    %v2673 = vmul.f32 %v2489, %v2642
    %v2674 = vadd.f32 %v2672, %v2673
    %v2675 = vmul.f32 %v2494, %v2646
    %v2676 = vadd.f32 %v2674, %v2675
    %v2677 = vmul.f32 %v2484, %v2650
    %v2678 = vmul.f32 %v2489, %v2653
    %v2679 = vadd.f32 %v2677, %v2678
    %v2680 = vmul.f32 %v2494, %v2657
    %v2681 = vadd.f32 %v2679, %v2680
    %v2682 = vmul.f32 %v2484, %v2661
    %v2683 = vmul.f32 %v2489, %v2664
    %v2684 = vadd.f32 %v2682, %v2683
    %v2685 = vmul.f32 %v2494, %v2668
    %v2686 = vadd.f32 %v2684, %v2685
    %v2687 = vmul.f32 %v2499, %v2639
    %v2688 = vmul.f32 %v2504, %v2642
    %v2689 = vadd.f32 %v2687, %v2688
    %v2690 = vmul.f32 %v2509, %v2646
    %v2691 = vadd.f32 %v2689, %v2690
    %v2692 = vmul.f32 %v2499, %v2650
    %v2693 = vmul.f32 %v2504, %v2653
    %v2694 = vadd.f32 %v2692, %v2693
    %v2695 = vmul.f32 %v2509, %v2657
    %v2696 = vadd.f32 %v2694, %v2695
    %v2697 = vmul.f32 %v2499, %v2661
    %v2698 = vmul.f32 %v2504, %v2664
    %v2699 = vadd.f32 %v2697, %v2698
    %v2700 = vmul.f32 %v2509, %v2668
    %v2701 = vadd.f32 %v2699, %v2700
    %v2702 = vrot.slane %v2603, 3
    %v2704 = vmul.f32 %v2451, %v2702
    %v2705 = vadd.f32 %v2524, %v2704
    %v2706 = vrot.slane %v2607, 3
    %v2708 = vmul.f32 %v2465, %v2706
    %v2709 = vadd.f32 %v2705, %v2708
    %v2710 = vrot.slane %v2611, 3
    %v2712 = vmul.f32 %v2479, %v2710
    %v2713 = vadd.f32 %v2709, %v2712
    %v2714 = vmul.f32 %v2484, %v2702
    %v2715 = vadd.f32 %v2530, %v2714
    %v2716 = vmul.f32 %v2489, %v2706
    %v2717 = vadd.f32 %v2715, %v2716
    %v2718 = vmul.f32 %v2494, %v2710
    %v2719 = vadd.f32 %v2717, %v2718
    %v2720 = vmul.f32 %v2499, %v2702
    %v2721 = vadd.f32 %v2536, %v2720
    %v2722 = vmul.f32 %v2504, %v2706
    %v2723 = vadd.f32 %v2721, %v2722
    %v2724 = vmul.f32 %v2509, %v2710
    %v2725 = vadd.f32 %v2723, %v2724
    %v2726 = vrot.slane %v2603, 4
    %v2728 = vmul.f32 %v2547, %v2726
    %v2729 = vadd.f32 %v2626, %v2728
    %v2730 = vrot.slane %v2607, 4
    %v2732 = vmul.f32 %v2558, %v2730
    %v2733 = vadd.f32 %v2729, %v2732
    %v2734 = vrot.slane %v2611, 4
    %v2736 = vmul.f32 %v2569, %v2734
    %v2737 = vadd.f32 %v2733, %v2736
    %v2738 = vmul.f32 %v2574, %v2726
    %v2739 = vadd.f32 %v2632, %v2738
    %v2740 = vmul.f32 %v2579, %v2730
    %v2741 = vadd.f32 %v2739, %v2740
    %v2742 = vmul.f32 %v2584, %v2734
    %v2743 = vadd.f32 %v2741, %v2742
    %v2744 = vmul.f32 %v2589, %v2726
    %v2745 = vadd.f32 %v2638, %v2744
    %v2746 = vmul.f32 %v2594, %v2730
    %v2747 = vadd.f32 %v2745, %v2746
    %v2748 = vmul.f32 %v2599, %v2734
    %v2749 = vadd.f32 %v2747, %v2748
    %v2750 = vrot.slane %v2603, 5
    %v2752 = vmul.f32 %v2649, %v2750
    %v2753 = vadd.f32 %v2713, %v2752
    %v2754 = vrot.slane %v2607, 5
    %v2756 = vmul.f32 %v2660, %v2754
    %v2757 = vadd.f32 %v2753, %v2756
    %v2758 = vrot.slane %v2611, 5
    %v2760 = vmul.f32 %v2671, %v2758
    %v2761 = vadd.f32 %v2757, %v2760
    %v2762 = vmul.f32 %v2676, %v2750
    %v2763 = vadd.f32 %v2719, %v2762
    %v2764 = vmul.f32 %v2681, %v2754
    %v2765 = vadd.f32 %v2763, %v2764
    %v2766 = vmul.f32 %v2686, %v2758
    %v2767 = vadd.f32 %v2765, %v2766
    %v2768 = vmul.f32 %v2691, %v2750
    %v2769 = vadd.f32 %v2725, %v2768
    %v2770 = vmul.f32 %v2696, %v2754
    %v2771 = vadd.f32 %v2769, %v2770
    %v2772 = vmul.f32 %v2701, %v2758
    %v2773 = vadd.f32 %v2771, %v2772
    %v2774 = vld [vmem:[%s3] sm:$0xff]
    %v2775 = vld [vmem:[%s3 + $0x8] sm:$0xff]
    %v2776 = vld [vmem:[%s3 + $0x10] sm:$0x3f]
    %s2777 = scalar_lea.vmem %s3, 24
    %v2778 = vld [vmem:[%s2777] sm:$0xff]
    %v2779 = vld [vmem:[%s2777 + $0x8] sm:$0xff]
    %v2780 = vld [vmem:[%s2777 + $0x10] sm:$0x3f]
    %s2781 = scalar_lea.vmem %s3, 48
    %v2782 = vld [vmem:[%s2781] sm:$0xff]
    %v2783 = vld [vmem:[%s2781 + $0x8] sm:$0xff]
    %v2784 = vld [vmem:[%s2781 + $0x10] sm:$0x3f]
    %v2785 = vld [vmem:[%s4] sm:$0xff]
    %v2786 = vld [vmem:[%s4 + $0x8] sm:$0xff]
    %v2787 = vld [vmem:[%s4 + $0x10] sm:$0x3f]
    %s2788 = scalar_lea.vmem %s4, 24
    %v2789 = vld [vmem:[%s2788] sm:$0xff]
    %v2790 = vld [vmem:[%s2788 + $0x8] sm:$0xff]
    %v2791 = vld [vmem:[%s2788 + $0x10] sm:$0x3f]
    %v2792 = vsub.f32 %v763, %v763
    %v2793 = vsub.f32 %v969, %v969
    %v2794 = vsub.f32 %v1175, %v1175
    %v2795 = vsub.f32 %v2774, %v2774
    %v2796 = vsub.f32 %v2792, %v2795
    %v2797 = vand.u32 2147483647, %v2796
    %v2798 = vsub.f32 %v2778, %v2778
    %v2799 = vsub.f32 %v2793, %v2798
    %v2800 = vand.u32 2147483647, %v2799
    %v2801 = vadd.f32 %v2797, %v2800
    %v2802 = vsub.f32 %v2782, %v2782
    %v2803 = vsub.f32 %v2794, %v2802
    %v2804 = vand.u32 2147483647, %v2803
    %v2805 = vadd.f32 %v2801, %v2804
    %v2806 = vadd.f32 %v2805, 0.0
    %v2807 = vadd.f32 %v2794, %v520
    %v2808 = vrcp.pop %v2807
    %v2810 = vrot.slane %v504, 1
    %v2812 = vadd.f32 %v2792, %v2810
    %v2813 = vmul.f32 %v2812, %v2808
    %v2814 = vmul.f32 %v2813, %v521
    %v2816 = vrot.slane %v516, 2
    %v2818 = vadd.f32 %v2793, %v2816
    %v2819 = vmul.f32 %v2818, %v2808
    %v2821 = vrot.slane %v521, 1
    %v2823 = vmul.f32 %v2819, %v2821
    %v2824 = vsub.f32 %v2814, %v2785
    %v2825 = vand.u32 2147483647, %v2824
    %v2826 = vadd.f32 %v2825, 0.0
    %v2827 = vsub.f32 %v2823, %v2789
    %v2828 = vand.u32 2147483647, %v2827
    %v2829 = vadd.f32 %v2826, %v2828
    %v2830 = vsub.f32 %v1276, %v763
    %v2831 = vsub.f32 %v1282, %v969
    %v2832 = vsub.f32 %v1288, %v1175
    %v2834 = vrot.slane %v2774, 7
    %v2836 = vsub.f32 %v2774, %v2834
    %v2838 = vrot.slane %v2836, 1
    %v2840 = vsub.f32 %v2830, %v2838
    %v2841 = vand.u32 2147483647, %v2840
    %v2843 = vrot.slane %v2778, 7
    %v2845 = vsub.f32 %v2778, %v2843
    %v2847 = vrot.slane %v2845, 1
    %v2849 = vsub.f32 %v2831, %v2847
    %v2850 = vand.u32 2147483647, %v2849
    %v2851 = vadd.f32 %v2841, %v2850
    %v2853 = vrot.slane %v2782, 7
    %v2855 = vsub.f32 %v2782, %v2853
    %v2857 = vrot.slane %v2855, 1
    %v2859 = vsub.f32 %v2832, %v2857
    %v2860 = vand.u32 2147483647, %v2859
    %v2861 = vadd.f32 %v2851, %v2860
    %v2862 = vadd.f32 %v2806, %v2861
    %v2863 = vadd.f32 %v2832, %v520
    %v2864 = vrcp.pop %v2863
    %v2865 = vadd.f32 %v2830, %v2810
    %v2866 = vmul.f32 %v2865, %v2864
    %v2867 = vmul.f32 %v2866, %v521
    %v2868 = vadd.f32 %v2831, %v2816
    %v2869 = vmul.f32 %v2868, %v2864
    %v2870 = vmul.f32 %v2869, %v2821
    %v2872 = vrot.slane %v2785, 1
    %v2874 = vsub.f32 %v2867, %v2872
    %v2875 = vand.u32 2147483647, %v2874
    %v2876 = vadd.f32 %v2829, %v2875
    %v2878 = vrot.slane %v2789, 1
    %v2880 = vsub.f32 %v2870, %v2878
    %v2881 = vand.u32 2147483647, %v2880
    %v2882 = vadd.f32 %v2876, %v2881
    %v2883 = vsub.f32 %v1375, %v763
    %v2884 = vsub.f32 %v1381, %v969
    %v2885 = vsub.f32 %v1387, %v1175
    %v2886 = vrot.slane %v2774, 6
    %v2888 = vsub.f32 %v2774, %v2886
    %v2890 = vrot.slane %v2888, 2
    %v2892 = vsub.f32 %v2883, %v2890
    %v2893 = vand.u32 2147483647, %v2892
    %v2894 = vrot.slane %v2778, 6
    %v2896 = vsub.f32 %v2778, %v2894
    %v2898 = vrot.slane %v2896, 2
    %v2900 = vsub.f32 %v2884, %v2898
    %v2901 = vand.u32 2147483647, %v2900
    %v2902 = vadd.f32 %v2893, %v2901
    %v2903 = vrot.slane %v2782, 6
    %v2905 = vsub.f32 %v2782, %v2903
    %v2907 = vrot.slane %v2905, 2
    %v2909 = vsub.f32 %v2885, %v2907
    %v2910 = vand.u32 2147483647, %v2909
    %v2911 = vadd.f32 %v2902, %v2910
    %v2912 = vadd.f32 %v2862, %v2911
    %v2913 = vadd.f32 %v2885, %v520
    %v2914 = vrcp.pop %v2913
    %v2915 = vadd.f32 %v2883, %v2810
    %v2916 = vmul.f32 %v2915, %v2914
    %v2917 = vmul.f32 %v2916, %v521
    %v2918 = vadd.f32 %v2884, %v2816
    %v2919 = vmul.f32 %v2918, %v2914
    %v2920 = vmul.f32 %v2919, %v2821
    %v2921 = vrot.slane %v2785, 2
    %v2923 = vsub.f32 %v2917, %v2921
    %v2924 = vand.u32 2147483647, %v2923
    %v2925 = vadd.f32 %v2882, %v2924
    %v2926 = vrot.slane %v2789, 2
    %v2928 = vsub.f32 %v2920, %v2926
    %v2929 = vand.u32 2147483647, %v2928
    %v2930 = vadd.f32 %v2925, %v2929
    %v2931 = vsub.f32 %v1474, %v763
    %v2932 = vsub.f32 %v1480, %v969
    %v2933 = vsub.f32 %v1486, %v1175
    %v2934 = vrot.slane %v2774, 5
    %v2936 = vsub.f32 %v2774, %v2934
    %v2938 = vrot.slane %v2936, 3
    %v2940 = vsub.f32 %v2931, %v2938
    %v2941 = vand.u32 2147483647, %v2940
    %v2942 = vrot.slane %v2778, 5
    %v2944 = vsub.f32 %v2778, %v2942
    %v2946 = vrot.slane %v2944, 3
    %v2948 = vsub.f32 %v2932, %v2946
    %v2949 = vand.u32 2147483647, %v2948
    %v2950 = vadd.f32 %v2941, %v2949
    %v2951 = vrot.slane %v2782, 5
    %v2953 = vsub.f32 %v2782, %v2951
    %v2955 = vrot.slane %v2953, 3
    %v2957 = vsub.f32 %v2933, %v2955
    %v2958 = vand.u32 2147483647, %v2957
    %v2959 = vadd.f32 %v2950, %v2958
    %v2960 = vadd.f32 %v2912, %v2959
    %v2961 = vadd.f32 %v2933, %v520
    %v2962 = vrcp.pop %v2961
    %v2963 = vadd.f32 %v2931, %v2810
    %v2964 = vmul.f32 %v2963, %v2962
    %v2965 = vmul.f32 %v2964, %v521
    %v2966 = vadd.f32 %v2932, %v2816
    %v2967 = vmul.f32 %v2966, %v2962
    %v2968 = vmul.f32 %v2967, %v2821
    %v2969 = vrot.slane %v2785, 3
    %v2971 = vsub.f32 %v2965, %v2969
    %v2972 = vand.u32 2147483647, %v2971
    %v2973 = vadd.f32 %v2930, %v2972
    %v2974 = vrot.slane %v2789, 3
    %v2976 = vsub.f32 %v2968, %v2974
    %v2977 = vand.u32 2147483647, %v2976
    %v2978 = vadd.f32 %v2973, %v2977
    %v2979 = vsub.f32 %v1561, %v763
    %v2980 = vsub.f32 %v1567, %v969
    %v2981 = vsub.f32 %v1573, %v1175
    %v2982 = vrot.slane %v2774, 4
    %v2984 = vsub.f32 %v2774, %v2982
    %v2986 = vrot.slane %v2984, 4
    %v2988 = vsub.f32 %v2979, %v2986
    %v2989 = vand.u32 2147483647, %v2988
    %v2990 = vrot.slane %v2778, 4
    %v2992 = vsub.f32 %v2778, %v2990
    %v2994 = vrot.slane %v2992, 4
    %v2996 = vsub.f32 %v2980, %v2994
    %v2997 = vand.u32 2147483647, %v2996
    %v2998 = vadd.f32 %v2989, %v2997
    %v2999 = vrot.slane %v2782, 4
    %v3001 = vsub.f32 %v2782, %v2999
    %v3003 = vrot.slane %v3001, 4
    %v3005 = vsub.f32 %v2981, %v3003
    %v3006 = vand.u32 2147483647, %v3005
    %v3007 = vadd.f32 %v2998, %v3006
    %v3008 = vadd.f32 %v2960, %v3007
    %v3009 = vadd.f32 %v2981, %v520
    %v3010 = vrcp.pop %v3009
    %v3011 = vadd.f32 %v2979, %v2810
    %v3012 = vmul.f32 %v3011, %v3010
    %v3013 = vmul.f32 %v3012, %v521
    %v3014 = vadd.f32 %v2980, %v2816
    %v3015 = vmul.f32 %v3014, %v3010
    %v3016 = vmul.f32 %v3015, %v2821
    %v3017 = vrot.slane %v2785, 4
    %v3019 = vsub.f32 %v3013, %v3017
    %v3020 = vand.u32 2147483647, %v3019
    %v3021 = vadd.f32 %v2978, %v3020
    %v3022 = vrot.slane %v2789, 4
    %v3024 = vsub.f32 %v3016, %v3022
    %v3025 = vand.u32 2147483647, %v3024
    %v3026 = vadd.f32 %v3021, %v3025
    %v3027 = vsub.f32 %v1648, %v763
    %v3028 = vsub.f32 %v1654, %v969
    %v3029 = vsub.f32 %v1660, %v1175
    %v3030 = vrot.slane %v2774, 3
    %v3032 = vsub.f32 %v2774, %v3030
    %v3034 = vrot.slane %v3032, 5
    %v3036 = vsub.f32 %v3027, %v3034
    %v3037 = vand.u32 2147483647, %v3036
    %v3038 = vrot.slane %v2778, 3
    %v3040 = vsub.f32 %v2778, %v3038
    %v3042 = vrot.slane %v3040, 5
    %v3044 = vsub.f32 %v3028, %v3042
    %v3045 = vand.u32 2147483647, %v3044
    %v3046 = vadd.f32 %v3037, %v3045
    %v3047 = vrot.slane %v2782, 3
    %v3049 = vsub.f32 %v2782, %v3047
    %v3051 = vrot.slane %v3049, 5
    %v3053 = vsub.f32 %v3029, %v3051
    %v3054 = vand.u32 2147483647, %v3053
    %v3055 = vadd.f32 %v3046, %v3054
    %v3056 = vadd.f32 %v3008, %v3055
    %v3057 = vadd.f32 %v3029, %v520
    %v3058 = vrcp.pop %v3057
    %v3059 = vadd.f32 %v3027, %v2810
    %v3060 = vmul.f32 %v3059, %v3058
    %v3061 = vmul.f32 %v3060, %v521
    %v3062 = vadd.f32 %v3028, %v2816
    %v3063 = vmul.f32 %v3062, %v3058
    %v3064 = vmul.f32 %v3063, %v2821
    %v3065 = vrot.slane %v2785, 5
    %v3067 = vsub.f32 %v3061, %v3065
    %v3068 = vand.u32 2147483647, %v3067
    %v3069 = vadd.f32 %v3026, %v3068
    %v3070 = vrot.slane %v2789, 5
    %v3072 = vsub.f32 %v3064, %v3070
    %v3073 = vand.u32 2147483647, %v3072
    %v3074 = vadd.f32 %v3069, %v3073
    %v3075 = vsub.f32 %v1735, %v763
    %v3076 = vsub.f32 %v1741, %v969
    %v3077 = vsub.f32 %v1747, %v1175
    %v3078 = vrot.slane %v2774, 2
    %v3080 = vsub.f32 %v2774, %v3078
    %v3082 = vrot.slane %v3080, 6
    %v3084 = vsub.f32 %v3075, %v3082
    %v3085 = vand.u32 2147483647, %v3084
    %v3086 = vrot.slane %v2778, 2
    %v3088 = vsub.f32 %v2778, %v3086
    %v3090 = vrot.slane %v3088, 6
    %v3092 = vsub.f32 %v3076, %v3090
    %v3093 = vand.u32 2147483647, %v3092
    %v3094 = vadd.f32 %v3085, %v3093
    %v3095 = vrot.slane %v2782, 2
    %v3097 = vsub.f32 %v2782, %v3095
    %v3099 = vrot.slane %v3097, 6
    %v3101 = vsub.f32 %v3077, %v3099
    %v3102 = vand.u32 2147483647, %v3101
    %v3103 = vadd.f32 %v3094, %v3102
    %v3104 = vadd.f32 %v3056, %v3103
    %v3105 = vadd.f32 %v3077, %v520
    %v3106 = vrcp.pop %v3105
    %v3107 = vadd.f32 %v3075, %v2810
    %v3108 = vmul.f32 %v3107, %v3106
    %v3109 = vmul.f32 %v3108, %v521
    %v3110 = vadd.f32 %v3076, %v2816
    %v3111 = vmul.f32 %v3110, %v3106
    %v3112 = vmul.f32 %v3111, %v2821
    %v3113 = vrot.slane %v2785, 6
    %v3115 = vsub.f32 %v3109, %v3113
    %v3116 = vand.u32 2147483647, %v3115
    %v3117 = vadd.f32 %v3074, %v3116
    %v3118 = vrot.slane %v2789, 6
    %v3120 = vsub.f32 %v3112, %v3118
    %v3121 = vand.u32 2147483647, %v3120
    %v3122 = vadd.f32 %v3117, %v3121
    %v3123 = vsub.f32 %v1822, %v763
    %v3124 = vsub.f32 %v1828, %v969
    %v3125 = vsub.f32 %v1834, %v1175
    %v3126 = vrot.slane %v2774, 1
    %v3128 = vsub.f32 %v2774, %v3126
    %v3130 = vrot.slane %v3128, 7
    %v3132 = vsub.f32 %v3123, %v3130
    %v3133 = vand.u32 2147483647, %v3132
    %v3134 = vrot.slane %v2778, 1
    %v3136 = vsub.f32 %v2778, %v3134
    %v3138 = vrot.slane %v3136, 7
    %v3140 = vsub.f32 %v3124, %v3138
    %v3141 = vand.u32 2147483647, %v3140
    %v3142 = vadd.f32 %v3133, %v3141
    %v3143 = vrot.slane %v2782, 1
    %v3145 = vsub.f32 %v2782, %v3143
    %v3147 = vrot.slane %v3145, 7
    %v3149 = vsub.f32 %v3125, %v3147
    %v3150 = vand.u32 2147483647, %v3149
    %v3151 = vadd.f32 %v3142, %v3150
    %v3152 = vadd.f32 %v3104, %v3151
    %v3153 = vadd.f32 %v3125, %v520
    %v3154 = vrcp.pop %v3153
    %v3155 = vadd.f32 %v3123, %v2810
    %v3156 = vmul.f32 %v3155, %v3154
    %v3157 = vmul.f32 %v3156, %v521
    %v3158 = vadd.f32 %v3124, %v2816
    %v3159 = vmul.f32 %v3158, %v3154
    %v3160 = vmul.f32 %v3159, %v2821
    %v3161 = vrot.slane %v2785, 7
    %v3163 = vsub.f32 %v3157, %v3161
    %v3164 = vand.u32 2147483647, %v3163
    %v3165 = vadd.f32 %v3122, %v3164
    %v3166 = vrot.slane %v2789, 7
    %v3168 = vsub.f32 %v3160, %v3166
    %v3169 = vand.u32 2147483647, %v3168
    %v3170 = vadd.f32 %v3165, %v3169
    %v3171 = vsub.f32 %v1888, %v763
    %v3172 = vsub.f32 %v1894, %v969
    %v3173 = vsub.f32 %v1900, %v1175
    %v3174 = vsub.f32 %v2775, %v2774
    %v3175 = vsub.f32 %v3171, %v3174
    %v3176 = vand.u32 2147483647, %v3175
    %v3177 = vsub.f32 %v2779, %v2778
    %v3178 = vsub.f32 %v3172, %v3177
    %v3179 = vand.u32 2147483647, %v3178
    %v3180 = vadd.f32 %v3176, %v3179
    %v3181 = vsub.f32 %v2783, %v2782
    %v3182 = vsub.f32 %v3173, %v3181
    %v3183 = vand.u32 2147483647, %v3182
    %v3184 = vadd.f32 %v3180, %v3183
    %v3185 = vadd.f32 %v3152, %v3184
    %v3186 = vadd.f32 %v3173, %v520
    %v3187 = vrcp.pop %v3186
    %v3188 = vadd.f32 %v3171, %v2810
    %v3189 = vmul.f32 %v3188, %v3187
    %v3190 = vmul.f32 %v3189, %v521
    %v3191 = vadd.f32 %v3172, %v2816
    %v3192 = vmul.f32 %v3191, %v3187
    %v3193 = vmul.f32 %v3192, %v2821
    %v3194 = vsub.f32 %v3190, %v2786
    %v3195 = vand.u32 2147483647, %v3194
    %v3196 = vadd.f32 %v3170, %v3195
    %v3197 = vsub.f32 %v3193, %v2790
    %v3198 = vand.u32 2147483647, %v3197
    %v3199 = vadd.f32 %v3196, %v3198
    %v3200 = vsub.f32 %v1987, %v763
    %v3201 = vsub.f32 %v1993, %v969
    %v3202 = vsub.f32 %v1999, %v1175
    %v3203 = vsub.f32 %v2775, %v2834
    %v3205 = vrot.slane %v3203, 1
    %v3207 = vsub.f32 %v3200, %v3205
    %v3208 = vand.u32 2147483647, %v3207
    %v3209 = vsub.f32 %v2779, %v2843
    %v3211 = vrot.slane %v3209, 1
    %v3213 = vsub.f32 %v3201, %v3211
    %v3214 = vand.u32 2147483647, %v3213
    %v3215 = vadd.f32 %v3208, %v3214
    %v3216 = vsub.f32 %v2783, %v2853
    %v3218 = vrot.slane %v3216, 1
    %v3220 = vsub.f32 %v3202, %v3218
    %v3221 = vand.u32 2147483647, %v3220
    %v3222 = vadd.f32 %v3215, %v3221
    %v3223 = vadd.f32 %v3185, %v3222
    %v3224 = vadd.f32 %v3202, %v520
    %v3225 = vrcp.pop %v3224
    %v3226 = vadd.f32 %v3200, %v2810
    %v3227 = vmul.f32 %v3226, %v3225
    %v3228 = vmul.f32 %v3227, %v521
    %v3229 = vadd.f32 %v3201, %v2816
    %v3230 = vmul.f32 %v3229, %v3225
    %v3231 = vmul.f32 %v3230, %v2821
    %v3233 = vrot.slane %v2786, 1
    %v3235 = vsub.f32 %v3228, %v3233
    %v3236 = vand.u32 2147483647, %v3235
    %v3237 = vadd.f32 %v3199, %v3236
    %v3239 = vrot.slane %v2790, 1
    %v3241 = vsub.f32 %v3231, %v3239
    %v3242 = vand.u32 2147483647, %v3241
    %v3243 = vadd.f32 %v3237, %v3242
    %v3244 = vsub.f32 %v2011, %v763
    %v3245 = vsub.f32 %v2017, %v969
    %v3246 = vsub.f32 %v2023, %v1175
    %v3247 = vsub.f32 %v2775, %v2886
    %v3249 = vrot.slane %v3247, 2
    %v3251 = vsub.f32 %v3244, %v3249
    %v3252 = vand.u32 2147483647, %v3251
    %v3253 = vsub.f32 %v2779, %v2894
    %v3255 = vrot.slane %v3253, 2
    %v3257 = vsub.f32 %v3245, %v3255
    %v3258 = vand.u32 2147483647, %v3257
    %v3259 = vadd.f32 %v3252, %v3258
    %v3260 = vsub.f32 %v2783, %v2903
    %v3262 = vrot.slane %v3260, 2
    %v3264 = vsub.f32 %v3246, %v3262
    %v3265 = vand.u32 2147483647, %v3264
    %v3266 = vadd.f32 %v3259, %v3265
    %v3267 = vadd.f32 %v3223, %v3266
    %v3268 = vadd.f32 %v3246, %v520
    %v3269 = vrcp.pop %v3268
    %v3270 = vadd.f32 %v3244, %v2810
    %v3271 = vmul.f32 %v3270, %v3269
    %v3272 = vmul.f32 %v3271, %v521
    %v3273 = vadd.f32 %v3245, %v2816
    %v3274 = vmul.f32 %v3273, %v3269
    %v3275 = vmul.f32 %v3274, %v2821
    %v3276 = vrot.slane %v2786, 2
    %v3278 = vsub.f32 %v3272, %v3276
    %v3279 = vand.u32 2147483647, %v3278
    %v3280 = vadd.f32 %v3243, %v3279
    %v3281 = vrot.slane %v2790, 2
    %v3283 = vsub.f32 %v3275, %v3281
    %v3284 = vand.u32 2147483647, %v3283
    %v3285 = vadd.f32 %v3280, %v3284
    %v3286 = vsub.f32 %v2050, %v763
    %v3287 = vsub.f32 %v2056, %v969
    %v3288 = vsub.f32 %v2062, %v1175
    %v3289 = vsub.f32 %v2775, %v2934
    %v3291 = vrot.slane %v3289, 3
    %v3293 = vsub.f32 %v3286, %v3291
    %v3294 = vand.u32 2147483647, %v3293
    %v3295 = vsub.f32 %v2779, %v2942
    %v3297 = vrot.slane %v3295, 3
    %v3299 = vsub.f32 %v3287, %v3297
    %v3300 = vand.u32 2147483647, %v3299
    %v3301 = vadd.f32 %v3294, %v3300
    %v3302 = vsub.f32 %v2783, %v2951
    %v3304 = vrot.slane %v3302, 3
    %v3306 = vsub.f32 %v3288, %v3304
    %v3307 = vand.u32 2147483647, %v3306
    %v3308 = vadd.f32 %v3301, %v3307
    %v3309 = vadd.f32 %v3267, %v3308
    %v3310 = vadd.f32 %v3288, %v520
    %v3311 = vrcp.pop %v3310
    %v3312 = vadd.f32 %v3286, %v2810
    %v3313 = vmul.f32 %v3312, %v3311
    %v3314 = vmul.f32 %v3313, %v521
    %v3315 = vadd.f32 %v3287, %v2816
    %v3316 = vmul.f32 %v3315, %v3311
    %v3317 = vmul.f32 %v3316, %v2821
    %v3318 = vrot.slane %v2786, 3
    %v3320 = vsub.f32 %v3314, %v3318
    %v3321 = vand.u32 2147483647, %v3320
    %v3322 = vadd.f32 %v3285, %v3321
    %v3323 = vrot.slane %v2790, 3
    %v3325 = vsub.f32 %v3317, %v3323
    %v3326 = vand.u32 2147483647, %v3325
    %v3327 = vadd.f32 %v3322, %v3326
    %v3328 = vsub.f32 %v2137, %v763
    %v3329 = vsub.f32 %v2143, %v969
    %v3330 = vsub.f32 %v2149, %v1175
    %v3331 = vsub.f32 %v2775, %v2982
    %v3333 = vrot.slane %v3331, 4
    %v3335 = vsub.f32 %v3328, %v3333
    %v3336 = vand.u32 2147483647, %v3335
    %v3337 = vsub.f32 %v2779, %v2990
    %v3339 = vrot.slane %v3337, 4
    %v3341 = vsub.f32 %v3329, %v3339
    %v3342 = vand.u32 2147483647, %v3341
    %v3343 = vadd.f32 %v3336, %v3342
    %v3344 = vsub.f32 %v2783, %v2999
    %v3346 = vrot.slane %v3344, 4
    %v3348 = vsub.f32 %v3330, %v3346
    %v3349 = vand.u32 2147483647, %v3348
    %v3350 = vadd.f32 %v3343, %v3349
    %v3351 = vadd.f32 %v3309, %v3350
    %v3352 = vadd.f32 %v3330, %v520
    %v3353 = vrcp.pop %v3352
    %v3354 = vadd.f32 %v3328, %v2810
    %v3355 = vmul.f32 %v3354, %v3353
    %v3356 = vmul.f32 %v3355, %v521
    %v3357 = vadd.f32 %v3329, %v2816
    %v3358 = vmul.f32 %v3357, %v3353
    %v3359 = vmul.f32 %v3358, %v2821
    %v3360 = vrot.slane %v2786, 4
    %v3362 = vsub.f32 %v3356, %v3360
    %v3363 = vand.u32 2147483647, %v3362
    %v3364 = vadd.f32 %v3327, %v3363
    %v3365 = vrot.slane %v2790, 4
    %v3367 = vsub.f32 %v3359, %v3365
    %v3368 = vand.u32 2147483647, %v3367
    %v3369 = vadd.f32 %v3364, %v3368
    %v3370 = vsub.f32 %v2236, %v763
    %v3371 = vsub.f32 %v2242, %v969
    %v3372 = vsub.f32 %v2248, %v1175
    %v3373 = vsub.f32 %v2775, %v3030
    %v3375 = vrot.slane %v3373, 5
    %v3377 = vsub.f32 %v3370, %v3375
    %v3378 = vand.u32 2147483647, %v3377
    %v3379 = vsub.f32 %v2779, %v3038
    %v3381 = vrot.slane %v3379, 5
    %v3383 = vsub.f32 %v3371, %v3381
    %v3384 = vand.u32 2147483647, %v3383
    %v3385 = vadd.f32 %v3378, %v3384
    %v3386 = vsub.f32 %v2783, %v3047
    %v3388 = vrot.slane %v3386, 5
    %v3390 = vsub.f32 %v3372, %v3388
    %v3391 = vand.u32 2147483647, %v3390
    %v3392 = vadd.f32 %v3385, %v3391
    %v3393 = vadd.f32 %v3351, %v3392
    %v3394 = vadd.f32 %v3372, %v520
    %v3395 = vrcp.pop %v3394
    %v3396 = vadd.f32 %v3370, %v2810
    %v3397 = vmul.f32 %v3396, %v3395
    %v3398 = vmul.f32 %v3397, %v521
    %v3399 = vadd.f32 %v3371, %v2816
    %v3400 = vmul.f32 %v3399, %v3395
    %v3401 = vmul.f32 %v3400, %v2821
    %v3402 = vrot.slane %v2786, 5
    %v3404 = vsub.f32 %v3398, %v3402
    %v3405 = vand.u32 2147483647, %v3404
    %v3406 = vadd.f32 %v3369, %v3405
    %v3407 = vrot.slane %v2790, 5
    %v3409 = vsub.f32 %v3401, %v3407
    %v3410 = vand.u32 2147483647, %v3409
    %v3411 = vadd.f32 %v3406, %v3410
    %v3412 = vsub.f32 %v2335, %v763
    %v3413 = vsub.f32 %v2341, %v969
    %v3414 = vsub.f32 %v2347, %v1175
    %v3415 = vsub.f32 %v2775, %v3078
    %v3417 = vrot.slane %v3415, 6
    %v3419 = vsub.f32 %v3412, %v3417
    %v3420 = vand.u32 2147483647, %v3419
    %v3421 = vsub.f32 %v2779, %v3086
    %v3423 = vrot.slane %v3421, 6
    %v3425 = vsub.f32 %v3413, %v3423
    %v3426 = vand.u32 2147483647, %v3425
    %v3427 = vadd.f32 %v3420, %v3426
    %v3428 = vsub.f32 %v2783, %v3095
    %v3430 = vrot.slane %v3428, 6
    %v3432 = vsub.f32 %v3414, %v3430
    %v3433 = vand.u32 2147483647, %v3432
    %v3434 = vadd.f32 %v3427, %v3433
    %v3435 = vadd.f32 %v3393, %v3434
    %v3436 = vadd.f32 %v3414, %v520
    %v3437 = vrcp.pop %v3436
    %v3438 = vadd.f32 %v3412, %v2810
    %v3439 = vmul.f32 %v3438, %v3437
    %v3440 = vmul.f32 %v3439, %v521
    %v3441 = vadd.f32 %v3413, %v2816
    %v3442 = vmul.f32 %v3441, %v3437
    %v3443 = vmul.f32 %v3442, %v2821
    %v3444 = vrot.slane %v2786, 6
    %v3446 = vsub.f32 %v3440, %v3444
    %v3447 = vand.u32 2147483647, %v3446
    %v3448 = vadd.f32 %v3411, %v3447
    %v3449 = vrot.slane %v2790, 6
    %v3451 = vsub.f32 %v3443, %v3449
    %v3452 = vand.u32 2147483647, %v3451
    %v3453 = vadd.f32 %v3448, %v3452
    %v3454 = vsub.f32 %v2359, %v763
    %v3455 = vsub.f32 %v2365, %v969
    %v3456 = vsub.f32 %v2371, %v1175
    %v3457 = vsub.f32 %v2775, %v3126
    %v3459 = vrot.slane %v3457, 7
    %v3461 = vsub.f32 %v3454, %v3459
    %v3462 = vand.u32 2147483647, %v3461
    %v3463 = vsub.f32 %v2779, %v3134
    %v3465 = vrot.slane %v3463, 7
    %v3467 = vsub.f32 %v3455, %v3465
    %v3468 = vand.u32 2147483647, %v3467
    %v3469 = vadd.f32 %v3462, %v3468
    %v3470 = vsub.f32 %v2783, %v3143
    %v3472 = vrot.slane %v3470, 7
    %v3474 = vsub.f32 %v3456, %v3472
    %v3475 = vand.u32 2147483647, %v3474
    %v3476 = vadd.f32 %v3469, %v3475
    %v3477 = vadd.f32 %v3435, %v3476
    %v3478 = vadd.f32 %v3456, %v520
    %v3479 = vrcp.pop %v3478
    %v3480 = vadd.f32 %v3454, %v2810
    %v3481 = vmul.f32 %v3480, %v3479
    %v3482 = vmul.f32 %v3481, %v521
    %v3483 = vadd.f32 %v3455, %v2816
    %v3484 = vmul.f32 %v3483, %v3479
    %v3485 = vmul.f32 %v3484, %v2821
    %v3486 = vrot.slane %v2786, 7
    %v3488 = vsub.f32 %v3482, %v3486
    %v3489 = vand.u32 2147483647, %v3488
    %v3490 = vadd.f32 %v3453, %v3489
    %v3491 = vrot.slane %v2790, 7
    %v3493 = vsub.f32 %v3485, %v3491
    %v3494 = vand.u32 2147483647, %v3493
    %v3495 = vadd.f32 %v3490, %v3494
    %v3496 = vsub.f32 %v2425, %v763
    %v3497 = vsub.f32 %v2431, %v969
    %v3498 = vsub.f32 %v2437, %v1175
    %v3499 = vsub.f32 %v2776, %v2774
    %v3500 = vsub.f32 %v3496, %v3499
    %v3501 = vand.u32 2147483647, %v3500
    %v3502 = vsub.f32 %v2780, %v2778
    %v3503 = vsub.f32 %v3497, %v3502
    %v3504 = vand.u32 2147483647, %v3503
    %v3505 = vadd.f32 %v3501, %v3504
    %v3506 = vsub.f32 %v2784, %v2782
    %v3507 = vsub.f32 %v3498, %v3506
    %v3508 = vand.u32 2147483647, %v3507
    %v3509 = vadd.f32 %v3505, %v3508
    %v3510 = vadd.f32 %v3477, %v3509
    %v3511 = vadd.f32 %v3498, %v520
    %v3512 = vrcp.pop %v3511
    %v3513 = vadd.f32 %v3496, %v2810
    %v3514 = vmul.f32 %v3513, %v3512
    %v3515 = vmul.f32 %v3514, %v521
    %v3516 = vadd.f32 %v3497, %v2816
    %v3517 = vmul.f32 %v3516, %v3512
    %v3518 = vmul.f32 %v3517, %v2821
    %v3519 = vsub.f32 %v3515, %v2787
    %v3520 = vand.u32 2147483647, %v3519
    %v3521 = vadd.f32 %v3495, %v3520
    %v3522 = vsub.f32 %v3518, %v2791
    %v3523 = vand.u32 2147483647, %v3522
    %v3524 = vadd.f32 %v3521, %v3523
    %v3525 = vsub.f32 %v2524, %v763
    %v3526 = vsub.f32 %v2530, %v969
    %v3527 = vsub.f32 %v2536, %v1175
    %v3528 = vsub.f32 %v2776, %v2834
    %v3530 = vrot.slane %v3528, 1
    %v3532 = vsub.f32 %v3525, %v3530
    %v3533 = vand.u32 2147483647, %v3532
    %v3534 = vsub.f32 %v2780, %v2843
    %v3536 = vrot.slane %v3534, 1
    %v3538 = vsub.f32 %v3526, %v3536
    %v3539 = vand.u32 2147483647, %v3538
    %v3540 = vadd.f32 %v3533, %v3539
    %v3541 = vsub.f32 %v2784, %v2853
    %v3543 = vrot.slane %v3541, 1
    %v3545 = vsub.f32 %v3527, %v3543
    %v3546 = vand.u32 2147483647, %v3545
    %v3547 = vadd.f32 %v3540, %v3546
    %v3548 = vadd.f32 %v3510, %v3547
    %v3549 = vadd.f32 %v3527, %v520
    %v3550 = vrcp.pop %v3549
    %v3551 = vadd.f32 %v3525, %v2810
    %v3552 = vmul.f32 %v3551, %v3550
    %v3553 = vmul.f32 %v3552, %v521
    %v3554 = vadd.f32 %v3526, %v2816
    %v3555 = vmul.f32 %v3554, %v3550
    %v3556 = vmul.f32 %v3555, %v2821
    %v3558 = vrot.slane %v2787, 1
    %v3560 = vsub.f32 %v3553, %v3558
    %v3561 = vand.u32 2147483647, %v3560
    %v3562 = vadd.f32 %v3524, %v3561
    %v3564 = vrot.slane %v2791, 1
    %v3566 = vsub.f32 %v3556, %v3564
    %v3567 = vand.u32 2147483647, %v3566
    %v3568 = vadd.f32 %v3562, %v3567
    %v3569 = vsub.f32 %v2626, %v763
    %v3570 = vsub.f32 %v2632, %v969
    %v3571 = vsub.f32 %v2638, %v1175
    %v3572 = vsub.f32 %v2776, %v2886
    %v3574 = vrot.slane %v3572, 2
    %v3576 = vsub.f32 %v3569, %v3574
    %v3577 = vand.u32 2147483647, %v3576
    %v3578 = vsub.f32 %v2780, %v2894
    %v3580 = vrot.slane %v3578, 2
    %v3582 = vsub.f32 %v3570, %v3580
    %v3583 = vand.u32 2147483647, %v3582
    %v3584 = vadd.f32 %v3577, %v3583
    %v3585 = vsub.f32 %v2784, %v2903
    %v3587 = vrot.slane %v3585, 2
    %v3589 = vsub.f32 %v3571, %v3587
    %v3590 = vand.u32 2147483647, %v3589
    %v3591 = vadd.f32 %v3584, %v3590
    %v3592 = vadd.f32 %v3548, %v3591
    %v3593 = vadd.f32 %v3571, %v520
    %v3594 = vrcp.pop %v3593
    %v3595 = vadd.f32 %v3569, %v2810
    %v3596 = vmul.f32 %v3595, %v3594
    %v3597 = vmul.f32 %v3596, %v521
    %v3598 = vadd.f32 %v3570, %v2816
    %v3599 = vmul.f32 %v3598, %v3594
    %v3600 = vmul.f32 %v3599, %v2821
    %v3601 = vrot.slane %v2787, 2
    %v3603 = vsub.f32 %v3597, %v3601
    %v3604 = vand.u32 2147483647, %v3603
    %v3605 = vadd.f32 %v3568, %v3604
    %v3606 = vrot.slane %v2791, 2
    %v3608 = vsub.f32 %v3600, %v3606
    %v3609 = vand.u32 2147483647, %v3608
    %v3610 = vadd.f32 %v3605, %v3609
    %v3611 = vsub.f32 %v2713, %v763
    %v3612 = vsub.f32 %v2719, %v969
    %v3613 = vsub.f32 %v2725, %v1175
    %v3614 = vsub.f32 %v2776, %v2934
    %v3616 = vrot.slane %v3614, 3
    %v3618 = vsub.f32 %v3611, %v3616
    %v3619 = vand.u32 2147483647, %v3618
    %v3620 = vsub.f32 %v2780, %v2942
    %v3622 = vrot.slane %v3620, 3
    %v3624 = vsub.f32 %v3612, %v3622
    %v3625 = vand.u32 2147483647, %v3624
    %v3626 = vadd.f32 %v3619, %v3625
    %v3627 = vsub.f32 %v2784, %v2951
    %v3629 = vrot.slane %v3627, 3
    %v3631 = vsub.f32 %v3613, %v3629
    %v3632 = vand.u32 2147483647, %v3631
    %v3633 = vadd.f32 %v3626, %v3632
    %v3634 = vadd.f32 %v3592, %v3633
    %v3635 = vadd.f32 %v3613, %v520
    %v3636 = vrcp.pop %v3635
    %v3637 = vadd.f32 %v3611, %v2810
    %v3638 = vmul.f32 %v3637, %v3636
    %v3639 = vmul.f32 %v3638, %v521
    %v3640 = vadd.f32 %v3612, %v2816
    %v3641 = vmul.f32 %v3640, %v3636
    %v3642 = vmul.f32 %v3641, %v2821
    %v3643 = vrot.slane %v2787, 3
    %v3645 = vsub.f32 %v3639, %v3643
    %v3646 = vand.u32 2147483647, %v3645
    %v3647 = vadd.f32 %v3610, %v3646
    %v3648 = vrot.slane %v2791, 3
    %v3650 = vsub.f32 %v3642, %v3648
    %v3651 = vand.u32 2147483647, %v3650
    %v3652 = vadd.f32 %v3647, %v3651
    %v3653 = vsub.f32 %v2737, %v763
    %v3654 = vsub.f32 %v2743, %v969
    %v3655 = vsub.f32 %v2749, %v1175
    %v3656 = vsub.f32 %v2776, %v2982
    %v3658 = vrot.slane %v3656, 4
    %v3660 = vsub.f32 %v3653, %v3658
    %v3661 = vand.u32 2147483647, %v3660
    %v3662 = vsub.f32 %v2780, %v2990
    %v3664 = vrot.slane %v3662, 4
    %v3666 = vsub.f32 %v3654, %v3664
    %v3667 = vand.u32 2147483647, %v3666
    %v3668 = vadd.f32 %v3661, %v3667
    %v3669 = vsub.f32 %v2784, %v2999
    %v3671 = vrot.slane %v3669, 4
    %v3673 = vsub.f32 %v3655, %v3671
    %v3674 = vand.u32 2147483647, %v3673
    %v3675 = vadd.f32 %v3668, %v3674
    %v3676 = vadd.f32 %v3634, %v3675
    %v3677 = vadd.f32 %v3655, %v520
    %v3678 = vrcp.pop %v3677
    %v3679 = vadd.f32 %v3653, %v2810
    %v3680 = vmul.f32 %v3679, %v3678
    %v3681 = vmul.f32 %v3680, %v521
    %v3682 = vadd.f32 %v3654, %v2816
    %v3683 = vmul.f32 %v3682, %v3678
    %v3684 = vmul.f32 %v3683, %v2821
    %v3685 = vrot.slane %v2787, 4
    %v3687 = vsub.f32 %v3681, %v3685
    %v3688 = vand.u32 2147483647, %v3687
    %v3689 = vadd.f32 %v3652, %v3688
    %v3690 = vrot.slane %v2791, 4
    %v3692 = vsub.f32 %v3684, %v3690
    %v3693 = vand.u32 2147483647, %v3692
    %v3694 = vadd.f32 %v3689, %v3693
    %v3695 = vsub.f32 %v2761, %v763
    %v3696 = vsub.f32 %v2767, %v969
    %v3697 = vsub.f32 %v2773, %v1175
    %v3698 = vsub.f32 %v2776, %v3030
    %v3700 = vrot.slane %v3698, 5
    %v3702 = vsub.f32 %v3695, %v3700
    %v3703 = vand.u32 2147483647, %v3702
    %v3704 = vsub.f32 %v2780, %v3038
    %v3706 = vrot.slane %v3704, 5
    %v3708 = vsub.f32 %v3696, %v3706
    %v3709 = vand.u32 2147483647, %v3708
    %v3710 = vadd.f32 %v3703, %v3709
    %v3711 = vsub.f32 %v2784, %v3047
    %v3713 = vrot.slane %v3711, 5
    %v3715 = vsub.f32 %v3697, %v3713
    %v3716 = vand.u32 2147483647, %v3715
    %v3717 = vadd.f32 %v3710, %v3716
    %v3718 = vadd.f32 %v3676, %v3717
    %v3719 = vadd.f32 %v3697, %v520
    %v3720 = vrcp.pop %v3719
    %v3721 = vadd.f32 %v3695, %v2810
    %v3722 = vmul.f32 %v3721, %v3720
    %v3723 = vmul.f32 %v3722, %v521
    %v3724 = vadd.f32 %v3696, %v2816
    %v3725 = vmul.f32 %v3724, %v3720
    %v3726 = vmul.f32 %v3725, %v2821
    %v3727 = vrot.slane %v2787, 5
    %v3729 = vsub.f32 %v3723, %v3727
    %v3730 = vand.u32 2147483647, %v3729
    %v3731 = vadd.f32 %v3694, %v3730
    %v3732 = vrot.slane %v2791, 5
    %v3734 = vsub.f32 %v3726, %v3732
    %v3735 = vand.u32 2147483647, %v3734
    %v3736 = vadd.f32 %v3731, %v3735
    %v3737 = vsel %vm344, %v3718, 0.0
    %3738 = vadd.xlane.f32.xlu0 %v3737
    %v3739 = vpop.xlane.xlu0 %3738
    %v3740 = vrot.slane %v3739, 4
    %v3741 = vadd.f32 %v3739, %v3740
    %v3742 = vrot.slane %v3741, 2
    %v3743 = vadd.f32 %v3741, %v3742
    %v3744 = vrot.slane %v3743, 1
    %v3745 = vadd.f32 %v3743, %v3744
    %s3746 = vtos %v3745
    %s3747 = smul.f32 %s3746, 0.5
    %v3748 = vsel %vm344, %v3736, 0.0
    %3749 = vadd.xlane.f32.xlu0 %v3748
    %v3750 = vpop.xlane.xlu0 %3749
    %v3751 = vrot.slane %v3750, 4
    %v3752 = vadd.f32 %v3750, %v3751
    %v3753 = vrot.slane %v3752, 2
    %v3754 = vadd.f32 %v3752, %v3753
    %v3755 = vrot.slane %v3754, 1
    %v3756 = vadd.f32 %v3754, %v3755
    %s3757 = vtos %v3756
    %s3758 = smul.f32 %s3757, 0.5
    %v3759 = vstv %s212
    %v3760 = vstv %s355
    %v3761 = vstv %s357
    %v3762 = vstv %s428
    %v3763 = vstv %s498
    %v3764 = vstv %s3747
    %v3765 = vstv %s3758
    %vm3766 = vcmask 7168
    %v3767 = vsel %vm3766, %v3759, %v3760
    %v3768 = vsel %vm198, %v3767, %v3761
    %vm3769 = vcmask 23552
    %v3770 = vsel %vm3769, %v3768, %v3762
    %vm3771 = vcmask 31744
    %v3772 = vsel %vm3771, %v3770, %v3763
    %vm3773 = vcmask 39936
    %v3774 = vsel %vm3773, %v3772, %v3764
    %vm3775 = vcmask 48128
    %v3776 = vsel %vm3775, %v3774, %v3765
    %vm3777 = vcmask 56320
    %v3778 = vsel %vm3777, %v3776, 0.0
    %vm3779 = vcmask 57344
    %3780 = vst.msk [vmem:[#allocation2] sm:$0x1] %vm3779, %v3778
    // Predicated region
    $region30: #{tpu_custom_call.1} parent=1 // pred_check
      _
    $region31: #{tpu_custom_call.1} parent=1 // pred_check_branch
      %3782 = sbr.rel (0) target = $region33
    $region32: #{tpu_custom_call.1} parent=1 // pred_region
      %s3784 = ssub.s32 16, 16
      %3785 = vsyncadd [#allocation3], %s3784
      %s3787 = sshll.u32 [#allocation2], 4
      %s3788 = int_to_ptr.vmem [resolvable:$true] %s3787
      %3790 = dma.vmem_to_hbm [thread:$0]  %s3788, 16, %s7, [#allocation3]
    $region33: #{tpu_custom_call.1} parent=1 // pred_fallthru
      _
    // Predicated region
    $region34: #{tpu_custom_call.1} parent=1 // pred_check
      _
    $region35: #{tpu_custom_call.1} parent=1 // pred_check_branch
      %3792 = sbr.rel (0) target = $region37
    $region36: #{tpu_custom_call.1} parent=1 // pred_region
      %3793 = dma.done [#allocation3], 16
    $region37: #{tpu_custom_call.1} parent=1 // pred_fallthru
      _
    %3794 = vsyncpa [#allocation3], 1

</llo_original>
